<compile_context>
chip_gen: v5e
topology: v5e:2x2
jax: 0.10.0
libtpu: 0.0.40
codegen_flags: <defaults>
</compile_context>

<pallas_src>
import functools

import numpy as np
import jax
import jax.numpy as jnp
from jax import lax
from jax.experimental import pallas as pl
from jax.experimental.pallas import tpu as pltpu

MXU_DTYPE = jnp.bfloat16   # MXU operand dtype (accumulation always f32)
ACT_DTYPE = jnp.float32    # output / inter-op value dtype
EPS = 1e-5                 # InstanceNorm eps
NEG_SLOPE = 0.01           # LeakyReLU negative slope
LANES = 128                # every activation / weight tile is 128 lanes wide


# ------------------------------ fused whole-network kernel ------------------------------


def _make_kernel(plan, n_arrays, eps, slope):
    """Kernel body. refs = (x_ref, *weight_refs, out_ref, buf).

    `plan` is a static tuple of ops; every in-kernel tensor is a 2-D lane-dense
    (rows, 128) value.  `buf` is a zero-padded f32 VMEM scratch every conv writes its
    input into, so kernel-row taps become (strided) sublane slices instead of matmuls.
    """

    def kernel(*refs):
        x_ref = refs[0]
        w_refs = refs[1:1 + n_arrays]
        out_ref = refs[1 + n_arrays]
        buf = refs[2 + n_arrays]

        zero_row = jnp.zeros((1, LANES), jnp.float32)

        def conv(src, a_idx, stride, hin, ho, padding):
            # Conv2d(stride, padding):  sum_kh  buf[kh::stride rows] @ A[kh]
            a_ref = w_refs[a_idx]
            n_taps = a_ref.shape[0]
            if padding:                                   # zero halo rows (H padding)
                buf[pl.ds(0, 1), :] = zero_row
                buf[pl.ds(hin + padding, 1), :] = zero_row
            buf[pl.ds(padding, hin), :] = src
            acc = None
            for kh in range(n_taps):
                if stride == 1:
                    rows = buf[pl.ds(kh, ho), :]
                else:
                    rows = buf[pl.ds(kh, ho, stride=stride), :]
                r = jnp.dot(rows.astype(MXU_DTYPE), a_ref[kh],
                            preferred_element_type=jnp.float32)
                acc = r if acc is None else acc + r
            return acc

        def inorm(y, p_idx, gb_idx, act):
            # InstanceNorm2d(affine=True), single-pass stats (biased variance).
            p_ref, gb_ref = w_refs[p_idx], w_refs[gb_idx]
            s1 = jnp.sum(y, axis=0, keepdims=True)
            s2 = jnp.sum(y * y, axis=0, keepdims=True)
            stats = jnp.dot(jnp.concatenate([s1, s2], axis=0), p_ref[...],
                            preferred_element_type=jnp.float32)          # (2, 128)
            mean = stats[0:1, :]
            var = jnp.maximum(stats[1:2, :] - mean * mean, 0.0)
            out = (y - mean) * (lax.rsqrt(var + eps) * gb_ref[0:1, :]) + gb_ref[1:2, :]
            if act:
                out = jnp.where(out >= 0, out, slope * out)
            return out

        regs = {}
        cur = x_ref[0].astype(jnp.float32)
        for step in plan:
            op = step[0]
            if op == "save":
                regs[step[1]] = cur
            elif op == "load":
                cur = regs[step[1]]
            elif op == "add":
                cur = cur + regs[step[1]]
            elif op == "lrelu":
                cur = jnp.where(cur >= 0, cur, slope * cur)
            elif op == "conv":
                _, a_idx, stride, hin, ho, padding = step
                cur = conv(cur, a_idx, stride, hin, ho, padding)
            elif op == "conv_add":                        # cur += conv(regs[src])
                _, a_idx, stride, hin, ho, padding, src = step
                cur = cur + conv(regs[src], a_idx, stride, hin, ho, padding)
            elif op == "upsample":                        # ConvTranspose2d(k == stride)
                _, b_idx, s, hl = step
                b_ref = w_refs[b_idx]
                xb = cur.astype(MXU_DTYPE)
                for a in range(s):
                    t = jnp.dot(xb, b_ref[a], preferred_element_type=jnp.float32)
                    buf[pl.ds(a, hl, stride=s), :] = t    # f32 row interleave, no matmul
                cur = buf[pl.ds(0, s * hl), :]
            elif op == "norm":
                _, p_idx, gb_idx, act = step
                cur = inorm(cur, p_idx, gb_idx, act)
            elif op == "bias_add":                        # seg-head bias (lane tiled)
                cur = cur + w_refs[step[1]][...]
            else:
                raise ValueError(f"unknown plan op {op}")
        out_ref[0] = cur.astype(out_ref.dtype)

    return kernel


def _const_idx(i, *, ndim):
    return (0,) * ndim


# ------------------------------ host-side matrix builders -------------------------------


def _conv_A(w, H, W, stride, padding):
    """Conv2d weight (KH,KW,Cin,Cout) -> A: (KH, W*Cin, Wo*Cout) so that
    Conv2d(stride,padding)(x)[i] == sum_kh x_row[stride*i+kh-padding] @ A[kh],
    with x laid out (H, W*Cin) (W outer, channel inner)."""
    KH, KW, Cin, Cout = (int(d) for d in w.shape)
    Ho = (H + 2 * padding - KH) // stride + 1
    Wo = (W + 2 * padding - KW) // stride + 1
    w_np = np.asarray(w, np.float32)
    A = np.zeros((KH, W * Cin, Wo * Cout), np.float32)
    for kh in range(KH):
        for kw in range(KW):
            for jo in range(Wo):
                j = stride * jo + kw - padding
                if 0 <= j < W:
                    A[kh, j * Cin:(j + 1) * Cin, jo * Cout:(jo + 1) * Cout] += w_np[kh, kw]
    return jnp.asarray(A, MXU_DTYPE), Ho, Wo


def _norm_P(H, W, C):
    """Channel-group averaging matrix (W*C, W*C) with 1/(H*W) folded in."""
    P = np.zeros((W * C, W * C), np.float32)
    inv = 1.0 / float(H * W)
    eye = np.eye(C, dtype=np.float32) * inv
    for j in range(W):
        for jp in range(W):
            P[j * C:(j + 1) * C, jp * C:(jp + 1) * C] = eye
    return jnp.asarray(P)


def _norm_gb(gamma, beta, W):
    g = np.tile(np.asarray(gamma, np.float32), W)
    b = np.tile(np.asarray(beta, np.float32), W)
    return jnp.asarray(np.stack([g, b], 0))               # (2, W*C)


def _transp_B(wt, Wl, s):
    """ConvTranspose2d(k=s, stride=s, bias=False), torch weight (Cin,Cout,s,s):
    output rows with parity a == x @ B[a], x laid out (Hl, Wl*Cin)."""
    Cin, Cout = int(wt.shape[0]), int(wt.shape[1])
    w_np = np.asarray(wt, np.float32)
    B = np.zeros((s, Wl * Cin, s * Wl * Cout), np.float32)
    for a in range(s):
        for b in range(s):
            for j in range(Wl):
                col = s * j + b
                B[a, j * Cin:(j + 1) * Cin, col * Cout:(col + 1) * Cout] = w_np[:, :, a, b]
    return jnp.asarray(B, MXU_DTYPE)


# ------------------------------ raw parameter init --------------------------------------


class _KeyGen:
    def __init__(self, seed):
        self.key = jax.random.PRNGKey(seed)

    def __call__(self):
        self.key, sub = jax.random.split(self.key)
        return sub


def _he(kg, shape, fan_in):
    return jax.random.normal(kg(), shape, jnp.float32) * float(np.sqrt(2.0 / fan_in))


def _cna_params(kg, k, cin, cout):
    return {"w": _he(kg, (k, k, cin, cout), k * k * cin),
            "gamma": jnp.ones((cout,), jnp.float32),
            "beta": jnp.zeros((cout,), jnp.float32)}


def init_raw_params(seed, input_channels, n_stages, features, k, strides, num_classes):
    kg = _KeyGen(seed)
    p = {"stem": _cna_params(kg, k, input_channels, features[0])}
    enc, cin = [], features[0]
    for s in range(n_stages):
        cout = features[s]
        blk = {"conv1": _cna_params(kg, k, cin, cout),
               "conv2": _cna_params(kg, k, cout, cout)}
        if strides[s] != 1 or cin != cout:
            blk["skip"] = {"w": _he(kg, (cin, cout), cin),
                           "gamma": jnp.ones((cout,), jnp.float32),
                           "beta": jnp.zeros((cout,), jnp.float32)}
        enc.append(blk)
        cin = cout
    p["encoder"] = enc
    dec = []
    for s in range(1, n_stages):
        cb, cs, st = features[-s], features[-(s + 1)], strides[-s]
        d = {"transp_w": _he(kg, (cb, cs, st, st), cb),
             "conv1": _cna_params(kg, k, 2 * cs, cs),
             "conv2": _cna_params(kg, k, cs, cs),
             "skip": {"w": _he(kg, (2 * cs, cs), 2 * cs),
                      "gamma": jnp.ones((cs,), jnp.float32),
                      "beta": jnp.zeros((cs,), jnp.float32)}}
        if s == n_stages - 1:                 # deep_supervision=False -> last seg only
            d["seg_w"] = _he(kg, (cs, num_classes), cs)
            d["seg_b"] = jnp.zeros((num_classes,), jnp.float32)
        dec.append(d)
    p["decoder"] = dec
    return p


# ------------------------------ model builder / forward ---------------------------------


class _Bank:
    def __init__(self):
        self.arrays = []
        self._p_cache = {}

    def add(self, arr):
        self.arrays.append(arr)
        return len(self.arrays) - 1

    def norm_p(self, H, W, C):                 # de-duplicate P per (H, W, C) resolution
        key = (H, W, C)
        if key not in self._p_cache:
            self._p_cache[key] = self.add(_norm_P(H, W, C))
        return self._p_cache[key]


def build_residual_unet(seed, *, input_channels, n_stages, features, kernel_size,
                        strides, n_blocks_per_stage, n_conv_per_stage_decoder,
                        num_classes, H, W):
    # TODO(synk): only 1 block per encoder/decoder stage is emitted (this config); more
    #             blocks would simply repeat the fused BasicBlockD sub-plan.
    assert all(b == 1 for b in n_blocks_per_stage)
    assert all(b == 1 for b in n_conv_per_stage_decoder)
    k = kernel_size
    pad = (k - 1) // 2
    assert LANES % W == 0, "lane padding below assumes W divides 128"
    cin_pad = max(input_channels, LANES // W)   # lane-dense stem input   (4 -> 8)
    ncls_pad = max(num_classes, LANES // W)     # lane-dense seg output   (3 -> 8)

    raw = init_raw_params(seed, input_channels, n_stages, features, kernel_size,
                          strides, num_classes)

    bank = _Bank()
    plan = []

    def cna(p, hc, wc, stride, padding, act, w_override=None):
        """ConvDropoutNormReLU (dropout disabled): conv -> InstanceNorm -> optional act."""
        w = p["w"] if w_override is None else w_override
        A, ho, wo = _conv_A(w, hc, wc, stride, padding)
        plan.append(("conv", bank.add(A), stride, hc, ho, padding))
        plan.append(("norm", bank.norm_p(ho, wo, int(w.shape[-1])),
                     bank.add(_norm_gb(p["gamma"], p["beta"], wo)), act))
        return ho, wo

    # ----- encoder: stem + 3 BasicBlockD stages -----
    stem_w = jnp.zeros((k, k, cin_pad, features[0]), jnp.float32)
    stem_w = stem_w.at[:, :, :input_channels, :].set(raw["stem"]["w"])
    h, w_sp = cna(raw["stem"], H, W, 1, pad, True, w_override=stem_w)

    enc_meta = []                                # (reg_name, H, W, C) per stage output
    for s in range(n_stages):
        blk, st = raw["encoder"][s], strides[s]
        stage_in = f"stage_in{s}"
        plan.append(("save", stage_in))
        ho, wo = cna(blk["conv1"], h, w_sp, st, pad, True)
        cna(blk["conv2"], ho, wo, 1, pad, False)
        if "skip" in blk:
            # ResNet-D skip: AvgPool(st)+1x1conv+norm folded into one st x st / stride-st
            # conv (exact: H and W are divisible by the stride in this config).
            plan.append(("save", f"main{s}"))
            plan.append(("load", stage_in))
            wsk = blk["skip"]["w"]
            if st > 1:
                w_eff = (jnp.broadcast_to(wsk[None, None], (st, st) + wsk.shape)
                         / float(st * st))
            else:
                w_eff = wsk[None, None]
            cna(blk["skip"], h, w_sp, st, 0, False, w_override=w_eff)
            plan.append(("add", f"main{s}"))
        else:
            plan.append(("add", stage_in))       # identity skip
        plan.append(("lrelu",))
        name = f"enc{s}"
        plan.append(("save", name))
        enc_meta.append((name, ho, wo, features[s]))
        h, w_sp = ho, wo

    # ----- decoder: transpconv + channel-concat split + BasicBlockD per stage -----
    lh, lw = enc_meta[-1][1], enc_meta[-1][2]
    for s in range(1, n_stages):
        d, st = raw["decoder"][s - 1], strides[-s]
        skip_name, sh, sw, sc = enc_meta[-(s + 1)]
        plan.append(("upsample", bank.add(_transp_B(d["transp_w"], lw, st)), st, lh))
        plan.append(("save", "u"))
        # conv over cat([u, skip], ch) == conv(u, w[:,:,:sc]) + conv(skip, w[:,:,sc:])
        w1 = d["conv1"]["w"]
        A_u, ho, wo = _conv_A(w1[:, :, :sc, :], sh, sw, 1, pad)
        A_s, _, _ = _conv_A(w1[:, :, sc:, :], sh, sw, 1, pad)
        plan.append(("conv", bank.add(A_u), 1, sh, ho, pad))
        plan.append(("conv_add", bank.add(A_s), 1, sh, ho, pad, skip_name))
        plan.append(("norm", bank.norm_p(ho, wo, sc),
                     bank.add(_norm_gb(d["conv1"]["gamma"], d["conv1"]["beta"], wo)), True))
        cna(d["conv2"], ho, wo, 1, pad, False)
        plan.append(("save", "main_dec"))
        # skip projection: 1x1 conv + norm over cat([u, skip]) (same channel split)
        plan.append(("load", "u"))
        wsk = d["skip"]["w"]
        Ak_u, _, _ = _conv_A(wsk[:sc, :][None, None], sh, sw, 1, 0)
        Ak_s, _, _ = _conv_A(wsk[sc:, :][None, None], sh, sw, 1, 0)
        plan.append(("conv", bank.add(Ak_u), 1, sh, sh, 0))
        plan.append(("conv_add", bank.add(Ak_s), 1, sh, sh, 0, skip_name))
        plan.append(("norm", bank.norm_p(sh, sw, sc),
                     bank.add(_norm_gb(d["skip"]["gamma"], d["skip"]["beta"], sw)), False))
        plan.append(("add", "main_dec"))
        plan.append(("lrelu",))
        lh, lw = sh, sw

    # seg head (deep_supervision=False -> last stage only); classes padded 3 -> 8 so the
    # kernel output block stays lane-dense (unmasked vst); padding sliced off in XLA.
    d_last = raw["decoder"][-1]
    seg_w = jnp.zeros((features[0], ncls_pad), jnp.float32)
    seg_w = seg_w.at[:, :num_classes].set(d_last["seg_w"])
    A_seg, _, _ = _conv_A(seg_w[None, None], H, W, 1, 0)
    plan.append(("conv", bank.add(A_seg), 1, H, H, 0))
    seg_b = np.zeros((ncls_pad,), np.float32)
    seg_b[:num_classes] = np.asarray(d_last["seg_b"], np.float32)
    plan.append(("bias_add", bank.add(jnp.asarray(np.tile(seg_b, W)[None, :]))))

    arrays = bank.arrays
    for a in arrays:
        assert int(a.shape[-1]) == LANES, a.shape      # everything stays lane-dense

    n_arrays = len(arrays)
    kernel = _make_kernel(tuple(plan), n_arrays, EPS, NEG_SLOPE)
    buf_rows = H + 2 * pad

    def forward(weights, x_nchw):
        n = int(x_nchw.shape[0])
        # NCHW (PyTorch) -> lane-dense (N, H, W*Cpad) with zero channel padding.
        x = jnp.transpose(x_nchw, (0, 2, 3, 1))
        x = jnp.pad(x, ((0, 0), (0, 0), (0, 0), (0, cin_pad - input_channels)))
        x = x.reshape(n, H, W * cin_pad).astype(ACT_DTYPE)

        in_specs = [pl.BlockSpec((1, H, W * cin_pad), lambda i: (i, 0, 0))]
        in_specs += [pl.BlockSpec(tuple(int(d) for d in a.shape),
                                  functools.partial(_const_idx, ndim=a.ndim))
                     for a in weights]
        out = pl.pallas_call(
            kernel,
            grid=(n,),
            in_specs=in_specs,
            out_specs=pl.BlockSpec((1, H, W * ncls_pad), lambda i: (i, 0, 0)),
            out_shape=jax.ShapeDtypeStruct((n, H, W * ncls_pad), ACT_DTYPE),
            scratch_shapes=[pltpu.VMEM((buf_rows, LANES), jnp.float32)],
            compiler_params=pltpu.CompilerParams(
                dimension_semantics=("parallel",),
                vmem_limit_bytes=32 * 1024 * 1024),
        )(x, *weights)
        logits = out.reshape(n, H, W, ncls_pad)[..., :num_classes]
        return jnp.transpose(logits, (0, 3, 1, 2))          # NCHW logits

    return jax.jit(forward), arrays


# ------------------------------ main -----------------------------------------------------

if __name__ == "__main__":
    N, C, H, W = 2, 4, 16, 16
    features = [8, 16, 32]
    strides = [1, 2, 2]
    num_classes = 3

    fwd, weights = build_residual_unet(
        seed=0, input_channels=C, n_stages=3, features=features, kernel_size=3,
        strides=strides, n_blocks_per_stage=[1, 1, 1], n_conv_per_stage_decoder=[1, 1],
        num_classes=num_classes, H=H, W=W)

    x = jax.random.normal(jax.random.PRNGKey(0), (N, C, H, W), jnp.float32)
    out = jax.block_until_ready(fwd(weights, x))

    assert out.shape == (N, num_classes, H, W), out.shape
    assert bool(jnp.isfinite(out).all())
    print("KERNEL_OK")
</pallas_src>

<mosaic_0001>
module attributes {stable_mosaic.version = 11 : i64} {
  func.func @kernel(%arg0: i32, %arg1: memref<1x16x128xf32, #tpu.memory_space<vmem>>, %arg2: memref<3x128x128xbf16, #tpu.memory_space<vmem>>, %arg3: memref<128x128xf32, #tpu.memory_space<vmem>>, %arg4: memref<2x128xf32, #tpu.memory_space<vmem>>, %arg5: memref<3x128x128xbf16, #tpu.memory_space<vmem>>, %arg6: memref<2x128xf32, #tpu.memory_space<vmem>>, %arg7: memref<3x128x128xbf16, #tpu.memory_space<vmem>>, %arg8: memref<2x128xf32, #tpu.memory_space<vmem>>, %arg9: memref<3x128x128xbf16, #tpu.memory_space<vmem>>, %arg10: memref<128x128xf32, #tpu.memory_space<vmem>>, %arg11: memref<2x128xf32, #tpu.memory_space<vmem>>, %arg12: memref<3x128x128xbf16, #tpu.memory_space<vmem>>, %arg13: memref<2x128xf32, #tpu.memory_space<vmem>>, %arg14: memref<2x128x128xbf16, #tpu.memory_space<vmem>>, %arg15: memref<2x128xf32, #tpu.memory_space<vmem>>, %arg16: memref<3x128x128xbf16, #tpu.memory_space<vmem>>, %arg17: memref<128x128xf32, #tpu.memory_space<vmem>>, %arg18: memref<2x128xf32, #tpu.memory_space<vmem>>, %arg19: memref<3x128x128xbf16, #tpu.memory_space<vmem>>, %arg20: memref<2x128xf32, #tpu.memory_space<vmem>>, %arg21: memref<2x128x128xbf16, #tpu.memory_space<vmem>>, %arg22: memref<2x128xf32, #tpu.memory_space<vmem>>, %arg23: memref<2x128x128xbf16, #tpu.memory_space<vmem>>, %arg24: memref<3x128x128xbf16, #tpu.memory_space<vmem>>, %arg25: memref<3x128x128xbf16, #tpu.memory_space<vmem>>, %arg26: memref<2x128xf32, #tpu.memory_space<vmem>>, %arg27: memref<3x128x128xbf16, #tpu.memory_space<vmem>>, %arg28: memref<2x128xf32, #tpu.memory_space<vmem>>, %arg29: memref<1x128x128xbf16, #tpu.memory_space<vmem>>, %arg30: memref<1x128x128xbf16, #tpu.memory_space<vmem>>, %arg31: memref<2x128xf32, #tpu.memory_space<vmem>>, %arg32: memref<2x128x128xbf16, #tpu.memory_space<vmem>>, %arg33: memref<3x128x128xbf16, #tpu.memory_space<vmem>>, %arg34: memref<3x128x128xbf16, #tpu.memory_space<vmem>>, %arg35: memref<2x128xf32, #tpu.memory_space<vmem>>, %arg36: memref<3x128x128xbf16, #tpu.memory_space<vmem>>, %arg37: memref<2x128xf32, #tpu.memory_space<vmem>>, %arg38: memref<1x128x128xbf16, #tpu.memory_space<vmem>>, %arg39: memref<1x128x128xbf16, #tpu.memory_space<vmem>>, %arg40: memref<2x128xf32, #tpu.memory_space<vmem>>, %arg41: memref<1x128x128xbf16, #tpu.memory_space<vmem>>, %arg42: memref<1x128xf32, #tpu.memory_space<vmem>>, %arg43: memref<1x16x128xf32, #tpu.memory_space<vmem>>, %arg44: memref<18x128xf32, #tpu.memory_space<vmem>>) attributes {dimension_semantics = [#tpu.dimension_semantics<parallel>], iteration_bounds = array<i64: 2>, scalar_prefetch = 0 : i64, scratch_operands = 1 : i64, tpu.core_type = #tpu.core_type<tc>, window_params = [{transform_indices = @transform_0, window_bounds = array<i64: 1, 16, 128>}, {pipeline_mode = #tpu.pipeline_mode<synchronous>, transform_indices = @transform_1, window_bounds = array<i64: 3, 128, 128>}, {pipeline_mode = #tpu.pipeline_mode<synchronous>, transform_indices = @transform_2, window_bounds = array<i64: 128, 128>}, {pipeline_mode = #tpu.pipeline_mode<synchronous>, transform_indices = @transform_3, window_bounds = array<i64: 2, 128>}, {pipeline_mode = #tpu.pipeline_mode<synchronous>, transform_indices = @transform_4, window_bounds = array<i64: 3, 128, 128>}, {pipeline_mode = #tpu.pipeline_mode<synchronous>, transform_indices = @transform_5, window_bounds = array<i64: 2, 128>}, {pipeline_mode = #tpu.pipeline_mode<synchronous>, transform_indices = @transform_6, window_bounds = array<i64: 3, 128, 128>}, {pipeline_mode = #tpu.pipeline_mode<synchronous>, transform_indices = @transform_7, window_bounds = array<i64: 2, 128>}, {pipeline_mode = #tpu.pipeline_mode<synchronous>, transform_indices = @transform_8, window_bounds = array<i64: 3, 128, 128>}, {pipeline_mode = #tpu.pipeline_mode<synchronous>, transform_indices = @transform_9, window_bounds = array<i64: 128, 128>}, {pipeline_mode = #tpu.pipeline_mode<synchronous>, transform_indices = @transform_10, window_bounds = array<i64: 2, 128>}, {pipeline_mode = #tpu.pipeline_mode<synchronous>, transform_indices = @transform_11, window_bounds = array<i64: 3, 128, 128>}, {pipeline_mode = #tpu.pipeline_mode<synchronous>, transform_indices = @transform_12, window_bounds = array<i64: 2, 128>}, {pipeline_mode = #tpu.pipeline_mode<synchronous>, transform_indices = @transform_13, window_bounds = array<i64: 2, 128, 128>}, {pipeline_mode = #tpu.pipeline_mode<synchronous>, transform_indices = @transform_14, window_bounds = array<i64: 2, 128>}, {pipeline_mode = #tpu.pipeline_mode<synchronous>, transform_indices = @transform_15, window_bounds = array<i64: 3, 128, 128>}, {pipeline_mode = #tpu.pipeline_mode<synchronous>, transform_indices = @transform_16, window_bounds = array<i64: 128, 128>}, {pipeline_mode = #tpu.pipeline_mode<synchronous>, transform_indices = @transform_17, window_bounds = array<i64: 2, 128>}, {pipeline_mode = #tpu.pipeline_mode<synchronous>, transform_indices = @transform_18, window_bounds = array<i64: 3, 128, 128>}, {pipeline_mode = #tpu.pipeline_mode<synchronous>, transform_indices = @transform_19, window_bounds = array<i64: 2, 128>}, {pipeline_mode = #tpu.pipeline_mode<synchronous>, transform_indices = @transform_20, window_bounds = array<i64: 2, 128, 128>}, {pipeline_mode = #tpu.pipeline_mode<synchronous>, transform_indices = @transform_21, window_bounds = array<i64: 2, 128>}, {pipeline_mode = #tpu.pipeline_mode<synchronous>, transform_indices = @transform_22, window_bounds = array<i64: 2, 128, 128>}, {pipeline_mode = #tpu.pipeline_mode<synchronous>, transform_indices = @transform_23, window_bounds = array<i64: 3, 128, 128>}, {pipeline_mode = #tpu.pipeline_mode<synchronous>, transform_indices = @transform_24, window_bounds = array<i64: 3, 128, 128>}, {pipeline_mode = #tpu.pipeline_mode<synchronous>, transform_indices = @transform_25, window_bounds = array<i64: 2, 128>}, {pipeline_mode = #tpu.pipeline_mode<synchronous>, transform_indices = @transform_26, window_bounds = array<i64: 3, 128, 128>}, {pipeline_mode = #tpu.pipeline_mode<synchronous>, transform_indices = @transform_27, window_bounds = array<i64: 2, 128>}, {pipeline_mode = #tpu.pipeline_mode<synchronous>, transform_indices = @transform_28, window_bounds = array<i64: 1, 128, 128>}, {pipeline_mode = #tpu.pipeline_mode<synchronous>, transform_indices = @transform_29, window_bounds = array<i64: 1, 128, 128>}, {pipeline_mode = #tpu.pipeline_mode<synchronous>, transform_indices = @transform_30, window_bounds = array<i64: 2, 128>}, {pipeline_mode = #tpu.pipeline_mode<synchronous>, transform_indices = @transform_31, window_bounds = array<i64: 2, 128, 128>}, {pipeline_mode = #tpu.pipeline_mode<synchronous>, transform_indices = @transform_32, window_bounds = array<i64: 3, 128, 128>}, {pipeline_mode = #tpu.pipeline_mode<synchronous>, transform_indices = @transform_33, window_bounds = array<i64: 3, 128, 128>}, {pipeline_mode = #tpu.pipeline_mode<synchronous>, transform_indices = @transform_34, window_bounds = array<i64: 2, 128>}, {pipeline_mode = #tpu.pipeline_mode<synchronous>, transform_indices = @transform_35, window_bounds = array<i64: 3, 128, 128>}, {pipeline_mode = #tpu.pipeline_mode<synchronous>, transform_indices = @transform_36, window_bounds = array<i64: 2, 128>}, {pipeline_mode = #tpu.pipeline_mode<synchronous>, transform_indices = @transform_37, window_bounds = array<i64: 1, 128, 128>}, {pipeline_mode = #tpu.pipeline_mode<synchronous>, transform_indices = @transform_38, window_bounds = array<i64: 1, 128, 128>}, {pipeline_mode = #tpu.pipeline_mode<synchronous>, transform_indices = @transform_39, window_bounds = array<i64: 2, 128>}, {pipeline_mode = #tpu.pipeline_mode<synchronous>, transform_indices = @transform_40, window_bounds = array<i64: 1, 128, 128>}, {pipeline_mode = #tpu.pipeline_mode<synchronous>, transform_indices = @transform_41, window_bounds = array<i64: 1, 128>}, {transform_indices = @transform_42, window_bounds = array<i64: 1, 16, 128>}]} {
    %cst = arith.constant 0.000000e+00 : f32
    %0 = vector.broadcast %cst : f32 to vector<1x128xf32>
    %c0 = arith.constant 0 : index
    %c0_0 = arith.constant 0 : index
    %c0_1 = arith.constant 0 : index
    %1 = vector.load %arg1[%c0, %c0_0, %c0_1] : memref<1x16x128xf32, #tpu.memory_space<vmem>>, vector<1x16x128xf32>
    %2 = vector.shape_cast %1 : vector<1x16x128xf32> to vector<16x128xf32>
    %c0_2 = arith.constant 0 : index
    %c0_3 = arith.constant 0 : index
    %3 = vector.load %arg44[%c0_2, %c0_3] : memref<18x128xf32, #tpu.memory_space<vmem>>, vector<1x128xf32>
    tpu.vector_store %arg44[%c0_2, %c0_3], %0 {strides = array<i32>} : memref<18x128xf32, #tpu.memory_space<vmem>>, vector<1x128xf32>,
    %c17 = arith.constant 17 : index
    %c0_4 = arith.constant 0 : index
    %4 = vector.load %arg44[%c17, %c0_4] : memref<18x128xf32, #tpu.memory_space<vmem>>, vector<1x128xf32>
    tpu.vector_store %arg44[%c17, %c0_4], %0 {strides = array<i32>} : memref<18x128xf32, #tpu.memory_space<vmem>>, vector<1x128xf32>,
    %c1 = arith.constant 1 : index
    %c0_5 = arith.constant 0 : index
    %5 = vector.load %arg44[%c1, %c0_5] : memref<18x128xf32, #tpu.memory_space<vmem>>, vector<16x128xf32>
    tpu.vector_store %arg44[%c1, %c0_5], %2 {strides = array<i32>} : memref<18x128xf32, #tpu.memory_space<vmem>>, vector<16x128xf32>,
    %c0_6 = arith.constant 0 : index
    %c0_7 = arith.constant 0 : index
    %6 = vector.load %arg44[%c0_6, %c0_7] : memref<18x128xf32, #tpu.memory_space<vmem>>, vector<16x128xf32>
    %7 = arith.truncf %6 : vector<16x128xf32> to vector<16x128xbf16>
    %c0_8 = arith.constant 0 : index
    %c0_9 = arith.constant 0 : index
    %c0_10 = arith.constant 0 : index
    %8 = vector.load %arg2[%c0_8, %c0_9, %c0_10] : memref<3x128x128xbf16, #tpu.memory_space<vmem>>, vector<1x128x128xbf16>
    %9 = vector.shape_cast %8 : vector<1x128x128xbf16> to vector<128x128xbf16>
    %cst_11 = arith.constant dense<0.000000e+00> : vector<16x128xf32>
    %10 = tpu.matmul %7, %9, %cst_11 {dimension_numbers = #tpu.dot_dimension_numbers<[1], [0], [0], [1], [0, 0, 1, 1], [], []>} : vector<16x128xbf16>, vector<128x128xbf16>, vector<16x128xf32> -> vector<16x128xf32>
    %c1_12 = arith.constant 1 : index
    %c0_13 = arith.constant 0 : index
    %11 = vector.load %arg44[%c1_12, %c0_13] : memref<18x128xf32, #tpu.memory_space<vmem>>, vector<16x128xf32>
    %12 = arith.truncf %11 : vector<16x128xf32> to vector<16x128xbf16>
    %c1_14 = arith.constant 1 : index
    %c0_15 = arith.constant 0 : index
    %c0_16 = arith.constant 0 : index
    %13 = vector.load %arg2[%c1_14, %c0_15, %c0_16] : memref<3x128x128xbf16, #tpu.memory_space<vmem>>, vector<1x128x128xbf16>
    %14 = vector.shape_cast %13 : vector<1x128x128xbf16> to vector<128x128xbf16>
    %cst_17 = arith.constant dense<0.000000e+00> : vector<16x128xf32>
    %15 = tpu.matmul %12, %14, %cst_17 {dimension_numbers = #tpu.dot_dimension_numbers<[1], [0], [0], [1], [0, 0, 1, 1], [], []>} : vector<16x128xbf16>, vector<128x128xbf16>, vector<16x128xf32> -> vector<16x128xf32>
    %16 = arith.addf %10, %15 : vector<16x128xf32>
    %c2 = arith.constant 2 : index
    %c0_18 = arith.constant 0 : index
    %17 = vector.load %arg44[%c2, %c0_18] : memref<18x128xf32, #tpu.memory_space<vmem>>, vector<16x128xf32>
    %18 = arith.truncf %17 : vector<16x128xf32> to vector<16x128xbf16>
    %c2_19 = arith.constant 2 : index
    %c0_20 = arith.constant 0 : index
    %c0_21 = arith.constant 0 : index
    %19 = vector.load %arg2[%c2_19, %c0_20, %c0_21] : memref<3x128x128xbf16, #tpu.memory_space<vmem>>, vector<1x128x128xbf16>
    %20 = vector.shape_cast %19 : vector<1x128x128xbf16> to vector<128x128xbf16>
    %cst_22 = arith.constant dense<0.000000e+00> : vector<16x128xf32>
    %21 = tpu.matmul %18, %20, %cst_22 {dimension_numbers = #tpu.dot_dimension_numbers<[1], [0], [0], [1], [0, 0, 1, 1], [], []>} : vector<16x128xbf16>, vector<128x128xbf16>, vector<16x128xf32> -> vector<16x128xf32>
    %22 = arith.addf %16, %21 : vector<16x128xf32>
    %cst_23 = arith.constant dense<0.000000e+00> : vector<128xf32>
    %23 = vector.multi_reduction <add>, %22, %cst_23 [0] : vector<16x128xf32> to vector<128xf32>
    %24 = vector.shape_cast %23 : vector<128xf32> to vector<1x128xf32>
    %25 = arith.mulf %22, %22 : vector<16x128xf32>
    %cst_24 = arith.constant dense<0.000000e+00> : vector<128xf32>
    %26 = vector.multi_reduction <add>, %25, %cst_24 [0] : vector<16x128xf32> to vector<128xf32>
    %27 = vector.shape_cast %26 : vector<128xf32> to vector<1x128xf32>
    %28 = tpu.concatenate %24, %27 in 0 : vector<1x128xf32>, vector<1x128xf32> -> vector<2x128xf32>
    %c0_25 = arith.constant 0 : index
    %c0_26 = arith.constant 0 : index
    %29 = vector.load %arg3[%c0_25, %c0_26] : memref<128x128xf32, #tpu.memory_space<vmem>>, vector<128x128xf32>
    %cst_27 = arith.constant dense<0.000000e+00> : vector<2x128xf32>
    %30 = tpu.matmul %28, %29, %cst_27 {dimension_numbers = #tpu.dot_dimension_numbers<[1], [0], [0], [1], [0, 0, 1, 1], [], []>} : vector<2x128xf32>, vector<128x128xf32>, vector<2x128xf32> -> vector<2x128xf32>
    %31 = vector.extract_strided_slice %30 {offsets = [0, 0], sizes = [1, 128], strides = [1, 1]} : vector<2x128xf32> to vector<1x128xf32>
    %32 = vector.extract_strided_slice %30 {offsets = [1, 0], sizes = [1, 128], strides = [1, 1]} : vector<2x128xf32> to vector<1x128xf32>
    %33 = arith.mulf %31, %31 : vector<1x128xf32>
    %34 = arith.subf %32, %33 : vector<1x128xf32>
    %cst_28 = arith.constant 0.000000e+00 : f32
    %35 = vector.broadcast %cst_28 : f32 to vector<1x128xf32>
    %36 = arith.maximumf %34, %35 : vector<1x128xf32>
    %37 = vector.broadcast %31 : vector<1x128xf32> to vector<16x128xf32>
    %38 = arith.subf %22, %37 : vector<16x128xf32>
    %cst_29 = arith.constant 9.99999974E-6 : f32
    %39 = vector.broadcast %cst_29 : f32 to vector<1x128xf32>
    %40 = arith.addf %36, %39 : vector<1x128xf32>
    %41 = math.rsqrt %40 : vector<1x128xf32>
    %c0_30 = arith.constant 0 : index
    %c0_31 = arith.constant 0 : index
    %42 = vector.load %arg4[%c0_30, %c0_31] : memref<2x128xf32, #tpu.memory_space<vmem>>, vector<1x128xf32>
    %43 = arith.mulf %41, %42 : vector<1x128xf32>
    %44 = vector.broadcast %43 : vector<1x128xf32> to vector<16x128xf32>
    %45 = arith.mulf %38, %44 : vector<16x128xf32>
    %c1_32 = arith.constant 1 : index
    %c0_33 = arith.constant 0 : index
    %46 = vector.load %arg4[%c1_32, %c0_33] : memref<2x128xf32, #tpu.memory_space<vmem>>, vector<1x128xf32>
    %47 = vector.broadcast %46 : vector<1x128xf32> to vector<16x128xf32>
    %48 = arith.addf %45, %47 : vector<16x128xf32>
    %cst_34 = arith.constant 0.000000e+00 : f32
    %49 = vector.broadcast %cst_34 : f32 to vector<16x128xf32>
    %50 = arith.cmpf oge, %48, %49 : vector<16x128xf32>
    %cst_35 = arith.constant 0.00999999977 : f32
    %51 = vector.broadcast %cst_35 : f32 to vector<16x128xf32>
    %52 = arith.mulf %51, %48 : vector<16x128xf32>
    %53 = arith.select %50, %48, %52 : vector<16x128xi1>, vector<16x128xf32>
    %c0_36 = arith.constant 0 : index
    %c0_37 = arith.constant 0 : index
    %54 = vector.load %arg44[%c0_36, %c0_37] : memref<18x128xf32, #tpu.memory_space<vmem>>, vector<1x128xf32>
    tpu.vector_store %arg44[%c0_36, %c0_37], %0 {strides = array<i32>} : memref<18x128xf32, #tpu.memory_space<vmem>>, vector<1x128xf32>,
    %c17_38 = arith.constant 17 : index
    %c0_39 = arith.constant 0 : index
    %55 = vector.load %arg44[%c17_38, %c0_39] : memref<18x128xf32, #tpu.memory_space<vmem>>, vector<1x128xf32>
    tpu.vector_store %arg44[%c17_38, %c0_39], %0 {strides = array<i32>} : memref<18x128xf32, #tpu.memory_space<vmem>>, vector<1x128xf32>,
    %c1_40 = arith.constant 1 : index
    %c0_41 = arith.constant 0 : index
    %56 = vector.load %arg44[%c1_40, %c0_41] : memref<18x128xf32, #tpu.memory_space<vmem>>, vector<16x128xf32>
    tpu.vector_store %arg44[%c1_40, %c0_41], %53 {strides = array<i32>} : memref<18x128xf32, #tpu.memory_space<vmem>>, vector<16x128xf32>,
    %c0_42 = arith.constant 0 : index
    %c0_43 = arith.constant 0 : index
    %57 = vector.load %arg44[%c0_42, %c0_43] : memref<18x128xf32, #tpu.memory_space<vmem>>, vector<16x128xf32>
    %58 = arith.truncf %57 : vector<16x128xf32> to vector<16x128xbf16>
    %c0_44 = arith.constant 0 : index
    %c0_45 = arith.constant 0 : index
    %c0_46 = arith.constant 0 : index
    %59 = vector.load %arg5[%c0_44, %c0_45, %c0_46] : memref<3x128x128xbf16, #tpu.memory_space<vmem>>, vector<1x128x128xbf16>
    %60 = vector.shape_cast %59 : vector<1x128x128xbf16> to vector<128x128xbf16>
    %cst_47 = arith.constant dense<0.000000e+00> : vector<16x128xf32>
    %61 = tpu.matmul %58, %60, %cst_47 {dimension_numbers = #tpu.dot_dimension_numbers<[1], [0], [0], [1], [0, 0, 1, 1], [], []>} : vector<16x128xbf16>, vector<128x128xbf16>, vector<16x128xf32> -> vector<16x128xf32>
    %c1_48 = arith.constant 1 : index
    %c0_49 = arith.constant 0 : index
    %62 = vector.load %arg44[%c1_48, %c0_49] : memref<18x128xf32, #tpu.memory_space<vmem>>, vector<16x128xf32>
    %63 = arith.truncf %62 : vector<16x128xf32> to vector<16x128xbf16>
    %c1_50 = arith.constant 1 : index
    %c0_51 = arith.constant 0 : index
    %c0_52 = arith.constant 0 : index
    %64 = vector.load %arg5[%c1_50, %c0_51, %c0_52] : memref<3x128x128xbf16, #tpu.memory_space<vmem>>, vector<1x128x128xbf16>
    %65 = vector.shape_cast %64 : vector<1x128x128xbf16> to vector<128x128xbf16>
    %cst_53 = arith.constant dense<0.000000e+00> : vector<16x128xf32>
    %66 = tpu.matmul %63, %65, %cst_53 {dimension_numbers = #tpu.dot_dimension_numbers<[1], [0], [0], [1], [0, 0, 1, 1], [], []>} : vector<16x128xbf16>, vector<128x128xbf16>, vector<16x128xf32> -> vector<16x128xf32>
    %67 = arith.addf %61, %66 : vector<16x128xf32>
    %c2_54 = arith.constant 2 : index
    %c0_55 = arith.constant 0 : index
    %68 = vector.load %arg44[%c2_54, %c0_55] : memref<18x128xf32, #tpu.memory_space<vmem>>, vector<16x128xf32>
    %69 = arith.truncf %68 : vector<16x128xf32> to vector<16x128xbf16>
    %c2_56 = arith.constant 2 : index
    %c0_57 = arith.constant 0 : index
    %c0_58 = arith.constant 0 : index
    %70 = vector.load %arg5[%c2_56, %c0_57, %c0_58] : memref<3x128x128xbf16, #tpu.memory_space<vmem>>, vector<1x128x128xbf16>
    %71 = vector.shape_cast %70 : vector<1x128x128xbf16> to vector<128x128xbf16>
    %cst_59 = arith.constant dense<0.000000e+00> : vector<16x128xf32>
    %72 = tpu.matmul %69, %71, %cst_59 {dimension_numbers = #tpu.dot_dimension_numbers<[1], [0], [0], [1], [0, 0, 1, 1], [], []>} : vector<16x128xbf16>, vector<128x128xbf16>, vector<16x128xf32> -> vector<16x128xf32>
    %73 = arith.addf %67, %72 : vector<16x128xf32>
    %cst_60 = arith.constant dense<0.000000e+00> : vector<128xf32>
    %74 = vector.multi_reduction <add>, %73, %cst_60 [0] : vector<16x128xf32> to vector<128xf32>
    %75 = vector.shape_cast %74 : vector<128xf32> to vector<1x128xf32>
    %76 = arith.mulf %73, %73 : vector<16x128xf32>
    %cst_61 = arith.constant dense<0.000000e+00> : vector<128xf32>
    %77 = vector.multi_reduction <add>, %76, %cst_61 [0] : vector<16x128xf32> to vector<128xf32>
    %78 = vector.shape_cast %77 : vector<128xf32> to vector<1x128xf32>
    %79 = tpu.concatenate %75, %78 in 0 : vector<1x128xf32>, vector<1x128xf32> -> vector<2x128xf32>
    %c0_62 = arith.constant 0 : index
    %c0_63 = arith.constant 0 : index
    %80 = vector.load %arg3[%c0_62, %c0_63] : memref<128x128xf32, #tpu.memory_space<vmem>>, vector<128x128xf32>
    %cst_64 = arith.constant dense<0.000000e+00> : vector<2x128xf32>
    %81 = tpu.matmul %79, %80, %cst_64 {dimension_numbers = #tpu.dot_dimension_numbers<[1], [0], [0], [1], [0, 0, 1, 1], [], []>} : vector<2x128xf32>, vector<128x128xf32>, vector<2x128xf32> -> vector<2x128xf32>
    %82 = vector.extract_strided_slice %81 {offsets = [0, 0], sizes = [1, 128], strides = [1, 1]} : vector<2x128xf32> to vector<1x128xf32>
    %83 = vector.extract_strided_slice %81 {offsets = [1, 0], sizes = [1, 128], strides = [1, 1]} : vector<2x128xf32> to vector<1x128xf32>
    %84 = arith.mulf %82, %82 : vector<1x128xf32>
    %85 = arith.subf %83, %84 : vector<1x128xf32>
    %cst_65 = arith.constant 0.000000e+00 : f32
    %86 = vector.broadcast %cst_65 : f32 to vector<1x128xf32>
    %87 = arith.maximumf %85, %86 : vector<1x128xf32>
    %88 = vector.broadcast %82 : vector<1x128xf32> to vector<16x128xf32>
    %89 = arith.subf %73, %88 : vector<16x128xf32>
    %cst_66 = arith.constant 9.99999974E-6 : f32
    %90 = vector.broadcast %cst_66 : f32 to vector<1x128xf32>
    %91 = arith.addf %87, %90 : vector<1x128xf32>
    %92 = math.rsqrt %91 : vector<1x128xf32>
    %c0_67 = arith.constant 0 : index
    %c0_68 = arith.constant 0 : index
    %93 = vector.load %arg6[%c0_67, %c0_68] : memref<2x128xf32, #tpu.memory_space<vmem>>, vector<1x128xf32>
    %94 = arith.mulf %92, %93 : vector<1x128xf32>
    %95 = vector.broadcast %94 : vector<1x128xf32> to vector<16x128xf32>
    %96 = arith.mulf %89, %95 : vector<16x128xf32>
    %c1_69 = arith.constant 1 : index
    %c0_70 = arith.constant 0 : index
    %97 = vector.load %arg6[%c1_69, %c0_70] : memref<2x128xf32, #tpu.memory_space<vmem>>, vector<1x128xf32>
    %98 = vector.broadcast %97 : vector<1x128xf32> to vector<16x128xf32>
    %99 = arith.addf %96, %98 : vector<16x128xf32>
    %cst_71 = arith.constant 0.000000e+00 : f32
    %100 = vector.broadcast %cst_71 : f32 to vector<16x128xf32>
    %101 = arith.cmpf oge, %99, %100 : vector<16x128xf32>
    %cst_72 = arith.constant 0.00999999977 : f32
    %102 = vector.broadcast %cst_72 : f32 to vector<16x128xf32>
    %103 = arith.mulf %102, %99 : vector<16x128xf32>
    %104 = arith.select %101, %99, %103 : vector<16x128xi1>, vector<16x128xf32>
    %c0_73 = arith.constant 0 : index
    %c0_74 = arith.constant 0 : index
    %105 = vector.load %arg44[%c0_73, %c0_74] : memref<18x128xf32, #tpu.memory_space<vmem>>, vector<1x128xf32>
    tpu.vector_store %arg44[%c0_73, %c0_74], %0 {strides = array<i32>} : memref<18x128xf32, #tpu.memory_space<vmem>>, vector<1x128xf32>,
    %c17_75 = arith.constant 17 : index
    %c0_76 = arith.constant 0 : index
    %106 = vector.load %arg44[%c17_75, %c0_76] : memref<18x128xf32, #tpu.memory_space<vmem>>, vector<1x128xf32>
    tpu.vector_store %arg44[%c17_75, %c0_76], %0 {strides = array<i32>} : memref<18x128xf32, #tpu.memory_space<vmem>>, vector<1x128xf32>,
    %c1_77 = arith.constant 1 : index
    %c0_78 = arith.constant 0 : index
    %107 = vector.load %arg44[%c1_77, %c0_78] : memref<18x128xf32, #tpu.memory_space<vmem>>, vector<16x128xf32>
    tpu.vector_store %arg44[%c1_77, %c0_78], %104 {strides = array<i32>} : memref<18x128xf32, #tpu.memory_space<vmem>>, vector<16x128xf32>,
    %c0_79 = arith.constant 0 : index
    %c0_80 = arith.constant 0 : index
    %108 = vector.load %arg44[%c0_79, %c0_80] : memref<18x128xf32, #tpu.memory_space<vmem>>, vector<16x128xf32>
    %109 = arith.truncf %108 : vector<16x128xf32> to vector<16x128xbf16>
    %c0_81 = arith.constant 0 : index
    %c0_82 = arith.constant 0 : index
    %c0_83 = arith.constant 0 : index
    %110 = vector.load %arg7[%c0_81, %c0_82, %c0_83] : memref<3x128x128xbf16, #tpu.memory_space<vmem>>, vector<1x128x128xbf16>
    %111 = vector.shape_cast %110 : vector<1x128x128xbf16> to vector<128x128xbf16>
    %cst_84 = arith.constant dense<0.000000e+00> : vector<16x128xf32>
    %112 = tpu.matmul %109, %111, %cst_84 {dimension_numbers = #tpu.dot_dimension_numbers<[1], [0], [0], [1], [0, 0, 1, 1], [], []>} : vector<16x128xbf16>, vector<128x128xbf16>, vector<16x128xf32> -> vector<16x128xf32>
    %c1_85 = arith.constant 1 : index
    %c0_86 = arith.constant 0 : index
    %113 = vector.load %arg44[%c1_85, %c0_86] : memref<18x128xf32, #tpu.memory_space<vmem>>, vector<16x128xf32>
    %114 = arith.truncf %113 : vector<16x128xf32> to vector<16x128xbf16>
    %c1_87 = arith.constant 1 : index
    %c0_88 = arith.constant 0 : index
    %c0_89 = arith.constant 0 : index
    %115 = vector.load %arg7[%c1_87, %c0_88, %c0_89] : memref<3x128x128xbf16, #tpu.memory_space<vmem>>, vector<1x128x128xbf16>
    %116 = vector.shape_cast %115 : vector<1x128x128xbf16> to vector<128x128xbf16>
    %cst_90 = arith.constant dense<0.000000e+00> : vector<16x128xf32>
    %117 = tpu.matmul %114, %116, %cst_90 {dimension_numbers = #tpu.dot_dimension_numbers<[1], [0], [0], [1], [0, 0, 1, 1], [], []>} : vector<16x128xbf16>, vector<128x128xbf16>, vector<16x128xf32> -> vector<16x128xf32>
    %118 = arith.addf %112, %117 : vector<16x128xf32>
    %c2_91 = arith.constant 2 : index
    %c0_92 = arith.constant 0 : index
    %119 = vector.load %arg44[%c2_91, %c0_92] : memref<18x128xf32, #tpu.memory_space<vmem>>, vector<16x128xf32>
    %120 = arith.truncf %119 : vector<16x128xf32> to vector<16x128xbf16>
    %c2_93 = arith.constant 2 : index
    %c0_94 = arith.constant 0 : index
    %c0_95 = arith.constant 0 : index
    %121 = vector.load %arg7[%c2_93, %c0_94, %c0_95] : memref<3x128x128xbf16, #tpu.memory_space<vmem>>, vector<1x128x128xbf16>
    %122 = vector.shape_cast %121 : vector<1x128x128xbf16> to vector<128x128xbf16>
    %cst_96 = arith.constant dense<0.000000e+00> : vector<16x128xf32>
    %123 = tpu.matmul %120, %122, %cst_96 {dimension_numbers = #tpu.dot_dimension_numbers<[1], [0], [0], [1], [0, 0, 1, 1], [], []>} : vector<16x128xbf16>, vector<128x128xbf16>, vector<16x128xf32> -> vector<16x128xf32>
    %124 = arith.addf %118, %123 : vector<16x128xf32>
    %cst_97 = arith.constant dense<0.000000e+00> : vector<128xf32>
    %125 = vector.multi_reduction <add>, %124, %cst_97 [0] : vector<16x128xf32> to vector<128xf32>
    %126 = vector.shape_cast %125 : vector<128xf32> to vector<1x128xf32>
    %127 = arith.mulf %124, %124 : vector<16x128xf32>
    %cst_98 = arith.constant dense<0.000000e+00> : vector<128xf32>
    %128 = vector.multi_reduction <add>, %127, %cst_98 [0] : vector<16x128xf32> to vector<128xf32>
    %129 = vector.shape_cast %128 : vector<128xf32> to vector<1x128xf32>
    %130 = tpu.concatenate %126, %129 in 0 : vector<1x128xf32>, vector<1x128xf32> -> vector<2x128xf32>
    %c0_99 = arith.constant 0 : index
    %c0_100 = arith.constant 0 : index
    %131 = vector.load %arg3[%c0_99, %c0_100] : memref<128x128xf32, #tpu.memory_space<vmem>>, vector<128x128xf32>
    %cst_101 = arith.constant dense<0.000000e+00> : vector<2x128xf32>
    %132 = tpu.matmul %130, %131, %cst_101 {dimension_numbers = #tpu.dot_dimension_numbers<[1], [0], [0], [1], [0, 0, 1, 1], [], []>} : vector<2x128xf32>, vector<128x128xf32>, vector<2x128xf32> -> vector<2x128xf32>
    %133 = vector.extract_strided_slice %132 {offsets = [0, 0], sizes = [1, 128], strides = [1, 1]} : vector<2x128xf32> to vector<1x128xf32>
    %134 = vector.extract_strided_slice %132 {offsets = [1, 0], sizes = [1, 128], strides = [1, 1]} : vector<2x128xf32> to vector<1x128xf32>
    %135 = arith.mulf %133, %133 : vector<1x128xf32>
    %136 = arith.subf %134, %135 : vector<1x128xf32>
    %cst_102 = arith.constant 0.000000e+00 : f32
    %137 = vector.broadcast %cst_102 : f32 to vector<1x128xf32>
    %138 = arith.maximumf %136, %137 : vector<1x128xf32>
    %139 = vector.broadcast %133 : vector<1x128xf32> to vector<16x128xf32>
    %140 = arith.subf %124, %139 : vector<16x128xf32>
    %cst_103 = arith.constant 9.99999974E-6 : f32
    %141 = vector.broadcast %cst_103 : f32 to vector<1x128xf32>
    %142 = arith.addf %138, %141 : vector<1x128xf32>
    %143 = math.rsqrt %142 : vector<1x128xf32>
    %c0_104 = arith.constant 0 : index
    %c0_105 = arith.constant 0 : index
    %144 = vector.load %arg8[%c0_104, %c0_105] : memref<2x128xf32, #tpu.memory_space<vmem>>, vector<1x128xf32>
    %145 = arith.mulf %143, %144 : vector<1x128xf32>
    %146 = vector.broadcast %145 : vector<1x128xf32> to vector<16x128xf32>
    %147 = arith.mulf %140, %146 : vector<16x128xf32>
    %c1_106 = arith.constant 1 : index
    %c0_107 = arith.constant 0 : index
    %148 = vector.load %arg8[%c1_106, %c0_107] : memref<2x128xf32, #tpu.memory_space<vmem>>, vector<1x128xf32>
    %149 = vector.broadcast %148 : vector<1x128xf32> to vector<16x128xf32>
    %150 = arith.addf %147, %149 : vector<16x128xf32>
    %151 = arith.addf %150, %53 : vector<16x128xf32>
    %cst_108 = arith.constant 0.000000e+00 : f32
    %152 = vector.broadcast %cst_108 : f32 to vector<16x128xf32>
    %153 = arith.cmpf oge, %151, %152 : vector<16x128xf32>
    %cst_109 = arith.constant 0.00999999977 : f32
    %154 = vector.broadcast %cst_109 : f32 to vector<16x128xf32>
    %155 = arith.mulf %154, %151 : vector<16x128xf32>
    %156 = arith.select %153, %151, %155 : vector<16x128xi1>, vector<16x128xf32>
    %c0_110 = arith.constant 0 : index
    %c0_111 = arith.constant 0 : index
    %157 = vector.load %arg44[%c0_110, %c0_111] : memref<18x128xf32, #tpu.memory_space<vmem>>, vector<1x128xf32>
    tpu.vector_store %arg44[%c0_110, %c0_111], %0 {strides = array<i32>} : memref<18x128xf32, #tpu.memory_space<vmem>>, vector<1x128xf32>,
    %c17_112 = arith.constant 17 : index
    %c0_113 = arith.constant 0 : index
    %158 = vector.load %arg44[%c17_112, %c0_113] : memref<18x128xf32, #tpu.memory_space<vmem>>, vector<1x128xf32>
    tpu.vector_store %arg44[%c17_112, %c0_113], %0 {strides = array<i32>} : memref<18x128xf32, #tpu.memory_space<vmem>>, vector<1x128xf32>,
    %c1_114 = arith.constant 1 : index
    %c0_115 = arith.constant 0 : index
    %159 = vector.load %arg44[%c1_114, %c0_115] : memref<18x128xf32, #tpu.memory_space<vmem>>, vector<16x128xf32>
    tpu.vector_store %arg44[%c1_114, %c0_115], %156 {strides = array<i32>} : memref<18x128xf32, #tpu.memory_space<vmem>>, vector<16x128xf32>,
    %c0_116 = arith.constant 0 : index
    %c0_117 = arith.constant 0 : index
    %160 = tpu.strided_load %arg44[%c0_116, %c0_117] {strides = array<i32: 2, 1>} : memref<18x128xf32, #tpu.memory_space<vmem>>, vector<8x128xf32>
    %161 = arith.truncf %160 : vector<8x128xf32> to vector<8x128xbf16>
    %c0_118 = arith.constant 0 : index
    %c0_119 = arith.constant 0 : index
    %c0_120 = arith.constant 0 : index
    %162 = vector.load %arg9[%c0_118, %c0_119, %c0_120] : memref<3x128x128xbf16, #tpu.memory_space<vmem>>, vector<1x128x128xbf16>
    %163 = vector.shape_cast %162 : vector<1x128x128xbf16> to vector<128x128xbf16>
    %cst_121 = arith.constant dense<0.000000e+00> : vector<8x128xf32>
    %164 = tpu.matmul %161, %163, %cst_121 {dimension_numbers = #tpu.dot_dimension_numbers<[1], [0], [0], [1], [0, 0, 1, 1], [], []>} : vector<8x128xbf16>, vector<128x128xbf16>, vector<8x128xf32> -> vector<8x128xf32>
    %c1_122 = arith.constant 1 : index
    %c0_123 = arith.constant 0 : index
    %165 = tpu.strided_load %arg44[%c1_122, %c0_123] {strides = array<i32: 2, 1>} : memref<18x128xf32, #tpu.memory_space<vmem>>, vector<8x128xf32>
    %166 = arith.truncf %165 : vector<8x128xf32> to vector<8x128xbf16>
    %c1_124 = arith.constant 1 : index
    %c0_125 = arith.constant 0 : index
    %c0_126 = arith.constant 0 : index
    %167 = vector.load %arg9[%c1_124, %c0_125, %c0_126] : memref<3x128x128xbf16, #tpu.memory_space<vmem>>, vector<1x128x128xbf16>
    %168 = vector.shape_cast %167 : vector<1x128x128xbf16> to vector<128x128xbf16>
    %cst_127 = arith.constant dense<0.000000e+00> : vector<8x128xf32>
    %169 = tpu.matmul %166, %168, %cst_127 {dimension_numbers = #tpu.dot_dimension_numbers<[1], [0], [0], [1], [0, 0, 1, 1], [], []>} : vector<8x128xbf16>, vector<128x128xbf16>, vector<8x128xf32> -> vector<8x128xf32>
    %170 = arith.addf %164, %169 : vector<8x128xf32>
    %c2_128 = arith.constant 2 : index
    %c0_129 = arith.constant 0 : index
    %171 = tpu.strided_load %arg44[%c2_128, %c0_129] {strides = array<i32: 2, 1>} : memref<18x128xf32, #tpu.memory_space<vmem>>, vector<8x128xf32>
    %172 = arith.truncf %171 : vector<8x128xf32> to vector<8x128xbf16>
    %c2_130 = arith.constant 2 : index
    %c0_131 = arith.constant 0 : index
    %c0_132 = arith.constant 0 : index
    %173 = vector.load %arg9[%c2_130, %c0_131, %c0_132] : memref<3x128x128xbf16, #tpu.memory_space<vmem>>, vector<1x128x128xbf16>
    %174 = vector.shape_cast %173 : vector<1x128x128xbf16> to vector<128x128xbf16>
    %cst_133 = arith.constant dense<0.000000e+00> : vector<8x128xf32>
    %175 = tpu.matmul %172, %174, %cst_133 {dimension_numbers = #tpu.dot_dimension_numbers<[1], [0], [0], [1], [0, 0, 1, 1], [], []>} : vector<8x128xbf16>, vector<128x128xbf16>, vector<8x128xf32> -> vector<8x128xf32>
    %176 = arith.addf %170, %175 : vector<8x128xf32>
    %cst_134 = arith.constant dense<0.000000e+00> : vector<128xf32>
    %177 = vector.multi_reduction <add>, %176, %cst_134 [0] : vector<8x128xf32> to vector<128xf32>
    %178 = vector.shape_cast %177 : vector<128xf32> to vector<1x128xf32>
    %179 = arith.mulf %176, %176 : vector<8x128xf32>
    %cst_135 = arith.constant dense<0.000000e+00> : vector<128xf32>
    %180 = vector.multi_reduction <add>, %179, %cst_135 [0] : vector<8x128xf32> to vector<128xf32>
    %181 = vector.shape_cast %180 : vector<128xf32> to vector<1x128xf32>
    %182 = tpu.concatenate %178, %181 in 0 : vector<1x128xf32>, vector<1x128xf32> -> vector<2x128xf32>
    %c0_136 = arith.constant 0 : index
    %c0_137 = arith.constant 0 : index
    %183 = vector.load %arg10[%c0_136, %c0_137] : memref<128x128xf32, #tpu.memory_space<vmem>>, vector<128x128xf32>
    %cst_138 = arith.constant dense<0.000000e+00> : vector<2x128xf32>
    %184 = tpu.matmul %182, %183, %cst_138 {dimension_numbers = #tpu.dot_dimension_numbers<[1], [0], [0], [1], [0, 0, 1, 1], [], []>} : vector<2x128xf32>, vector<128x128xf32>, vector<2x128xf32> -> vector<2x128xf32>
    %185 = vector.extract_strided_slice %184 {offsets = [0, 0], sizes = [1, 128], strides = [1, 1]} : vector<2x128xf32> to vector<1x128xf32>
    %186 = vector.extract_strided_slice %184 {offsets = [1, 0], sizes = [1, 128], strides = [1, 1]} : vector<2x128xf32> to vector<1x128xf32>
    %187 = arith.mulf %185, %185 : vector<1x128xf32>
    %188 = arith.subf %186, %187 : vector<1x128xf32>
    %cst_139 = arith.constant 0.000000e+00 : f32
    %189 = vector.broadcast %cst_139 : f32 to vector<1x128xf32>
    %190 = arith.maximumf %188, %189 : vector<1x128xf32>
    %191 = vector.broadcast %185 : vector<1x128xf32> to vector<8x128xf32>
    %192 = arith.subf %176, %191 : vector<8x128xf32>
    %cst_140 = arith.constant 9.99999974E-6 : f32
    %193 = vector.broadcast %cst_140 : f32 to vector<1x128xf32>
    %194 = arith.addf %190, %193 : vector<1x128xf32>
    %195 = math.rsqrt %194 : vector<1x128xf32>
    %c0_141 = arith.constant 0 : index
    %c0_142 = arith.constant 0 : index
    %196 = vector.load %arg11[%c0_141, %c0_142] : memref<2x128xf32, #tpu.memory_space<vmem>>, vector<1x128xf32>
    %197 = arith.mulf %195, %196 : vector<1x128xf32>
    %198 = vector.broadcast %197 : vector<1x128xf32> to vector<8x128xf32>
    %199 = arith.mulf %192, %198 : vector<8x128xf32>
    %c1_143 = arith.constant 1 : index
    %c0_144 = arith.constant 0 : index
    %200 = vector.load %arg11[%c1_143, %c0_144] : memref<2x128xf32, #tpu.memory_space<vmem>>, vector<1x128xf32>
    %201 = vector.broadcast %200 : vector<1x128xf32> to vector<8x128xf32>
    %202 = arith.addf %199, %201 : vector<8x128xf32>
    %cst_145 = arith.constant 0.000000e+00 : f32
    %203 = vector.broadcast %cst_145 : f32 to vector<8x128xf32>
    %204 = arith.cmpf oge, %202, %203 : vector<8x128xf32>
    %cst_146 = arith.constant 0.00999999977 : f32
    %205 = vector.broadcast %cst_146 : f32 to vector<8x128xf32>
    %206 = arith.mulf %205, %202 : vector<8x128xf32>
    %207 = arith.select %204, %202, %206 : vector<8x128xi1>, vector<8x128xf32>
    %c0_147 = arith.constant 0 : index
    %c0_148 = arith.constant 0 : index
    %208 = vector.load %arg44[%c0_147, %c0_148] : memref<18x128xf32, #tpu.memory_space<vmem>>, vector<1x128xf32>
    tpu.vector_store %arg44[%c0_147, %c0_148], %0 {strides = array<i32>} : memref<18x128xf32, #tpu.memory_space<vmem>>, vector<1x128xf32>,
    %c9 = arith.constant 9 : index
    %c0_149 = arith.constant 0 : index
    %209 = vector.load %arg44[%c9, %c0_149] : memref<18x128xf32, #tpu.memory_space<vmem>>, vector<1x128xf32>
    tpu.vector_store %arg44[%c9, %c0_149], %0 {strides = array<i32>} : memref<18x128xf32, #tpu.memory_space<vmem>>, vector<1x128xf32>,
    %c1_150 = arith.constant 1 : index
    %c0_151 = arith.constant 0 : index
    %210 = vector.load %arg44[%c1_150, %c0_151] : memref<18x128xf32, #tpu.memory_space<vmem>>, vector<8x128xf32>
    tpu.vector_store %arg44[%c1_150, %c0_151], %207 {strides = array<i32>} : memref<18x128xf32, #tpu.memory_space<vmem>>, vector<8x128xf32>,
    %c0_152 = arith.constant 0 : index
    %c0_153 = arith.constant 0 : index
    %211 = vector.load %arg44[%c0_152, %c0_153] : memref<18x128xf32, #tpu.memory_space<vmem>>, vector<8x128xf32>
    %212 = arith.truncf %211 : vector<8x128xf32> to vector<8x128xbf16>
    %c0_154 = arith.constant 0 : index
    %c0_155 = arith.constant 0 : index
    %c0_156 = arith.constant 0 : index
    %213 = vector.load %arg12[%c0_154, %c0_155, %c0_156] : memref<3x128x128xbf16, #tpu.memory_space<vmem>>, vector<1x128x128xbf16>
    %214 = vector.shape_cast %213 : vector<1x128x128xbf16> to vector<128x128xbf16>
    %cst_157 = arith.constant dense<0.000000e+00> : vector<8x128xf32>
    %215 = tpu.matmul %212, %214, %cst_157 {dimension_numbers = #tpu.dot_dimension_numbers<[1], [0], [0], [1], [0, 0, 1, 1], [], []>} : vector<8x128xbf16>, vector<128x128xbf16>, vector<8x128xf32> -> vector<8x128xf32>
    %c1_158 = arith.constant 1 : index
    %c0_159 = arith.constant 0 : index
    %216 = vector.load %arg44[%c1_158, %c0_159] : memref<18x128xf32, #tpu.memory_space<vmem>>, vector<8x128xf32>
    %217 = arith.truncf %216 : vector<8x128xf32> to vector<8x128xbf16>
    %c1_160 = arith.constant 1 : index
    %c0_161 = arith.constant 0 : index
    %c0_162 = arith.constant 0 : index
    %218 = vector.load %arg12[%c1_160, %c0_161, %c0_162] : memref<3x128x128xbf16, #tpu.memory_space<vmem>>, vector<1x128x128xbf16>
    %219 = vector.shape_cast %218 : vector<1x128x128xbf16> to vector<128x128xbf16>
    %cst_163 = arith.constant dense<0.000000e+00> : vector<8x128xf32>
    %220 = tpu.matmul %217, %219, %cst_163 {dimension_numbers = #tpu.dot_dimension_numbers<[1], [0], [0], [1], [0, 0, 1, 1], [], []>} : vector<8x128xbf16>, vector<128x128xbf16>, vector<8x128xf32> -> vector<8x128xf32>
    %221 = arith.addf %215, %220 : vector<8x128xf32>
    %c2_164 = arith.constant 2 : index
    %c0_165 = arith.constant 0 : index
    %222 = vector.load %arg44[%c2_164, %c0_165] : memref<18x128xf32, #tpu.memory_space<vmem>>, vector<8x128xf32>
    %223 = arith.truncf %222 : vector<8x128xf32> to vector<8x128xbf16>
    %c2_166 = arith.constant 2 : index
    %c0_167 = arith.constant 0 : index
    %c0_168 = arith.constant 0 : index
    %224 = vector.load %arg12[%c2_166, %c0_167, %c0_168] : memref<3x128x128xbf16, #tpu.memory_space<vmem>>, vector<1x128x128xbf16>
    %225 = vector.shape_cast %224 : vector<1x128x128xbf16> to vector<128x128xbf16>
    %cst_169 = arith.constant dense<0.000000e+00> : vector<8x128xf32>
    %226 = tpu.matmul %223, %225, %cst_169 {dimension_numbers = #tpu.dot_dimension_numbers<[1], [0], [0], [1], [0, 0, 1, 1], [], []>} : vector<8x128xbf16>, vector<128x128xbf16>, vector<8x128xf32> -> vector<8x128xf32>
    %227 = arith.addf %221, %226 : vector<8x128xf32>
    %cst_170 = arith.constant dense<0.000000e+00> : vector<128xf32>
    %228 = vector.multi_reduction <add>, %227, %cst_170 [0] : vector<8x128xf32> to vector<128xf32>
    %229 = vector.shape_cast %228 : vector<128xf32> to vector<1x128xf32>
    %230 = arith.mulf %227, %227 : vector<8x128xf32>
    %cst_171 = arith.constant dense<0.000000e+00> : vector<128xf32>
    %231 = vector.multi_reduction <add>, %230, %cst_171 [0] : vector<8x128xf32> to vector<128xf32>
    %232 = vector.shape_cast %231 : vector<128xf32> to vector<1x128xf32>
    %233 = tpu.concatenate %229, %232 in 0 : vector<1x128xf32>, vector<1x128xf32> -> vector<2x128xf32>
    %c0_172 = arith.constant 0 : index
    %c0_173 = arith.constant 0 : index
    %234 = vector.load %arg10[%c0_172, %c0_173] : memref<128x128xf32, #tpu.memory_space<vmem>>, vector<128x128xf32>
    %cst_174 = arith.constant dense<0.000000e+00> : vector<2x128xf32>
    %235 = tpu.matmul %233, %234, %cst_174 {dimension_numbers = #tpu.dot_dimension_numbers<[1], [0], [0], [1], [0, 0, 1, 1], [], []>} : vector<2x128xf32>, vector<128x128xf32>, vector<2x128xf32> -> vector<2x128xf32>
    %236 = vector.extract_strided_slice %235 {offsets = [0, 0], sizes = [1, 128], strides = [1, 1]} : vector<2x128xf32> to vector<1x128xf32>
    %237 = vector.extract_strided_slice %235 {offsets = [1, 0], sizes = [1, 128], strides = [1, 1]} : vector<2x128xf32> to vector<1x128xf32>
    %238 = arith.mulf %236, %236 : vector<1x128xf32>
    %239 = arith.subf %237, %238 : vector<1x128xf32>
    %cst_175 = arith.constant 0.000000e+00 : f32
    %240 = vector.broadcast %cst_175 : f32 to vector<1x128xf32>
    %241 = arith.maximumf %239, %240 : vector<1x128xf32>
    %242 = vector.broadcast %236 : vector<1x128xf32> to vector<8x128xf32>
    %243 = arith.subf %227, %242 : vector<8x128xf32>
    %cst_176 = arith.constant 9.99999974E-6 : f32
    %244 = vector.broadcast %cst_176 : f32 to vector<1x128xf32>
    %245 = arith.addf %241, %244 : vector<1x128xf32>
    %246 = math.rsqrt %245 : vector<1x128xf32>
    %c0_177 = arith.constant 0 : index
    %c0_178 = arith.constant 0 : index
    %247 = vector.load %arg13[%c0_177, %c0_178] : memref<2x128xf32, #tpu.memory_space<vmem>>, vector<1x128xf32>
    %248 = arith.mulf %246, %247 : vector<1x128xf32>
    %249 = vector.broadcast %248 : vector<1x128xf32> to vector<8x128xf32>
    %250 = arith.mulf %243, %249 : vector<8x128xf32>
    %c1_179 = arith.constant 1 : index
    %c0_180 = arith.constant 0 : index
    %251 = vector.load %arg13[%c1_179, %c0_180] : memref<2x128xf32, #tpu.memory_space<vmem>>, vector<1x128xf32>
    %252 = vector.broadcast %251 : vector<1x128xf32> to vector<8x128xf32>
    %253 = arith.addf %250, %252 : vector<8x128xf32>
    %c0_181 = arith.constant 0 : index
    %c0_182 = arith.constant 0 : index
    %254 = vector.load %arg44[%c0_181, %c0_182] : memref<18x128xf32, #tpu.memory_space<vmem>>, vector<16x128xf32>
    tpu.vector_store %arg44[%c0_181, %c0_182], %156 {strides = array<i32>} : memref<18x128xf32, #tpu.memory_space<vmem>>, vector<16x128xf32>,
    %c0_183 = arith.constant 0 : index
    %c0_184 = arith.constant 0 : index
    %255 = tpu.strided_load %arg44[%c0_183, %c0_184] {strides = array<i32: 2, 1>} : memref<18x128xf32, #tpu.memory_space<vmem>>, vector<8x128xf32>
    %256 = arith.truncf %255 : vector<8x128xf32> to vector<8x128xbf16>
    %c0_185 = arith.constant 0 : index
    %c0_186 = arith.constant 0 : index
    %c0_187 = arith.constant 0 : index
    %257 = vector.load %arg14[%c0_185, %c0_186, %c0_187] : memref<2x128x128xbf16, #tpu.memory_space<vmem>>, vector<1x128x128xbf16>
    %258 = vector.shape_cast %257 : vector<1x128x128xbf16> to vector<128x128xbf16>
    %cst_188 = arith.constant dense<0.000000e+00> : vector<8x128xf32>
    %259 = tpu.matmul %256, %258, %cst_188 {dimension_numbers = #tpu.dot_dimension_numbers<[1], [0], [0], [1], [0, 0, 1, 1], [], []>} : vector<8x128xbf16>, vector<128x128xbf16>, vector<8x128xf32> -> vector<8x128xf32>
    %c1_189 = arith.constant 1 : index
    %c0_190 = arith.constant 0 : index
    %260 = tpu.strided_load %arg44[%c1_189, %c0_190] {strides = array<i32: 2, 1>} : memref<18x128xf32, #tpu.memory_space<vmem>>, vector<8x128xf32>
    %261 = arith.truncf %260 : vector<8x128xf32> to vector<8x128xbf16>
    %c1_191 = arith.constant 1 : index
    %c0_192 = arith.constant 0 : index
    %c0_193 = arith.constant 0 : index
    %262 = vector.load %arg14[%c1_191, %c0_192, %c0_193] : memref<2x128x128xbf16, #tpu.memory_space<vmem>>, vector<1x128x128xbf16>
    %263 = vector.shape_cast %262 : vector<1x128x128xbf16> to vector<128x128xbf16>
    %cst_194 = arith.constant dense<0.000000e+00> : vector<8x128xf32>
    %264 = tpu.matmul %261, %263, %cst_194 {dimension_numbers = #tpu.dot_dimension_numbers<[1], [0], [0], [1], [0, 0, 1, 1], [], []>} : vector<8x128xbf16>, vector<128x128xbf16>, vector<8x128xf32> -> vector<8x128xf32>
    %265 = arith.addf %259, %264 : vector<8x128xf32>
    %cst_195 = arith.constant dense<0.000000e+00> : vector<128xf32>
    %266 = vector.multi_reduction <add>, %265, %cst_195 [0] : vector<8x128xf32> to vector<128xf32>
    %267 = vector.shape_cast %266 : vector<128xf32> to vector<1x128xf32>
    %268 = arith.mulf %265, %265 : vector<8x128xf32>
    %cst_196 = arith.constant dense<0.000000e+00> : vector<128xf32>
    %269 = vector.multi_reduction <add>, %268, %cst_196 [0] : vector<8x128xf32> to vector<128xf32>
    %270 = vector.shape_cast %269 : vector<128xf32> to vector<1x128xf32>
    %271 = tpu.concatenate %267, %270 in 0 : vector<1x128xf32>, vector<1x128xf32> -> vector<2x128xf32>
    %c0_197 = arith.constant 0 : index
    %c0_198 = arith.constant 0 : index
    %272 = vector.load %arg10[%c0_197, %c0_198] : memref<128x128xf32, #tpu.memory_space<vmem>>, vector<128x128xf32>
    %cst_199 = arith.constant dense<0.000000e+00> : vector<2x128xf32>
    %273 = tpu.matmul %271, %272, %cst_199 {dimension_numbers = #tpu.dot_dimension_numbers<[1], [0], [0], [1], [0, 0, 1, 1], [], []>} : vector<2x128xf32>, vector<128x128xf32>, vector<2x128xf32> -> vector<2x128xf32>
    %274 = vector.extract_strided_slice %273 {offsets = [0, 0], sizes = [1, 128], strides = [1, 1]} : vector<2x128xf32> to vector<1x128xf32>
    %275 = vector.extract_strided_slice %273 {offsets = [1, 0], sizes = [1, 128], strides = [1, 1]} : vector<2x128xf32> to vector<1x128xf32>
    %276 = arith.mulf %274, %274 : vector<1x128xf32>
    %277 = arith.subf %275, %276 : vector<1x128xf32>
    %cst_200 = arith.constant 0.000000e+00 : f32
    %278 = vector.broadcast %cst_200 : f32 to vector<1x128xf32>
    %279 = arith.maximumf %277, %278 : vector<1x128xf32>
    %280 = vector.broadcast %274 : vector<1x128xf32> to vector<8x128xf32>
    %281 = arith.subf %265, %280 : vector<8x128xf32>
    %cst_201 = arith.constant 9.99999974E-6 : f32
    %282 = vector.broadcast %cst_201 : f32 to vector<1x128xf32>
    %283 = arith.addf %279, %282 : vector<1x128xf32>
    %284 = math.rsqrt %283 : vector<1x128xf32>
    %c0_202 = arith.constant 0 : index
    %c0_203 = arith.constant 0 : index
    %285 = vector.load %arg15[%c0_202, %c0_203] : memref<2x128xf32, #tpu.memory_space<vmem>>, vector<1x128xf32>
    %286 = arith.mulf %284, %285 : vector<1x128xf32>
    %287 = vector.broadcast %286 : vector<1x128xf32> to vector<8x128xf32>
    %288 = arith.mulf %281, %287 : vector<8x128xf32>
    %c1_204 = arith.constant 1 : index
    %c0_205 = arith.constant 0 : index
    %289 = vector.load %arg15[%c1_204, %c0_205] : memref<2x128xf32, #tpu.memory_space<vmem>>, vector<1x128xf32>
    %290 = vector.broadcast %289 : vector<1x128xf32> to vector<8x128xf32>
    %291 = arith.addf %288, %290 : vector<8x128xf32>
    %292 = arith.addf %291, %253 : vector<8x128xf32>
    %cst_206 = arith.constant 0.000000e+00 : f32
    %293 = vector.broadcast %cst_206 : f32 to vector<8x128xf32>
    %294 = arith.cmpf oge, %292, %293 : vector<8x128xf32>
    %cst_207 = arith.constant 0.00999999977 : f32
    %295 = vector.broadcast %cst_207 : f32 to vector<8x128xf32>
    %296 = arith.mulf %295, %292 : vector<8x128xf32>
    %297 = arith.select %294, %292, %296 : vector<8x128xi1>, vector<8x128xf32>
    %c0_208 = arith.constant 0 : index
    %c0_209 = arith.constant 0 : index
    %298 = vector.load %arg44[%c0_208, %c0_209] : memref<18x128xf32, #tpu.memory_space<vmem>>, vector<1x128xf32>
    tpu.vector_store %arg44[%c0_208, %c0_209], %0 {strides = array<i32>} : memref<18x128xf32, #tpu.memory_space<vmem>>, vector<1x128xf32>,
    %c9_210 = arith.constant 9 : index
    %c0_211 = arith.constant 0 : index
    %299 = vector.load %arg44[%c9_210, %c0_211] : memref<18x128xf32, #tpu.memory_space<vmem>>, vector<1x128xf32>
    tpu.vector_store %arg44[%c9_210, %c0_211], %0 {strides = array<i32>} : memref<18x128xf32, #tpu.memory_space<vmem>>, vector<1x128xf32>,
    %c1_212 = arith.constant 1 : index
    %c0_213 = arith.constant 0 : index
    %300 = vector.load %arg44[%c1_212, %c0_213] : memref<18x128xf32, #tpu.memory_space<vmem>>, vector<8x128xf32>
    tpu.vector_store %arg44[%c1_212, %c0_213], %297 {strides = array<i32>} : memref<18x128xf32, #tpu.memory_space<vmem>>, vector<8x128xf32>,
    %c0_214 = arith.constant 0 : index
    %c0_215 = arith.constant 0 : index
    %301 = tpu.strided_load %arg44[%c0_214, %c0_215] {strides = array<i32: 2, 1>} : memref<18x128xf32, #tpu.memory_space<vmem>>, vector<4x128xf32>
    %302 = arith.truncf %301 : vector<4x128xf32> to vector<4x128xbf16>
    %c0_216 = arith.constant 0 : index
    %c0_217 = arith.constant 0 : index
    %c0_218 = arith.constant 0 : index
    %303 = vector.load %arg16[%c0_216, %c0_217, %c0_218] : memref<3x128x128xbf16, #tpu.memory_space<vmem>>, vector<1x128x128xbf16>
    %304 = vector.shape_cast %303 : vector<1x128x128xbf16> to vector<128x128xbf16>
    %cst_219 = arith.constant dense<0.000000e+00> : vector<4x128xf32>
    %305 = tpu.matmul %302, %304, %cst_219 {dimension_numbers = #tpu.dot_dimension_numbers<[1], [0], [0], [1], [0, 0, 1, 1], [], []>} : vector<4x128xbf16>, vector<128x128xbf16>, vector<4x128xf32> -> vector<4x128xf32>
    %c1_220 = arith.constant 1 : index
    %c0_221 = arith.constant 0 : index
    %306 = tpu.strided_load %arg44[%c1_220, %c0_221] {strides = array<i32: 2, 1>} : memref<18x128xf32, #tpu.memory_space<vmem>>, vector<4x128xf32>
    %307 = arith.truncf %306 : vector<4x128xf32> to vector<4x128xbf16>
    %c1_222 = arith.constant 1 : index
    %c0_223 = arith.constant 0 : index
    %c0_224 = arith.constant 0 : index
    %308 = vector.load %arg16[%c1_222, %c0_223, %c0_224] : memref<3x128x128xbf16, #tpu.memory_space<vmem>>, vector<1x128x128xbf16>
    %309 = vector.shape_cast %308 : vector<1x128x128xbf16> to vector<128x128xbf16>
    %cst_225 = arith.constant dense<0.000000e+00> : vector<4x128xf32>
    %310 = tpu.matmul %307, %309, %cst_225 {dimension_numbers = #tpu.dot_dimension_numbers<[1], [0], [0], [1], [0, 0, 1, 1], [], []>} : vector<4x128xbf16>, vector<128x128xbf16>, vector<4x128xf32> -> vector<4x128xf32>
    %311 = arith.addf %305, %310 : vector<4x128xf32>
    %c2_226 = arith.constant 2 : index
    %c0_227 = arith.constant 0 : index
    %312 = tpu.strided_load %arg44[%c2_226, %c0_227] {strides = array<i32: 2, 1>} : memref<18x128xf32, #tpu.memory_space<vmem>>, vector<4x128xf32>
    %313 = arith.truncf %312 : vector<4x128xf32> to vector<4x128xbf16>
    %c2_228 = arith.constant 2 : index
    %c0_229 = arith.constant 0 : index
    %c0_230 = arith.constant 0 : index
    %314 = vector.load %arg16[%c2_228, %c0_229, %c0_230] : memref<3x128x128xbf16, #tpu.memory_space<vmem>>, vector<1x128x128xbf16>
    %315 = vector.shape_cast %314 : vector<1x128x128xbf16> to vector<128x128xbf16>
    %cst_231 = arith.constant dense<0.000000e+00> : vector<4x128xf32>
    %316 = tpu.matmul %313, %315, %cst_231 {dimension_numbers = #tpu.dot_dimension_numbers<[1], [0], [0], [1], [0, 0, 1, 1], [], []>} : vector<4x128xbf16>, vector<128x128xbf16>, vector<4x128xf32> -> vector<4x128xf32>
    %317 = arith.addf %311, %316 : vector<4x128xf32>
    %cst_232 = arith.constant dense<0.000000e+00> : vector<128xf32>
    %318 = vector.multi_reduction <add>, %317, %cst_232 [0] : vector<4x128xf32> to vector<128xf32>
    %319 = vector.shape_cast %318 : vector<128xf32> to vector<1x128xf32>
    %320 = arith.mulf %317, %317 : vector<4x128xf32>
    %cst_233 = arith.constant dense<0.000000e+00> : vector<128xf32>
    %321 = vector.multi_reduction <add>, %320, %cst_233 [0] : vector<4x128xf32> to vector<128xf32>
    %322 = vector.shape_cast %321 : vector<128xf32> to vector<1x128xf32>
    %323 = tpu.concatenate %319, %322 in 0 : vector<1x128xf32>, vector<1x128xf32> -> vector<2x128xf32>
    %c0_234 = arith.constant 0 : index
    %c0_235 = arith.constant 0 : index
    %324 = vector.load %arg17[%c0_234, %c0_235] : memref<128x128xf32, #tpu.memory_space<vmem>>, vector<128x128xf32>
    %cst_236 = arith.constant dense<0.000000e+00> : vector<2x128xf32>
    %325 = tpu.matmul %323, %324, %cst_236 {dimension_numbers = #tpu.dot_dimension_numbers<[1], [0], [0], [1], [0, 0, 1, 1], [], []>} : vector<2x128xf32>, vector<128x128xf32>, vector<2x128xf32> -> vector<2x128xf32>
    %326 = vector.extract_strided_slice %325 {offsets = [0, 0], sizes = [1, 128], strides = [1, 1]} : vector<2x128xf32> to vector<1x128xf32>
    %327 = vector.extract_strided_slice %325 {offsets = [1, 0], sizes = [1, 128], strides = [1, 1]} : vector<2x128xf32> to vector<1x128xf32>
    %328 = arith.mulf %326, %326 : vector<1x128xf32>
    %329 = arith.subf %327, %328 : vector<1x128xf32>
    %cst_237 = arith.constant 0.000000e+00 : f32
    %330 = vector.broadcast %cst_237 : f32 to vector<1x128xf32>
    %331 = arith.maximumf %329, %330 : vector<1x128xf32>
    %332 = vector.broadcast %326 : vector<1x128xf32> to vector<4x128xf32>
    %333 = arith.subf %317, %332 : vector<4x128xf32>
    %cst_238 = arith.constant 9.99999974E-6 : f32
    %334 = vector.broadcast %cst_238 : f32 to vector<1x128xf32>
    %335 = arith.addf %331, %334 : vector<1x128xf32>
    %336 = math.rsqrt %335 : vector<1x128xf32>
    %c0_239 = arith.constant 0 : index
    %c0_240 = arith.constant 0 : index
    %337 = vector.load %arg18[%c0_239, %c0_240] : memref<2x128xf32, #tpu.memory_space<vmem>>, vector<1x128xf32>
    %338 = arith.mulf %336, %337 : vector<1x128xf32>
    %339 = vector.broadcast %338 : vector<1x128xf32> to vector<4x128xf32>
    %340 = arith.mulf %333, %339 : vector<4x128xf32>
    %c1_241 = arith.constant 1 : index
    %c0_242 = arith.constant 0 : index
    %341 = vector.load %arg18[%c1_241, %c0_242] : memref<2x128xf32, #tpu.memory_space<vmem>>, vector<1x128xf32>
    %342 = vector.broadcast %341 : vector<1x128xf32> to vector<4x128xf32>
    %343 = arith.addf %340, %342 : vector<4x128xf32>
    %cst_243 = arith.constant 0.000000e+00 : f32
    %344 = vector.broadcast %cst_243 : f32 to vector<4x128xf32>
    %345 = arith.cmpf oge, %343, %344 : vector<4x128xf32>
    %cst_244 = arith.constant 0.00999999977 : f32
    %346 = vector.broadcast %cst_244 : f32 to vector<4x128xf32>
    %347 = arith.mulf %346, %343 : vector<4x128xf32>
    %348 = arith.select %345, %343, %347 : vector<4x128xi1>, vector<4x128xf32>
    %c0_245 = arith.constant 0 : index
    %c0_246 = arith.constant 0 : index
    %349 = vector.load %arg44[%c0_245, %c0_246] : memref<18x128xf32, #tpu.memory_space<vmem>>, vector<1x128xf32>
    tpu.vector_store %arg44[%c0_245, %c0_246], %0 {strides = array<i32>} : memref<18x128xf32, #tpu.memory_space<vmem>>, vector<1x128xf32>,
    %c5 = arith.constant 5 : index
    %c0_247 = arith.constant 0 : index
    %350 = vector.load %arg44[%c5, %c0_247] : memref<18x128xf32, #tpu.memory_space<vmem>>, vector<1x128xf32>
    tpu.vector_store %arg44[%c5, %c0_247], %0 {strides = array<i32>} : memref<18x128xf32, #tpu.memory_space<vmem>>, vector<1x128xf32>,
    %c1_248 = arith.constant 1 : index
    %c0_249 = arith.constant 0 : index
    %351 = vector.load %arg44[%c1_248, %c0_249] : memref<18x128xf32, #tpu.memory_space<vmem>>, vector<4x128xf32>
    tpu.vector_store %arg44[%c1_248, %c0_249], %348 {strides = array<i32>} : memref<18x128xf32, #tpu.memory_space<vmem>>, vector<4x128xf32>,
    %c0_250 = arith.constant 0 : index
    %c0_251 = arith.constant 0 : index
    %352 = vector.load %arg44[%c0_250, %c0_251] : memref<18x128xf32, #tpu.memory_space<vmem>>, vector<4x128xf32>
    %353 = arith.truncf %352 : vector<4x128xf32> to vector<4x128xbf16>
    %c0_252 = arith.constant 0 : index
    %c0_253 = arith.constant 0 : index
    %c0_254 = arith.constant 0 : index
    %354 = vector.load %arg19[%c0_252, %c0_253, %c0_254] : memref<3x128x128xbf16, #tpu.memory_space<vmem>>, vector<1x128x128xbf16>
    %355 = vector.shape_cast %354 : vector<1x128x128xbf16> to vector<128x128xbf16>
    %cst_255 = arith.constant dense<0.000000e+00> : vector<4x128xf32>
    %356 = tpu.matmul %353, %355, %cst_255 {dimension_numbers = #tpu.dot_dimension_numbers<[1], [0], [0], [1], [0, 0, 1, 1], [], []>} : vector<4x128xbf16>, vector<128x128xbf16>, vector<4x128xf32> -> vector<4x128xf32>
    %c1_256 = arith.constant 1 : index
    %c0_257 = arith.constant 0 : index
    %357 = vector.load %arg44[%c1_256, %c0_257] : memref<18x128xf32, #tpu.memory_space<vmem>>, vector<4x128xf32>
    %358 = arith.truncf %357 : vector<4x128xf32> to vector<4x128xbf16>
    %c1_258 = arith.constant 1 : index
    %c0_259 = arith.constant 0 : index
    %c0_260 = arith.constant 0 : index
    %359 = vector.load %arg19[%c1_258, %c0_259, %c0_260] : memref<3x128x128xbf16, #tpu.memory_space<vmem>>, vector<1x128x128xbf16>
    %360 = vector.shape_cast %359 : vector<1x128x128xbf16> to vector<128x128xbf16>
    %cst_261 = arith.constant dense<0.000000e+00> : vector<4x128xf32>
    %361 = tpu.matmul %358, %360, %cst_261 {dimension_numbers = #tpu.dot_dimension_numbers<[1], [0], [0], [1], [0, 0, 1, 1], [], []>} : vector<4x128xbf16>, vector<128x128xbf16>, vector<4x128xf32> -> vector<4x128xf32>
    %362 = arith.addf %356, %361 : vector<4x128xf32>
    %c2_262 = arith.constant 2 : index
    %c0_263 = arith.constant 0 : index
    %363 = vector.load %arg44[%c2_262, %c0_263] : memref<18x128xf32, #tpu.memory_space<vmem>>, vector<4x128xf32>
    %364 = arith.truncf %363 : vector<4x128xf32> to vector<4x128xbf16>
    %c2_264 = arith.constant 2 : index
    %c0_265 = arith.constant 0 : index
    %c0_266 = arith.constant 0 : index
    %365 = vector.load %arg19[%c2_264, %c0_265, %c0_266] : memref<3x128x128xbf16, #tpu.memory_space<vmem>>, vector<1x128x128xbf16>
    %366 = vector.shape_cast %365 : vector<1x128x128xbf16> to vector<128x128xbf16>
    %cst_267 = arith.constant dense<0.000000e+00> : vector<4x128xf32>
    %367 = tpu.matmul %364, %366, %cst_267 {dimension_numbers = #tpu.dot_dimension_numbers<[1], [0], [0], [1], [0, 0, 1, 1], [], []>} : vector<4x128xbf16>, vector<128x128xbf16>, vector<4x128xf32> -> vector<4x128xf32>
    %368 = arith.addf %362, %367 : vector<4x128xf32>
    %cst_268 = arith.constant dense<0.000000e+00> : vector<128xf32>
    %369 = vector.multi_reduction <add>, %368, %cst_268 [0] : vector<4x128xf32> to vector<128xf32>
    %370 = vector.shape_cast %369 : vector<128xf32> to vector<1x128xf32>
    %371 = arith.mulf %368, %368 : vector<4x128xf32>
    %cst_269 = arith.constant dense<0.000000e+00> : vector<128xf32>
    %372 = vector.multi_reduction <add>, %371, %cst_269 [0] : vector<4x128xf32> to vector<128xf32>
    %373 = vector.shape_cast %372 : vector<128xf32> to vector<1x128xf32>
    %374 = tpu.concatenate %370, %373 in 0 : vector<1x128xf32>, vector<1x128xf32> -> vector<2x128xf32>
    %c0_270 = arith.constant 0 : index
    %c0_271 = arith.constant 0 : index
    %375 = vector.load %arg17[%c0_270, %c0_271] : memref<128x128xf32, #tpu.memory_space<vmem>>, vector<128x128xf32>
    %cst_272 = arith.constant dense<0.000000e+00> : vector<2x128xf32>
    %376 = tpu.matmul %374, %375, %cst_272 {dimension_numbers = #tpu.dot_dimension_numbers<[1], [0], [0], [1], [0, 0, 1, 1], [], []>} : vector<2x128xf32>, vector<128x128xf32>, vector<2x128xf32> -> vector<2x128xf32>
    %377 = vector.extract_strided_slice %376 {offsets = [0, 0], sizes = [1, 128], strides = [1, 1]} : vector<2x128xf32> to vector<1x128xf32>
    %378 = vector.extract_strided_slice %376 {offsets = [1, 0], sizes = [1, 128], strides = [1, 1]} : vector<2x128xf32> to vector<1x128xf32>
    %379 = arith.mulf %377, %377 : vector<1x128xf32>
    %380 = arith.subf %378, %379 : vector<1x128xf32>
    %cst_273 = arith.constant 0.000000e+00 : f32
    %381 = vector.broadcast %cst_273 : f32 to vector<1x128xf32>
    %382 = arith.maximumf %380, %381 : vector<1x128xf32>
    %383 = vector.broadcast %377 : vector<1x128xf32> to vector<4x128xf32>
    %384 = arith.subf %368, %383 : vector<4x128xf32>
    %cst_274 = arith.constant 9.99999974E-6 : f32
    %385 = vector.broadcast %cst_274 : f32 to vector<1x128xf32>
    %386 = arith.addf %382, %385 : vector<1x128xf32>
    %387 = math.rsqrt %386 : vector<1x128xf32>
    %c0_275 = arith.constant 0 : index
    %c0_276 = arith.constant 0 : index
    %388 = vector.load %arg20[%c0_275, %c0_276] : memref<2x128xf32, #tpu.memory_space<vmem>>, vector<1x128xf32>
    %389 = arith.mulf %387, %388 : vector<1x128xf32>
    %390 = vector.broadcast %389 : vector<1x128xf32> to vector<4x128xf32>
    %391 = arith.mulf %384, %390 : vector<4x128xf32>
    %c1_277 = arith.constant 1 : index
    %c0_278 = arith.constant 0 : index
    %392 = vector.load %arg20[%c1_277, %c0_278] : memref<2x128xf32, #tpu.memory_space<vmem>>, vector<1x128xf32>
    %393 = vector.broadcast %392 : vector<1x128xf32> to vector<4x128xf32>
    %394 = arith.addf %391, %393 : vector<4x128xf32>
    %c0_279 = arith.constant 0 : index
    %c0_280 = arith.constant 0 : index
    %395 = vector.load %arg44[%c0_279, %c0_280] : memref<18x128xf32, #tpu.memory_space<vmem>>, vector<8x128xf32>
    tpu.vector_store %arg44[%c0_279, %c0_280], %297 {strides = array<i32>} : memref<18x128xf32, #tpu.memory_space<vmem>>, vector<8x128xf32>,
    %c0_281 = arith.constant 0 : index
    %c0_282 = arith.constant 0 : index
    %396 = tpu.strided_load %arg44[%c0_281, %c0_282] {strides = array<i32: 2, 1>} : memref<18x128xf32, #tpu.memory_space<vmem>>, vector<4x128xf32>
    %397 = arith.truncf %396 : vector<4x128xf32> to vector<4x128xbf16>
    %c0_283 = arith.constant 0 : index
    %c0_284 = arith.constant 0 : index
    %c0_285 = arith.constant 0 : index
    %398 = vector.load %arg21[%c0_283, %c0_284, %c0_285] : memref<2x128x128xbf16, #tpu.memory_space<vmem>>, vector<1x128x128xbf16>
    %399 = vector.shape_cast %398 : vector<1x128x128xbf16> to vector<128x128xbf16>
    %cst_286 = arith.constant dense<0.000000e+00> : vector<4x128xf32>
    %400 = tpu.matmul %397, %399, %cst_286 {dimension_numbers = #tpu.dot_dimension_numbers<[1], [0], [0], [1], [0, 0, 1, 1], [], []>} : vector<4x128xbf16>, vector<128x128xbf16>, vector<4x128xf32> -> vector<4x128xf32>
    %c1_287 = arith.constant 1 : index
    %c0_288 = arith.constant 0 : index
    %401 = tpu.strided_load %arg44[%c1_287, %c0_288] {strides = array<i32: 2, 1>} : memref<18x128xf32, #tpu.memory_space<vmem>>, vector<4x128xf32>
    %402 = arith.truncf %401 : vector<4x128xf32> to vector<4x128xbf16>
    %c1_289 = arith.constant 1 : index
    %c0_290 = arith.constant 0 : index
    %c0_291 = arith.constant 0 : index
    %403 = vector.load %arg21[%c1_289, %c0_290, %c0_291] : memref<2x128x128xbf16, #tpu.memory_space<vmem>>, vector<1x128x128xbf16>
    %404 = vector.shape_cast %403 : vector<1x128x128xbf16> to vector<128x128xbf16>
    %cst_292 = arith.constant dense<0.000000e+00> : vector<4x128xf32>
    %405 = tpu.matmul %402, %404, %cst_292 {dimension_numbers = #tpu.dot_dimension_numbers<[1], [0], [0], [1], [0, 0, 1, 1], [], []>} : vector<4x128xbf16>, vector<128x128xbf16>, vector<4x128xf32> -> vector<4x128xf32>
    %406 = arith.addf %400, %405 : vector<4x128xf32>
    %cst_293 = arith.constant dense<0.000000e+00> : vector<128xf32>
    %407 = vector.multi_reduction <add>, %406, %cst_293 [0] : vector<4x128xf32> to vector<128xf32>
    %408 = vector.shape_cast %407 : vector<128xf32> to vector<1x128xf32>
    %409 = arith.mulf %406, %406 : vector<4x128xf32>
    %cst_294 = arith.constant dense<0.000000e+00> : vector<128xf32>
    %410 = vector.multi_reduction <add>, %409, %cst_294 [0] : vector<4x128xf32> to vector<128xf32>
    %411 = vector.shape_cast %410 : vector<128xf32> to vector<1x128xf32>
    %412 = tpu.concatenate %408, %411 in 0 : vector<1x128xf32>, vector<1x128xf32> -> vector<2x128xf32>
    %c0_295 = arith.constant 0 : index
    %c0_296 = arith.constant 0 : index
    %413 = vector.load %arg17[%c0_295, %c0_296] : memref<128x128xf32, #tpu.memory_space<vmem>>, vector<128x128xf32>
    %cst_297 = arith.constant dense<0.000000e+00> : vector<2x128xf32>
    %414 = tpu.matmul %412, %413, %cst_297 {dimension_numbers = #tpu.dot_dimension_numbers<[1], [0], [0], [1], [0, 0, 1, 1], [], []>} : vector<2x128xf32>, vector<128x128xf32>, vector<2x128xf32> -> vector<2x128xf32>
    %415 = vector.extract_strided_slice %414 {offsets = [0, 0], sizes = [1, 128], strides = [1, 1]} : vector<2x128xf32> to vector<1x128xf32>
    %416 = vector.extract_strided_slice %414 {offsets = [1, 0], sizes = [1, 128], strides = [1, 1]} : vector<2x128xf32> to vector<1x128xf32>
    %417 = arith.mulf %415, %415 : vector<1x128xf32>
    %418 = arith.subf %416, %417 : vector<1x128xf32>
    %cst_298 = arith.constant 0.000000e+00 : f32
    %419 = vector.broadcast %cst_298 : f32 to vector<1x128xf32>
    %420 = arith.maximumf %418, %419 : vector<1x128xf32>
    %421 = vector.broadcast %415 : vector<1x128xf32> to vector<4x128xf32>
    %422 = arith.subf %406, %421 : vector<4x128xf32>
    %cst_299 = arith.constant 9.99999974E-6 : f32
    %423 = vector.broadcast %cst_299 : f32 to vector<1x128xf32>
    %424 = arith.addf %420, %423 : vector<1x128xf32>
    %425 = math.rsqrt %424 : vector<1x128xf32>
    %c0_300 = arith.constant 0 : index
    %c0_301 = arith.constant 0 : index
    %426 = vector.load %arg22[%c0_300, %c0_301] : memref<2x128xf32, #tpu.memory_space<vmem>>, vector<1x128xf32>
    %427 = arith.mulf %425, %426 : vector<1x128xf32>
    %428 = vector.broadcast %427 : vector<1x128xf32> to vector<4x128xf32>
    %429 = arith.mulf %422, %428 : vector<4x128xf32>
    %c1_302 = arith.constant 1 : index
    %c0_303 = arith.constant 0 : index
    %430 = vector.load %arg22[%c1_302, %c0_303] : memref<2x128xf32, #tpu.memory_space<vmem>>, vector<1x128xf32>
    %431 = vector.broadcast %430 : vector<1x128xf32> to vector<4x128xf32>
    %432 = arith.addf %429, %431 : vector<4x128xf32>
    %433 = arith.addf %432, %394 : vector<4x128xf32>
    %cst_304 = arith.constant 0.000000e+00 : f32
    %434 = vector.broadcast %cst_304 : f32 to vector<4x128xf32>
    %435 = arith.cmpf oge, %433, %434 : vector<4x128xf32>
    %cst_305 = arith.constant 0.00999999977 : f32
    %436 = vector.broadcast %cst_305 : f32 to vector<4x128xf32>
    %437 = arith.mulf %436, %433 : vector<4x128xf32>
    %438 = arith.select %435, %433, %437 : vector<4x128xi1>, vector<4x128xf32>
    %439 = arith.truncf %438 : vector<4x128xf32> to vector<4x128xbf16>
    %c0_306 = arith.constant 0 : index
    %c0_307 = arith.constant 0 : index
    %c0_308 = arith.constant 0 : index
    %440 = vector.load %arg23[%c0_306, %c0_307, %c0_308] : memref<2x128x128xbf16, #tpu.memory_space<vmem>>, vector<1x128x128xbf16>
    %441 = vector.shape_cast %440 : vector<1x128x128xbf16> to vector<128x128xbf16>
    %cst_309 = arith.constant dense<0.000000e+00> : vector<4x128xf32>
    %442 = tpu.matmul %439, %441, %cst_309 {dimension_numbers = #tpu.dot_dimension_numbers<[1], [0], [0], [1], [0, 0, 1, 1], [], []>} : vector<4x128xbf16>, vector<128x128xbf16>, vector<4x128xf32> -> vector<4x128xf32>
    %c0_310 = arith.constant 0 : index
    %c0_311 = arith.constant 0 : index
    %443 = tpu.strided_load %arg44[%c0_310, %c0_311] {strides = array<i32: 2, 1>} : memref<18x128xf32, #tpu.memory_space<vmem>>, vector<4x128xf32>
    tpu.strided_store %arg44[%c0_310, %c0_311], %442 {strides = array<i32: 2, 1>} : memref<18x128xf32, #tpu.memory_space<vmem>>, vector<4x128xf32>
    %c1_312 = arith.constant 1 : index
    %c0_313 = arith.constant 0 : index
    %c0_314 = arith.constant 0 : index
    %444 = vector.load %arg23[%c1_312, %c0_313, %c0_314] : memref<2x128x128xbf16, #tpu.memory_space<vmem>>, vector<1x128x128xbf16>
    %445 = vector.shape_cast %444 : vector<1x128x128xbf16> to vector<128x128xbf16>
    %cst_315 = arith.constant dense<0.000000e+00> : vector<4x128xf32>
    %446 = tpu.matmul %439, %445, %cst_315 {dimension_numbers = #tpu.dot_dimension_numbers<[1], [0], [0], [1], [0, 0, 1, 1], [], []>} : vector<4x128xbf16>, vector<128x128xbf16>, vector<4x128xf32> -> vector<4x128xf32>
    %c1_316 = arith.constant 1 : index
    %c0_317 = arith.constant 0 : index
    %447 = tpu.strided_load %arg44[%c1_316, %c0_317] {strides = array<i32: 2, 1>} : memref<18x128xf32, #tpu.memory_space<vmem>>, vector<4x128xf32>
    tpu.strided_store %arg44[%c1_316, %c0_317], %446 {strides = array<i32: 2, 1>} : memref<18x128xf32, #tpu.memory_space<vmem>>, vector<4x128xf32>
    %c0_318 = arith.constant 0 : index
    %c0_319 = arith.constant 0 : index
    %448 = vector.load %arg44[%c0_318, %c0_319] : memref<18x128xf32, #tpu.memory_space<vmem>>, vector<8x128xf32>
    %c0_320 = arith.constant 0 : index
    %c0_321 = arith.constant 0 : index
    %449 = vector.load %arg44[%c0_320, %c0_321] : memref<18x128xf32, #tpu.memory_space<vmem>>, vector<1x128xf32>
    tpu.vector_store %arg44[%c0_320, %c0_321], %0 {strides = array<i32>} : memref<18x128xf32, #tpu.memory_space<vmem>>, vector<1x128xf32>,
    %c9_322 = arith.constant 9 : index
    %c0_323 = arith.constant 0 : index
    %450 = vector.load %arg44[%c9_322, %c0_323] : memref<18x128xf32, #tpu.memory_space<vmem>>, vector<1x128xf32>
    tpu.vector_store %arg44[%c9_322, %c0_323], %0 {strides = array<i32>} : memref<18x128xf32, #tpu.memory_space<vmem>>, vector<1x128xf32>,
    %c1_324 = arith.constant 1 : index
    %c0_325 = arith.constant 0 : index
    %451 = vector.load %arg44[%c1_324, %c0_325] : memref<18x128xf32, #tpu.memory_space<vmem>>, vector<8x128xf32>
    tpu.vector_store %arg44[%c1_324, %c0_325], %448 {strides = array<i32>} : memref<18x128xf32, #tpu.memory_space<vmem>>, vector<8x128xf32>,
    %c0_326 = arith.constant 0 : index
    %c0_327 = arith.constant 0 : index
    %452 = vector.load %arg44[%c0_326, %c0_327] : memref<18x128xf32, #tpu.memory_space<vmem>>, vector<8x128xf32>
    %453 = arith.truncf %452 : vector<8x128xf32> to vector<8x128xbf16>
    %c0_328 = arith.constant 0 : index
    %c0_329 = arith.constant 0 : index
    %c0_330 = arith.constant 0 : index
    %454 = vector.load %arg24[%c0_328, %c0_329, %c0_330] : memref<3x128x128xbf16, #tpu.memory_space<vmem>>, vector<1x128x128xbf16>
    %455 = vector.shape_cast %454 : vector<1x128x128xbf16> to vector<128x128xbf16>
    %cst_331 = arith.constant dense<0.000000e+00> : vector<8x128xf32>
    %456 = tpu.matmul %453, %455, %cst_331 {dimension_numbers = #tpu.dot_dimension_numbers<[1], [0], [0], [1], [0, 0, 1, 1], [], []>} : vector<8x128xbf16>, vector<128x128xbf16>, vector<8x128xf32> -> vector<8x128xf32>
    %c1_332 = arith.constant 1 : index
    %c0_333 = arith.constant 0 : index
    %457 = vector.load %arg44[%c1_332, %c0_333] : memref<18x128xf32, #tpu.memory_space<vmem>>, vector<8x128xf32>
    %458 = arith.truncf %457 : vector<8x128xf32> to vector<8x128xbf16>
    %c1_334 = arith.constant 1 : index
    %c0_335 = arith.constant 0 : index
    %c0_336 = arith.constant 0 : index
    %459 = vector.load %arg24[%c1_334, %c0_335, %c0_336] : memref<3x128x128xbf16, #tpu.memory_space<vmem>>, vector<1x128x128xbf16>
    %460 = vector.shape_cast %459 : vector<1x128x128xbf16> to vector<128x128xbf16>
    %cst_337 = arith.constant dense<0.000000e+00> : vector<8x128xf32>
    %461 = tpu.matmul %458, %460, %cst_337 {dimension_numbers = #tpu.dot_dimension_numbers<[1], [0], [0], [1], [0, 0, 1, 1], [], []>} : vector<8x128xbf16>, vector<128x128xbf16>, vector<8x128xf32> -> vector<8x128xf32>
    %462 = arith.addf %456, %461 : vector<8x128xf32>
    %c2_338 = arith.constant 2 : index
    %c0_339 = arith.constant 0 : index
    %463 = vector.load %arg44[%c2_338, %c0_339] : memref<18x128xf32, #tpu.memory_space<vmem>>, vector<8x128xf32>
    %464 = arith.truncf %463 : vector<8x128xf32> to vector<8x128xbf16>
    %c2_340 = arith.constant 2 : index
    %c0_341 = arith.constant 0 : index
    %c0_342 = arith.constant 0 : index
    %465 = vector.load %arg24[%c2_340, %c0_341, %c0_342] : memref<3x128x128xbf16, #tpu.memory_space<vmem>>, vector<1x128x128xbf16>
    %466 = vector.shape_cast %465 : vector<1x128x128xbf16> to vector<128x128xbf16>
    %cst_343 = arith.constant dense<0.000000e+00> : vector<8x128xf32>
    %467 = tpu.matmul %464, %466, %cst_343 {dimension_numbers = #tpu.dot_dimension_numbers<[1], [0], [0], [1], [0, 0, 1, 1], [], []>} : vector<8x128xbf16>, vector<128x128xbf16>, vector<8x128xf32> -> vector<8x128xf32>
    %468 = arith.addf %462, %467 : vector<8x128xf32>
    %c0_344 = arith.constant 0 : index
    %c0_345 = arith.constant 0 : index
    %469 = vector.load %arg44[%c0_344, %c0_345] : memref<18x128xf32, #tpu.memory_space<vmem>>, vector<1x128xf32>
    tpu.vector_store %arg44[%c0_344, %c0_345], %0 {strides = array<i32>} : memref<18x128xf32, #tpu.memory_space<vmem>>, vector<1x128xf32>,
    %c9_346 = arith.constant 9 : index
    %c0_347 = arith.constant 0 : index
    %470 = vector.load %arg44[%c9_346, %c0_347] : memref<18x128xf32, #tpu.memory_space<vmem>>, vector<1x128xf32>
    tpu.vector_store %arg44[%c9_346, %c0_347], %0 {strides = array<i32>} : memref<18x128xf32, #tpu.memory_space<vmem>>, vector<1x128xf32>,
    %c1_348 = arith.constant 1 : index
    %c0_349 = arith.constant 0 : index
    %471 = vector.load %arg44[%c1_348, %c0_349] : memref<18x128xf32, #tpu.memory_space<vmem>>, vector<8x128xf32>
    tpu.vector_store %arg44[%c1_348, %c0_349], %297 {strides = array<i32>} : memref<18x128xf32, #tpu.memory_space<vmem>>, vector<8x128xf32>,
    %c0_350 = arith.constant 0 : index
    %c0_351 = arith.constant 0 : index
    %472 = vector.load %arg44[%c0_350, %c0_351] : memref<18x128xf32, #tpu.memory_space<vmem>>, vector<8x128xf32>
    %473 = arith.truncf %472 : vector<8x128xf32> to vector<8x128xbf16>
    %c0_352 = arith.constant 0 : index
    %c0_353 = arith.constant 0 : index
    %c0_354 = arith.constant 0 : index
    %474 = vector.load %arg25[%c0_352, %c0_353, %c0_354] : memref<3x128x128xbf16, #tpu.memory_space<vmem>>, vector<1x128x128xbf16>
    %475 = vector.shape_cast %474 : vector<1x128x128xbf16> to vector<128x128xbf16>
    %cst_355 = arith.constant dense<0.000000e+00> : vector<8x128xf32>
    %476 = tpu.matmul %473, %475, %cst_355 {dimension_numbers = #tpu.dot_dimension_numbers<[1], [0], [0], [1], [0, 0, 1, 1], [], []>} : vector<8x128xbf16>, vector<128x128xbf16>, vector<8x128xf32> -> vector<8x128xf32>
    %c1_356 = arith.constant 1 : index
    %c0_357 = arith.constant 0 : index
    %477 = vector.load %arg44[%c1_356, %c0_357] : memref<18x128xf32, #tpu.memory_space<vmem>>, vector<8x128xf32>
    %478 = arith.truncf %477 : vector<8x128xf32> to vector<8x128xbf16>
    %c1_358 = arith.constant 1 : index
    %c0_359 = arith.constant 0 : index
    %c0_360 = arith.constant 0 : index
    %479 = vector.load %arg25[%c1_358, %c0_359, %c0_360] : memref<3x128x128xbf16, #tpu.memory_space<vmem>>, vector<1x128x128xbf16>
    %480 = vector.shape_cast %479 : vector<1x128x128xbf16> to vector<128x128xbf16>
    %cst_361 = arith.constant dense<0.000000e+00> : vector<8x128xf32>
    %481 = tpu.matmul %478, %480, %cst_361 {dimension_numbers = #tpu.dot_dimension_numbers<[1], [0], [0], [1], [0, 0, 1, 1], [], []>} : vector<8x128xbf16>, vector<128x128xbf16>, vector<8x128xf32> -> vector<8x128xf32>
    %482 = arith.addf %476, %481 : vector<8x128xf32>
    %c2_362 = arith.constant 2 : index
    %c0_363 = arith.constant 0 : index
    %483 = vector.load %arg44[%c2_362, %c0_363] : memref<18x128xf32, #tpu.memory_space<vmem>>, vector<8x128xf32>
    %484 = arith.truncf %483 : vector<8x128xf32> to vector<8x128xbf16>
    %c2_364 = arith.constant 2 : index
    %c0_365 = arith.constant 0 : index
    %c0_366 = arith.constant 0 : index
    %485 = vector.load %arg25[%c2_364, %c0_365, %c0_366] : memref<3x128x128xbf16, #tpu.memory_space<vmem>>, vector<1x128x128xbf16>
    %486 = vector.shape_cast %485 : vector<1x128x128xbf16> to vector<128x128xbf16>
    %cst_367 = arith.constant dense<0.000000e+00> : vector<8x128xf32>
    %487 = tpu.matmul %484, %486, %cst_367 {dimension_numbers = #tpu.dot_dimension_numbers<[1], [0], [0], [1], [0, 0, 1, 1], [], []>} : vector<8x128xbf16>, vector<128x128xbf16>, vector<8x128xf32> -> vector<8x128xf32>
    %488 = arith.addf %482, %487 : vector<8x128xf32>
    %489 = arith.addf %468, %488 : vector<8x128xf32>
    %cst_368 = arith.constant dense<0.000000e+00> : vector<128xf32>
    %490 = vector.multi_reduction <add>, %489, %cst_368 [0] : vector<8x128xf32> to vector<128xf32>
    %491 = vector.shape_cast %490 : vector<128xf32> to vector<1x128xf32>
    %492 = arith.mulf %489, %489 : vector<8x128xf32>
    %cst_369 = arith.constant dense<0.000000e+00> : vector<128xf32>
    %493 = vector.multi_reduction <add>, %492, %cst_369 [0] : vector<8x128xf32> to vector<128xf32>
    %494 = vector.shape_cast %493 : vector<128xf32> to vector<1x128xf32>
    %495 = tpu.concatenate %491, %494 in 0 : vector<1x128xf32>, vector<1x128xf32> -> vector<2x128xf32>
    %c0_370 = arith.constant 0 : index
    %c0_371 = arith.constant 0 : index
    %496 = vector.load %arg10[%c0_370, %c0_371] : memref<128x128xf32, #tpu.memory_space<vmem>>, vector<128x128xf32>
    %cst_372 = arith.constant dense<0.000000e+00> : vector<2x128xf32>
    %497 = tpu.matmul %495, %496, %cst_372 {dimension_numbers = #tpu.dot_dimension_numbers<[1], [0], [0], [1], [0, 0, 1, 1], [], []>} : vector<2x128xf32>, vector<128x128xf32>, vector<2x128xf32> -> vector<2x128xf32>
    %498 = vector.extract_strided_slice %497 {offsets = [0, 0], sizes = [1, 128], strides = [1, 1]} : vector<2x128xf32> to vector<1x128xf32>
    %499 = vector.extract_strided_slice %497 {offsets = [1, 0], sizes = [1, 128], strides = [1, 1]} : vector<2x128xf32> to vector<1x128xf32>
    %500 = arith.mulf %498, %498 : vector<1x128xf32>
    %501 = arith.subf %499, %500 : vector<1x128xf32>
    %cst_373 = arith.constant 0.000000e+00 : f32
    %502 = vector.broadcast %cst_373 : f32 to vector<1x128xf32>
    %503 = arith.maximumf %501, %502 : vector<1x128xf32>
    %504 = vector.broadcast %498 : vector<1x128xf32> to vector<8x128xf32>
    %505 = arith.subf %489, %504 : vector<8x128xf32>
    %cst_374 = arith.constant 9.99999974E-6 : f32
    %506 = vector.broadcast %cst_374 : f32 to vector<1x128xf32>
    %507 = arith.addf %503, %506 : vector<1x128xf32>
    %508 = math.rsqrt %507 : vector<1x128xf32>
    %c0_375 = arith.constant 0 : index
    %c0_376 = arith.constant 0 : index
    %509 = vector.load %arg26[%c0_375, %c0_376] : memref<2x128xf32, #tpu.memory_space<vmem>>, vector<1x128xf32>
    %510 = arith.mulf %508, %509 : vector<1x128xf32>
    %511 = vector.broadcast %510 : vector<1x128xf32> to vector<8x128xf32>
    %512 = arith.mulf %505, %511 : vector<8x128xf32>
    %c1_377 = arith.constant 1 : index
    %c0_378 = arith.constant 0 : index
    %513 = vector.load %arg26[%c1_377, %c0_378] : memref<2x128xf32, #tpu.memory_space<vmem>>, vector<1x128xf32>
    %514 = vector.broadcast %513 : vector<1x128xf32> to vector<8x128xf32>
    %515 = arith.addf %512, %514 : vector<8x128xf32>
    %cst_379 = arith.constant 0.000000e+00 : f32
    %516 = vector.broadcast %cst_379 : f32 to vector<8x128xf32>
    %517 = arith.cmpf oge, %515, %516 : vector<8x128xf32>
    %cst_380 = arith.constant 0.00999999977 : f32
    %518 = vector.broadcast %cst_380 : f32 to vector<8x128xf32>
    %519 = arith.mulf %518, %515 : vector<8x128xf32>
    %520 = arith.select %517, %515, %519 : vector<8x128xi1>, vector<8x128xf32>
    %c0_381 = arith.constant 0 : index
    %c0_382 = arith.constant 0 : index
    %521 = vector.load %arg44[%c0_381, %c0_382] : memref<18x128xf32, #tpu.memory_space<vmem>>, vector<1x128xf32>
    tpu.vector_store %arg44[%c0_381, %c0_382], %0 {strides = array<i32>} : memref<18x128xf32, #tpu.memory_space<vmem>>, vector<1x128xf32>,
    %c9_383 = arith.constant 9 : index
    %c0_384 = arith.constant 0 : index
    %522 = vector.load %arg44[%c9_383, %c0_384] : memref<18x128xf32, #tpu.memory_space<vmem>>, vector<1x128xf32>
    tpu.vector_store %arg44[%c9_383, %c0_384], %0 {strides = array<i32>} : memref<18x128xf32, #tpu.memory_space<vmem>>, vector<1x128xf32>,
    %c1_385 = arith.constant 1 : index
    %c0_386 = arith.constant 0 : index
    %523 = vector.load %arg44[%c1_385, %c0_386] : memref<18x128xf32, #tpu.memory_space<vmem>>, vector<8x128xf32>
    tpu.vector_store %arg44[%c1_385, %c0_386], %520 {strides = array<i32>} : memref<18x128xf32, #tpu.memory_space<vmem>>, vector<8x128xf32>,
    %c0_387 = arith.constant 0 : index
    %c0_388 = arith.constant 0 : index
    %524 = vector.load %arg44[%c0_387, %c0_388] : memref<18x128xf32, #tpu.memory_space<vmem>>, vector<8x128xf32>
    %525 = arith.truncf %524 : vector<8x128xf32> to vector<8x128xbf16>
    %c0_389 = arith.constant 0 : index
    %c0_390 = arith.constant 0 : index
    %c0_391 = arith.constant 0 : index
    %526 = vector.load %arg27[%c0_389, %c0_390, %c0_391] : memref<3x128x128xbf16, #tpu.memory_space<vmem>>, vector<1x128x128xbf16>
    %527 = vector.shape_cast %526 : vector<1x128x128xbf16> to vector<128x128xbf16>
    %cst_392 = arith.constant dense<0.000000e+00> : vector<8x128xf32>
    %528 = tpu.matmul %525, %527, %cst_392 {dimension_numbers = #tpu.dot_dimension_numbers<[1], [0], [0], [1], [0, 0, 1, 1], [], []>} : vector<8x128xbf16>, vector<128x128xbf16>, vector<8x128xf32> -> vector<8x128xf32>
    %c1_393 = arith.constant 1 : index
    %c0_394 = arith.constant 0 : index
    %529 = vector.load %arg44[%c1_393, %c0_394] : memref<18x128xf32, #tpu.memory_space<vmem>>, vector<8x128xf32>
    %530 = arith.truncf %529 : vector<8x128xf32> to vector<8x128xbf16>
    %c1_395 = arith.constant 1 : index
    %c0_396 = arith.constant 0 : index
    %c0_397 = arith.constant 0 : index
    %531 = vector.load %arg27[%c1_395, %c0_396, %c0_397] : memref<3x128x128xbf16, #tpu.memory_space<vmem>>, vector<1x128x128xbf16>
    %532 = vector.shape_cast %531 : vector<1x128x128xbf16> to vector<128x128xbf16>
    %cst_398 = arith.constant dense<0.000000e+00> : vector<8x128xf32>
    %533 = tpu.matmul %530, %532, %cst_398 {dimension_numbers = #tpu.dot_dimension_numbers<[1], [0], [0], [1], [0, 0, 1, 1], [], []>} : vector<8x128xbf16>, vector<128x128xbf16>, vector<8x128xf32> -> vector<8x128xf32>
    %534 = arith.addf %528, %533 : vector<8x128xf32>
    %c2_399 = arith.constant 2 : index
    %c0_400 = arith.constant 0 : index
    %535 = vector.load %arg44[%c2_399, %c0_400] : memref<18x128xf32, #tpu.memory_space<vmem>>, vector<8x128xf32>
    %536 = arith.truncf %535 : vector<8x128xf32> to vector<8x128xbf16>
    %c2_401 = arith.constant 2 : index
    %c0_402 = arith.constant 0 : index
    %c0_403 = arith.constant 0 : index
    %537 = vector.load %arg27[%c2_401, %c0_402, %c0_403] : memref<3x128x128xbf16, #tpu.memory_space<vmem>>, vector<1x128x128xbf16>
    %538 = vector.shape_cast %537 : vector<1x128x128xbf16> to vector<128x128xbf16>
    %cst_404 = arith.constant dense<0.000000e+00> : vector<8x128xf32>
    %539 = tpu.matmul %536, %538, %cst_404 {dimension_numbers = #tpu.dot_dimension_numbers<[1], [0], [0], [1], [0, 0, 1, 1], [], []>} : vector<8x128xbf16>, vector<128x128xbf16>, vector<8x128xf32> -> vector<8x128xf32>
    %540 = arith.addf %534, %539 : vector<8x128xf32>
    %cst_405 = arith.constant dense<0.000000e+00> : vector<128xf32>
    %541 = vector.multi_reduction <add>, %540, %cst_405 [0] : vector<8x128xf32> to vector<128xf32>
    %542 = vector.shape_cast %541 : vector<128xf32> to vector<1x128xf32>
    %543 = arith.mulf %540, %540 : vector<8x128xf32>
    %cst_406 = arith.constant dense<0.000000e+00> : vector<128xf32>
    %544 = vector.multi_reduction <add>, %543, %cst_406 [0] : vector<8x128xf32> to vector<128xf32>
    %545 = vector.shape_cast %544 : vector<128xf32> to vector<1x128xf32>
    %546 = tpu.concatenate %542, %545 in 0 : vector<1x128xf32>, vector<1x128xf32> -> vector<2x128xf32>
    %c0_407 = arith.constant 0 : index
    %c0_408 = arith.constant 0 : index
    %547 = vector.load %arg10[%c0_407, %c0_408] : memref<128x128xf32, #tpu.memory_space<vmem>>, vector<128x128xf32>
    %cst_409 = arith.constant dense<0.000000e+00> : vector<2x128xf32>
    %548 = tpu.matmul %546, %547, %cst_409 {dimension_numbers = #tpu.dot_dimension_numbers<[1], [0], [0], [1], [0, 0, 1, 1], [], []>} : vector<2x128xf32>, vector<128x128xf32>, vector<2x128xf32> -> vector<2x128xf32>
    %549 = vector.extract_strided_slice %548 {offsets = [0, 0], sizes = [1, 128], strides = [1, 1]} : vector<2x128xf32> to vector<1x128xf32>
    %550 = vector.extract_strided_slice %548 {offsets = [1, 0], sizes = [1, 128], strides = [1, 1]} : vector<2x128xf32> to vector<1x128xf32>
    %551 = arith.mulf %549, %549 : vector<1x128xf32>
    %552 = arith.subf %550, %551 : vector<1x128xf32>
    %cst_410 = arith.constant 0.000000e+00 : f32
    %553 = vector.broadcast %cst_410 : f32 to vector<1x128xf32>
    %554 = arith.maximumf %552, %553 : vector<1x128xf32>
    %555 = vector.broadcast %549 : vector<1x128xf32> to vector<8x128xf32>
    %556 = arith.subf %540, %555 : vector<8x128xf32>
    %cst_411 = arith.constant 9.99999974E-6 : f32
    %557 = vector.broadcast %cst_411 : f32 to vector<1x128xf32>
    %558 = arith.addf %554, %557 : vector<1x128xf32>
    %559 = math.rsqrt %558 : vector<1x128xf32>
    %c0_412 = arith.constant 0 : index
    %c0_413 = arith.constant 0 : index
    %560 = vector.load %arg28[%c0_412, %c0_413] : memref<2x128xf32, #tpu.memory_space<vmem>>, vector<1x128xf32>
    %561 = arith.mulf %559, %560 : vector<1x128xf32>
    %562 = vector.broadcast %561 : vector<1x128xf32> to vector<8x128xf32>
    %563 = arith.mulf %556, %562 : vector<8x128xf32>
    %c1_414 = arith.constant 1 : index
    %c0_415 = arith.constant 0 : index
    %564 = vector.load %arg28[%c1_414, %c0_415] : memref<2x128xf32, #tpu.memory_space<vmem>>, vector<1x128xf32>
    %565 = vector.broadcast %564 : vector<1x128xf32> to vector<8x128xf32>
    %566 = arith.addf %563, %565 : vector<8x128xf32>
    %c0_416 = arith.constant 0 : index
    %c0_417 = arith.constant 0 : index
    %567 = vector.load %arg44[%c0_416, %c0_417] : memref<18x128xf32, #tpu.memory_space<vmem>>, vector<8x128xf32>
    tpu.vector_store %arg44[%c0_416, %c0_417], %448 {strides = array<i32>} : memref<18x128xf32, #tpu.memory_space<vmem>>, vector<8x128xf32>,
    %c0_418 = arith.constant 0 : index
    %c0_419 = arith.constant 0 : index
    %568 = vector.load %arg44[%c0_418, %c0_419] : memref<18x128xf32, #tpu.memory_space<vmem>>, vector<8x128xf32>
    %569 = arith.truncf %568 : vector<8x128xf32> to vector<8x128xbf16>
    %c0_420 = arith.constant 0 : index
    %c0_421 = arith.constant 0 : index
    %c0_422 = arith.constant 0 : index
    %570 = vector.load %arg29[%c0_420, %c0_421, %c0_422] : memref<1x128x128xbf16, #tpu.memory_space<vmem>>, vector<1x128x128xbf16>
    %571 = vector.shape_cast %570 : vector<1x128x128xbf16> to vector<128x128xbf16>
    %cst_423 = arith.constant dense<0.000000e+00> : vector<8x128xf32>
    %572 = tpu.matmul %569, %571, %cst_423 {dimension_numbers = #tpu.dot_dimension_numbers<[1], [0], [0], [1], [0, 0, 1, 1], [], []>} : vector<8x128xbf16>, vector<128x128xbf16>, vector<8x128xf32> -> vector<8x128xf32>
    %c0_424 = arith.constant 0 : index
    %c0_425 = arith.constant 0 : index
    %573 = vector.load %arg44[%c0_424, %c0_425] : memref<18x128xf32, #tpu.memory_space<vmem>>, vector<8x128xf32>
    tpu.vector_store %arg44[%c0_424, %c0_425], %297 {strides = array<i32>} : memref<18x128xf32, #tpu.memory_space<vmem>>, vector<8x128xf32>,
    %c0_426 = arith.constant 0 : index
    %c0_427 = arith.constant 0 : index
    %574 = vector.load %arg44[%c0_426, %c0_427] : memref<18x128xf32, #tpu.memory_space<vmem>>, vector<8x128xf32>
    %575 = arith.truncf %574 : vector<8x128xf32> to vector<8x128xbf16>
    %c0_428 = arith.constant 0 : index
    %c0_429 = arith.constant 0 : index
    %c0_430 = arith.constant 0 : index
    %576 = vector.load %arg30[%c0_428, %c0_429, %c0_430] : memref<1x128x128xbf16, #tpu.memory_space<vmem>>, vector<1x128x128xbf16>
    %577 = vector.shape_cast %576 : vector<1x128x128xbf16> to vector<128x128xbf16>
    %cst_431 = arith.constant dense<0.000000e+00> : vector<8x128xf32>
    %578 = tpu.matmul %575, %577, %cst_431 {dimension_numbers = #tpu.dot_dimension_numbers<[1], [0], [0], [1], [0, 0, 1, 1], [], []>} : vector<8x128xbf16>, vector<128x128xbf16>, vector<8x128xf32> -> vector<8x128xf32>
    %579 = arith.addf %572, %578 : vector<8x128xf32>
    %cst_432 = arith.constant dense<0.000000e+00> : vector<128xf32>
    %580 = vector.multi_reduction <add>, %579, %cst_432 [0] : vector<8x128xf32> to vector<128xf32>
    %581 = vector.shape_cast %580 : vector<128xf32> to vector<1x128xf32>
    %582 = arith.mulf %579, %579 : vector<8x128xf32>
    %cst_433 = arith.constant dense<0.000000e+00> : vector<128xf32>
    %583 = vector.multi_reduction <add>, %582, %cst_433 [0] : vector<8x128xf32> to vector<128xf32>
    %584 = vector.shape_cast %583 : vector<128xf32> to vector<1x128xf32>
    %585 = tpu.concatenate %581, %584 in 0 : vector<1x128xf32>, vector<1x128xf32> -> vector<2x128xf32>
    %c0_434 = arith.constant 0 : index
    %c0_435 = arith.constant 0 : index
    %586 = vector.load %arg10[%c0_434, %c0_435] : memref<128x128xf32, #tpu.memory_space<vmem>>, vector<128x128xf32>
    %cst_436 = arith.constant dense<0.000000e+00> : vector<2x128xf32>
    %587 = tpu.matmul %585, %586, %cst_436 {dimension_numbers = #tpu.dot_dimension_numbers<[1], [0], [0], [1], [0, 0, 1, 1], [], []>} : vector<2x128xf32>, vector<128x128xf32>, vector<2x128xf32> -> vector<2x128xf32>
    %588 = vector.extract_strided_slice %587 {offsets = [0, 0], sizes = [1, 128], strides = [1, 1]} : vector<2x128xf32> to vector<1x128xf32>
    %589 = vector.extract_strided_slice %587 {offsets = [1, 0], sizes = [1, 128], strides = [1, 1]} : vector<2x128xf32> to vector<1x128xf32>
    %590 = arith.mulf %588, %588 : vector<1x128xf32>
    %591 = arith.subf %589, %590 : vector<1x128xf32>
    %cst_437 = arith.constant 0.000000e+00 : f32
    %592 = vector.broadcast %cst_437 : f32 to vector<1x128xf32>
    %593 = arith.maximumf %591, %592 : vector<1x128xf32>
    %594 = vector.broadcast %588 : vector<1x128xf32> to vector<8x128xf32>
    %595 = arith.subf %579, %594 : vector<8x128xf32>
    %cst_438 = arith.constant 9.99999974E-6 : f32
    %596 = vector.broadcast %cst_438 : f32 to vector<1x128xf32>
    %597 = arith.addf %593, %596 : vector<1x128xf32>
    %598 = math.rsqrt %597 : vector<1x128xf32>
    %c0_439 = arith.constant 0 : index
    %c0_440 = arith.constant 0 : index
    %599 = vector.load %arg31[%c0_439, %c0_440] : memref<2x128xf32, #tpu.memory_space<vmem>>, vector<1x128xf32>
    %600 = arith.mulf %598, %599 : vector<1x128xf32>
    %601 = vector.broadcast %600 : vector<1x128xf32> to vector<8x128xf32>
    %602 = arith.mulf %595, %601 : vector<8x128xf32>
    %c1_441 = arith.constant 1 : index
    %c0_442 = arith.constant 0 : index
    %603 = vector.load %arg31[%c1_441, %c0_442] : memref<2x128xf32, #tpu.memory_space<vmem>>, vector<1x128xf32>
    %604 = vector.broadcast %603 : vector<1x128xf32> to vector<8x128xf32>
    %605 = arith.addf %602, %604 : vector<8x128xf32>
    %606 = arith.addf %605, %566 : vector<8x128xf32>
    %cst_443 = arith.constant 0.000000e+00 : f32
    %607 = vector.broadcast %cst_443 : f32 to vector<8x128xf32>
    %608 = arith.cmpf oge, %606, %607 : vector<8x128xf32>
    %cst_444 = arith.constant 0.00999999977 : f32
    %609 = vector.broadcast %cst_444 : f32 to vector<8x128xf32>
    %610 = arith.mulf %609, %606 : vector<8x128xf32>
    %611 = arith.select %608, %606, %610 : vector<8x128xi1>, vector<8x128xf32>
    %612 = arith.truncf %611 : vector<8x128xf32> to vector<8x128xbf16>
    %c0_445 = arith.constant 0 : index
    %c0_446 = arith.constant 0 : index
    %c0_447 = arith.constant 0 : index
    %613 = vector.load %arg32[%c0_445, %c0_446, %c0_447] : memref<2x128x128xbf16, #tpu.memory_space<vmem>>, vector<1x128x128xbf16>
    %614 = vector.shape_cast %613 : vector<1x128x128xbf16> to vector<128x128xbf16>
    %cst_448 = arith.constant dense<0.000000e+00> : vector<8x128xf32>
    %615 = tpu.matmul %612, %614, %cst_448 {dimension_numbers = #tpu.dot_dimension_numbers<[1], [0], [0], [1], [0, 0, 1, 1], [], []>} : vector<8x128xbf16>, vector<128x128xbf16>, vector<8x128xf32> -> vector<8x128xf32>
    %c0_449 = arith.constant 0 : index
    %c0_450 = arith.constant 0 : index
    %616 = tpu.strided_load %arg44[%c0_449, %c0_450] {strides = array<i32: 2, 1>} : memref<18x128xf32, #tpu.memory_space<vmem>>, vector<8x128xf32>
    tpu.strided_store %arg44[%c0_449, %c0_450], %615 {strides = array<i32: 2, 1>} : memref<18x128xf32, #tpu.memory_space<vmem>>, vector<8x128xf32>
    %c1_451 = arith.constant 1 : index
    %c0_452 = arith.constant 0 : index
    %c0_453 = arith.constant 0 : index
    %617 = vector.load %arg32[%c1_451, %c0_452, %c0_453] : memref<2x128x128xbf16, #tpu.memory_space<vmem>>, vector<1x128x128xbf16>
    %618 = vector.shape_cast %617 : vector<1x128x128xbf16> to vector<128x128xbf16>
    %cst_454 = arith.constant dense<0.000000e+00> : vector<8x128xf32>
    %619 = tpu.matmul %612, %618, %cst_454 {dimension_numbers = #tpu.dot_dimension_numbers<[1], [0], [0], [1], [0, 0, 1, 1], [], []>} : vector<8x128xbf16>, vector<128x128xbf16>, vector<8x128xf32> -> vector<8x128xf32>
    %c1_455 = arith.constant 1 : index
    %c0_456 = arith.constant 0 : index
    %620 = tpu.strided_load %arg44[%c1_455, %c0_456] {strides = array<i32: 2, 1>} : memref<18x128xf32, #tpu.memory_space<vmem>>, vector<8x128xf32>
    tpu.strided_store %arg44[%c1_455, %c0_456], %619 {strides = array<i32: 2, 1>} : memref<18x128xf32, #tpu.memory_space<vmem>>, vector<8x128xf32>
    %c0_457 = arith.constant 0 : index
    %c0_458 = arith.constant 0 : index
    %621 = vector.load %arg44[%c0_457, %c0_458] : memref<18x128xf32, #tpu.memory_space<vmem>>, vector<16x128xf32>
    %c0_459 = arith.constant 0 : index
    %c0_460 = arith.constant 0 : index
    %622 = vector.load %arg44[%c0_459, %c0_460] : memref<18x128xf32, #tpu.memory_space<vmem>>, vector<1x128xf32>
    tpu.vector_store %arg44[%c0_459, %c0_460], %0 {strides = array<i32>} : memref<18x128xf32, #tpu.memory_space<vmem>>, vector<1x128xf32>,
    %c17_461 = arith.constant 17 : index
    %c0_462 = arith.constant 0 : index
    %623 = vector.load %arg44[%c17_461, %c0_462] : memref<18x128xf32, #tpu.memory_space<vmem>>, vector<1x128xf32>
    tpu.vector_store %arg44[%c17_461, %c0_462], %0 {strides = array<i32>} : memref<18x128xf32, #tpu.memory_space<vmem>>, vector<1x128xf32>,
    %c1_463 = arith.constant 1 : index
    %c0_464 = arith.constant 0 : index
    %624 = vector.load %arg44[%c1_463, %c0_464] : memref<18x128xf32, #tpu.memory_space<vmem>>, vector<16x128xf32>
    tpu.vector_store %arg44[%c1_463, %c0_464], %621 {strides = array<i32>} : memref<18x128xf32, #tpu.memory_space<vmem>>, vector<16x128xf32>,
    %c0_465 = arith.constant 0 : index
    %c0_466 = arith.constant 0 : index
    %625 = vector.load %arg44[%c0_465, %c0_466] : memref<18x128xf32, #tpu.memory_space<vmem>>, vector<16x128xf32>
    %626 = arith.truncf %625 : vector<16x128xf32> to vector<16x128xbf16>
    %c0_467 = arith.constant 0 : index
    %c0_468 = arith.constant 0 : index
    %c0_469 = arith.constant 0 : index
    %627 = vector.load %arg33[%c0_467, %c0_468, %c0_469] : memref<3x128x128xbf16, #tpu.memory_space<vmem>>, vector<1x128x128xbf16>
    %628 = vector.shape_cast %627 : vector<1x128x128xbf16> to vector<128x128xbf16>
    %cst_470 = arith.constant dense<0.000000e+00> : vector<16x128xf32>
    %629 = tpu.matmul %626, %628, %cst_470 {dimension_numbers = #tpu.dot_dimension_numbers<[1], [0], [0], [1], [0, 0, 1, 1], [], []>} : vector<16x128xbf16>, vector<128x128xbf16>, vector<16x128xf32> -> vector<16x128xf32>
    %c1_471 = arith.constant 1 : index
    %c0_472 = arith.constant 0 : index
    %630 = vector.load %arg44[%c1_471, %c0_472] : memref<18x128xf32, #tpu.memory_space<vmem>>, vector<16x128xf32>
    %631 = arith.truncf %630 : vector<16x128xf32> to vector<16x128xbf16>
    %c1_473 = arith.constant 1 : index
    %c0_474 = arith.constant 0 : index
    %c0_475 = arith.constant 0 : index
    %632 = vector.load %arg33[%c1_473, %c0_474, %c0_475] : memref<3x128x128xbf16, #tpu.memory_space<vmem>>, vector<1x128x128xbf16>
    %633 = vector.shape_cast %632 : vector<1x128x128xbf16> to vector<128x128xbf16>
    %cst_476 = arith.constant dense<0.000000e+00> : vector<16x128xf32>
    %634 = tpu.matmul %631, %633, %cst_476 {dimension_numbers = #tpu.dot_dimension_numbers<[1], [0], [0], [1], [0, 0, 1, 1], [], []>} : vector<16x128xbf16>, vector<128x128xbf16>, vector<16x128xf32> -> vector<16x128xf32>
    %635 = arith.addf %629, %634 : vector<16x128xf32>
    %c2_477 = arith.constant 2 : index
    %c0_478 = arith.constant 0 : index
    %636 = vector.load %arg44[%c2_477, %c0_478] : memref<18x128xf32, #tpu.memory_space<vmem>>, vector<16x128xf32>
    %637 = arith.truncf %636 : vector<16x128xf32> to vector<16x128xbf16>
    %c2_479 = arith.constant 2 : index
    %c0_480 = arith.constant 0 : index
    %c0_481 = arith.constant 0 : index
    %638 = vector.load %arg33[%c2_479, %c0_480, %c0_481] : memref<3x128x128xbf16, #tpu.memory_space<vmem>>, vector<1x128x128xbf16>
    %639 = vector.shape_cast %638 : vector<1x128x128xbf16> to vector<128x128xbf16>
    %cst_482 = arith.constant dense<0.000000e+00> : vector<16x128xf32>
    %640 = tpu.matmul %637, %639, %cst_482 {dimension_numbers = #tpu.dot_dimension_numbers<[1], [0], [0], [1], [0, 0, 1, 1], [], []>} : vector<16x128xbf16>, vector<128x128xbf16>, vector<16x128xf32> -> vector<16x128xf32>
    %641 = arith.addf %635, %640 : vector<16x128xf32>
    %c0_483 = arith.constant 0 : index
    %c0_484 = arith.constant 0 : index
    %642 = vector.load %arg44[%c0_483, %c0_484] : memref<18x128xf32, #tpu.memory_space<vmem>>, vector<1x128xf32>
    tpu.vector_store %arg44[%c0_483, %c0_484], %0 {strides = array<i32>} : memref<18x128xf32, #tpu.memory_space<vmem>>, vector<1x128xf32>,
    %c17_485 = arith.constant 17 : index
    %c0_486 = arith.constant 0 : index
    %643 = vector.load %arg44[%c17_485, %c0_486] : memref<18x128xf32, #tpu.memory_space<vmem>>, vector<1x128xf32>
    tpu.vector_store %arg44[%c17_485, %c0_486], %0 {strides = array<i32>} : memref<18x128xf32, #tpu.memory_space<vmem>>, vector<1x128xf32>,
    %c1_487 = arith.constant 1 : index
    %c0_488 = arith.constant 0 : index
    %644 = vector.load %arg44[%c1_487, %c0_488] : memref<18x128xf32, #tpu.memory_space<vmem>>, vector<16x128xf32>
    tpu.vector_store %arg44[%c1_487, %c0_488], %156 {strides = array<i32>} : memref<18x128xf32, #tpu.memory_space<vmem>>, vector<16x128xf32>,
    %c0_489 = arith.constant 0 : index
    %c0_490 = arith.constant 0 : index
    %645 = vector.load %arg44[%c0_489, %c0_490] : memref<18x128xf32, #tpu.memory_space<vmem>>, vector<16x128xf32>
    %646 = arith.truncf %645 : vector<16x128xf32> to vector<16x128xbf16>
    %c0_491 = arith.constant 0 : index
    %c0_492 = arith.constant 0 : index
    %c0_493 = arith.constant 0 : index
    %647 = vector.load %arg34[%c0_491, %c0_492, %c0_493] : memref<3x128x128xbf16, #tpu.memory_space<vmem>>, vector<1x128x128xbf16>
    %648 = vector.shape_cast %647 : vector<1x128x128xbf16> to vector<128x128xbf16>
    %cst_494 = arith.constant dense<0.000000e+00> : vector<16x128xf32>
    %649 = tpu.matmul %646, %648, %cst_494 {dimension_numbers = #tpu.dot_dimension_numbers<[1], [0], [0], [1], [0, 0, 1, 1], [], []>} : vector<16x128xbf16>, vector<128x128xbf16>, vector<16x128xf32> -> vector<16x128xf32>
    %c1_495 = arith.constant 1 : index
    %c0_496 = arith.constant 0 : index
    %650 = vector.load %arg44[%c1_495, %c0_496] : memref<18x128xf32, #tpu.memory_space<vmem>>, vector<16x128xf32>
    %651 = arith.truncf %650 : vector<16x128xf32> to vector<16x128xbf16>
    %c1_497 = arith.constant 1 : index
    %c0_498 = arith.constant 0 : index
    %c0_499 = arith.constant 0 : index
    %652 = vector.load %arg34[%c1_497, %c0_498, %c0_499] : memref<3x128x128xbf16, #tpu.memory_space<vmem>>, vector<1x128x128xbf16>
    %653 = vector.shape_cast %652 : vector<1x128x128xbf16> to vector<128x128xbf16>
    %cst_500 = arith.constant dense<0.000000e+00> : vector<16x128xf32>
    %654 = tpu.matmul %651, %653, %cst_500 {dimension_numbers = #tpu.dot_dimension_numbers<[1], [0], [0], [1], [0, 0, 1, 1], [], []>} : vector<16x128xbf16>, vector<128x128xbf16>, vector<16x128xf32> -> vector<16x128xf32>
    %655 = arith.addf %649, %654 : vector<16x128xf32>
    %c2_501 = arith.constant 2 : index
    %c0_502 = arith.constant 0 : index
    %656 = vector.load %arg44[%c2_501, %c0_502] : memref<18x128xf32, #tpu.memory_space<vmem>>, vector<16x128xf32>
    %657 = arith.truncf %656 : vector<16x128xf32> to vector<16x128xbf16>
    %c2_503 = arith.constant 2 : index
    %c0_504 = arith.constant 0 : index
    %c0_505 = arith.constant 0 : index
    %658 = vector.load %arg34[%c2_503, %c0_504, %c0_505] : memref<3x128x128xbf16, #tpu.memory_space<vmem>>, vector<1x128x128xbf16>
    %659 = vector.shape_cast %658 : vector<1x128x128xbf16> to vector<128x128xbf16>
    %cst_506 = arith.constant dense<0.000000e+00> : vector<16x128xf32>
    %660 = tpu.matmul %657, %659, %cst_506 {dimension_numbers = #tpu.dot_dimension_numbers<[1], [0], [0], [1], [0, 0, 1, 1], [], []>} : vector<16x128xbf16>, vector<128x128xbf16>, vector<16x128xf32> -> vector<16x128xf32>
    %661 = arith.addf %655, %660 : vector<16x128xf32>
    %662 = arith.addf %641, %661 : vector<16x128xf32>
    %cst_507 = arith.constant dense<0.000000e+00> : vector<128xf32>
    %663 = vector.multi_reduction <add>, %662, %cst_507 [0] : vector<16x128xf32> to vector<128xf32>
    %664 = vector.shape_cast %663 : vector<128xf32> to vector<1x128xf32>
    %665 = arith.mulf %662, %662 : vector<16x128xf32>
    %cst_508 = arith.constant dense<0.000000e+00> : vector<128xf32>
    %666 = vector.multi_reduction <add>, %665, %cst_508 [0] : vector<16x128xf32> to vector<128xf32>
    %667 = vector.shape_cast %666 : vector<128xf32> to vector<1x128xf32>
    %668 = tpu.concatenate %664, %667 in 0 : vector<1x128xf32>, vector<1x128xf32> -> vector<2x128xf32>
    %c0_509 = arith.constant 0 : index
    %c0_510 = arith.constant 0 : index
    %669 = vector.load %arg3[%c0_509, %c0_510] : memref<128x128xf32, #tpu.memory_space<vmem>>, vector<128x128xf32>
    %cst_511 = arith.constant dense<0.000000e+00> : vector<2x128xf32>
    %670 = tpu.matmul %668, %669, %cst_511 {dimension_numbers = #tpu.dot_dimension_numbers<[1], [0], [0], [1], [0, 0, 1, 1], [], []>} : vector<2x128xf32>, vector<128x128xf32>, vector<2x128xf32> -> vector<2x128xf32>
    %671 = vector.extract_strided_slice %670 {offsets = [0, 0], sizes = [1, 128], strides = [1, 1]} : vector<2x128xf32> to vector<1x128xf32>
    %672 = vector.extract_strided_slice %670 {offsets = [1, 0], sizes = [1, 128], strides = [1, 1]} : vector<2x128xf32> to vector<1x128xf32>
    %673 = arith.mulf %671, %671 : vector<1x128xf32>
    %674 = arith.subf %672, %673 : vector<1x128xf32>
    %cst_512 = arith.constant 0.000000e+00 : f32
    %675 = vector.broadcast %cst_512 : f32 to vector<1x128xf32>
    %676 = arith.maximumf %674, %675 : vector<1x128xf32>
    %677 = vector.broadcast %671 : vector<1x128xf32> to vector<16x128xf32>
    %678 = arith.subf %662, %677 : vector<16x128xf32>
    %cst_513 = arith.constant 9.99999974E-6 : f32
    %679 = vector.broadcast %cst_513 : f32 to vector<1x128xf32>
    %680 = arith.addf %676, %679 : vector<1x128xf32>
    %681 = math.rsqrt %680 : vector<1x128xf32>
    %c0_514 = arith.constant 0 : index
    %c0_515 = arith.constant 0 : index
    %682 = vector.load %arg35[%c0_514, %c0_515] : memref<2x128xf32, #tpu.memory_space<vmem>>, vector<1x128xf32>
    %683 = arith.mulf %681, %682 : vector<1x128xf32>
    %684 = vector.broadcast %683 : vector<1x128xf32> to vector<16x128xf32>
    %685 = arith.mulf %678, %684 : vector<16x128xf32>
    %c1_516 = arith.constant 1 : index
    %c0_517 = arith.constant 0 : index
    %686 = vector.load %arg35[%c1_516, %c0_517] : memref<2x128xf32, #tpu.memory_space<vmem>>, vector<1x128xf32>
    %687 = vector.broadcast %686 : vector<1x128xf32> to vector<16x128xf32>
    %688 = arith.addf %685, %687 : vector<16x128xf32>
    %cst_518 = arith.constant 0.000000e+00 : f32
    %689 = vector.broadcast %cst_518 : f32 to vector<16x128xf32>
    %690 = arith.cmpf oge, %688, %689 : vector<16x128xf32>
    %cst_519 = arith.constant 0.00999999977 : f32
    %691 = vector.broadcast %cst_519 : f32 to vector<16x128xf32>
    %692 = arith.mulf %691, %688 : vector<16x128xf32>
    %693 = arith.select %690, %688, %692 : vector<16x128xi1>, vector<16x128xf32>
    %c0_520 = arith.constant 0 : index
    %c0_521 = arith.constant 0 : index
    %694 = vector.load %arg44[%c0_520, %c0_521] : memref<18x128xf32, #tpu.memory_space<vmem>>, vector<1x128xf32>
    tpu.vector_store %arg44[%c0_520, %c0_521], %0 {strides = array<i32>} : memref<18x128xf32, #tpu.memory_space<vmem>>, vector<1x128xf32>,
    %c17_522 = arith.constant 17 : index
    %c0_523 = arith.constant 0 : index
    %695 = vector.load %arg44[%c17_522, %c0_523] : memref<18x128xf32, #tpu.memory_space<vmem>>, vector<1x128xf32>
    tpu.vector_store %arg44[%c17_522, %c0_523], %0 {strides = array<i32>} : memref<18x128xf32, #tpu.memory_space<vmem>>, vector<1x128xf32>,
    %c1_524 = arith.constant 1 : index
    %c0_525 = arith.constant 0 : index
    %696 = vector.load %arg44[%c1_524, %c0_525] : memref<18x128xf32, #tpu.memory_space<vmem>>, vector<16x128xf32>
    tpu.vector_store %arg44[%c1_524, %c0_525], %693 {strides = array<i32>} : memref<18x128xf32, #tpu.memory_space<vmem>>, vector<16x128xf32>,
    %c0_526 = arith.constant 0 : index
    %c0_527 = arith.constant 0 : index
    %697 = vector.load %arg44[%c0_526, %c0_527] : memref<18x128xf32, #tpu.memory_space<vmem>>, vector<16x128xf32>
    %698 = arith.truncf %697 : vector<16x128xf32> to vector<16x128xbf16>
    %c0_528 = arith.constant 0 : index
    %c0_529 = arith.constant 0 : index
    %c0_530 = arith.constant 0 : index
    %699 = vector.load %arg36[%c0_528, %c0_529, %c0_530] : memref<3x128x128xbf16, #tpu.memory_space<vmem>>, vector<1x128x128xbf16>
    %700 = vector.shape_cast %699 : vector<1x128x128xbf16> to vector<128x128xbf16>
    %cst_531 = arith.constant dense<0.000000e+00> : vector<16x128xf32>
    %701 = tpu.matmul %698, %700, %cst_531 {dimension_numbers = #tpu.dot_dimension_numbers<[1], [0], [0], [1], [0, 0, 1, 1], [], []>} : vector<16x128xbf16>, vector<128x128xbf16>, vector<16x128xf32> -> vector<16x128xf32>
    %c1_532 = arith.constant 1 : index
    %c0_533 = arith.constant 0 : index
    %702 = vector.load %arg44[%c1_532, %c0_533] : memref<18x128xf32, #tpu.memory_space<vmem>>, vector<16x128xf32>
    %703 = arith.truncf %702 : vector<16x128xf32> to vector<16x128xbf16>
    %c1_534 = arith.constant 1 : index
    %c0_535 = arith.constant 0 : index
    %c0_536 = arith.constant 0 : index
    %704 = vector.load %arg36[%c1_534, %c0_535, %c0_536] : memref<3x128x128xbf16, #tpu.memory_space<vmem>>, vector<1x128x128xbf16>
    %705 = vector.shape_cast %704 : vector<1x128x128xbf16> to vector<128x128xbf16>
    %cst_537 = arith.constant dense<0.000000e+00> : vector<16x128xf32>
    %706 = tpu.matmul %703, %705, %cst_537 {dimension_numbers = #tpu.dot_dimension_numbers<[1], [0], [0], [1], [0, 0, 1, 1], [], []>} : vector<16x128xbf16>, vector<128x128xbf16>, vector<16x128xf32> -> vector<16x128xf32>
    %707 = arith.addf %701, %706 : vector<16x128xf32>
    %c2_538 = arith.constant 2 : index
    %c0_539 = arith.constant 0 : index
    %708 = vector.load %arg44[%c2_538, %c0_539] : memref<18x128xf32, #tpu.memory_space<vmem>>, vector<16x128xf32>
    %709 = arith.truncf %708 : vector<16x128xf32> to vector<16x128xbf16>
    %c2_540 = arith.constant 2 : index
    %c0_541 = arith.constant 0 : index
    %c0_542 = arith.constant 0 : index
    %710 = vector.load %arg36[%c2_540, %c0_541, %c0_542] : memref<3x128x128xbf16, #tpu.memory_space<vmem>>, vector<1x128x128xbf16>
    %711 = vector.shape_cast %710 : vector<1x128x128xbf16> to vector<128x128xbf16>
    %cst_543 = arith.constant dense<0.000000e+00> : vector<16x128xf32>
    %712 = tpu.matmul %709, %711, %cst_543 {dimension_numbers = #tpu.dot_dimension_numbers<[1], [0], [0], [1], [0, 0, 1, 1], [], []>} : vector<16x128xbf16>, vector<128x128xbf16>, vector<16x128xf32> -> vector<16x128xf32>
    %713 = arith.addf %707, %712 : vector<16x128xf32>
    %cst_544 = arith.constant dense<0.000000e+00> : vector<128xf32>
    %714 = vector.multi_reduction <add>, %713, %cst_544 [0] : vector<16x128xf32> to vector<128xf32>
    %715 = vector.shape_cast %714 : vector<128xf32> to vector<1x128xf32>
    %716 = arith.mulf %713, %713 : vector<16x128xf32>
    %cst_545 = arith.constant dense<0.000000e+00> : vector<128xf32>
    %717 = vector.multi_reduction <add>, %716, %cst_545 [0] : vector<16x128xf32> to vector<128xf32>
    %718 = vector.shape_cast %717 : vector<128xf32> to vector<1x128xf32>
    %719 = tpu.concatenate %715, %718 in 0 : vector<1x128xf32>, vector<1x128xf32> -> vector<2x128xf32>
    %c0_546 = arith.constant 0 : index
    %c0_547 = arith.constant 0 : index
    %720 = vector.load %arg3[%c0_546, %c0_547] : memref<128x128xf32, #tpu.memory_space<vmem>>, vector<128x128xf32>
    %cst_548 = arith.constant dense<0.000000e+00> : vector<2x128xf32>
    %721 = tpu.matmul %719, %720, %cst_548 {dimension_numbers = #tpu.dot_dimension_numbers<[1], [0], [0], [1], [0, 0, 1, 1], [], []>} : vector<2x128xf32>, vector<128x128xf32>, vector<2x128xf32> -> vector<2x128xf32>
    %722 = vector.extract_strided_slice %721 {offsets = [0, 0], sizes = [1, 128], strides = [1, 1]} : vector<2x128xf32> to vector<1x128xf32>
    %723 = vector.extract_strided_slice %721 {offsets = [1, 0], sizes = [1, 128], strides = [1, 1]} : vector<2x128xf32> to vector<1x128xf32>
    %724 = arith.mulf %722, %722 : vector<1x128xf32>
    %725 = arith.subf %723, %724 : vector<1x128xf32>
    %cst_549 = arith.constant 0.000000e+00 : f32
    %726 = vector.broadcast %cst_549 : f32 to vector<1x128xf32>
    %727 = arith.maximumf %725, %726 : vector<1x128xf32>
    %728 = vector.broadcast %722 : vector<1x128xf32> to vector<16x128xf32>
    %729 = arith.subf %713, %728 : vector<16x128xf32>
    %cst_550 = arith.constant 9.99999974E-6 : f32
    %730 = vector.broadcast %cst_550 : f32 to vector<1x128xf32>
    %731 = arith.addf %727, %730 : vector<1x128xf32>
    %732 = math.rsqrt %731 : vector<1x128xf32>
    %c0_551 = arith.constant 0 : index
    %c0_552 = arith.constant 0 : index
    %733 = vector.load %arg37[%c0_551, %c0_552] : memref<2x128xf32, #tpu.memory_space<vmem>>, vector<1x128xf32>
    %734 = arith.mulf %732, %733 : vector<1x128xf32>
    %735 = vector.broadcast %734 : vector<1x128xf32> to vector<16x128xf32>
    %736 = arith.mulf %729, %735 : vector<16x128xf32>
    %c1_553 = arith.constant 1 : index
    %c0_554 = arith.constant 0 : index
    %737 = vector.load %arg37[%c1_553, %c0_554] : memref<2x128xf32, #tpu.memory_space<vmem>>, vector<1x128xf32>
    %738 = vector.broadcast %737 : vector<1x128xf32> to vector<16x128xf32>
    %739 = arith.addf %736, %738 : vector<16x128xf32>
    %c0_555 = arith.constant 0 : index
    %c0_556 = arith.constant 0 : index
    %740 = vector.load %arg44[%c0_555, %c0_556] : memref<18x128xf32, #tpu.memory_space<vmem>>, vector<16x128xf32>
    tpu.vector_store %arg44[%c0_555, %c0_556], %621 {strides = array<i32>} : memref<18x128xf32, #tpu.memory_space<vmem>>, vector<16x128xf32>,
    %c0_557 = arith.constant 0 : index
    %c0_558 = arith.constant 0 : index
    %741 = vector.load %arg44[%c0_557, %c0_558] : memref<18x128xf32, #tpu.memory_space<vmem>>, vector<16x128xf32>
    %742 = arith.truncf %741 : vector<16x128xf32> to vector<16x128xbf16>
    %c0_559 = arith.constant 0 : index
    %c0_560 = arith.constant 0 : index
    %c0_561 = arith.constant 0 : index
    %743 = vector.load %arg38[%c0_559, %c0_560, %c0_561] : memref<1x128x128xbf16, #tpu.memory_space<vmem>>, vector<1x128x128xbf16>
    %744 = vector.shape_cast %743 : vector<1x128x128xbf16> to vector<128x128xbf16>
    %cst_562 = arith.constant dense<0.000000e+00> : vector<16x128xf32>
    %745 = tpu.matmul %742, %744, %cst_562 {dimension_numbers = #tpu.dot_dimension_numbers<[1], [0], [0], [1], [0, 0, 1, 1], [], []>} : vector<16x128xbf16>, vector<128x128xbf16>, vector<16x128xf32> -> vector<16x128xf32>
    %c0_563 = arith.constant 0 : index
    %c0_564 = arith.constant 0 : index
    %746 = vector.load %arg44[%c0_563, %c0_564] : memref<18x128xf32, #tpu.memory_space<vmem>>, vector<16x128xf32>
    tpu.vector_store %arg44[%c0_563, %c0_564], %156 {strides = array<i32>} : memref<18x128xf32, #tpu.memory_space<vmem>>, vector<16x128xf32>,
    %c0_565 = arith.constant 0 : index
    %c0_566 = arith.constant 0 : index
    %747 = vector.load %arg44[%c0_565, %c0_566] : memref<18x128xf32, #tpu.memory_space<vmem>>, vector<16x128xf32>
    %748 = arith.truncf %747 : vector<16x128xf32> to vector<16x128xbf16>
    %c0_567 = arith.constant 0 : index
    %c0_568 = arith.constant 0 : index
    %c0_569 = arith.constant 0 : index
    %749 = vector.load %arg39[%c0_567, %c0_568, %c0_569] : memref<1x128x128xbf16, #tpu.memory_space<vmem>>, vector<1x128x128xbf16>
    %750 = vector.shape_cast %749 : vector<1x128x128xbf16> to vector<128x128xbf16>
    %cst_570 = arith.constant dense<0.000000e+00> : vector<16x128xf32>
    %751 = tpu.matmul %748, %750, %cst_570 {dimension_numbers = #tpu.dot_dimension_numbers<[1], [0], [0], [1], [0, 0, 1, 1], [], []>} : vector<16x128xbf16>, vector<128x128xbf16>, vector<16x128xf32> -> vector<16x128xf32>
    %752 = arith.addf %745, %751 : vector<16x128xf32>
    %cst_571 = arith.constant dense<0.000000e+00> : vector<128xf32>
    %753 = vector.multi_reduction <add>, %752, %cst_571 [0] : vector<16x128xf32> to vector<128xf32>
    %754 = vector.shape_cast %753 : vector<128xf32> to vector<1x128xf32>
    %755 = arith.mulf %752, %752 : vector<16x128xf32>
    %cst_572 = arith.constant dense<0.000000e+00> : vector<128xf32>
    %756 = vector.multi_reduction <add>, %755, %cst_572 [0] : vector<16x128xf32> to vector<128xf32>
    %757 = vector.shape_cast %756 : vector<128xf32> to vector<1x128xf32>
    %758 = tpu.concatenate %754, %757 in 0 : vector<1x128xf32>, vector<1x128xf32> -> vector<2x128xf32>
    %c0_573 = arith.constant 0 : index
    %c0_574 = arith.constant 0 : index
    %759 = vector.load %arg3[%c0_573, %c0_574] : memref<128x128xf32, #tpu.memory_space<vmem>>, vector<128x128xf32>
    %cst_575 = arith.constant dense<0.000000e+00> : vector<2x128xf32>
    %760 = tpu.matmul %758, %759, %cst_575 {dimension_numbers = #tpu.dot_dimension_numbers<[1], [0], [0], [1], [0, 0, 1, 1], [], []>} : vector<2x128xf32>, vector<128x128xf32>, vector<2x128xf32> -> vector<2x128xf32>
    %761 = vector.extract_strided_slice %760 {offsets = [0, 0], sizes = [1, 128], strides = [1, 1]} : vector<2x128xf32> to vector<1x128xf32>
    %762 = vector.extract_strided_slice %760 {offsets = [1, 0], sizes = [1, 128], strides = [1, 1]} : vector<2x128xf32> to vector<1x128xf32>
    %763 = arith.mulf %761, %761 : vector<1x128xf32>
    %764 = arith.subf %762, %763 : vector<1x128xf32>
    %cst_576 = arith.constant 0.000000e+00 : f32
    %765 = vector.broadcast %cst_576 : f32 to vector<1x128xf32>
    %766 = arith.maximumf %764, %765 : vector<1x128xf32>
    %767 = vector.broadcast %761 : vector<1x128xf32> to vector<16x128xf32>
    %768 = arith.subf %752, %767 : vector<16x128xf32>
    %cst_577 = arith.constant 9.99999974E-6 : f32
    %769 = vector.broadcast %cst_577 : f32 to vector<1x128xf32>
    %770 = arith.addf %766, %769 : vector<1x128xf32>
    %771 = math.rsqrt %770 : vector<1x128xf32>
    %c0_578 = arith.constant 0 : index
    %c0_579 = arith.constant 0 : index
    %772 = vector.load %arg40[%c0_578, %c0_579] : memref<2x128xf32, #tpu.memory_space<vmem>>, vector<1x128xf32>
    %773 = arith.mulf %771, %772 : vector<1x128xf32>
    %774 = vector.broadcast %773 : vector<1x128xf32> to vector<16x128xf32>
    %775 = arith.mulf %768, %774 : vector<16x128xf32>
    %c1_580 = arith.constant 1 : index
    %c0_581 = arith.constant 0 : index
    %776 = vector.load %arg40[%c1_580, %c0_581] : memref<2x128xf32, #tpu.memory_space<vmem>>, vector<1x128xf32>
    %777 = vector.broadcast %776 : vector<1x128xf32> to vector<16x128xf32>
    %778 = arith.addf %775, %777 : vector<16x128xf32>
    %779 = arith.addf %778, %739 : vector<16x128xf32>
    %cst_582 = arith.constant 0.000000e+00 : f32
    %780 = vector.broadcast %cst_582 : f32 to vector<16x128xf32>
    %781 = arith.cmpf oge, %779, %780 : vector<16x128xf32>
    %cst_583 = arith.constant 0.00999999977 : f32
    %782 = vector.broadcast %cst_583 : f32 to vector<16x128xf32>
    %783 = arith.mulf %782, %779 : vector<16x128xf32>
    %784 = arith.select %781, %779, %783 : vector<16x128xi1>, vector<16x128xf32>
    %c0_584 = arith.constant 0 : index
    %c0_585 = arith.constant 0 : index
    %785 = vector.load %arg44[%c0_584, %c0_585] : memref<18x128xf32, #tpu.memory_space<vmem>>, vector<16x128xf32>
    tpu.vector_store %arg44[%c0_584, %c0_585], %784 {strides = array<i32>} : memref<18x128xf32, #tpu.memory_space<vmem>>, vector<16x128xf32>,
    %c0_586 = arith.constant 0 : index
    %c0_587 = arith.constant 0 : index
    %786 = vector.load %arg44[%c0_586, %c0_587] : memref<18x128xf32, #tpu.memory_space<vmem>>, vector<16x128xf32>
    %787 = arith.truncf %786 : vector<16x128xf32> to vector<16x128xbf16>
    %c0_588 = arith.constant 0 : index
    %c0_589 = arith.constant 0 : index
    %c0_590 = arith.constant 0 : index
    %788 = vector.load %arg41[%c0_588, %c0_589, %c0_590] : memref<1x128x128xbf16, #tpu.memory_space<vmem>>, vector<1x128x128xbf16>
    %789 = vector.shape_cast %788 : vector<1x128x128xbf16> to vector<128x128xbf16>
    %cst_591 = arith.constant dense<0.000000e+00> : vector<16x128xf32>
    %790 = tpu.matmul %787, %789, %cst_591 {dimension_numbers = #tpu.dot_dimension_numbers<[1], [0], [0], [1], [0, 0, 1, 1], [], []>} : vector<16x128xbf16>, vector<128x128xbf16>, vector<16x128xf32> -> vector<16x128xf32>
    %c0_592 = arith.constant 0 : index
    %c0_593 = arith.constant 0 : index
    %791 = vector.load %arg42[%c0_592, %c0_593] : memref<1x128xf32, #tpu.memory_space<vmem>>, vector<1x128xf32>
    %792 = vector.broadcast %791 : vector<1x128xf32> to vector<16x128xf32>
    %793 = arith.addf %790, %792 : vector<16x128xf32>
    %c0_594 = arith.constant 0 : index
    %c0_595 = arith.constant 0 : index
    %c0_596 = arith.constant 0 : index
    %794 = vector.load %arg43[%c0_594, %c0_595, %c0_596] : memref<1x16x128xf32, #tpu.memory_space<vmem>>, vector<1x16x128xf32>
    %795 = vector.shape_cast %794 : vector<1x16x128xf32> to vector<16x128xf32>
    %796 = vector.shape_cast %793 : vector<16x128xf32> to vector<1x16x128xf32>
    tpu.vector_store %arg43[%c0_594, %c0_595, %c0_596], %796 {strides = array<i32>} : memref<1x16x128xf32, #tpu.memory_space<vmem>>, vector<1x16x128xf32>,
    return
  }
  func.func @transform_0(%arg0: i32) -> (i32, i32, i32) {
    %c0_i32 = arith.constant 0 : i32
    %c0_i32_0 = arith.constant 0 : i32
    %c0_i32_1 = arith.constant 0 : i32
    return %arg0, %c0_i32, %c0_i32_0 : i32, i32, i32
  }
  func.func @transform_1(%arg0: i32) -> (i32, i32, i32) {
    %c0_i32 = arith.constant 0 : i32
    %c0_i32_0 = arith.constant 0 : i32
    %c0_i32_1 = arith.constant 0 : i32
    %c0_i32_2 = arith.constant 0 : i32
    return %c0_i32, %c0_i32_0, %c0_i32_1 : i32, i32, i32
  }
  func.func @transform_2(%arg0: i32) -> (i32, i32) {
    %c0_i32 = arith.constant 0 : i32
    %c0_i32_0 = arith.constant 0 : i32
    %c0_i32_1 = arith.constant 0 : i32
    return %c0_i32, %c0_i32_0 : i32, i32
  }
  func.func @transform_3(%arg0: i32) -> (i32, i32) {
    %c0_i32 = arith.constant 0 : i32
    %c0_i32_0 = arith.constant 0 : i32
    %c0_i32_1 = arith.constant 0 : i32
    return %c0_i32, %c0_i32_0 : i32, i32
  }
  func.func @transform_4(%arg0: i32) -> (i32, i32, i32) {
    %c0_i32 = arith.constant 0 : i32
    %c0_i32_0 = arith.constant 0 : i32
    %c0_i32_1 = arith.constant 0 : i32
    %c0_i32_2 = arith.constant 0 : i32
    return %c0_i32, %c0_i32_0, %c0_i32_1 : i32, i32, i32
  }
  func.func @transform_5(%arg0: i32) -> (i32, i32) {
    %c0_i32 = arith.constant 0 : i32
    %c0_i32_0 = arith.constant 0 : i32
    %c0_i32_1 = arith.constant 0 : i32
    return %c0_i32, %c0_i32_0 : i32, i32
  }
  func.func @transform_6(%arg0: i32) -> (i32, i32, i32) {
    %c0_i32 = arith.constant 0 : i32
    %c0_i32_0 = arith.constant 0 : i32
    %c0_i32_1 = arith.constant 0 : i32
    %c0_i32_2 = arith.constant 0 : i32
    return %c0_i32, %c0_i32_0, %c0_i32_1 : i32, i32, i32
  }
  func.func @transform_7(%arg0: i32) -> (i32, i32) {
    %c0_i32 = arith.constant 0 : i32
    %c0_i32_0 = arith.constant 0 : i32
    %c0_i32_1 = arith.constant 0 : i32
    return %c0_i32, %c0_i32_0 : i32, i32
  }
  func.func @transform_8(%arg0: i32) -> (i32, i32, i32) {
    %c0_i32 = arith.constant 0 : i32
    %c0_i32_0 = arith.constant 0 : i32
    %c0_i32_1 = arith.constant 0 : i32
    %c0_i32_2 = arith.constant 0 : i32
    return %c0_i32, %c0_i32_0, %c0_i32_1 : i32, i32, i32
  }
  func.func @transform_9(%arg0: i32) -> (i32, i32) {
    %c0_i32 = arith.constant 0 : i32
    %c0_i32_0 = arith.constant 0 : i32
    %c0_i32_1 = arith.constant 0 : i32
    return %c0_i32, %c0_i32_0 : i32, i32
  }
  func.func @transform_10(%arg0: i32) -> (i32, i32) {
    %c0_i32 = arith.constant 0 : i32
    %c0_i32_0 = arith.constant 0 : i32
    %c0_i32_1 = arith.constant 0 : i32
    return %c0_i32, %c0_i32_0 : i32, i32
  }
  func.func @transform_11(%arg0: i32) -> (i32, i32, i32) {
    %c0_i32 = arith.constant 0 : i32
    %c0_i32_0 = arith.constant 0 : i32
    %c0_i32_1 = arith.constant 0 : i32
    %c0_i32_2 = arith.constant 0 : i32
    return %c0_i32, %c0_i32_0, %c0_i32_1 : i32, i32, i32
  }
  func.func @transform_12(%arg0: i32) -> (i32, i32) {
    %c0_i32 = arith.constant 0 : i32
    %c0_i32_0 = arith.constant 0 : i32
    %c0_i32_1 = arith.constant 0 : i32
    return %c0_i32, %c0_i32_0 : i32, i32
  }
  func.func @transform_13(%arg0: i32) -> (i32, i32, i32) {
    %c0_i32 = arith.constant 0 : i32
    %c0_i32_0 = arith.constant 0 : i32
    %c0_i32_1 = arith.constant 0 : i32
    %c0_i32_2 = arith.constant 0 : i32
    return %c0_i32, %c0_i32_0, %c0_i32_1 : i32, i32, i32
  }
  func.func @transform_14(%arg0: i32) -> (i32, i32) {
    %c0_i32 = arith.constant 0 : i32
    %c0_i32_0 = arith.constant 0 : i32
    %c0_i32_1 = arith.constant 0 : i32
    return %c0_i32, %c0_i32_0 : i32, i32
  }
  func.func @transform_15(%arg0: i32) -> (i32, i32, i32) {
    %c0_i32 = arith.constant 0 : i32
    %c0_i32_0 = arith.constant 0 : i32
    %c0_i32_1 = arith.constant 0 : i32
    %c0_i32_2 = arith.constant 0 : i32
    return %c0_i32, %c0_i32_0, %c0_i32_1 : i32, i32, i32
  }
  func.func @transform_16(%arg0: i32) -> (i32, i32) {
    %c0_i32 = arith.constant 0 : i32
    %c0_i32_0 = arith.constant 0 : i32
    %c0_i32_1 = arith.constant 0 : i32
    return %c0_i32, %c0_i32_0 : i32, i32
  }
  func.func @transform_17(%arg0: i32) -> (i32, i32) {
    %c0_i32 = arith.constant 0 : i32
    %c0_i32_0 = arith.constant 0 : i32
    %c0_i32_1 = arith.constant 0 : i32
    return %c0_i32, %c0_i32_0 : i32, i32
  }
  func.func @transform_18(%arg0: i32) -> (i32, i32, i32) {
    %c0_i32 = arith.constant 0 : i32
    %c0_i32_0 = arith.constant 0 : i32
    %c0_i32_1 = arith.constant 0 : i32
    %c0_i32_2 = arith.constant 0 : i32
    return %c0_i32, %c0_i32_0, %c0_i32_1 : i32, i32, i32
  }
  func.func @transform_19(%arg0: i32) -> (i32, i32) {
    %c0_i32 = arith.constant 0 : i32
    %c0_i32_0 = arith.constant 0 : i32
    %c0_i32_1 = arith.constant 0 : i32
    return %c0_i32, %c0_i32_0 : i32, i32
  }
  func.func @transform_20(%arg0: i32) -> (i32, i32, i32) {
    %c0_i32 = arith.constant 0 : i32
    %c0_i32_0 = arith.constant 0 : i32
    %c0_i32_1 = arith.constant 0 : i32
    %c0_i32_2 = arith.constant 0 : i32
    return %c0_i32, %c0_i32_0, %c0_i32_1 : i32, i32, i32
  }
  func.func @transform_21(%arg0: i32) -> (i32, i32) {
    %c0_i32 = arith.constant 0 : i32
    %c0_i32_0 = arith.constant 0 : i32
    %c0_i32_1 = arith.constant 0 : i32
    return %c0_i32, %c0_i32_0 : i32, i32
  }
  func.func @transform_22(%arg0: i32) -> (i32, i32, i32) {
    %c0_i32 = arith.constant 0 : i32
    %c0_i32_0 = arith.constant 0 : i32
    %c0_i32_1 = arith.constant 0 : i32
    %c0_i32_2 = arith.constant 0 : i32
    return %c0_i32, %c0_i32_0, %c0_i32_1 : i32, i32, i32
  }
  func.func @transform_23(%arg0: i32) -> (i32, i32, i32) {
    %c0_i32 = arith.constant 0 : i32
    %c0_i32_0 = arith.constant 0 : i32
    %c0_i32_1 = arith.constant 0 : i32
    %c0_i32_2 = arith.constant 0 : i32
    return %c0_i32, %c0_i32_0, %c0_i32_1 : i32, i32, i32
  }
  func.func @transform_24(%arg0: i32) -> (i32, i32, i32) {
    %c0_i32 = arith.constant 0 : i32
    %c0_i32_0 = arith.constant 0 : i32
    %c0_i32_1 = arith.constant 0 : i32
    %c0_i32_2 = arith.constant 0 : i32
    return %c0_i32, %c0_i32_0, %c0_i32_1 : i32, i32, i32
  }
  func.func @transform_25(%arg0: i32) -> (i32, i32) {
    %c0_i32 = arith.constant 0 : i32
    %c0_i32_0 = arith.constant 0 : i32
    %c0_i32_1 = arith.constant 0 : i32
    return %c0_i32, %c0_i32_0 : i32, i32
  }
  func.func @transform_26(%arg0: i32) -> (i32, i32, i32) {
    %c0_i32 = arith.constant 0 : i32
    %c0_i32_0 = arith.constant 0 : i32
    %c0_i32_1 = arith.constant 0 : i32
    %c0_i32_2 = arith.constant 0 : i32
    return %c0_i32, %c0_i32_0, %c0_i32_1 : i32, i32, i32
  }
  func.func @transform_27(%arg0: i32) -> (i32, i32) {
    %c0_i32 = arith.constant 0 : i32
    %c0_i32_0 = arith.constant 0 : i32
    %c0_i32_1 = arith.constant 0 : i32
    return %c0_i32, %c0_i32_0 : i32, i32
  }
  func.func @transform_28(%arg0: i32) -> (i32, i32, i32) {
    %c0_i32 = arith.constant 0 : i32
    %c0_i32_0 = arith.constant 0 : i32
    %c0_i32_1 = arith.constant 0 : i32
    %c0_i32_2 = arith.constant 0 : i32
    return %c0_i32, %c0_i32_0, %c0_i32_1 : i32, i32, i32
  }
  func.func @transform_29(%arg0: i32) -> (i32, i32, i32) {
    %c0_i32 = arith.constant 0 : i32
    %c0_i32_0 = arith.constant 0 : i32
    %c0_i32_1 = arith.constant 0 : i32
    %c0_i32_2 = arith.constant 0 : i32
    return %c0_i32, %c0_i32_0, %c0_i32_1 : i32, i32, i32
  }
  func.func @transform_30(%arg0: i32) -> (i32, i32) {
    %c0_i32 = arith.constant 0 : i32
    %c0_i32_0 = arith.constant 0 : i32
    %c0_i32_1 = arith.constant 0 : i32
    return %c0_i32, %c0_i32_0 : i32, i32
  }
  func.func @transform_31(%arg0: i32) -> (i32, i32, i32) {
    %c0_i32 = arith.constant 0 : i32
    %c0_i32_0 = arith.constant 0 : i32
    %c0_i32_1 = arith.constant 0 : i32
    %c0_i32_2 = arith.constant 0 : i32
    return %c0_i32, %c0_i32_0, %c0_i32_1 : i32, i32, i32
  }
  func.func @transform_32(%arg0: i32) -> (i32, i32, i32) {
    %c0_i32 = arith.constant 0 : i32
    %c0_i32_0 = arith.constant 0 : i32
    %c0_i32_1 = arith.constant 0 : i32
    %c0_i32_2 = arith.constant 0 : i32
    return %c0_i32, %c0_i32_0, %c0_i32_1 : i32, i32, i32
  }
  func.func @transform_33(%arg0: i32) -> (i32, i32, i32) {
    %c0_i32 = arith.constant 0 : i32
    %c0_i32_0 = arith.constant 0 : i32
    %c0_i32_1 = arith.constant 0 : i32
    %c0_i32_2 = arith.constant 0 : i32
    return %c0_i32, %c0_i32_0, %c0_i32_1 : i32, i32, i32
  }
  func.func @transform_34(%arg0: i32) -> (i32, i32) {
    %c0_i32 = arith.constant 0 : i32
    %c0_i32_0 = arith.constant 0 : i32
    %c0_i32_1 = arith.constant 0 : i32
    return %c0_i32, %c0_i32_0 : i32, i32
  }
  func.func @transform_35(%arg0: i32) -> (i32, i32, i32) {
    %c0_i32 = arith.constant 0 : i32
    %c0_i32_0 = arith.constant 0 : i32
    %c0_i32_1 = arith.constant 0 : i32
    %c0_i32_2 = arith.constant 0 : i32
    return %c0_i32, %c0_i32_0, %c0_i32_1 : i32, i32, i32
  }
  func.func @transform_36(%arg0: i32) -> (i32, i32) {
    %c0_i32 = arith.constant 0 : i32
    %c0_i32_0 = arith.constant 0 : i32
    %c0_i32_1 = arith.constant 0 : i32
    return %c0_i32, %c0_i32_0 : i32, i32
  }
  func.func @transform_37(%arg0: i32) -> (i32, i32, i32) {
    %c0_i32 = arith.constant 0 : i32
    %c0_i32_0 = arith.constant 0 : i32
    %c0_i32_1 = arith.constant 0 : i32
    %c0_i32_2 = arith.constant 0 : i32
    return %c0_i32, %c0_i32_0, %c0_i32_1 : i32, i32, i32
  }
  func.func @transform_38(%arg0: i32) -> (i32, i32, i32) {
    %c0_i32 = arith.constant 0 : i32
    %c0_i32_0 = arith.constant 0 : i32
    %c0_i32_1 = arith.constant 0 : i32
    %c0_i32_2 = arith.constant 0 : i32
    return %c0_i32, %c0_i32_0, %c0_i32_1 : i32, i32, i32
  }
  func.func @transform_39(%arg0: i32) -> (i32, i32) {
    %c0_i32 = arith.constant 0 : i32
    %c0_i32_0 = arith.constant 0 : i32
    %c0_i32_1 = arith.constant 0 : i32
    return %c0_i32, %c0_i32_0 : i32, i32
  }
  func.func @transform_40(%arg0: i32) -> (i32, i32, i32) {
    %c0_i32 = arith.constant 0 : i32
    %c0_i32_0 = arith.constant 0 : i32
    %c0_i32_1 = arith.constant 0 : i32
    %c0_i32_2 = arith.constant 0 : i32
    return %c0_i32, %c0_i32_0, %c0_i32_1 : i32, i32, i32
  }
  func.func @transform_41(%arg0: i32) -> (i32, i32) {
    %c0_i32 = arith.constant 0 : i32
    %c0_i32_0 = arith.constant 0 : i32
    %c0_i32_1 = arith.constant 0 : i32
    return %c0_i32, %c0_i32_0 : i32, i32
  }
  func.func @transform_42(%arg0: i32) -> (i32, i32, i32) {
    %c0_i32 = arith.constant 0 : i32
    %c0_i32_0 = arith.constant 0 : i32
    %c0_i32_1 = arith.constant 0 : i32
    return %arg0, %c0_i32, %c0_i32_0 : i32, i32, i32
  }
}

</mosaic_0001>

<llo_original>
// kernel: forward.1
$region0: #{forward.1}
  #allocation0 [shape = 'u32[]', space=smem, size = 0x4, offset = 0x4, fixed_abs, tag = 'smem constant byte address 0x4 - core index']
  #allocation1 [shape = 'u32[72,128]{1,0:T(1,128)}', space=vmem, size = 0x9000, scoped, tag = 'internal scratch']
  #allocation2 [shape = 'f32[18,128]{1,0:T(8,128)}', space=vmem, size = 0x3000, scoped, tag = 'scratch operand']
  %s0 = inlined_call_operand.smem [shape: u32[43], index: -1, kind: input, shape index: {}]
  %s1 = sld [smem:[%s0]]
  %s2 = scalar_lea.smem %s0, 1
  %s3 = sld [smem:[%s2]]
  %s4 = scalar_lea.smem %s0, 2
  %s5 = sld [smem:[%s4]]
  %s6 = scalar_lea.smem %s0, 3
  %s7 = sld [smem:[%s6]]
  %s8 = scalar_lea.smem %s0, 4
  %s9 = sld [smem:[%s8]]
  %s10 = scalar_lea.smem %s0, 5
  %s11 = sld [smem:[%s10]]
  %s12 = scalar_lea.smem %s0, 6
  %s13 = sld [smem:[%s12]]
  %s14 = scalar_lea.smem %s0, 7
  %s15 = sld [smem:[%s14]]
  %s16 = scalar_lea.smem %s0, 8
  %s17 = sld [smem:[%s16]]
  %s18 = scalar_lea.smem %s0, 9
  %s19 = sld [smem:[%s18]]
  %s20 = scalar_lea.smem %s0, 10
  %s21 = sld [smem:[%s20]]
  %s22 = scalar_lea.smem %s0, 11
  %s23 = sld [smem:[%s22]]
  %s24 = scalar_lea.smem %s0, 12
  %s25 = sld [smem:[%s24]]
  %s26 = scalar_lea.smem %s0, 13
  %s27 = sld [smem:[%s26]]
  %s28 = scalar_lea.smem %s0, 14
  %s29 = sld [smem:[%s28]]
  %s30 = scalar_lea.smem %s0, 15
  %s31 = sld [smem:[%s30]]
  %s32 = scalar_lea.smem %s0, 16
  %s33 = sld [smem:[%s32]]
  %s34 = scalar_lea.smem %s0, 17
  %s35 = sld [smem:[%s34]]
  %s36 = scalar_lea.smem %s0, 18
  %s37 = sld [smem:[%s36]]
  %s38 = scalar_lea.smem %s0, 19
  %s39 = sld [smem:[%s38]]
  %s40 = scalar_lea.smem %s0, 20
  %s41 = sld [smem:[%s40]]
  %s42 = scalar_lea.smem %s0, 21
  %s43 = sld [smem:[%s42]]
  %s44 = scalar_lea.smem %s0, 22
  %s45 = sld [smem:[%s44]]
  %s46 = scalar_lea.smem %s0, 23
  %s47 = sld [smem:[%s46]]
  %s48 = scalar_lea.smem %s0, 24
  %s49 = sld [smem:[%s48]]
  %s50 = scalar_lea.smem %s0, 25
  %s51 = sld [smem:[%s50]]
  %s52 = scalar_lea.smem %s0, 26
  %s53 = sld [smem:[%s52]]
  %s54 = scalar_lea.smem %s0, 27
  %s55 = sld [smem:[%s54]]
  %s56 = scalar_lea.smem %s0, 28
  %s57 = sld [smem:[%s56]]
  %s58 = scalar_lea.smem %s0, 29
  %s59 = sld [smem:[%s58]]
  %s60 = scalar_lea.smem %s0, 30
  %s61 = sld [smem:[%s60]]
  %s62 = scalar_lea.smem %s0, 31
  %s63 = sld [smem:[%s62]]
  %s64 = scalar_lea.smem %s0, 32
  %s65 = sld [smem:[%s64]]
  %s66 = scalar_lea.smem %s0, 33
  %s67 = sld [smem:[%s66]]
  %s68 = scalar_lea.smem %s0, 34
  %s69 = sld [smem:[%s68]]
  %s70 = scalar_lea.smem %s0, 35
  %s71 = sld [smem:[%s70]]
  %s72 = scalar_lea.smem %s0, 36
  %s73 = sld [smem:[%s72]]
  %s74 = scalar_lea.smem %s0, 37
  %s75 = sld [smem:[%s74]]
  %s76 = scalar_lea.smem %s0, 38
  %s77 = sld [smem:[%s76]]
  %s78 = scalar_lea.smem %s0, 39
  %s79 = sld [smem:[%s78]]
  %s80 = scalar_lea.smem %s0, 40
  %s81 = sld [smem:[%s80]]
  %s82 = scalar_lea.smem %s0, 41
  %s83 = sld [smem:[%s82]]
  %s84 = scalar_lea.smem %s0, 42
  %s85 = sld [smem:[%s84]]
  %s86 = sld [smem:[#allocation0]]
  $region281: #{forward.1} parent=0
    _
  %s88 = ssub.s32 1, %s86
  %s89 = scalar_select 0, %s88, %s86
  $region1: #{forward.1} parent=0
    #allocation3 [shape = 'u8[65536]{0}', space=vmem, size = 0x10000, scoped, tag = 'input window, operand 9, single buffered']
    #allocation4 [shape = 's32[2]{0}', space=sflag, size = 0x8, scoped, tag = 'scoped memory for forward.1']
    #allocation5 [shape = 'u8[98304]{0}', space=vmem, size = 0x18000, scoped, tag = 'input window, operand 11, single buffered']
    #allocation6 [shape = 's32[1]{0}', space=sflag, size = 0x4, scoped, tag = 'scoped memory for forward.1']
    #allocation7 [shape = 'u8[65536]{0}', space=vmem, size = 0x10000, scoped, tag = 'input window, operand 13, single buffered']
    #allocation8 [shape = 'u8[98304]{0}', space=vmem, size = 0x18000, scoped, tag = 'input window, operand 15, single buffered']
    #allocation9 [shape = 's32[1]{0}', space=sflag, size = 0x4, scoped, tag = 'scoped memory for forward.1']
    #allocation10 [shape = 'u8[65536]{0}', space=vmem, size = 0x10000, scoped, tag = 'input window, operand 16, single buffered']
    #allocation11 [shape = 'u8[98304]{0}', space=vmem, size = 0x18000, scoped, tag = 'input window, operand 18, single buffered']
    #allocation12 [shape = 's32[1]{0}', space=sflag, size = 0x4, scoped, tag = 'scoped memory for forward.1']
    #allocation13 [shape = 'u8[65536]{0}', space=vmem, size = 0x10000, scoped, tag = 'input window, operand 20, single buffered']
    #allocation14 [shape = 'u8[65536]{0}', space=vmem, size = 0x10000, scoped, tag = 'input window, operand 22, single buffered']
    #allocation15 [shape = 's32[1]{0}', space=sflag, size = 0x4, scoped, tag = 'scoped memory for forward.1']
    #allocation16 [shape = 'u8[98304]{0}', space=vmem, size = 0x18000, scoped, tag = 'input window, operand 23, single buffered']
    #allocation17 [shape = 'u8[98304]{0}', space=vmem, size = 0x18000, scoped, tag = 'input window, operand 24, single buffered']
    #allocation18 [shape = 's32[1]{0}', space=sflag, size = 0x4, scoped, tag = 'scoped memory for forward.1']
    #allocation19 [shape = 'u8[98304]{0}', space=vmem, size = 0x18000, scoped, tag = 'input window, operand 26, single buffered']
    #allocation20 [shape = 'u8[32768]{0}', space=vmem, size = 0x8000, scoped, tag = 'input window, operand 28, single buffered']
    #allocation21 [shape = 's32[1]{0}', space=sflag, size = 0x4, scoped, tag = 'scoped memory for forward.1']
    #allocation22 [shape = 'u8[32768]{0}', space=vmem, size = 0x8000, scoped, tag = 'input window, operand 29, single buffered']
    #allocation23 [shape = 'u8[65536]{0}', space=vmem, size = 0x10000, scoped, tag = 'input window, operand 31, single buffered']
    #allocation24 [shape = 's32[1]{0}', space=sflag, size = 0x4, scoped, tag = 'scoped memory for forward.1']
    #allocation25 [shape = 'u8[98304]{0}', space=vmem, size = 0x18000, scoped, tag = 'input window, operand 32, single buffered']
    #allocation26 [shape = 'u8[98304]{0}', space=vmem, size = 0x18000, scoped, tag = 'input window, operand 33, single buffered']
    #allocation27 [shape = 's32[1]{0}', space=sflag, size = 0x4, scoped, tag = 'scoped memory for forward.1']
    #allocation28 [shape = 'u8[98304]{0}', space=vmem, size = 0x18000, scoped, tag = 'input window, operand 35, single buffered']
    #allocation29 [shape = 'u8[32768]{0}', space=vmem, size = 0x8000, scoped, tag = 'input window, operand 37, single buffered']
    #allocation30 [shape = 's32[1]{0}', space=sflag, size = 0x4, scoped, tag = 'scoped memory for forward.1']
    #allocation31 [shape = 'u8[32768]{0}', space=vmem, size = 0x8000, scoped, tag = 'input window, operand 38, single buffered']
    #allocation32 [shape = 'u8[32768]{0}', space=vmem, size = 0x8000, scoped, tag = 'input window, operand 40, single buffered']
    #allocation33 [shape = 's32[1]{0}', space=sflag, size = 0x4, scoped, tag = 'scoped memory for forward.1']
    %90 = vsyncpa [#allocation4], 0
    %91 = vsyncpa [#allocation6], 0
    %92 = vsyncpa [#allocation9], 0
    %93 = vsyncpa [#allocation12], 0
    %94 = vsyncpa [#allocation15], 0
    %95 = vsyncpa [#allocation18], 0
    %96 = vsyncpa [#allocation21], 0
    %97 = vsyncpa [#allocation24], 0
    %98 = vsyncpa [#allocation27], 0
    %99 = vsyncpa [#allocation30], 0
    %100 = vsyncpa [#allocation33], 0
    loop: start=0, step=1, limit=4
    $region2: #{forward.1} parent=1 // loop_pre_header
      _
    $region3: #{forward.1} parent=1 // loop_header
      %s102 = sphi 0, %s106
      %p103 = scmp.ge.s32.totalorder %s102, 4
      %s112 = sphi 0, %s114
      %s115 = sphi 0, %s112
      %s116 = sphi 0, %s115
      %s132 = sphi 0, %s116
      %s136 = sphi 0, %s136
      %s138 = sphi 0, %s136
      %s139 = sphi 0, %s138
      %s153 = sphi 0, %s139
      %s157 = sphi 0, %s157
      %s159 = sphi 0, %s157
      %s160 = sphi 0, %s159
      %s174 = sphi 0, %s160
      %s178 = sphi 0, %s178
      %s180 = sphi 0, %s178
      %s181 = sphi 0, %s180
      %s195 = sphi 0, %s181
      %s199 = sphi 0, %s199
      %s201 = sphi 0, %s199
      %s202 = sphi 0, %s201
      %s216 = sphi 0, %s202
      %s220 = sphi 0, %s220
      %s222 = sphi 0, %s220
      %s223 = sphi 0, %s222
      %s237 = sphi 0, %s223
      %s241 = sphi 0, %s241
      %s243 = sphi 0, %s241
      %s244 = sphi 0, %s243
      %s258 = sphi 0, %s244
      %s262 = sphi 0, %s262
      %s264 = sphi 0, %s262
      %s265 = sphi 0, %s264
      %s279 = sphi 0, %s265
      %s283 = sphi 0, %s283
      %s285 = sphi 0, %s283
      %s286 = sphi 0, %s285
      %s300 = sphi 0, %s286
      %s304 = sphi 0, %s304
      %s306 = sphi 0, %s304
      %s307 = sphi 0, %s306
      %s321 = sphi 0, %s307
      %s325 = sphi 0, %s325
      %s327 = sphi 0, %s325
      %s328 = sphi 0, %s327
      %s342 = sphi 0, %s328
      %s346 = sphi 0, %s346
      %s348 = sphi 0, %s346
      %s349 = sphi 0, %s348
      %s363 = sphi 0, %s349
      %s367 = sphi 0, %s367
      %s369 = sphi 0, %s367
      %s370 = sphi 0, %s369
      %s384 = sphi 0, %s370
      %s388 = sphi 0, %s388
      %s390 = sphi 0, %s388
      %s391 = sphi 0, %s390
      %s405 = sphi 0, %s391
      %s409 = sphi 0, %s409
      %s411 = sphi 0, %s409
      %s412 = sphi 0, %s411
      %s426 = sphi 0, %s412
      %s430 = sphi 0, %s430
      %s432 = sphi 0, %s430
      %s433 = sphi 0, %s432
      %s447 = sphi 0, %s433
      %s451 = sphi 0, %s451
      %s453 = sphi 0, %s451
      %s454 = sphi 0, %s453
      %s468 = sphi 0, %s454
      %s472 = sphi 0, %s472
      %s474 = sphi 0, %s472
      %s475 = sphi 0, %s474
      %s489 = sphi 0, %s475
      %s493 = sphi 0, %s493
      %s495 = sphi 0, %s493
      %s496 = sphi 0, %s495
      %s510 = sphi 0, %s496
      %s514 = sphi 0, %s514
      %s516 = sphi 0, %s514
      %s517 = sphi 0, %s516
      %s531 = sphi 0, %s517
      %s535 = sphi 0, %s535
      %s537 = sphi 0, %s535
      %s538 = sphi 0, %s537
      %s552 = sphi 0, %s538
      %s556 = sphi 0, %s556
      %s558 = sphi 0, %s556
      %s559 = sphi 0, %s558
      %s573 = sphi 0, %s559
      %s577 = sphi 0, %s577
      %s579 = sphi 0, %s577
      %s580 = sphi 0, %s579
      %s594 = sphi 0, %s580
      %s598 = sphi 0, %s598
      %s600 = sphi 0, %s598
      %s601 = sphi 0, %s600
      %s615 = sphi 0, %s601
      %s619 = sphi 0, %s619
      %s621 = sphi 0, %s619
      %s622 = sphi 0, %s621
      %s636 = sphi 0, %s622
      %s640 = sphi 0, %s640
      %s642 = sphi 0, %s640
      %s643 = sphi 0, %s642
      %s657 = sphi 0, %s643
      %s661 = sphi 0, %s661
      %s663 = sphi 0, %s661
      %s664 = sphi 0, %s663
      %s678 = sphi 0, %s664
      %s682 = sphi 0, %s682
      %s684 = sphi 0, %s682
      %s685 = sphi 0, %s684
      %s699 = sphi 0, %s685
      %s703 = sphi 0, %s703
      %s705 = sphi 0, %s703
      %s706 = sphi 0, %s705
      %s720 = sphi 0, %s706
      %s724 = sphi 0, %s724
      %s726 = sphi 0, %s724
      %s727 = sphi 0, %s726
      %s741 = sphi 0, %s727
      %s745 = sphi 0, %s745
      %s747 = sphi 0, %s745
      %s748 = sphi 0, %s747
      %s762 = sphi 0, %s748
      %s766 = sphi 0, %s766
      %s768 = sphi 0, %s766
      %s769 = sphi 0, %s768
      %s783 = sphi 0, %s769
      %s787 = sphi 0, %s787
      %s789 = sphi 0, %s787
      %s790 = sphi 0, %s789
      %s804 = sphi 0, %s790
      %s808 = sphi 0, %s808
      %s810 = sphi 0, %s808
      %s811 = sphi 0, %s810
      %s825 = sphi 0, %s811
      %s829 = sphi 0, %s829
      %s831 = sphi 0, %s829
      %s832 = sphi 0, %s831
      %s846 = sphi 0, %s832
      %s850 = sphi 0, %s850
      %s852 = sphi 0, %s850
      %s853 = sphi 0, %s852
      %s867 = sphi 0, %s853
      %s871 = sphi 0, %s871
      %s873 = sphi 0, %s871
      %s874 = sphi 0, %s873
      %s888 = sphi 0, %s874
      %s892 = sphi 0, %s892
      %s894 = sphi 0, %s892
      %s895 = sphi 0, %s894
      %s909 = sphi 0, %s895
      %s913 = sphi 0, %s913
      %s915 = sphi 0, %s913
      %s916 = sphi 0, %s915
      %s930 = sphi 0, %s916
      %s934 = sphi 0, %s934
      %s936 = sphi 0, %s934
      %s937 = sphi 0, %s936
      %s951 = sphi 0, %s937
      %s955 = sphi 0, %s955
      %s957 = sphi 0, %s955
      %s958 = sphi 0, %s957
      %s972 = sphi 0, %s958
      %s976 = sphi 0, %s976
      %s978 = sphi 0, %s976
      %s979 = sphi 0, %s978
      %s993 = sphi 0, %s979
      %s999 = sphi 0, %s1001
      %s1002 = sphi 0, %s999
      %s1003 = sphi 0, %s1002
      %s1019 = sphi 0, %s1003
    $region4: #{forward.1} parent=1 // loop_header_branch
      %105 = sbr.rel (%p103) target = $region8
    $region5: #{forward.1} parent=1 // loop_body
      %s107 = ssub.s32 %s102, 1
      %s108 = ssub.s32 %s102, 2
      %s109 = sadd.s32 %s102, 1
      %s110 = ssub.s32 %s102, %s109
      %p111 = scmp.eq.s32.totalorder %s110, 0
      %s113 = sadd.s32 %s112, 1
      %s114 = scalar_select %p111, %s112, %s113
      %p117 = pneg %p111
      %p118 = scmp.eq.s32.totalorder %s102, 1
      %p119 = por %p117, %p118
      %p120 = scmp.ne.s32.totalorder %s112, %s115
      %p121 = scmp.eq.s32.totalorder %s102, 0
      %p122 = por %p120, %p121
      %p123 = scmp.ne.s32.totalorder %s112, %s115
      %p124 = scmp.eq.s32.totalorder %s107, 1
      %p125 = por %p123, %p124
      %p126 = scmp.ne.s32.totalorder %s115, %s116
      %p127 = scmp.eq.s32.totalorder %s107, 0
      %p128 = por %p126, %p127
      %p129 = scmp.ne.s32.totalorder %s115, %s116
      %p130 = scmp.eq.s32.totalorder %s108, 1
      %p131 = por %p129, %p130
      %p133 = scmp.ne.s32.totalorder %s116, %s132
      %p134 = scmp.eq.s32.totalorder %s108, 0
      %p135 = por %p133, %p134
      %s137 = sadd.s32 %s136, 1
      %p140 = scmp.eq.s32.totalorder %s102, 1
      %p141 = scmp.ne.s32.totalorder %s136, %s138
      %p142 = scmp.eq.s32.totalorder %s102, 0
      %p143 = por %p141, %p142
      %p144 = scmp.ne.s32.totalorder %s136, %s138
      %p145 = scmp.eq.s32.totalorder %s107, 1
      %p146 = por %p144, %p145
      %p147 = scmp.ne.s32.totalorder %s138, %s139
      %p148 = scmp.eq.s32.totalorder %s107, 0
      %p149 = por %p147, %p148
      %p150 = scmp.ne.s32.totalorder %s138, %s139
      %p151 = scmp.eq.s32.totalorder %s108, 1
      %p152 = por %p150, %p151
      %p154 = scmp.ne.s32.totalorder %s139, %s153
      %p155 = scmp.eq.s32.totalorder %s108, 0
      %p156 = por %p154, %p155
      %s158 = sadd.s32 %s157, 1
      %p161 = scmp.eq.s32.totalorder %s102, 1
      %p162 = scmp.ne.s32.totalorder %s157, %s159
      %p163 = scmp.eq.s32.totalorder %s102, 0
      %p164 = por %p162, %p163
      %p165 = scmp.ne.s32.totalorder %s157, %s159
      %p166 = scmp.eq.s32.totalorder %s107, 1
      %p167 = por %p165, %p166
      %p168 = scmp.ne.s32.totalorder %s159, %s160
      %p169 = scmp.eq.s32.totalorder %s107, 0
      %p170 = por %p168, %p169
      %p171 = scmp.ne.s32.totalorder %s159, %s160
      %p172 = scmp.eq.s32.totalorder %s108, 1
      %p173 = por %p171, %p172
      %p175 = scmp.ne.s32.totalorder %s160, %s174
      %p176 = scmp.eq.s32.totalorder %s108, 0
      %p177 = por %p175, %p176
      %s179 = sadd.s32 %s178, 1
      %p182 = scmp.eq.s32.totalorder %s102, 1
      %p183 = scmp.ne.s32.totalorder %s178, %s180
      %p184 = scmp.eq.s32.totalorder %s102, 0
      %p185 = por %p183, %p184
      %p186 = scmp.ne.s32.totalorder %s178, %s180
      %p187 = scmp.eq.s32.totalorder %s107, 1
      %p188 = por %p186, %p187
      %p189 = scmp.ne.s32.totalorder %s180, %s181
      %p190 = scmp.eq.s32.totalorder %s107, 0
      %p191 = por %p189, %p190
      %p192 = scmp.ne.s32.totalorder %s180, %s181
      %p193 = scmp.eq.s32.totalorder %s108, 1
      %p194 = por %p192, %p193
      %p196 = scmp.ne.s32.totalorder %s181, %s195
      %p197 = scmp.eq.s32.totalorder %s108, 0
      %p198 = por %p196, %p197
      %s200 = sadd.s32 %s199, 1
      %p203 = scmp.eq.s32.totalorder %s102, 1
      %p204 = scmp.ne.s32.totalorder %s199, %s201
      %p205 = scmp.eq.s32.totalorder %s102, 0
      %p206 = por %p204, %p205
      %p207 = scmp.ne.s32.totalorder %s199, %s201
      %p208 = scmp.eq.s32.totalorder %s107, 1
      %p209 = por %p207, %p208
      %p210 = scmp.ne.s32.totalorder %s201, %s202
      %p211 = scmp.eq.s32.totalorder %s107, 0
      %p212 = por %p210, %p211
      %p213 = scmp.ne.s32.totalorder %s201, %s202
      %p214 = scmp.eq.s32.totalorder %s108, 1
      %p215 = por %p213, %p214
      %p217 = scmp.ne.s32.totalorder %s202, %s216
      %p218 = scmp.eq.s32.totalorder %s108, 0
      %p219 = por %p217, %p218
      %s221 = sadd.s32 %s220, 1
      %p224 = scmp.eq.s32.totalorder %s102, 1
      %p225 = scmp.ne.s32.totalorder %s220, %s222
      %p226 = scmp.eq.s32.totalorder %s102, 0
      %p227 = por %p225, %p226
      %p228 = scmp.ne.s32.totalorder %s220, %s222
      %p229 = scmp.eq.s32.totalorder %s107, 1
      %p230 = por %p228, %p229
      %p231 = scmp.ne.s32.totalorder %s222, %s223
      %p232 = scmp.eq.s32.totalorder %s107, 0
      %p233 = por %p231, %p232
      %p234 = scmp.ne.s32.totalorder %s222, %s223
      %p235 = scmp.eq.s32.totalorder %s108, 1
      %p236 = por %p234, %p235
      %p238 = scmp.ne.s32.totalorder %s223, %s237
      %p239 = scmp.eq.s32.totalorder %s108, 0
      %p240 = por %p238, %p239
      %s242 = sadd.s32 %s241, 1
      %p245 = scmp.eq.s32.totalorder %s102, 1
      %p246 = scmp.ne.s32.totalorder %s241, %s243
      %p247 = scmp.eq.s32.totalorder %s102, 0
      %p248 = por %p246, %p247
      %p249 = scmp.ne.s32.totalorder %s241, %s243
      %p250 = scmp.eq.s32.totalorder %s107, 1
      %p251 = por %p249, %p250
      %p252 = scmp.ne.s32.totalorder %s243, %s244
      %p253 = scmp.eq.s32.totalorder %s107, 0
      %p254 = por %p252, %p253
      %p255 = scmp.ne.s32.totalorder %s243, %s244
      %p256 = scmp.eq.s32.totalorder %s108, 1
      %p257 = por %p255, %p256
      %p259 = scmp.ne.s32.totalorder %s244, %s258
      %p260 = scmp.eq.s32.totalorder %s108, 0
      %p261 = por %p259, %p260
      %s263 = sadd.s32 %s262, 1
      %p266 = scmp.eq.s32.totalorder %s102, 1
      %p267 = scmp.ne.s32.totalorder %s262, %s264
      %p268 = scmp.eq.s32.totalorder %s102, 0
      %p269 = por %p267, %p268
      %p270 = scmp.ne.s32.totalorder %s262, %s264
      %p271 = scmp.eq.s32.totalorder %s107, 1
      %p272 = por %p270, %p271
      %p273 = scmp.ne.s32.totalorder %s264, %s265
      %p274 = scmp.eq.s32.totalorder %s107, 0
      %p275 = por %p273, %p274
      %p276 = scmp.ne.s32.totalorder %s264, %s265
      %p277 = scmp.eq.s32.totalorder %s108, 1
      %p278 = por %p276, %p277
      %p280 = scmp.ne.s32.totalorder %s265, %s279
      %p281 = scmp.eq.s32.totalorder %s108, 0
      %p282 = por %p280, %p281
      %s284 = sadd.s32 %s283, 1
      %p287 = scmp.eq.s32.totalorder %s102, 1
      %p288 = scmp.ne.s32.totalorder %s283, %s285
      %p289 = scmp.eq.s32.totalorder %s102, 0
      %p290 = por %p288, %p289
      %p291 = scmp.ne.s32.totalorder %s283, %s285
      %p292 = scmp.eq.s32.totalorder %s107, 1
      %p293 = por %p291, %p292
      %p294 = scmp.ne.s32.totalorder %s285, %s286
      %p295 = scmp.eq.s32.totalorder %s107, 0
      %p296 = por %p294, %p295
      %p297 = scmp.ne.s32.totalorder %s285, %s286
      %p298 = scmp.eq.s32.totalorder %s108, 1
      %p299 = por %p297, %p298
      %p301 = scmp.ne.s32.totalorder %s286, %s300
      %p302 = scmp.eq.s32.totalorder %s108, 0
      %p303 = por %p301, %p302
      %s305 = sadd.s32 %s304, 1
      %p308 = scmp.eq.s32.totalorder %s102, 1
      %p309 = scmp.ne.s32.totalorder %s304, %s306
      %p310 = scmp.eq.s32.totalorder %s102, 0
      %p311 = por %p309, %p310
      %p312 = scmp.ne.s32.totalorder %s304, %s306
      %p313 = scmp.eq.s32.totalorder %s107, 1
      %p314 = por %p312, %p313
      %p315 = scmp.ne.s32.totalorder %s306, %s307
      %p316 = scmp.eq.s32.totalorder %s107, 0
      %p317 = por %p315, %p316
      %p318 = scmp.ne.s32.totalorder %s306, %s307
      %p319 = scmp.eq.s32.totalorder %s108, 1
      %p320 = por %p318, %p319
      %p322 = scmp.ne.s32.totalorder %s307, %s321
      %p323 = scmp.eq.s32.totalorder %s108, 0
      %p324 = por %p322, %p323
      %s326 = sadd.s32 %s325, 1
      %p329 = scmp.eq.s32.totalorder %s102, 1
      %p330 = scmp.ne.s32.totalorder %s325, %s327
      %p331 = scmp.eq.s32.totalorder %s102, 0
      %p332 = por %p330, %p331
      %p333 = scmp.ne.s32.totalorder %s325, %s327
      %p334 = scmp.eq.s32.totalorder %s107, 1
      %p335 = por %p333, %p334
      %p336 = scmp.ne.s32.totalorder %s327, %s328
      %p337 = scmp.eq.s32.totalorder %s107, 0
      %p338 = por %p336, %p337
      %p339 = scmp.ne.s32.totalorder %s327, %s328
      %p340 = scmp.eq.s32.totalorder %s108, 1
      %p341 = por %p339, %p340
      %p343 = scmp.ne.s32.totalorder %s328, %s342
      %p344 = scmp.eq.s32.totalorder %s108, 0
      %p345 = por %p343, %p344
      %s347 = sadd.s32 %s346, 1
      %p350 = scmp.eq.s32.totalorder %s102, 1
      %p351 = scmp.ne.s32.totalorder %s346, %s348
      %p352 = scmp.eq.s32.totalorder %s102, 0
      %p353 = por %p351, %p352
      %p354 = scmp.ne.s32.totalorder %s346, %s348
      %p355 = scmp.eq.s32.totalorder %s107, 1
      %p356 = por %p354, %p355
      %p357 = scmp.ne.s32.totalorder %s348, %s349
      %p358 = scmp.eq.s32.totalorder %s107, 0
      %p359 = por %p357, %p358
      %p360 = scmp.ne.s32.totalorder %s348, %s349
      %p361 = scmp.eq.s32.totalorder %s108, 1
      %p362 = por %p360, %p361
      %p364 = scmp.ne.s32.totalorder %s349, %s363
      %p365 = scmp.eq.s32.totalorder %s108, 0
      %p366 = por %p364, %p365
      %s368 = sadd.s32 %s367, 1
      %p371 = scmp.eq.s32.totalorder %s102, 1
      %p372 = scmp.ne.s32.totalorder %s367, %s369
      %p373 = scmp.eq.s32.totalorder %s102, 0
      %p374 = por %p372, %p373
      %p375 = scmp.ne.s32.totalorder %s367, %s369
      %p376 = scmp.eq.s32.totalorder %s107, 1
      %p377 = por %p375, %p376
      %p378 = scmp.ne.s32.totalorder %s369, %s370
      %p379 = scmp.eq.s32.totalorder %s107, 0
      %p380 = por %p378, %p379
      %p381 = scmp.ne.s32.totalorder %s369, %s370
      %p382 = scmp.eq.s32.totalorder %s108, 1
      %p383 = por %p381, %p382
      %p385 = scmp.ne.s32.totalorder %s370, %s384
      %p386 = scmp.eq.s32.totalorder %s108, 0
      %p387 = por %p385, %p386
      %s389 = sadd.s32 %s388, 1
      %p392 = scmp.eq.s32.totalorder %s102, 1
      %p393 = scmp.ne.s32.totalorder %s388, %s390
      %p394 = scmp.eq.s32.totalorder %s102, 0
      %p395 = por %p393, %p394
      %p396 = scmp.ne.s32.totalorder %s388, %s390
      %p397 = scmp.eq.s32.totalorder %s107, 1
      %p398 = por %p396, %p397
      %p399 = scmp.ne.s32.totalorder %s390, %s391
      %p400 = scmp.eq.s32.totalorder %s107, 0
      %p401 = por %p399, %p400
      %p402 = scmp.ne.s32.totalorder %s390, %s391
      %p403 = scmp.eq.s32.totalorder %s108, 1
      %p404 = por %p402, %p403
      %p406 = scmp.ne.s32.totalorder %s391, %s405
      %p407 = scmp.eq.s32.totalorder %s108, 0
      %p408 = por %p406, %p407
      %s410 = sadd.s32 %s409, 1
      %p413 = scmp.eq.s32.totalorder %s102, 1
      %p414 = scmp.ne.s32.totalorder %s409, %s411
      %p415 = scmp.eq.s32.totalorder %s102, 0
      %p416 = por %p414, %p415
      %p417 = scmp.ne.s32.totalorder %s409, %s411
      %p418 = scmp.eq.s32.totalorder %s107, 1
      %p419 = por %p417, %p418
      %p420 = scmp.ne.s32.totalorder %s411, %s412
      %p421 = scmp.eq.s32.totalorder %s107, 0
      %p422 = por %p420, %p421
      %p423 = scmp.ne.s32.totalorder %s411, %s412
      %p424 = scmp.eq.s32.totalorder %s108, 1
      %p425 = por %p423, %p424
      %p427 = scmp.ne.s32.totalorder %s412, %s426
      %p428 = scmp.eq.s32.totalorder %s108, 0
      %p429 = por %p427, %p428
      %s431 = sadd.s32 %s430, 1
      %p434 = scmp.eq.s32.totalorder %s102, 1
      %p435 = scmp.ne.s32.totalorder %s430, %s432
      %p436 = scmp.eq.s32.totalorder %s102, 0
      %p437 = por %p435, %p436
      %p438 = scmp.ne.s32.totalorder %s430, %s432
      %p439 = scmp.eq.s32.totalorder %s107, 1
      %p440 = por %p438, %p439
      %p441 = scmp.ne.s32.totalorder %s432, %s433
      %p442 = scmp.eq.s32.totalorder %s107, 0
      %p443 = por %p441, %p442
      %p444 = scmp.ne.s32.totalorder %s432, %s433
      %p445 = scmp.eq.s32.totalorder %s108, 1
      %p446 = por %p444, %p445
      %p448 = scmp.ne.s32.totalorder %s433, %s447
      %p449 = scmp.eq.s32.totalorder %s108, 0
      %p450 = por %p448, %p449
      %s452 = sadd.s32 %s451, 1
      %p455 = scmp.eq.s32.totalorder %s102, 1
      %p456 = scmp.ne.s32.totalorder %s451, %s453
      %p457 = scmp.eq.s32.totalorder %s102, 0
      %p458 = por %p456, %p457
      %p459 = scmp.ne.s32.totalorder %s451, %s453
      %p460 = scmp.eq.s32.totalorder %s107, 1
      %p461 = por %p459, %p460
      %p462 = scmp.ne.s32.totalorder %s453, %s454
      %p463 = scmp.eq.s32.totalorder %s107, 0
      %p464 = por %p462, %p463
      %p465 = scmp.ne.s32.totalorder %s453, %s454
      %p466 = scmp.eq.s32.totalorder %s108, 1
      %p467 = por %p465, %p466
      %p469 = scmp.ne.s32.totalorder %s454, %s468
      %p470 = scmp.eq.s32.totalorder %s108, 0
      %p471 = por %p469, %p470
      %s473 = sadd.s32 %s472, 1
      %p476 = scmp.eq.s32.totalorder %s102, 1
      %p477 = scmp.ne.s32.totalorder %s472, %s474
      %p478 = scmp.eq.s32.totalorder %s102, 0
      %p479 = por %p477, %p478
      %p480 = scmp.ne.s32.totalorder %s472, %s474
      %p481 = scmp.eq.s32.totalorder %s107, 1
      %p482 = por %p480, %p481
      %p483 = scmp.ne.s32.totalorder %s474, %s475
      %p484 = scmp.eq.s32.totalorder %s107, 0
      %p485 = por %p483, %p484
      %p486 = scmp.ne.s32.totalorder %s474, %s475
      %p487 = scmp.eq.s32.totalorder %s108, 1
      %p488 = por %p486, %p487
      %p490 = scmp.ne.s32.totalorder %s475, %s489
      %p491 = scmp.eq.s32.totalorder %s108, 0
      %p492 = por %p490, %p491
      %s494 = sadd.s32 %s493, 1
      %p497 = scmp.eq.s32.totalorder %s102, 1
      %p498 = scmp.ne.s32.totalorder %s493, %s495
      %p499 = scmp.eq.s32.totalorder %s102, 0
      %p500 = por %p498, %p499
      %p501 = scmp.ne.s32.totalorder %s493, %s495
      %p502 = scmp.eq.s32.totalorder %s107, 1
      %p503 = por %p501, %p502
      %p504 = scmp.ne.s32.totalorder %s495, %s496
      %p505 = scmp.eq.s32.totalorder %s107, 0
      %p506 = por %p504, %p505
      %p507 = scmp.ne.s32.totalorder %s495, %s496
      %p508 = scmp.eq.s32.totalorder %s108, 1
      %p509 = por %p507, %p508
      %p511 = scmp.ne.s32.totalorder %s496, %s510
      %p512 = scmp.eq.s32.totalorder %s108, 0
      %p513 = por %p511, %p512
      %s515 = sadd.s32 %s514, 1
      %p518 = scmp.eq.s32.totalorder %s102, 1
      %p519 = scmp.ne.s32.totalorder %s514, %s516
      %p520 = scmp.eq.s32.totalorder %s102, 0
      %p521 = por %p519, %p520
      %p522 = scmp.ne.s32.totalorder %s514, %s516
      %p523 = scmp.eq.s32.totalorder %s107, 1
      %p524 = por %p522, %p523
      %p525 = scmp.ne.s32.totalorder %s516, %s517
      %p526 = scmp.eq.s32.totalorder %s107, 0
      %p527 = por %p525, %p526
      %p528 = scmp.ne.s32.totalorder %s516, %s517
      %p529 = scmp.eq.s32.totalorder %s108, 1
      %p530 = por %p528, %p529
      %p532 = scmp.ne.s32.totalorder %s517, %s531
      %p533 = scmp.eq.s32.totalorder %s108, 0
      %p534 = por %p532, %p533
      %s536 = sadd.s32 %s535, 1
      %p539 = scmp.eq.s32.totalorder %s102, 1
      %p540 = scmp.ne.s32.totalorder %s535, %s537
      %p541 = scmp.eq.s32.totalorder %s102, 0
      %p542 = por %p540, %p541
      %p543 = scmp.ne.s32.totalorder %s535, %s537
      %p544 = scmp.eq.s32.totalorder %s107, 1
      %p545 = por %p543, %p544
      %p546 = scmp.ne.s32.totalorder %s537, %s538
      %p547 = scmp.eq.s32.totalorder %s107, 0
      %p548 = por %p546, %p547
      %p549 = scmp.ne.s32.totalorder %s537, %s538
      %p550 = scmp.eq.s32.totalorder %s108, 1
      %p551 = por %p549, %p550
      %p553 = scmp.ne.s32.totalorder %s538, %s552
      %p554 = scmp.eq.s32.totalorder %s108, 0
      %p555 = por %p553, %p554
      %s557 = sadd.s32 %s556, 1
      %p560 = scmp.eq.s32.totalorder %s102, 1
      %p561 = scmp.ne.s32.totalorder %s556, %s558
      %p562 = scmp.eq.s32.totalorder %s102, 0
      %p563 = por %p561, %p562
      %p564 = scmp.ne.s32.totalorder %s556, %s558
      %p565 = scmp.eq.s32.totalorder %s107, 1
      %p566 = por %p564, %p565
      %p567 = scmp.ne.s32.totalorder %s558, %s559
      %p568 = scmp.eq.s32.totalorder %s107, 0
      %p569 = por %p567, %p568
      %p570 = scmp.ne.s32.totalorder %s558, %s559
      %p571 = scmp.eq.s32.totalorder %s108, 1
      %p572 = por %p570, %p571
      %p574 = scmp.ne.s32.totalorder %s559, %s573
      %p575 = scmp.eq.s32.totalorder %s108, 0
      %p576 = por %p574, %p575
      %s578 = sadd.s32 %s577, 1
      %p581 = scmp.eq.s32.totalorder %s102, 1
      %p582 = scmp.ne.s32.totalorder %s577, %s579
      %p583 = scmp.eq.s32.totalorder %s102, 0
      %p584 = por %p582, %p583
      %p585 = scmp.ne.s32.totalorder %s577, %s579
      %p586 = scmp.eq.s32.totalorder %s107, 1
      %p587 = por %p585, %p586
      %p588 = scmp.ne.s32.totalorder %s579, %s580
      %p589 = scmp.eq.s32.totalorder %s107, 0
      %p590 = por %p588, %p589
      %p591 = scmp.ne.s32.totalorder %s579, %s580
      %p592 = scmp.eq.s32.totalorder %s108, 1
      %p593 = por %p591, %p592
      %p595 = scmp.ne.s32.totalorder %s580, %s594
      %p596 = scmp.eq.s32.totalorder %s108, 0
      %p597 = por %p595, %p596
      %s599 = sadd.s32 %s598, 1
      %p602 = scmp.eq.s32.totalorder %s102, 1
      %p603 = scmp.ne.s32.totalorder %s598, %s600
      %p604 = scmp.eq.s32.totalorder %s102, 0
      %p605 = por %p603, %p604
      %p606 = scmp.ne.s32.totalorder %s598, %s600
      %p607 = scmp.eq.s32.totalorder %s107, 1
      %p608 = por %p606, %p607
      %p609 = scmp.ne.s32.totalorder %s600, %s601
      %p610 = scmp.eq.s32.totalorder %s107, 0
      %p611 = por %p609, %p610
      %p612 = scmp.ne.s32.totalorder %s600, %s601
      %p613 = scmp.eq.s32.totalorder %s108, 1
      %p614 = por %p612, %p613
      %p616 = scmp.ne.s32.totalorder %s601, %s615
      %p617 = scmp.eq.s32.totalorder %s108, 0
      %p618 = por %p616, %p617
      %s620 = sadd.s32 %s619, 1
      %p623 = scmp.eq.s32.totalorder %s102, 1
      %p624 = scmp.ne.s32.totalorder %s619, %s621
      %p625 = scmp.eq.s32.totalorder %s102, 0
      %p626 = por %p624, %p625
      %p627 = scmp.ne.s32.totalorder %s619, %s621
      %p628 = scmp.eq.s32.totalorder %s107, 1
      %p629 = por %p627, %p628
      %p630 = scmp.ne.s32.totalorder %s621, %s622
      %p631 = scmp.eq.s32.totalorder %s107, 0
      %p632 = por %p630, %p631
      %p633 = scmp.ne.s32.totalorder %s621, %s622
      %p634 = scmp.eq.s32.totalorder %s108, 1
      %p635 = por %p633, %p634
      %p637 = scmp.ne.s32.totalorder %s622, %s636
      %p638 = scmp.eq.s32.totalorder %s108, 0
      %p639 = por %p637, %p638
      %s641 = sadd.s32 %s640, 1
      %p644 = scmp.eq.s32.totalorder %s102, 1
      %p645 = scmp.ne.s32.totalorder %s640, %s642
      %p646 = scmp.eq.s32.totalorder %s102, 0
      %p647 = por %p645, %p646
      %p648 = scmp.ne.s32.totalorder %s640, %s642
      %p649 = scmp.eq.s32.totalorder %s107, 1
      %p650 = por %p648, %p649
      %p651 = scmp.ne.s32.totalorder %s642, %s643
      %p652 = scmp.eq.s32.totalorder %s107, 0
      %p653 = por %p651, %p652
      %p654 = scmp.ne.s32.totalorder %s642, %s643
      %p655 = scmp.eq.s32.totalorder %s108, 1
      %p656 = por %p654, %p655
      %p658 = scmp.ne.s32.totalorder %s643, %s657
      %p659 = scmp.eq.s32.totalorder %s108, 0
      %p660 = por %p658, %p659
      %s662 = sadd.s32 %s661, 1
      %p665 = scmp.eq.s32.totalorder %s102, 1
      %p666 = scmp.ne.s32.totalorder %s661, %s663
      %p667 = scmp.eq.s32.totalorder %s102, 0
      %p668 = por %p666, %p667
      %p669 = scmp.ne.s32.totalorder %s661, %s663
      %p670 = scmp.eq.s32.totalorder %s107, 1
      %p671 = por %p669, %p670
      %p672 = scmp.ne.s32.totalorder %s663, %s664
      %p673 = scmp.eq.s32.totalorder %s107, 0
      %p674 = por %p672, %p673
      %p675 = scmp.ne.s32.totalorder %s663, %s664
      %p676 = scmp.eq.s32.totalorder %s108, 1
      %p677 = por %p675, %p676
      %p679 = scmp.ne.s32.totalorder %s664, %s678
      %p680 = scmp.eq.s32.totalorder %s108, 0
      %p681 = por %p679, %p680
      %s683 = sadd.s32 %s682, 1
      %p686 = scmp.eq.s32.totalorder %s102, 1
      %p687 = scmp.ne.s32.totalorder %s682, %s684
      %p688 = scmp.eq.s32.totalorder %s102, 0
      %p689 = por %p687, %p688
      %p690 = scmp.ne.s32.totalorder %s682, %s684
      %p691 = scmp.eq.s32.totalorder %s107, 1
      %p692 = por %p690, %p691
      %p693 = scmp.ne.s32.totalorder %s684, %s685
      %p694 = scmp.eq.s32.totalorder %s107, 0
      %p695 = por %p693, %p694
      %p696 = scmp.ne.s32.totalorder %s684, %s685
      %p697 = scmp.eq.s32.totalorder %s108, 1
      %p698 = por %p696, %p697
      %p700 = scmp.ne.s32.totalorder %s685, %s699
      %p701 = scmp.eq.s32.totalorder %s108, 0
      %p702 = por %p700, %p701
      %s704 = sadd.s32 %s703, 1
      %p707 = scmp.eq.s32.totalorder %s102, 1
      %p708 = scmp.ne.s32.totalorder %s703, %s705
      %p709 = scmp.eq.s32.totalorder %s102, 0
      %p710 = por %p708, %p709
      %p711 = scmp.ne.s32.totalorder %s703, %s705
      %p712 = scmp.eq.s32.totalorder %s107, 1
      %p713 = por %p711, %p712
      %p714 = scmp.ne.s32.totalorder %s705, %s706
      %p715 = scmp.eq.s32.totalorder %s107, 0
      %p716 = por %p714, %p715
      %p717 = scmp.ne.s32.totalorder %s705, %s706
      %p718 = scmp.eq.s32.totalorder %s108, 1
      %p719 = por %p717, %p718
      %p721 = scmp.ne.s32.totalorder %s706, %s720
      %p722 = scmp.eq.s32.totalorder %s108, 0
      %p723 = por %p721, %p722
      %s725 = sadd.s32 %s724, 1
      %p728 = scmp.eq.s32.totalorder %s102, 1
      %p729 = scmp.ne.s32.totalorder %s724, %s726
      %p730 = scmp.eq.s32.totalorder %s102, 0
      %p731 = por %p729, %p730
      %p732 = scmp.ne.s32.totalorder %s724, %s726
      %p733 = scmp.eq.s32.totalorder %s107, 1
      %p734 = por %p732, %p733
      %p735 = scmp.ne.s32.totalorder %s726, %s727
      %p736 = scmp.eq.s32.totalorder %s107, 0
      %p737 = por %p735, %p736
      %p738 = scmp.ne.s32.totalorder %s726, %s727
      %p739 = scmp.eq.s32.totalorder %s108, 1
      %p740 = por %p738, %p739
      %p742 = scmp.ne.s32.totalorder %s727, %s741
      %p743 = scmp.eq.s32.totalorder %s108, 0
      %p744 = por %p742, %p743
      %s746 = sadd.s32 %s745, 1
      %p749 = scmp.eq.s32.totalorder %s102, 1
      %p750 = scmp.ne.s32.totalorder %s745, %s747
      %p751 = scmp.eq.s32.totalorder %s102, 0
      %p752 = por %p750, %p751
      %p753 = scmp.ne.s32.totalorder %s745, %s747
      %p754 = scmp.eq.s32.totalorder %s107, 1
      %p755 = por %p753, %p754
      %p756 = scmp.ne.s32.totalorder %s747, %s748
      %p757 = scmp.eq.s32.totalorder %s107, 0
      %p758 = por %p756, %p757
      %p759 = scmp.ne.s32.totalorder %s747, %s748
      %p760 = scmp.eq.s32.totalorder %s108, 1
      %p761 = por %p759, %p760
      %p763 = scmp.ne.s32.totalorder %s748, %s762
      %p764 = scmp.eq.s32.totalorder %s108, 0
      %p765 = por %p763, %p764
      %s767 = sadd.s32 %s766, 1
      %p770 = scmp.eq.s32.totalorder %s102, 1
      %p771 = scmp.ne.s32.totalorder %s766, %s768
      %p772 = scmp.eq.s32.totalorder %s102, 0
      %p773 = por %p771, %p772
      %p774 = scmp.ne.s32.totalorder %s766, %s768
      %p775 = scmp.eq.s32.totalorder %s107, 1
      %p776 = por %p774, %p775
      %p777 = scmp.ne.s32.totalorder %s768, %s769
      %p778 = scmp.eq.s32.totalorder %s107, 0
      %p779 = por %p777, %p778
      %p780 = scmp.ne.s32.totalorder %s768, %s769
      %p781 = scmp.eq.s32.totalorder %s108, 1
      %p782 = por %p780, %p781
      %p784 = scmp.ne.s32.totalorder %s769, %s783
      %p785 = scmp.eq.s32.totalorder %s108, 0
      %p786 = por %p784, %p785
      %s788 = sadd.s32 %s787, 1
      %p791 = scmp.eq.s32.totalorder %s102, 1
      %p792 = scmp.ne.s32.totalorder %s787, %s789
      %p793 = scmp.eq.s32.totalorder %s102, 0
      %p794 = por %p792, %p793
      %p795 = scmp.ne.s32.totalorder %s787, %s789
      %p796 = scmp.eq.s32.totalorder %s107, 1
      %p797 = por %p795, %p796
      %p798 = scmp.ne.s32.totalorder %s789, %s790
      %p799 = scmp.eq.s32.totalorder %s107, 0
      %p800 = por %p798, %p799
      %p801 = scmp.ne.s32.totalorder %s789, %s790
      %p802 = scmp.eq.s32.totalorder %s108, 1
      %p803 = por %p801, %p802
      %p805 = scmp.ne.s32.totalorder %s790, %s804
      %p806 = scmp.eq.s32.totalorder %s108, 0
      %p807 = por %p805, %p806
      %s809 = sadd.s32 %s808, 1
      %p812 = scmp.eq.s32.totalorder %s102, 1
      %p813 = scmp.ne.s32.totalorder %s808, %s810
      %p814 = scmp.eq.s32.totalorder %s102, 0
      %p815 = por %p813, %p814
      %p816 = scmp.ne.s32.totalorder %s808, %s810
      %p817 = scmp.eq.s32.totalorder %s107, 1
      %p818 = por %p816, %p817
      %p819 = scmp.ne.s32.totalorder %s810, %s811
      %p820 = scmp.eq.s32.totalorder %s107, 0
      %p821 = por %p819, %p820
      %p822 = scmp.ne.s32.totalorder %s810, %s811
      %p823 = scmp.eq.s32.totalorder %s108, 1
      %p824 = por %p822, %p823
      %p826 = scmp.ne.s32.totalorder %s811, %s825
      %p827 = scmp.eq.s32.totalorder %s108, 0
      %p828 = por %p826, %p827
      %s830 = sadd.s32 %s829, 1
      %p833 = scmp.eq.s32.totalorder %s102, 1
      %p834 = scmp.ne.s32.totalorder %s829, %s831
      %p835 = scmp.eq.s32.totalorder %s102, 0
      %p836 = por %p834, %p835
      %p837 = scmp.ne.s32.totalorder %s829, %s831
      %p838 = scmp.eq.s32.totalorder %s107, 1
      %p839 = por %p837, %p838
      %p840 = scmp.ne.s32.totalorder %s831, %s832
      %p841 = scmp.eq.s32.totalorder %s107, 0
      %p842 = por %p840, %p841
      %p843 = scmp.ne.s32.totalorder %s831, %s832
      %p844 = scmp.eq.s32.totalorder %s108, 1
      %p845 = por %p843, %p844
      %p847 = scmp.ne.s32.totalorder %s832, %s846
      %p848 = scmp.eq.s32.totalorder %s108, 0
      %p849 = por %p847, %p848
      %s851 = sadd.s32 %s850, 1
      %p854 = scmp.eq.s32.totalorder %s102, 1
      %p855 = scmp.ne.s32.totalorder %s850, %s852
      %p856 = scmp.eq.s32.totalorder %s102, 0
      %p857 = por %p855, %p856
      %p858 = scmp.ne.s32.totalorder %s850, %s852
      %p859 = scmp.eq.s32.totalorder %s107, 1
      %p860 = por %p858, %p859
      %p861 = scmp.ne.s32.totalorder %s852, %s853
      %p862 = scmp.eq.s32.totalorder %s107, 0
      %p863 = por %p861, %p862
      %p864 = scmp.ne.s32.totalorder %s852, %s853
      %p865 = scmp.eq.s32.totalorder %s108, 1
      %p866 = por %p864, %p865
      %p868 = scmp.ne.s32.totalorder %s853, %s867
      %p869 = scmp.eq.s32.totalorder %s108, 0
      %p870 = por %p868, %p869
      %s872 = sadd.s32 %s871, 1
      %p875 = scmp.eq.s32.totalorder %s102, 1
      %p876 = scmp.ne.s32.totalorder %s871, %s873
      %p877 = scmp.eq.s32.totalorder %s102, 0
      %p878 = por %p876, %p877
      %p879 = scmp.ne.s32.totalorder %s871, %s873
      %p880 = scmp.eq.s32.totalorder %s107, 1
      %p881 = por %p879, %p880
      %p882 = scmp.ne.s32.totalorder %s873, %s874
      %p883 = scmp.eq.s32.totalorder %s107, 0
      %p884 = por %p882, %p883
      %p885 = scmp.ne.s32.totalorder %s873, %s874
      %p886 = scmp.eq.s32.totalorder %s108, 1
      %p887 = por %p885, %p886
      %p889 = scmp.ne.s32.totalorder %s874, %s888
      %p890 = scmp.eq.s32.totalorder %s108, 0
      %p891 = por %p889, %p890
      %s893 = sadd.s32 %s892, 1
      %p896 = scmp.eq.s32.totalorder %s102, 1
      %p897 = scmp.ne.s32.totalorder %s892, %s894
      %p898 = scmp.eq.s32.totalorder %s102, 0
      %p899 = por %p897, %p898
      %p900 = scmp.ne.s32.totalorder %s892, %s894
      %p901 = scmp.eq.s32.totalorder %s107, 1
      %p902 = por %p900, %p901
      %p903 = scmp.ne.s32.totalorder %s894, %s895
      %p904 = scmp.eq.s32.totalorder %s107, 0
      %p905 = por %p903, %p904
      %p906 = scmp.ne.s32.totalorder %s894, %s895
      %p907 = scmp.eq.s32.totalorder %s108, 1
      %p908 = por %p906, %p907
      %p910 = scmp.ne.s32.totalorder %s895, %s909
      %p911 = scmp.eq.s32.totalorder %s108, 0
      %p912 = por %p910, %p911
      %s914 = sadd.s32 %s913, 1
      %p917 = scmp.eq.s32.totalorder %s102, 1
      %p918 = scmp.ne.s32.totalorder %s913, %s915
      %p919 = scmp.eq.s32.totalorder %s102, 0
      %p920 = por %p918, %p919
      %p921 = scmp.ne.s32.totalorder %s913, %s915
      %p922 = scmp.eq.s32.totalorder %s107, 1
      %p923 = por %p921, %p922
      %p924 = scmp.ne.s32.totalorder %s915, %s916
      %p925 = scmp.eq.s32.totalorder %s107, 0
      %p926 = por %p924, %p925
      %p927 = scmp.ne.s32.totalorder %s915, %s916
      %p928 = scmp.eq.s32.totalorder %s108, 1
      %p929 = por %p927, %p928
      %p931 = scmp.ne.s32.totalorder %s916, %s930
      %p932 = scmp.eq.s32.totalorder %s108, 0
      %p933 = por %p931, %p932
      %s935 = sadd.s32 %s934, 1
      %p938 = scmp.eq.s32.totalorder %s102, 1
      %p939 = scmp.ne.s32.totalorder %s934, %s936
      %p940 = scmp.eq.s32.totalorder %s102, 0
      %p941 = por %p939, %p940
      %p942 = scmp.ne.s32.totalorder %s934, %s936
      %p943 = scmp.eq.s32.totalorder %s107, 1
      %p944 = por %p942, %p943
      %p945 = scmp.ne.s32.totalorder %s936, %s937
      %p946 = scmp.eq.s32.totalorder %s107, 0
      %p947 = por %p945, %p946
      %p948 = scmp.ne.s32.totalorder %s936, %s937
      %p949 = scmp.eq.s32.totalorder %s108, 1
      %p950 = por %p948, %p949
      %p952 = scmp.ne.s32.totalorder %s937, %s951
      %p953 = scmp.eq.s32.totalorder %s108, 0
      %p954 = por %p952, %p953
      %s956 = sadd.s32 %s955, 1
      %p959 = scmp.eq.s32.totalorder %s102, 1
      %p960 = scmp.ne.s32.totalorder %s955, %s957
      %p961 = scmp.eq.s32.totalorder %s102, 0
      %p962 = por %p960, %p961
      %p963 = scmp.ne.s32.totalorder %s955, %s957
      %p964 = scmp.eq.s32.totalorder %s107, 1
      %p965 = por %p963, %p964
      %p966 = scmp.ne.s32.totalorder %s957, %s958
      %p967 = scmp.eq.s32.totalorder %s107, 0
      %p968 = por %p966, %p967
      %p969 = scmp.ne.s32.totalorder %s957, %s958
      %p970 = scmp.eq.s32.totalorder %s108, 1
      %p971 = por %p969, %p970
      %p973 = scmp.ne.s32.totalorder %s958, %s972
      %p974 = scmp.eq.s32.totalorder %s108, 0
      %p975 = por %p973, %p974
      %s977 = sadd.s32 %s976, 1
      %p980 = scmp.eq.s32.totalorder %s102, 1
      %p981 = scmp.ne.s32.totalorder %s976, %s978
      %p982 = scmp.eq.s32.totalorder %s102, 0
      %p983 = por %p981, %p982
      %p984 = scmp.ne.s32.totalorder %s976, %s978
      %p985 = scmp.eq.s32.totalorder %s107, 1
      %p986 = por %p984, %p985
      %p987 = scmp.ne.s32.totalorder %s978, %s979
      %p988 = scmp.eq.s32.totalorder %s107, 0
      %p989 = por %p987, %p988
      %p990 = scmp.ne.s32.totalorder %s978, %s979
      %p991 = scmp.eq.s32.totalorder %s108, 1
      %p992 = por %p990, %p991
      %p994 = scmp.ne.s32.totalorder %s979, %s993
      %p995 = scmp.eq.s32.totalorder %s108, 0
      %p996 = por %p994, %p995
      %s997 = ssub.s32 %s102, %s109
      %p998 = scmp.eq.s32.totalorder %s997, 0
      %s1000 = sadd.s32 %s999, 1
      %s1001 = scalar_select %p998, %s999, %s1000
      %p1004 = pneg %p998
      %p1005 = scmp.eq.s32.totalorder %s102, 1
      %p1006 = por %p1004, %p1005
      %p1007 = scmp.ne.s32.totalorder %s999, %s1002
      %p1008 = scmp.eq.s32.totalorder %s102, 0
      %p1009 = por %p1007, %p1008
      %p1010 = scmp.ne.s32.totalorder %s999, %s1002
      %p1011 = scmp.eq.s32.totalorder %s107, 1
      %p1012 = por %p1010, %p1011
      %p1013 = scmp.ne.s32.totalorder %s1002, %s1003
      %p1014 = scmp.eq.s32.totalorder %s107, 0
      %p1015 = por %p1013, %p1014
      %p1016 = scmp.ne.s32.totalorder %s1002, %s1003
      %p1017 = scmp.eq.s32.totalorder %s108, 1
      %p1018 = por %p1016, %p1017
      %p1020 = scmp.ne.s32.totalorder %s1003, %s1019
      %p1021 = scmp.eq.s32.totalorder %s108, 0
      %p1022 = por %p1020, %p1021
      %p1023 = scmp.le.s32.totalorder 1, %s102
      %p1024 = scmp.lt.s32.totalorder %s102, 3
      %p1025 = pnand %p1023, %p1024
      %p1026 = pneg %p1025
      // Predicated region
      $region9: #{forward.1} parent=5 // pred_check
        _
      $region10: #{forward.1} parent=5 // pred_check_branch
        %1028 = sbr.rel (%p1025) target = $region12
      $region11: #{forward.1} parent=5 // pred_region
        %s1029 = ssub.s32 %s102, 1
        // Predicated region
        $region13: #{forward.1} parent=11 // pred_check
          %p1030 = pneg %p149
        $region14: #{forward.1} parent=11 // pred_check_branch
          %1032 = sbr.rel (%p1030) target = $region16
        $region15: #{forward.1} parent=11 // pred_region
          _
        $region16: #{forward.1} parent=11 // pred_fallthru
          _
        // Predicated region
        $region17: #{forward.1} parent=11 // pred_check
          %p1033 = pneg %p170
        $region18: #{forward.1} parent=11 // pred_check_branch
          %1035 = sbr.rel (%p1033) target = $region20
        $region19: #{forward.1} parent=11 // pred_region
          _
        $region20: #{forward.1} parent=11 // pred_fallthru
          _
        // Predicated region
        $region21: #{forward.1} parent=11 // pred_check
          %p1036 = pneg %p191
        $region22: #{forward.1} parent=11 // pred_check_branch
          %1038 = sbr.rel (%p1036) target = $region24
        $region23: #{forward.1} parent=11 // pred_region
          _
        $region24: #{forward.1} parent=11 // pred_fallthru
          _
        // Predicated region
        $region25: #{forward.1} parent=11 // pred_check
          %p1039 = pneg %p212
        $region26: #{forward.1} parent=11 // pred_check_branch
          %1041 = sbr.rel (%p1039) target = $region28
        $region27: #{forward.1} parent=11 // pred_region
          _
        $region28: #{forward.1} parent=11 // pred_fallthru
          _
        // Predicated region
        $region29: #{forward.1} parent=11 // pred_check
          %p1042 = pneg %p233
        $region30: #{forward.1} parent=11 // pred_check_branch
          %1044 = sbr.rel (%p1042) target = $region32
        $region31: #{forward.1} parent=11 // pred_region
          _
        $region32: #{forward.1} parent=11 // pred_fallthru
          _
        // Predicated region
        $region33: #{forward.1} parent=11 // pred_check
          %p1045 = pneg %p254
        $region34: #{forward.1} parent=11 // pred_check_branch
          %1047 = sbr.rel (%p1045) target = $region36
        $region35: #{forward.1} parent=11 // pred_region
          _
        $region36: #{forward.1} parent=11 // pred_fallthru
          _
        // Predicated region
        $region37: #{forward.1} parent=11 // pred_check
          %p1048 = pneg %p275
        $region38: #{forward.1} parent=11 // pred_check_branch
          %1050 = sbr.rel (%p1048) target = $region40
        $region39: #{forward.1} parent=11 // pred_region
          _
        $region40: #{forward.1} parent=11 // pred_fallthru
          _
        // Predicated region
        $region41: #{forward.1} parent=11 // pred_check
          %p1051 = pneg %p296
        $region42: #{forward.1} parent=11 // pred_check_branch
          %1053 = sbr.rel (%p1051) target = $region44
        $region43: #{forward.1} parent=11 // pred_region
          _
        $region44: #{forward.1} parent=11 // pred_fallthru
          _
        // Predicated region
        $region45: #{forward.1} parent=11 // pred_check
          %p1054 = pneg %p317
        $region46: #{forward.1} parent=11 // pred_check_branch
          %1056 = sbr.rel (%p1054) target = $region48
        $region47: #{forward.1} parent=11 // pred_region
          %1058 = vsyncadd [#allocation4], 0
          %s1059 = sshll.u32 %s19, 4
          %s1060 = int_to_ptr.hbm [resolvable:$true] %s1059
          %s1061 = sshll.u32 [#allocation3], 4
          %s1062 = int_to_ptr.vmem [resolvable:$true] %s1061
          %1067 = dma.hbm_to_vmem [thread:$0]  %s1060, 2048, %s1062, [#allocation4], 128, 128, 8
        $region48: #{forward.1} parent=11 // pred_fallthru
          _
        // Predicated region
        $region49: #{forward.1} parent=11 // pred_check
          %p1068 = pneg %p338
        $region50: #{forward.1} parent=11 // pred_check_branch
          %1070 = sbr.rel (%p1068) target = $region52
        $region51: #{forward.1} parent=11 // pred_region
          _
        $region52: #{forward.1} parent=11 // pred_fallthru
          _
        // Predicated region
        $region53: #{forward.1} parent=11 // pred_check
          %p1071 = pneg %p359
        $region54: #{forward.1} parent=11 // pred_check_branch
          %1073 = sbr.rel (%p1071) target = $region56
        $region55: #{forward.1} parent=11 // pred_region
          %1075 = vsyncadd [#allocation6], 0
          %s1076 = sshll.u32 %s23, 4
          %s1077 = int_to_ptr.hbm [resolvable:$true] %s1076
          %s1078 = sshll.u32 [#allocation5], 4
          %s1079 = int_to_ptr.vmem [resolvable:$true] %s1078
          %1084 = dma.hbm_to_vmem [thread:$0]  %s1077, 3072, %s1079, [#allocation6], 64, 64, 4
        $region56: #{forward.1} parent=11 // pred_fallthru
          _
        // Predicated region
        $region57: #{forward.1} parent=11 // pred_check
          %p1085 = pneg %p380
        $region58: #{forward.1} parent=11 // pred_check_branch
          %1087 = sbr.rel (%p1085) target = $region60
        $region59: #{forward.1} parent=11 // pred_region
          _
        $region60: #{forward.1} parent=11 // pred_fallthru
          _
        // Predicated region
        $region61: #{forward.1} parent=11 // pred_check
          %p1088 = pneg %p401
        $region62: #{forward.1} parent=11 // pred_check_branch
          %1090 = sbr.rel (%p1088) target = $region64
        $region63: #{forward.1} parent=11 // pred_region
          %1092 = vsyncadd [#allocation6], 0
          %s1093 = sshll.u32 %s27, 4
          %s1094 = int_to_ptr.hbm [resolvable:$true] %s1093
          %s1095 = sshll.u32 [#allocation7], 4
          %s1096 = int_to_ptr.vmem [resolvable:$true] %s1095
          %1101 = dma.hbm_to_vmem [thread:$0]  %s1094, 2048, %s1096, [#allocation6], 64, 64, 4
        $region64: #{forward.1} parent=11 // pred_fallthru
          _
        // Predicated region
        $region65: #{forward.1} parent=11 // pred_check
          %p1102 = pneg %p422
        $region66: #{forward.1} parent=11 // pred_check_branch
          %1104 = sbr.rel (%p1102) target = $region68
        $region67: #{forward.1} parent=11 // pred_region
          _
        $region68: #{forward.1} parent=11 // pred_fallthru
          _
        // Predicated region
        $region69: #{forward.1} parent=11 // pred_check
          %p1105 = pneg %p443
        $region70: #{forward.1} parent=11 // pred_check_branch
          %1107 = sbr.rel (%p1105) target = $region72
        $region71: #{forward.1} parent=11 // pred_region
          %1109 = vsyncadd [#allocation9], 0
          %s1110 = sshll.u32 %s31, 4
          %s1111 = int_to_ptr.hbm [resolvable:$true] %s1110
          %s1112 = sshll.u32 [#allocation8], 4
          %s1113 = int_to_ptr.vmem [resolvable:$true] %s1112
          %1118 = dma.hbm_to_vmem [thread:$0]  %s1111, 3072, %s1113, [#allocation9], 64, 64, 4
        $region72: #{forward.1} parent=11 // pred_fallthru
          _
        // Predicated region
        $region73: #{forward.1} parent=11 // pred_check
          %p1119 = pneg %p464
        $region74: #{forward.1} parent=11 // pred_check_branch
          %1121 = sbr.rel (%p1119) target = $region76
        $region75: #{forward.1} parent=11 // pred_region
          %1123 = vsyncadd [#allocation9], 0
          %s1124 = sshll.u32 %s33, 4
          %s1125 = int_to_ptr.hbm [resolvable:$true] %s1124
          %s1126 = sshll.u32 [#allocation10], 4
          %s1127 = int_to_ptr.vmem [resolvable:$true] %s1126
          %1132 = dma.hbm_to_vmem [thread:$0]  %s1125, 2048, %s1127, [#allocation9], 128, 128, 8
        $region76: #{forward.1} parent=11 // pred_fallthru
          _
        // Predicated region
        $region77: #{forward.1} parent=11 // pred_check
          %p1133 = pneg %p485
        $region78: #{forward.1} parent=11 // pred_check_branch
          %1135 = sbr.rel (%p1133) target = $region80
        $region79: #{forward.1} parent=11 // pred_region
          _
        $region80: #{forward.1} parent=11 // pred_fallthru
          _
        // Predicated region
        $region81: #{forward.1} parent=11 // pred_check
          %p1136 = pneg %p506
        $region82: #{forward.1} parent=11 // pred_check_branch
          %1138 = sbr.rel (%p1136) target = $region84
        $region83: #{forward.1} parent=11 // pred_region
          %1140 = vsyncadd [#allocation12], 0
          %s1141 = sshll.u32 %s37, 4
          %s1142 = int_to_ptr.hbm [resolvable:$true] %s1141
          %s1143 = sshll.u32 [#allocation11], 4
          %s1144 = int_to_ptr.vmem [resolvable:$true] %s1143
          %1149 = dma.hbm_to_vmem [thread:$0]  %s1142, 3072, %s1144, [#allocation12], 64, 64, 4
        $region84: #{forward.1} parent=11 // pred_fallthru
          _
        // Predicated region
        $region85: #{forward.1} parent=11 // pred_check
          %p1150 = pneg %p527
        $region86: #{forward.1} parent=11 // pred_check_branch
          %1152 = sbr.rel (%p1150) target = $region88
        $region87: #{forward.1} parent=11 // pred_region
          _
        $region88: #{forward.1} parent=11 // pred_fallthru
          _
        // Predicated region
        $region89: #{forward.1} parent=11 // pred_check
          %p1153 = pneg %p548
        $region90: #{forward.1} parent=11 // pred_check_branch
          %1155 = sbr.rel (%p1153) target = $region92
        $region91: #{forward.1} parent=11 // pred_region
          %1157 = vsyncadd [#allocation12], 0
          %s1158 = sshll.u32 %s41, 4
          %s1159 = int_to_ptr.hbm [resolvable:$true] %s1158
          %s1160 = sshll.u32 [#allocation13], 4
          %s1161 = int_to_ptr.vmem [resolvable:$true] %s1160
          %1166 = dma.hbm_to_vmem [thread:$0]  %s1159, 2048, %s1161, [#allocation12], 64, 64, 4
        $region92: #{forward.1} parent=11 // pred_fallthru
          _
        // Predicated region
        $region93: #{forward.1} parent=11 // pred_check
          %p1167 = pneg %p569
        $region94: #{forward.1} parent=11 // pred_check_branch
          %1169 = sbr.rel (%p1167) target = $region96
        $region95: #{forward.1} parent=11 // pred_region
          _
        $region96: #{forward.1} parent=11 // pred_fallthru
          _
        // Predicated region
        $region97: #{forward.1} parent=11 // pred_check
          %p1170 = pneg %p590
        $region98: #{forward.1} parent=11 // pred_check_branch
          %1172 = sbr.rel (%p1170) target = $region100
        $region99: #{forward.1} parent=11 // pred_region
          %1174 = vsyncadd [#allocation15], 0
          %s1175 = sshll.u32 %s45, 4
          %s1176 = int_to_ptr.hbm [resolvable:$true] %s1175
          %s1177 = sshll.u32 [#allocation14], 4
          %s1178 = int_to_ptr.vmem [resolvable:$true] %s1177
          %1183 = dma.hbm_to_vmem [thread:$0]  %s1176, 2048, %s1178, [#allocation15], 64, 64, 4
        $region100: #{forward.1} parent=11 // pred_fallthru
          _
        // Predicated region
        $region101: #{forward.1} parent=11 // pred_check
          %p1184 = pneg %p611
        $region102: #{forward.1} parent=11 // pred_check_branch
          %1186 = sbr.rel (%p1184) target = $region104
        $region103: #{forward.1} parent=11 // pred_region
          %1188 = vsyncadd [#allocation15], 0
          %s1189 = sshll.u32 %s47, 4
          %s1190 = int_to_ptr.hbm [resolvable:$true] %s1189
          %s1191 = sshll.u32 [#allocation16], 4
          %s1192 = int_to_ptr.vmem [resolvable:$true] %s1191
          %1197 = dma.hbm_to_vmem [thread:$0]  %s1190, 3072, %s1192, [#allocation15], 64, 64, 4
        $region104: #{forward.1} parent=11 // pred_fallthru
          _
        // Predicated region
        $region105: #{forward.1} parent=11 // pred_check
          %p1198 = pneg %p632
        $region106: #{forward.1} parent=11 // pred_check_branch
          %1200 = sbr.rel (%p1198) target = $region108
        $region107: #{forward.1} parent=11 // pred_region
          %1202 = vsyncadd [#allocation18], 0
          %s1203 = sshll.u32 %s49, 4
          %s1204 = int_to_ptr.hbm [resolvable:$true] %s1203
          %s1205 = sshll.u32 [#allocation17], 4
          %s1206 = int_to_ptr.vmem [resolvable:$true] %s1205
          %1211 = dma.hbm_to_vmem [thread:$0]  %s1204, 3072, %s1206, [#allocation18], 64, 64, 4
        $region108: #{forward.1} parent=11 // pred_fallthru
          _
        // Predicated region
        $region109: #{forward.1} parent=11 // pred_check
          %p1212 = pneg %p653
        $region110: #{forward.1} parent=11 // pred_check_branch
          %1214 = sbr.rel (%p1212) target = $region112
        $region111: #{forward.1} parent=11 // pred_region
          _
        $region112: #{forward.1} parent=11 // pred_fallthru
          _
        // Predicated region
        $region113: #{forward.1} parent=11 // pred_check
          %p1215 = pneg %p674
        $region114: #{forward.1} parent=11 // pred_check_branch
          %1217 = sbr.rel (%p1215) target = $region116
        $region115: #{forward.1} parent=11 // pred_region
          %1219 = vsyncadd [#allocation18], 0
          %s1220 = sshll.u32 %s53, 4
          %s1221 = int_to_ptr.hbm [resolvable:$true] %s1220
          %s1222 = sshll.u32 [#allocation19], 4
          %s1223 = int_to_ptr.vmem [resolvable:$true] %s1222
          %1228 = dma.hbm_to_vmem [thread:$0]  %s1221, 3072, %s1223, [#allocation18], 64, 64, 4
        $region116: #{forward.1} parent=11 // pred_fallthru
          _
        // Predicated region
        $region117: #{forward.1} parent=11 // pred_check
          %p1229 = pneg %p695
        $region118: #{forward.1} parent=11 // pred_check_branch
          %1231 = sbr.rel (%p1229) target = $region120
        $region119: #{forward.1} parent=11 // pred_region
          _
        $region120: #{forward.1} parent=11 // pred_fallthru
          _
        // Predicated region
        $region121: #{forward.1} parent=11 // pred_check
          %p1232 = pneg %p716
        $region122: #{forward.1} parent=11 // pred_check_branch
          %1234 = sbr.rel (%p1232) target = $region124
        $region123: #{forward.1} parent=11 // pred_region
          %1236 = vsyncadd [#allocation21], 0
          %s1237 = sshll.u32 %s57, 4
          %s1238 = int_to_ptr.hbm [resolvable:$true] %s1237
          %s1239 = sshll.u32 [#allocation20], 4
          %s1240 = int_to_ptr.vmem [resolvable:$true] %s1239
          %1245 = dma.hbm_to_vmem [thread:$0]  %s1238, 1024, %s1240, [#allocation21], 64, 64, 4
        $region124: #{forward.1} parent=11 // pred_fallthru
          _
        // Predicated region
        $region125: #{forward.1} parent=11 // pred_check
          %p1246 = pneg %p737
        $region126: #{forward.1} parent=11 // pred_check_branch
          %1248 = sbr.rel (%p1246) target = $region128
        $region127: #{forward.1} parent=11 // pred_region
          %1250 = vsyncadd [#allocation21], 0
          %s1251 = sshll.u32 %s59, 4
          %s1252 = int_to_ptr.hbm [resolvable:$true] %s1251
          %s1253 = sshll.u32 [#allocation22], 4
          %s1254 = int_to_ptr.vmem [resolvable:$true] %s1253
          %1259 = dma.hbm_to_vmem [thread:$0]  %s1252, 1024, %s1254, [#allocation21], 64, 64, 4
        $region128: #{forward.1} parent=11 // pred_fallthru
          _
        // Predicated region
        $region129: #{forward.1} parent=11 // pred_check
          %p1260 = pneg %p758
        $region130: #{forward.1} parent=11 // pred_check_branch
          %1262 = sbr.rel (%p1260) target = $region132
        $region131: #{forward.1} parent=11 // pred_region
          _
        $region132: #{forward.1} parent=11 // pred_fallthru
          _
        // Predicated region
        $region133: #{forward.1} parent=11 // pred_check
          %p1263 = pneg %p779
        $region134: #{forward.1} parent=11 // pred_check_branch
          %1265 = sbr.rel (%p1263) target = $region136
        $region135: #{forward.1} parent=11 // pred_region
          %1267 = vsyncadd [#allocation24], 0
          %s1268 = sshll.u32 %s63, 4
          %s1269 = int_to_ptr.hbm [resolvable:$true] %s1268
          %s1270 = sshll.u32 [#allocation23], 4
          %s1271 = int_to_ptr.vmem [resolvable:$true] %s1270
          %1276 = dma.hbm_to_vmem [thread:$0]  %s1269, 2048, %s1271, [#allocation24], 64, 64, 4
        $region136: #{forward.1} parent=11 // pred_fallthru
          _
        // Predicated region
        $region137: #{forward.1} parent=11 // pred_check
          %p1277 = pneg %p800
        $region138: #{forward.1} parent=11 // pred_check_branch
          %1279 = sbr.rel (%p1277) target = $region140
        $region139: #{forward.1} parent=11 // pred_region
          %1281 = vsyncadd [#allocation24], 0
          %s1282 = sshll.u32 %s65, 4
          %s1283 = int_to_ptr.hbm [resolvable:$true] %s1282
          %s1284 = sshll.u32 [#allocation25], 4
          %s1285 = int_to_ptr.vmem [resolvable:$true] %s1284
          %1290 = dma.hbm_to_vmem [thread:$0]  %s1283, 3072, %s1285, [#allocation24], 64, 64, 4
        $region140: #{forward.1} parent=11 // pred_fallthru
          _
        // Predicated region
        $region141: #{forward.1} parent=11 // pred_check
          %p1291 = pneg %p821
        $region142: #{forward.1} parent=11 // pred_check_branch
          %1293 = sbr.rel (%p1291) target = $region144
        $region143: #{forward.1} parent=11 // pred_region
          %1295 = vsyncadd [#allocation27], 0
          %s1296 = sshll.u32 %s67, 4
          %s1297 = int_to_ptr.hbm [resolvable:$true] %s1296
          %s1298 = sshll.u32 [#allocation26], 4
          %s1299 = int_to_ptr.vmem [resolvable:$true] %s1298
          %1304 = dma.hbm_to_vmem [thread:$0]  %s1297, 3072, %s1299, [#allocation27], 64, 64, 4
        $region144: #{forward.1} parent=11 // pred_fallthru
          _
        // Predicated region
        $region145: #{forward.1} parent=11 // pred_check
          %p1305 = pneg %p842
        $region146: #{forward.1} parent=11 // pred_check_branch
          %1307 = sbr.rel (%p1305) target = $region148
        $region147: #{forward.1} parent=11 // pred_region
          _
        $region148: #{forward.1} parent=11 // pred_fallthru
          _
        // Predicated region
        $region149: #{forward.1} parent=11 // pred_check
          %p1308 = pneg %p863
        $region150: #{forward.1} parent=11 // pred_check_branch
          %1310 = sbr.rel (%p1308) target = $region152
        $region151: #{forward.1} parent=11 // pred_region
          %1312 = vsyncadd [#allocation27], 0
          %s1313 = sshll.u32 %s71, 4
          %s1314 = int_to_ptr.hbm [resolvable:$true] %s1313
          %s1315 = sshll.u32 [#allocation28], 4
          %s1316 = int_to_ptr.vmem [resolvable:$true] %s1315
          %1321 = dma.hbm_to_vmem [thread:$0]  %s1314, 3072, %s1316, [#allocation27], 64, 64, 4
        $region152: #{forward.1} parent=11 // pred_fallthru
          _
        // Predicated region
        $region153: #{forward.1} parent=11 // pred_check
          %p1322 = pneg %p884
        $region154: #{forward.1} parent=11 // pred_check_branch
          %1324 = sbr.rel (%p1322) target = $region156
        $region155: #{forward.1} parent=11 // pred_region
          _
        $region156: #{forward.1} parent=11 // pred_fallthru
          _
        // Predicated region
        $region157: #{forward.1} parent=11 // pred_check
          %p1325 = pneg %p905
        $region158: #{forward.1} parent=11 // pred_check_branch
          %1327 = sbr.rel (%p1325) target = $region160
        $region159: #{forward.1} parent=11 // pred_region
          %1329 = vsyncadd [#allocation30], 0
          %s1330 = sshll.u32 %s75, 4
          %s1331 = int_to_ptr.hbm [resolvable:$true] %s1330
          %s1332 = sshll.u32 [#allocation29], 4
          %s1333 = int_to_ptr.vmem [resolvable:$true] %s1332
          %1338 = dma.hbm_to_vmem [thread:$0]  %s1331, 1024, %s1333, [#allocation30], 64, 64, 4
        $region160: #{forward.1} parent=11 // pred_fallthru
          _
        // Predicated region
        $region161: #{forward.1} parent=11 // pred_check
          %p1339 = pneg %p926
        $region162: #{forward.1} parent=11 // pred_check_branch
          %1341 = sbr.rel (%p1339) target = $region164
        $region163: #{forward.1} parent=11 // pred_region
          %1343 = vsyncadd [#allocation30], 0
          %s1344 = sshll.u32 %s77, 4
          %s1345 = int_to_ptr.hbm [resolvable:$true] %s1344
          %s1346 = sshll.u32 [#allocation31], 4
          %s1347 = int_to_ptr.vmem [resolvable:$true] %s1346
          %1352 = dma.hbm_to_vmem [thread:$0]  %s1345, 1024, %s1347, [#allocation30], 64, 64, 4
        $region164: #{forward.1} parent=11 // pred_fallthru
          _
        // Predicated region
        $region165: #{forward.1} parent=11 // pred_check
          %p1353 = pneg %p947
        $region166: #{forward.1} parent=11 // pred_check_branch
          %1355 = sbr.rel (%p1353) target = $region168
        $region167: #{forward.1} parent=11 // pred_region
          _
        $region168: #{forward.1} parent=11 // pred_fallthru
          _
        // Predicated region
        $region169: #{forward.1} parent=11 // pred_check
          %p1356 = pneg %p968
        $region170: #{forward.1} parent=11 // pred_check_branch
          %1358 = sbr.rel (%p1356) target = $region172
        $region171: #{forward.1} parent=11 // pred_region
          %1360 = vsyncadd [#allocation33], 0
          %s1361 = sshll.u32 %s81, 4
          %s1362 = int_to_ptr.hbm [resolvable:$true] %s1361
          %s1363 = sshll.u32 [#allocation32], 4
          %s1364 = int_to_ptr.vmem [resolvable:$true] %s1363
          %1369 = dma.hbm_to_vmem [thread:$0]  %s1362, 1024, %s1364, [#allocation33], 64, 64, 4
        $region172: #{forward.1} parent=11 // pred_fallthru
          _
        // Predicated region
        $region173: #{forward.1} parent=11 // pred_check
          %p1370 = pneg %p989
        $region174: #{forward.1} parent=11 // pred_check_branch
          %1372 = sbr.rel (%p1370) target = $region176
        $region175: #{forward.1} parent=11 // pred_region
          _
        $region176: #{forward.1} parent=11 // pred_fallthru
          _
      $region12: #{forward.1} parent=5 // pred_fallthru
        _
      %p1373 = scmp.lt.s32.totalorder %s102, 2
      // Predicated region
      $region177: #{forward.1} parent=5 // pred_check
        %p1374 = pneg %p1373
      $region178: #{forward.1} parent=5 // pred_check_branch
        %1376 = sbr.rel (%p1374) target = $region180
      $region179: #{forward.1} parent=5 // pred_region
        // Predicated region
        $region181: #{forward.1} parent=179 // pred_check
          %p1377 = pneg %p122
        $region182: #{forward.1} parent=179 // pred_check_branch
          %1379 = sbr.rel (%p1377) target = $region184
        $region183: #{forward.1} parent=179 // pred_region
          %p1380 = scmp.lt.s32.totalorder %s102, 1
          %s1381 = scalar_select %p1380, %s102, 1
          %s1382 = smul.addr %s1381, 2
          %s1383 = smul.addr %s1382, 8
          %s1384 = scalar_lea.vmem %s1, %s1383
        $region184: #{forward.1} parent=179 // pred_fallthru
          _
      $region180: #{forward.1} parent=5 // pred_fallthru
        _
      %p1385 = scmp.le.s32.totalorder 1, %s102
      %p1386 = scmp.lt.s32.totalorder %s102, 3
      %p1387 = pnand %p1385, %p1386
      %p1388 = pneg %p1387
      // Predicated region
      $region185: #{forward.1} parent=5 // pred_check
        _
      $region186: #{forward.1} parent=5 // pred_check_branch
        %1390 = sbr.rel (%p1387) target = $region188
      $region187: #{forward.1} parent=5 // pred_region
        %s1391 = ssub.s32 %s102, 1
        // Predicated region
        $region189: #{forward.1} parent=187 // pred_check
          %p1392 = pneg %p317
        $region190: #{forward.1} parent=187 // pred_check_branch
          %1394 = sbr.rel (%p1392) target = $region192
        $region191: #{forward.1} parent=187 // pred_region
          %1396 = dma.done [#allocation4], 2048
        $region192: #{forward.1} parent=187 // pred_fallthru
          _
        // Predicated region
        $region193: #{forward.1} parent=187 // pred_check
          %p1397 = pneg %p359
        $region194: #{forward.1} parent=187 // pred_check_branch
          %1399 = sbr.rel (%p1397) target = $region196
        $region195: #{forward.1} parent=187 // pred_region
          %1401 = dma.done [#allocation6], 3072
        $region196: #{forward.1} parent=187 // pred_fallthru
          _
        // Predicated region
        $region197: #{forward.1} parent=187 // pred_check
          %p1402 = pneg %p401
        $region198: #{forward.1} parent=187 // pred_check_branch
          %1404 = sbr.rel (%p1402) target = $region200
        $region199: #{forward.1} parent=187 // pred_region
          %1406 = dma.done [#allocation6], 2048
        $region200: #{forward.1} parent=187 // pred_fallthru
          _
        // Predicated region
        $region201: #{forward.1} parent=187 // pred_check
          %p1407 = pneg %p443
        $region202: #{forward.1} parent=187 // pred_check_branch
          %1409 = sbr.rel (%p1407) target = $region204
        $region203: #{forward.1} parent=187 // pred_region
          %1411 = dma.done [#allocation9], 3072
        $region204: #{forward.1} parent=187 // pred_fallthru
          _
        // Predicated region
        $region205: #{forward.1} parent=187 // pred_check
          %p1412 = pneg %p464
        $region206: #{forward.1} parent=187 // pred_check_branch
          %1414 = sbr.rel (%p1412) target = $region208
        $region207: #{forward.1} parent=187 // pred_region
          %1416 = dma.done [#allocation9], 2048
        $region208: #{forward.1} parent=187 // pred_fallthru
          _
        // Predicated region
        $region209: #{forward.1} parent=187 // pred_check
          %p1417 = pneg %p506
        $region210: #{forward.1} parent=187 // pred_check_branch
          %1419 = sbr.rel (%p1417) target = $region212
        $region211: #{forward.1} parent=187 // pred_region
          %1421 = dma.done [#allocation12], 3072
        $region212: #{forward.1} parent=187 // pred_fallthru
          _
        // Predicated region
        $region213: #{forward.1} parent=187 // pred_check
          %p1422 = pneg %p548
        $region214: #{forward.1} parent=187 // pred_check_branch
          %1424 = sbr.rel (%p1422) target = $region216
        $region215: #{forward.1} parent=187 // pred_region
          %1426 = dma.done [#allocation12], 2048
        $region216: #{forward.1} parent=187 // pred_fallthru
          _
        // Predicated region
        $region217: #{forward.1} parent=187 // pred_check
          %p1427 = pneg %p590
        $region218: #{forward.1} parent=187 // pred_check_branch
          %1429 = sbr.rel (%p1427) target = $region220
        $region219: #{forward.1} parent=187 // pred_region
          %1431 = dma.done [#allocation15], 2048
        $region220: #{forward.1} parent=187 // pred_fallthru
          _
        // Predicated region
        $region221: #{forward.1} parent=187 // pred_check
          %p1432 = pneg %p611
        $region222: #{forward.1} parent=187 // pred_check_branch
          %1434 = sbr.rel (%p1432) target = $region224
        $region223: #{forward.1} parent=187 // pred_region
          %1436 = dma.done [#allocation15], 3072
        $region224: #{forward.1} parent=187 // pred_fallthru
          _
        // Predicated region
        $region225: #{forward.1} parent=187 // pred_check
          %p1437 = pneg %p632
        $region226: #{forward.1} parent=187 // pred_check_branch
          %1439 = sbr.rel (%p1437) target = $region228
        $region227: #{forward.1} parent=187 // pred_region
          %1441 = dma.done [#allocation18], 3072
        $region228: #{forward.1} parent=187 // pred_fallthru
          _
        // Predicated region
        $region229: #{forward.1} parent=187 // pred_check
          %p1442 = pneg %p674
        $region230: #{forward.1} parent=187 // pred_check_branch
          %1444 = sbr.rel (%p1442) target = $region232
        $region231: #{forward.1} parent=187 // pred_region
          %1446 = dma.done [#allocation18], 3072
        $region232: #{forward.1} parent=187 // pred_fallthru
          _
        // Predicated region
        $region233: #{forward.1} parent=187 // pred_check
          %p1447 = pneg %p716
        $region234: #{forward.1} parent=187 // pred_check_branch
          %1449 = sbr.rel (%p1447) target = $region236
        $region235: #{forward.1} parent=187 // pred_region
          %1451 = dma.done [#allocation21], 1024
        $region236: #{forward.1} parent=187 // pred_fallthru
          _
        // Predicated region
        $region237: #{forward.1} parent=187 // pred_check
          %p1452 = pneg %p737
        $region238: #{forward.1} parent=187 // pred_check_branch
          %1454 = sbr.rel (%p1452) target = $region240
        $region239: #{forward.1} parent=187 // pred_region
          %1456 = dma.done [#allocation21], 1024
        $region240: #{forward.1} parent=187 // pred_fallthru
          _
        // Predicated region
        $region241: #{forward.1} parent=187 // pred_check
          %p1457 = pneg %p779
        $region242: #{forward.1} parent=187 // pred_check_branch
          %1459 = sbr.rel (%p1457) target = $region244
        $region243: #{forward.1} parent=187 // pred_region
          %1461 = dma.done [#allocation24], 2048
        $region244: #{forward.1} parent=187 // pred_fallthru
          _
        // Predicated region
        $region245: #{forward.1} parent=187 // pred_check
          %p1462 = pneg %p800
        $region246: #{forward.1} parent=187 // pred_check_branch
          %1464 = sbr.rel (%p1462) target = $region248
        $region247: #{forward.1} parent=187 // pred_region
          %1466 = dma.done [#allocation24], 3072
        $region248: #{forward.1} parent=187 // pred_fallthru
          _
        // Predicated region
        $region249: #{forward.1} parent=187 // pred_check
          %p1467 = pneg %p821
        $region250: #{forward.1} parent=187 // pred_check_branch
          %1469 = sbr.rel (%p1467) target = $region252
        $region251: #{forward.1} parent=187 // pred_region
          %1471 = dma.done [#allocation27], 3072
        $region252: #{forward.1} parent=187 // pred_fallthru
          _
        // Predicated region
        $region253: #{forward.1} parent=187 // pred_check
          %p1472 = pneg %p863
        $region254: #{forward.1} parent=187 // pred_check_branch
          %1474 = sbr.rel (%p1472) target = $region256
        $region255: #{forward.1} parent=187 // pred_region
          %1476 = dma.done [#allocation27], 3072
        $region256: #{forward.1} parent=187 // pred_fallthru
          _
        // Predicated region
        $region257: #{forward.1} parent=187 // pred_check
          %p1477 = pneg %p905
        $region258: #{forward.1} parent=187 // pred_check_branch
          %1479 = sbr.rel (%p1477) target = $region260
        $region259: #{forward.1} parent=187 // pred_region
          %1481 = dma.done [#allocation30], 1024
        $region260: #{forward.1} parent=187 // pred_fallthru
          _
        // Predicated region
        $region261: #{forward.1} parent=187 // pred_check
          %p1482 = pneg %p926
        $region262: #{forward.1} parent=187 // pred_check_branch
          %1484 = sbr.rel (%p1482) target = $region264
        $region263: #{forward.1} parent=187 // pred_region
          %1486 = dma.done [#allocation30], 1024
        $region264: #{forward.1} parent=187 // pred_fallthru
          _
        // Predicated region
        $region265: #{forward.1} parent=187 // pred_check
          %p1487 = pneg %p968
        $region266: #{forward.1} parent=187 // pred_check_branch
          %1489 = sbr.rel (%p1487) target = $region268
        $region267: #{forward.1} parent=187 // pred_region
          %1491 = dma.done [#allocation33], 1024
        $region268: #{forward.1} parent=187 // pred_fallthru
          _
        %p1492 = scmp.lt.s32.totalorder %s107, 1
        %s1493 = scalar_select %p1492, %s107, 1
        %s1494 = smul.addr %s1493, 2
        %s1495 = smul.addr %s1494, 8
        %s1496 = scalar_lea.vmem %s1, %s1495
        %p1497 = pneg %p128
        %p1498 = pneg %p125
        %p1499 = pneg %p149
        %p1500 = pneg %p146
        %p1501 = pneg %p170
        %p1502 = pneg %p167
        %p1503 = pneg %p191
        %p1504 = pneg %p188
        %p1505 = pneg %p212
        %p1506 = pneg %p209
        %p1507 = pneg %p233
        %p1508 = pneg %p230
        %p1509 = pneg %p254
        %p1510 = pneg %p251
        %p1511 = pneg %p275
        %p1512 = pneg %p272
        %p1513 = pneg %p296
        %p1514 = pneg %p293
        %p1515 = pneg %p317
        %p1516 = pneg %p314
        %p1517 = pneg %p338
        %p1518 = pneg %p335
        %p1519 = pneg %p359
        %p1520 = pneg %p356
        %p1521 = pneg %p380
        %p1522 = pneg %p377
        %p1523 = pneg %p401
        %p1524 = pneg %p398
        %p1525 = pneg %p422
        %p1526 = pneg %p419
        %p1527 = pneg %p443
        %p1528 = pneg %p440
        %p1529 = pneg %p464
        %p1530 = pneg %p461
        %p1531 = pneg %p485
        %p1532 = pneg %p482
        %p1533 = pneg %p506
        %p1534 = pneg %p503
        %p1535 = pneg %p527
        %p1536 = pneg %p524
        %p1537 = pneg %p548
        %p1538 = pneg %p545
        %p1539 = pneg %p569
        %p1540 = pneg %p566
        %p1541 = pneg %p590
        %p1542 = pneg %p587
        %p1543 = pneg %p611
        %p1544 = pneg %p608
        %p1545 = pneg %p632
        %p1546 = pneg %p629
        %p1547 = pneg %p653
        %p1548 = pneg %p650
        %p1549 = pneg %p674
        %p1550 = pneg %p671
        %p1551 = pneg %p695
        %p1552 = pneg %p692
        %p1553 = pneg %p716
        %p1554 = pneg %p713
        %p1555 = pneg %p737
        %p1556 = pneg %p734
        %p1557 = pneg %p758
        %p1558 = pneg %p755
        %p1559 = pneg %p779
        %p1560 = pneg %p776
        %p1561 = pneg %p800
        %p1562 = pneg %p797
        %p1563 = pneg %p821
        %p1564 = pneg %p818
        %p1565 = pneg %p842
        %p1566 = pneg %p839
        %p1567 = pneg %p863
        %p1568 = pneg %p860
        %p1569 = pneg %p884
        %p1570 = pneg %p881
        %p1571 = pneg %p905
        %p1572 = pneg %p902
        %p1573 = pneg %p926
        %p1574 = pneg %p923
        %p1575 = pneg %p947
        %p1576 = pneg %p944
        %p1577 = pneg %p968
        %p1578 = pneg %p965
        %p1579 = pneg %p989
        %p1580 = pneg %p986
        %p1581 = pneg %p1015
        %p1582 = pneg %p1012
        %p1583 = scmp.lt.s32.totalorder %s107, 1
        %s1584 = scalar_select %p1583, %s107, 1
        %s1585 = smul.addr %s1584, 2
        %s1586 = smul.addr %s1585, 8
        %s1587 = scalar_lea.vmem %s85, %s1586
        %p1588 = scmp.lt.s32.totalorder %s107, 1
        %s1589 = scalar_select %p1588, %s107, 1
        %s1590 = smul.addr %s1589, 2
        %s1591 = smul.addr %s1590, 8
        %s1592 = scalar_lea.vmem %s1, %s1591
        %p1593 = scmp.lt.s32.totalorder %s107, 1
        %s1594 = scalar_select %p1593, %s107, 1
        %s1595 = smul.addr %s1594, 2
        %s1596 = smul.addr %s1595, 8
        %s1597 = scalar_lea.vmem %s85, %s1596
        %v1598 = vld [vmem:[%s1592] sm:$0xff]
        %v1599 = vld [vmem:[%s1592 + $0x8] sm:$0xff]
        %1600 = vst [vmem:[#allocation2] sm:$0x1] 0.0
        %1601 = vst [vmem:[#allocation2 + $0x11] sm:$0x1] 0.0
        %1602 = vst [vmem:[#allocation2 + $0x1] sm:$0xff] %v1598
        %1603 = vst [vmem:[#allocation2 + $0x9] sm:$0xff] %v1599
        %v1604 = vld [vmem:[#allocation2] sm:$0xff]
        %v1605 = vld [vmem:[#allocation2 + $0x8] sm:$0xff]
        %v1606 = vpack.c.bf16 %v1605, %v1604
        %v1607 = vld [vmem:[%s3] sm:$0xf]
        %v1608 = vld [vmem:[%s3 + $0x4] sm:$0xf]
        %v1609 = vld [vmem:[%s3 + $0x8] sm:$0xf]
        %v1610 = vld [vmem:[%s3 + $0xc] sm:$0xf]
        %v1611 = vld [vmem:[%s3 + $0x10] sm:$0xf]
        %v1612 = vld [vmem:[%s3 + $0x14] sm:$0xf]
        %v1613 = vld [vmem:[%s3 + $0x18] sm:$0xf]
        %v1614 = vld [vmem:[%s3 + $0x1c] sm:$0xf]
        %v1615 = vld [vmem:[%s3 + $0x20] sm:$0xf]
        %v1616 = vld [vmem:[%s3 + $0x24] sm:$0xf]
        %v1617 = vld [vmem:[%s3 + $0x28] sm:$0xf]
        %v1618 = vld [vmem:[%s3 + $0x2c] sm:$0xf]
        %v1619 = vld [vmem:[%s3 + $0x30] sm:$0xf]
        %v1620 = vld [vmem:[%s3 + $0x34] sm:$0xf]
        %v1621 = vld [vmem:[%s3 + $0x38] sm:$0xf]
        %v1622 = vld [vmem:[%s3 + $0x3c] sm:$0xf]
        %v1623 = vld [vmem:[#allocation2 + $0x1] sm:$0xff]
        %v1624 = vld [vmem:[#allocation2 + $0x9] sm:$0xff]
        %v1625 = vpack.c.bf16 %v1624, %v1623
        %s1626 = scalar_lea.vmem %s3, 64
        %v1627 = vld [vmem:[%s1626] sm:$0xf]
        %v1628 = vld [vmem:[%s1626 + $0x4] sm:$0xf]
        %v1629 = vld [vmem:[%s1626 + $0x8] sm:$0xf]
        %v1630 = vld [vmem:[%s1626 + $0xc] sm:$0xf]
        %v1631 = vld [vmem:[%s1626 + $0x10] sm:$0xf]
        %v1632 = vld [vmem:[%s1626 + $0x14] sm:$0xf]
        %v1633 = vld [vmem:[%s1626 + $0x18] sm:$0xf]
        %v1634 = vld [vmem:[%s1626 + $0x1c] sm:$0xf]
        %v1635 = vld [vmem:[%s1626 + $0x20] sm:$0xf]
        %v1636 = vld [vmem:[%s1626 + $0x24] sm:$0xf]
        %v1637 = vld [vmem:[%s1626 + $0x28] sm:$0xf]
        %v1638 = vld [vmem:[%s1626 + $0x2c] sm:$0xf]
        %v1639 = vld [vmem:[%s1626 + $0x30] sm:$0xf]
        %v1640 = vld [vmem:[%s1626 + $0x34] sm:$0xf]
        %v1641 = vld [vmem:[%s1626 + $0x38] sm:$0xf]
        %v1642 = vld [vmem:[%s1626 + $0x3c] sm:$0xf]
        %v1659 = vunpack.c.l.b16 %v1627
        %v1660 = vunpack.c.l.b16 %v1628
        %v1661 = vunpack.c.l.b16 %v1629
        %v1662 = vunpack.c.l.b16 %v1630
        %v1663 = vunpack.c.l.b16 %v1631
        %v1664 = vunpack.c.l.b16 %v1632
        %v1665 = vunpack.c.l.b16 %v1633
        %v1666 = vunpack.c.l.b16 %v1634
        %v1667 = vunpack.c.l.b16 %v1635
        %v1668 = vunpack.c.l.b16 %v1636
        %v1669 = vunpack.c.l.b16 %v1637
        %v1670 = vunpack.c.l.b16 %v1638
        %v1671 = vunpack.c.l.b16 %v1639
        %v1672 = vunpack.c.l.b16 %v1640
        %v1673 = vunpack.c.l.b16 %v1641
        %v1674 = vunpack.c.l.b16 %v1642
        %v1675 = vpack.c.b16 %v1660, %v1659
        %v1676 = vpack.c.b16 %v1662, %v1661
        %v1677 = vpack.c.b16 %v1664, %v1663
        %v1678 = vpack.c.b16 %v1666, %v1665
        %v1679 = vpack.c.b16 %v1668, %v1667
        %v1680 = vpack.c.b16 %v1670, %v1669
        %v1681 = vpack.c.b16 %v1672, %v1671
        %v1682 = vpack.c.b16 %v1674, %v1673
        %1691 = vmatpush.bf16.msra.mxu0 %v1682
        %1692 = vmatpush.bf16.msra.mxu0 %v1681
        %1693 = vmatpush.bf16.msra.mxu0 %v1680
        %1694 = vmatpush.bf16.msra.mxu0 %v1679
        %1695 = vmatpush.bf16.msra.mxu0 %v1678
        %1696 = vmatpush.bf16.msra.mxu0 %v1677
        %1697 = vmatpush.bf16.msra.mxu0 %v1676
        %1698 = vmatpush.bf16.msra.mxu0 %v1675
        %1699 = vmatmul.bf16.gmra.mxu0 %v1625
        %v1700 = vpop.f32.mrf.mxu0
        %v1701 = vadd.f32 0.0, %v1700
        %v1702 = vpop.f32.mrf.mxu0
        %v1703 = vadd.f32 0.0, %v1702
        %1704 = vdwg.mxu0
        %v1721 = vunpack.c.l.b16 %v1607
        %v1722 = vunpack.c.l.b16 %v1608
        %v1723 = vunpack.c.l.b16 %v1609
        %v1724 = vunpack.c.l.b16 %v1610
        %v1725 = vunpack.c.l.b16 %v1611
        %v1726 = vunpack.c.l.b16 %v1612
        %v1727 = vunpack.c.l.b16 %v1613
        %v1728 = vunpack.c.l.b16 %v1614
        %v1729 = vunpack.c.l.b16 %v1615
        %v1730 = vunpack.c.l.b16 %v1616
        %v1731 = vunpack.c.l.b16 %v1617
        %v1732 = vunpack.c.l.b16 %v1618
        %v1733 = vunpack.c.l.b16 %v1619
        %v1734 = vunpack.c.l.b16 %v1620
        %v1735 = vunpack.c.l.b16 %v1621
        %v1736 = vunpack.c.l.b16 %v1622
        %v1737 = vpack.c.b16 %v1722, %v1721
        %v1738 = vpack.c.b16 %v1724, %v1723
        %v1739 = vpack.c.b16 %v1726, %v1725
        %v1740 = vpack.c.b16 %v1728, %v1727
        %v1741 = vpack.c.b16 %v1730, %v1729
        %v1742 = vpack.c.b16 %v1732, %v1731
        %v1743 = vpack.c.b16 %v1734, %v1733
        %v1744 = vpack.c.b16 %v1736, %v1735
        %1753 = vmatpush.bf16.msra.mxu0 %v1744
        %1754 = vmatpush.bf16.msra.mxu0 %v1743
        %1755 = vmatpush.bf16.msra.mxu0 %v1742
        %1756 = vmatpush.bf16.msra.mxu0 %v1741
        %1757 = vmatpush.bf16.msra.mxu0 %v1740
        %1758 = vmatpush.bf16.msra.mxu0 %v1739
        %1759 = vmatpush.bf16.msra.mxu0 %v1738
        %1760 = vmatpush.bf16.msra.mxu0 %v1737
        %1761 = vmatmul.bf16.gmra.mxu0 %v1606
        %v1762 = vpop.f32.mrf.mxu0
        %v1763 = vadd.f32 %v1701, %v1762
        %v1764 = vpop.f32.mrf.mxu0
        %v1765 = vadd.f32 %v1703, %v1764
        %1766 = vdwg.mxu0
        %v1767 = vld [vmem:[#allocation2 + $0x2] sm:$0xff]
        %v1768 = vld [vmem:[#allocation2 + $0xa] sm:$0xff]
        %v1769 = vpack.c.bf16 %v1768, %v1767
        %s1770 = scalar_lea.vmem %s3, 128
        %v1771 = vld [vmem:[%s1770] sm:$0xf]
        %v1772 = vld [vmem:[%s1770 + $0x4] sm:$0xf]
        %v1773 = vld [vmem:[%s1770 + $0x8] sm:$0xf]
        %v1774 = vld [vmem:[%s1770 + $0xc] sm:$0xf]
        %v1775 = vld [vmem:[%s1770 + $0x10] sm:$0xf]
        %v1776 = vld [vmem:[%s1770 + $0x14] sm:$0xf]
        %v1777 = vld [vmem:[%s1770 + $0x18] sm:$0xf]
        %v1778 = vld [vmem:[%s1770 + $0x1c] sm:$0xf]
        %v1779 = vld [vmem:[%s1770 + $0x20] sm:$0xf]
        %v1780 = vld [vmem:[%s1770 + $0x24] sm:$0xf]
        %v1781 = vld [vmem:[%s1770 + $0x28] sm:$0xf]
        %v1782 = vld [vmem:[%s1770 + $0x2c] sm:$0xf]
        %v1783 = vld [vmem:[%s1770 + $0x30] sm:$0xf]
        %v1784 = vld [vmem:[%s1770 + $0x34] sm:$0xf]
        %v1785 = vld [vmem:[%s1770 + $0x38] sm:$0xf]
        %v1786 = vld [vmem:[%s1770 + $0x3c] sm:$0xf]
        %v1803 = vunpack.c.l.b16 %v1771
        %v1804 = vunpack.c.l.b16 %v1772
        %v1805 = vunpack.c.l.b16 %v1773
        %v1806 = vunpack.c.l.b16 %v1774
        %v1807 = vunpack.c.l.b16 %v1775
        %v1808 = vunpack.c.l.b16 %v1776
        %v1809 = vunpack.c.l.b16 %v1777
        %v1810 = vunpack.c.l.b16 %v1778
        %v1811 = vunpack.c.l.b16 %v1779
        %v1812 = vunpack.c.l.b16 %v1780
        %v1813 = vunpack.c.l.b16 %v1781
        %v1814 = vunpack.c.l.b16 %v1782
        %v1815 = vunpack.c.l.b16 %v1783
        %v1816 = vunpack.c.l.b16 %v1784
        %v1817 = vunpack.c.l.b16 %v1785
        %v1818 = vunpack.c.l.b16 %v1786
        %v1819 = vpack.c.b16 %v1804, %v1803
        %v1820 = vpack.c.b16 %v1806, %v1805
        %v1821 = vpack.c.b16 %v1808, %v1807
        %v1822 = vpack.c.b16 %v1810, %v1809
        %v1823 = vpack.c.b16 %v1812, %v1811
        %v1824 = vpack.c.b16 %v1814, %v1813
        %v1825 = vpack.c.b16 %v1816, %v1815
        %v1826 = vpack.c.b16 %v1818, %v1817
        %1835 = vmatpush.bf16.msra.mxu0 %v1826
        %1836 = vmatpush.bf16.msra.mxu0 %v1825
        %1837 = vmatpush.bf16.msra.mxu0 %v1824
        %1838 = vmatpush.bf16.msra.mxu0 %v1823
        %1839 = vmatpush.bf16.msra.mxu0 %v1822
        %1840 = vmatpush.bf16.msra.mxu0 %v1821
        %1841 = vmatpush.bf16.msra.mxu0 %v1820
        %1842 = vmatpush.bf16.msra.mxu0 %v1819
        %1843 = vmatmul.bf16.gmra.mxu0 %v1769
        %v1844 = vpop.f32.mrf.mxu0
        %v1845 = vadd.f32 0.0, %v1844
        %v1846 = vpop.f32.mrf.mxu0
        %v1847 = vadd.f32 0.0, %v1846
        %1848 = vdwg.mxu0
        %v1849 = vadd.f32 %v1763, %v1845
        %v1850 = vadd.f32 %v1765, %v1847
        %v1851 = vadd.f32 %v1849, %v1850
        %v1852 = vrot.slane %v1851, 4
        %v1853 = vadd.f32 %v1851, %v1852
        %v1854 = vrot.slane %v1853, 2
        %v1855 = vadd.f32 %v1853, %v1854
        %v1856 = vrot.slane %v1855, 1
        %v1857 = vadd.f32 %v1855, %v1856
        %v1858 = vmul.f32 %v1849, %v1849
        %v1859 = vmul.f32 %v1850, %v1850
        %v1860 = vadd.f32 %v1858, %v1859
        %v1861 = vrot.slane %v1860, 4
        %v1862 = vadd.f32 %v1860, %v1861
        %v1863 = vrot.slane %v1862, 2
        %v1864 = vadd.f32 %v1862, %v1863
        %v1865 = vrot.slane %v1864, 1
        %v1866 = vadd.f32 %v1864, %v1865
        %vm1867 = vcmask 1040384
        %v1868 = vsel %vm1867, %v1857, %v1866
        %v1869 = vld [vmem:[%s5] sm:$0xff]
        %v1870 = vld [vmem:[%s5 + $0x8] sm:$0xff]
        %v1871 = vld [vmem:[%s5 + $0x10] sm:$0xff]
        %v1872 = vld [vmem:[%s5 + $0x18] sm:$0xff]
        %v1873 = vld [vmem:[%s5 + $0x20] sm:$0xff]
        %v1874 = vld [vmem:[%s5 + $0x28] sm:$0xff]
        %v1875 = vld [vmem:[%s5 + $0x30] sm:$0xff]
        %v1876 = vld [vmem:[%s5 + $0x38] sm:$0xff]
        %v1877 = vld [vmem:[%s5 + $0x40] sm:$0xff]
        %v1878 = vld [vmem:[%s5 + $0x48] sm:$0xff]
        %v1879 = vld [vmem:[%s5 + $0x50] sm:$0xff]
        %v1880 = vld [vmem:[%s5 + $0x58] sm:$0xff]
        %v1881 = vld [vmem:[%s5 + $0x60] sm:$0xff]
        %v1882 = vld [vmem:[%s5 + $0x68] sm:$0xff]
        %v1883 = vld [vmem:[%s5 + $0x70] sm:$0xff]
        %v1884 = vld [vmem:[%s5 + $0x78] sm:$0xff]
        %1885 = vmatpush.msra.mxu0 %v1884
        %1886 = vmatpush.msra.mxu0 %v1883
        %1887 = vmatpush.msra.mxu0 %v1882
        %1888 = vmatpush.msra.mxu0 %v1881
        %1889 = vmatpush.msra.mxu0 %v1880
        %1890 = vmatpush.msra.mxu0 %v1879
        %1891 = vmatpush.msra.mxu0 %v1878
        %1892 = vmatpush.msra.mxu0 %v1877
        %1893 = vmatpush.msra.mxu0 %v1876
        %1894 = vmatpush.msra.mxu0 %v1875
        %1895 = vmatpush.msra.mxu0 %v1874
        %1896 = vmatpush.msra.mxu0 %v1873
        %1897 = vmatpush.msra.mxu0 %v1872
        %1898 = vmatpush.msra.mxu0 %v1871
        %1899 = vmatpush.msra.mxu0 %v1870
        %1900 = vmatpush.msra.mxu0 %v1869
        %1901 = vmatmul.f32.gmra.mxu0 %v1868
        %v1902 = vpop.f32.mrf.mxu0
        %v1903 = vadd.f32 0.0, %v1902
        %1904 = vdwg.mxu0
        %v1905 = vmul.f32 %v1903, %v1903
        %v1907 = vrot.slane %v1905, 7
        %v1909 = vsub.f32 %v1903, %v1907
        %v1910 = vmax.f32 %v1909, 0.0
        %v1911 = vperm.slane %v1903, 0
        %v1912 = vsub.f32 %v1849, %v1911
        %v1913 = vsub.f32 %v1850, %v1911
        %v1914 = vadd.f32 %v1910, 1e-05
        %v1915 = vrsqrt.pop %v1914
        %v1916 = vmul.f32 %v1915, %v1914
        %v1917 = vmul.f32 %v1916, %v1915
        %v1918 = vmul.f32 0.5, %v1917
        %v1919 = vsub.f32 1.5, %v1918
        %v1920 = vmul.f32 %v1915, %v1919
        %vm1921 = vweird.f32 %v1914
        %vm1922 = vweird.f32 %v1915
        %vm1923 = vmor %vm1921, %vm1922
        %v1924 = vsel %vm1923, %v1915, %v1920
        %v1925 = vld [vmem:[%s7] sm:$0x1]
        %v1927 = vrot.slane %v1925, 7
        %v1929 = vmul.f32 %v1924, %v1927
        %v1930 = vperm.slane %v1929, 1
        %v1931 = vmul.f32 %v1912, %v1930
        %v1932 = vmul.f32 %v1913, %v1930
        %v1933 = vld [vmem:[%s7 + $0x1] sm:$0x1]
        %v1934 = vperm.slane %v1933, 0
        %v1935 = vadd.f32 %v1931, %v1934
        %v1936 = vadd.f32 %v1932, %v1934
        %vm1937 = vcmp.ge.f32.partialorder %v1935, 0.0
        %vm1938 = vcmp.ge.f32.partialorder %v1936, 0.0
        %v1939 = vmul.f32 %v1935, 0.01
        %v1940 = vmul.f32 %v1936, 0.01
        %v1941 = vsel %vm1937, %v1935, %v1939
        %v1942 = vsel %vm1938, %v1936, %v1940
        %1943 = vst [vmem:[#allocation2] sm:$0x1] 0.0
        %1944 = vst [vmem:[#allocation2 + $0x11] sm:$0x1] 0.0
        %1945 = vst [vmem:[#allocation2 + $0x1] sm:$0xff] %v1941
        %1946 = vst [vmem:[#allocation2 + $0x9] sm:$0xff] %v1942
        %v1947 = vld [vmem:[#allocation2] sm:$0xff]
        %v1948 = vld [vmem:[#allocation2 + $0x8] sm:$0xff]
        %v1949 = vpack.c.bf16 %v1948, %v1947
        %v1950 = vld [vmem:[%s9] sm:$0xf]
        %v1951 = vld [vmem:[%s9 + $0x4] sm:$0xf]
        %v1952 = vld [vmem:[%s9 + $0x8] sm:$0xf]
        %v1953 = vld [vmem:[%s9 + $0xc] sm:$0xf]
        %v1954 = vld [vmem:[%s9 + $0x10] sm:$0xf]
        %v1955 = vld [vmem:[%s9 + $0x14] sm:$0xf]
        %v1956 = vld [vmem:[%s9 + $0x18] sm:$0xf]
        %v1957 = vld [vmem:[%s9 + $0x1c] sm:$0xf]
        %v1958 = vld [vmem:[%s9 + $0x20] sm:$0xf]
        %v1959 = vld [vmem:[%s9 + $0x24] sm:$0xf]
        %v1960 = vld [vmem:[%s9 + $0x28] sm:$0xf]
        %v1961 = vld [vmem:[%s9 + $0x2c] sm:$0xf]
        %v1962 = vld [vmem:[%s9 + $0x30] sm:$0xf]
        %v1963 = vld [vmem:[%s9 + $0x34] sm:$0xf]
        %v1964 = vld [vmem:[%s9 + $0x38] sm:$0xf]
        %v1965 = vld [vmem:[%s9 + $0x3c] sm:$0xf]
        %v1966 = vld [vmem:[#allocation2 + $0x1] sm:$0xff]
        %v1967 = vld [vmem:[#allocation2 + $0x9] sm:$0xff]
        %v1968 = vpack.c.bf16 %v1967, %v1966
        %s1969 = scalar_lea.vmem %s9, 64
        %v1970 = vld [vmem:[%s1969] sm:$0xf]
        %v1971 = vld [vmem:[%s1969 + $0x4] sm:$0xf]
        %v1972 = vld [vmem:[%s1969 + $0x8] sm:$0xf]
        %v1973 = vld [vmem:[%s1969 + $0xc] sm:$0xf]
        %v1974 = vld [vmem:[%s1969 + $0x10] sm:$0xf]
        %v1975 = vld [vmem:[%s1969 + $0x14] sm:$0xf]
        %v1976 = vld [vmem:[%s1969 + $0x18] sm:$0xf]
        %v1977 = vld [vmem:[%s1969 + $0x1c] sm:$0xf]
        %v1978 = vld [vmem:[%s1969 + $0x20] sm:$0xf]
        %v1979 = vld [vmem:[%s1969 + $0x24] sm:$0xf]
        %v1980 = vld [vmem:[%s1969 + $0x28] sm:$0xf]
        %v1981 = vld [vmem:[%s1969 + $0x2c] sm:$0xf]
        %v1982 = vld [vmem:[%s1969 + $0x30] sm:$0xf]
        %v1983 = vld [vmem:[%s1969 + $0x34] sm:$0xf]
        %v1984 = vld [vmem:[%s1969 + $0x38] sm:$0xf]
        %v1985 = vld [vmem:[%s1969 + $0x3c] sm:$0xf]
        %v2002 = vunpack.c.l.b16 %v1970
        %v2003 = vunpack.c.l.b16 %v1971
        %v2004 = vunpack.c.l.b16 %v1972
        %v2005 = vunpack.c.l.b16 %v1973
        %v2006 = vunpack.c.l.b16 %v1974
        %v2007 = vunpack.c.l.b16 %v1975
        %v2008 = vunpack.c.l.b16 %v1976
        %v2009 = vunpack.c.l.b16 %v1977
        %v2010 = vunpack.c.l.b16 %v1978
        %v2011 = vunpack.c.l.b16 %v1979
        %v2012 = vunpack.c.l.b16 %v1980
        %v2013 = vunpack.c.l.b16 %v1981
        %v2014 = vunpack.c.l.b16 %v1982
        %v2015 = vunpack.c.l.b16 %v1983
        %v2016 = vunpack.c.l.b16 %v1984
        %v2017 = vunpack.c.l.b16 %v1985
        %v2018 = vpack.c.b16 %v2003, %v2002
        %v2019 = vpack.c.b16 %v2005, %v2004
        %v2020 = vpack.c.b16 %v2007, %v2006
        %v2021 = vpack.c.b16 %v2009, %v2008
        %v2022 = vpack.c.b16 %v2011, %v2010
        %v2023 = vpack.c.b16 %v2013, %v2012
        %v2024 = vpack.c.b16 %v2015, %v2014
        %v2025 = vpack.c.b16 %v2017, %v2016
        %2034 = vmatpush.bf16.msra.mxu0 %v2025
        %2035 = vmatpush.bf16.msra.mxu0 %v2024
        %2036 = vmatpush.bf16.msra.mxu0 %v2023
        %2037 = vmatpush.bf16.msra.mxu0 %v2022
        %2038 = vmatpush.bf16.msra.mxu0 %v2021
        %2039 = vmatpush.bf16.msra.mxu0 %v2020
        %2040 = vmatpush.bf16.msra.mxu0 %v2019
        %2041 = vmatpush.bf16.msra.mxu0 %v2018
        %2042 = vmatmul.bf16.gmra.mxu0 %v1968
        %v2043 = vpop.f32.mrf.mxu0
        %v2044 = vadd.f32 0.0, %v2043
        %v2045 = vpop.f32.mrf.mxu0
        %v2046 = vadd.f32 0.0, %v2045
        %2047 = vdwg.mxu0
        %v2064 = vunpack.c.l.b16 %v1950
        %v2065 = vunpack.c.l.b16 %v1951
        %v2066 = vunpack.c.l.b16 %v1952
        %v2067 = vunpack.c.l.b16 %v1953
        %v2068 = vunpack.c.l.b16 %v1954
        %v2069 = vunpack.c.l.b16 %v1955
        %v2070 = vunpack.c.l.b16 %v1956
        %v2071 = vunpack.c.l.b16 %v1957
        %v2072 = vunpack.c.l.b16 %v1958
        %v2073 = vunpack.c.l.b16 %v1959
        %v2074 = vunpack.c.l.b16 %v1960
        %v2075 = vunpack.c.l.b16 %v1961
        %v2076 = vunpack.c.l.b16 %v1962
        %v2077 = vunpack.c.l.b16 %v1963
        %v2078 = vunpack.c.l.b16 %v1964
        %v2079 = vunpack.c.l.b16 %v1965
        %v2080 = vpack.c.b16 %v2065, %v2064
        %v2081 = vpack.c.b16 %v2067, %v2066
        %v2082 = vpack.c.b16 %v2069, %v2068
        %v2083 = vpack.c.b16 %v2071, %v2070
        %v2084 = vpack.c.b16 %v2073, %v2072
        %v2085 = vpack.c.b16 %v2075, %v2074
        %v2086 = vpack.c.b16 %v2077, %v2076
        %v2087 = vpack.c.b16 %v2079, %v2078
        %2096 = vmatpush.bf16.msra.mxu0 %v2087
        %2097 = vmatpush.bf16.msra.mxu0 %v2086
        %2098 = vmatpush.bf16.msra.mxu0 %v2085
        %2099 = vmatpush.bf16.msra.mxu0 %v2084
        %2100 = vmatpush.bf16.msra.mxu0 %v2083
        %2101 = vmatpush.bf16.msra.mxu0 %v2082
        %2102 = vmatpush.bf16.msra.mxu0 %v2081
        %2103 = vmatpush.bf16.msra.mxu0 %v2080
        %2104 = vmatmul.bf16.gmra.mxu0 %v1949
        %v2105 = vpop.f32.mrf.mxu0
        %v2106 = vadd.f32 %v2044, %v2105
        %v2107 = vpop.f32.mrf.mxu0
        %v2108 = vadd.f32 %v2046, %v2107
        %2109 = vdwg.mxu0
        %v2110 = vld [vmem:[#allocation2 + $0x2] sm:$0xff]
        %v2111 = vld [vmem:[#allocation2 + $0xa] sm:$0xff]
        %v2112 = vpack.c.bf16 %v2111, %v2110
        %s2113 = scalar_lea.vmem %s9, 128
        %v2114 = vld [vmem:[%s2113] sm:$0xf]
        %v2115 = vld [vmem:[%s2113 + $0x4] sm:$0xf]
        %v2116 = vld [vmem:[%s2113 + $0x8] sm:$0xf]
        %v2117 = vld [vmem:[%s2113 + $0xc] sm:$0xf]
        %v2118 = vld [vmem:[%s2113 + $0x10] sm:$0xf]
        %v2119 = vld [vmem:[%s2113 + $0x14] sm:$0xf]
        %v2120 = vld [vmem:[%s2113 + $0x18] sm:$0xf]
        %v2121 = vld [vmem:[%s2113 + $0x1c] sm:$0xf]
        %v2122 = vld [vmem:[%s2113 + $0x20] sm:$0xf]
        %v2123 = vld [vmem:[%s2113 + $0x24] sm:$0xf]
        %v2124 = vld [vmem:[%s2113 + $0x28] sm:$0xf]
        %v2125 = vld [vmem:[%s2113 + $0x2c] sm:$0xf]
        %v2126 = vld [vmem:[%s2113 + $0x30] sm:$0xf]
        %v2127 = vld [vmem:[%s2113 + $0x34] sm:$0xf]
        %v2128 = vld [vmem:[%s2113 + $0x38] sm:$0xf]
        %v2129 = vld [vmem:[%s2113 + $0x3c] sm:$0xf]
        %v2146 = vunpack.c.l.b16 %v2114
        %v2147 = vunpack.c.l.b16 %v2115
        %v2148 = vunpack.c.l.b16 %v2116
        %v2149 = vunpack.c.l.b16 %v2117
        %v2150 = vunpack.c.l.b16 %v2118
        %v2151 = vunpack.c.l.b16 %v2119
        %v2152 = vunpack.c.l.b16 %v2120
        %v2153 = vunpack.c.l.b16 %v2121
        %v2154 = vunpack.c.l.b16 %v2122
        %v2155 = vunpack.c.l.b16 %v2123
        %v2156 = vunpack.c.l.b16 %v2124
        %v2157 = vunpack.c.l.b16 %v2125
        %v2158 = vunpack.c.l.b16 %v2126
        %v2159 = vunpack.c.l.b16 %v2127
        %v2160 = vunpack.c.l.b16 %v2128
        %v2161 = vunpack.c.l.b16 %v2129
        %v2162 = vpack.c.b16 %v2147, %v2146
        %v2163 = vpack.c.b16 %v2149, %v2148
        %v2164 = vpack.c.b16 %v2151, %v2150
        %v2165 = vpack.c.b16 %v2153, %v2152
        %v2166 = vpack.c.b16 %v2155, %v2154
        %v2167 = vpack.c.b16 %v2157, %v2156
        %v2168 = vpack.c.b16 %v2159, %v2158
        %v2169 = vpack.c.b16 %v2161, %v2160
        %2178 = vmatpush.bf16.msra.mxu0 %v2169
        %2179 = vmatpush.bf16.msra.mxu0 %v2168
        %2180 = vmatpush.bf16.msra.mxu0 %v2167
        %2181 = vmatpush.bf16.msra.mxu0 %v2166
        %2182 = vmatpush.bf16.msra.mxu0 %v2165
        %2183 = vmatpush.bf16.msra.mxu0 %v2164
        %2184 = vmatpush.bf16.msra.mxu0 %v2163
        %2185 = vmatpush.bf16.msra.mxu0 %v2162
        %2186 = vmatmul.bf16.gmra.mxu0 %v2112
        %v2187 = vpop.f32.mrf.mxu0
        %v2188 = vadd.f32 0.0, %v2187
        %v2189 = vpop.f32.mrf.mxu0
        %v2190 = vadd.f32 0.0, %v2189
        %2191 = vdwg.mxu0
        %v2192 = vadd.f32 %v2106, %v2188
        %v2193 = vadd.f32 %v2108, %v2190
        %v2194 = vadd.f32 %v2192, %v2193
        %v2195 = vrot.slane %v2194, 4
        %v2196 = vadd.f32 %v2194, %v2195
        %v2197 = vrot.slane %v2196, 2
        %v2198 = vadd.f32 %v2196, %v2197
        %v2199 = vrot.slane %v2198, 1
        %v2200 = vadd.f32 %v2198, %v2199
        %v2201 = vmul.f32 %v2192, %v2192
        %v2202 = vmul.f32 %v2193, %v2193
        %v2203 = vadd.f32 %v2201, %v2202
        %v2204 = vrot.slane %v2203, 4
        %v2205 = vadd.f32 %v2203, %v2204
        %v2206 = vrot.slane %v2205, 2
        %v2207 = vadd.f32 %v2205, %v2206
        %v2208 = vrot.slane %v2207, 1
        %v2209 = vadd.f32 %v2207, %v2208
        %v2210 = vsel %vm1867, %v2200, %v2209
        %v2211 = vld [vmem:[%s5] sm:$0xff]
        %v2212 = vld [vmem:[%s5 + $0x8] sm:$0xff]
        %v2213 = vld [vmem:[%s5 + $0x10] sm:$0xff]
        %v2214 = vld [vmem:[%s5 + $0x18] sm:$0xff]
        %v2215 = vld [vmem:[%s5 + $0x20] sm:$0xff]
        %v2216 = vld [vmem:[%s5 + $0x28] sm:$0xff]
        %v2217 = vld [vmem:[%s5 + $0x30] sm:$0xff]
        %v2218 = vld [vmem:[%s5 + $0x38] sm:$0xff]
        %v2219 = vld [vmem:[%s5 + $0x40] sm:$0xff]
        %v2220 = vld [vmem:[%s5 + $0x48] sm:$0xff]
        %v2221 = vld [vmem:[%s5 + $0x50] sm:$0xff]
        %v2222 = vld [vmem:[%s5 + $0x58] sm:$0xff]
        %v2223 = vld [vmem:[%s5 + $0x60] sm:$0xff]
        %v2224 = vld [vmem:[%s5 + $0x68] sm:$0xff]
        %v2225 = vld [vmem:[%s5 + $0x70] sm:$0xff]
        %v2226 = vld [vmem:[%s5 + $0x78] sm:$0xff]
        %2227 = vmatpush.msra.mxu0 %v2226
        %2228 = vmatpush.msra.mxu0 %v2225
        %2229 = vmatpush.msra.mxu0 %v2224
        %2230 = vmatpush.msra.mxu0 %v2223
        %2231 = vmatpush.msra.mxu0 %v2222
        %2232 = vmatpush.msra.mxu0 %v2221
        %2233 = vmatpush.msra.mxu0 %v2220
        %2234 = vmatpush.msra.mxu0 %v2219
        %2235 = vmatpush.msra.mxu0 %v2218
        %2236 = vmatpush.msra.mxu0 %v2217
        %2237 = vmatpush.msra.mxu0 %v2216
        %2238 = vmatpush.msra.mxu0 %v2215
        %2239 = vmatpush.msra.mxu0 %v2214
        %2240 = vmatpush.msra.mxu0 %v2213
        %2241 = vmatpush.msra.mxu0 %v2212
        %2242 = vmatpush.msra.mxu0 %v2211
        %2243 = vmatmul.f32.gmra.mxu0 %v2210
        %v2244 = vpop.f32.mrf.mxu0
        %v2245 = vadd.f32 0.0, %v2244
        %2246 = vdwg.mxu0
        %v2247 = vmul.f32 %v2245, %v2245
        %v2249 = vrot.slane %v2247, 7
        %v2251 = vsub.f32 %v2245, %v2249
        %v2252 = vmax.f32 %v2251, 0.0
        %v2253 = vperm.slane %v2245, 0
        %v2254 = vsub.f32 %v2192, %v2253
        %v2255 = vsub.f32 %v2193, %v2253
        %v2256 = vadd.f32 %v2252, 1e-05
        %v2257 = vrsqrt.pop %v2256
        %v2258 = vmul.f32 %v2257, %v2256
        %v2259 = vmul.f32 %v2258, %v2257
        %v2260 = vmul.f32 0.5, %v2259
        %v2261 = vsub.f32 1.5, %v2260
        %v2262 = vmul.f32 %v2257, %v2261
        %vm2263 = vweird.f32 %v2256
        %vm2264 = vweird.f32 %v2257
        %vm2265 = vmor %vm2263, %vm2264
        %v2266 = vsel %vm2265, %v2257, %v2262
        %v2267 = vld [vmem:[%s11] sm:$0x1]
        %v2269 = vrot.slane %v2267, 7
        %v2271 = vmul.f32 %v2266, %v2269
        %v2272 = vperm.slane %v2271, 1
        %v2273 = vmul.f32 %v2254, %v2272
        %v2274 = vmul.f32 %v2255, %v2272
        %v2275 = vld [vmem:[%s11 + $0x1] sm:$0x1]
        %v2276 = vperm.slane %v2275, 0
        %v2277 = vadd.f32 %v2273, %v2276
        %v2278 = vadd.f32 %v2274, %v2276
        %vm2279 = vcmp.ge.f32.partialorder %v2277, 0.0
        %vm2280 = vcmp.ge.f32.partialorder %v2278, 0.0
        %v2281 = vmul.f32 %v2277, 0.01
        %v2282 = vmul.f32 %v2278, 0.01
        %v2283 = vsel %vm2279, %v2277, %v2281
        %v2284 = vsel %vm2280, %v2278, %v2282
        %2285 = vst [vmem:[#allocation2] sm:$0x1] 0.0
        %2286 = vst [vmem:[#allocation2 + $0x11] sm:$0x1] 0.0
        %2287 = vst [vmem:[#allocation2 + $0x1] sm:$0xff] %v2283
        %2288 = vst [vmem:[#allocation2 + $0x9] sm:$0xff] %v2284
        %v2289 = vld [vmem:[#allocation2] sm:$0xff]
        %v2290 = vld [vmem:[#allocation2 + $0x8] sm:$0xff]
        %v2291 = vpack.c.bf16 %v2290, %v2289
        %v2292 = vld [vmem:[%s13] sm:$0xf]
        %v2293 = vld [vmem:[%s13 + $0x4] sm:$0xf]
        %v2294 = vld [vmem:[%s13 + $0x8] sm:$0xf]
        %v2295 = vld [vmem:[%s13 + $0xc] sm:$0xf]
        %v2296 = vld [vmem:[%s13 + $0x10] sm:$0xf]
        %v2297 = vld [vmem:[%s13 + $0x14] sm:$0xf]
        %v2298 = vld [vmem:[%s13 + $0x18] sm:$0xf]
        %v2299 = vld [vmem:[%s13 + $0x1c] sm:$0xf]
        %v2300 = vld [vmem:[%s13 + $0x20] sm:$0xf]
        %v2301 = vld [vmem:[%s13 + $0x24] sm:$0xf]
        %v2302 = vld [vmem:[%s13 + $0x28] sm:$0xf]
        %v2303 = vld [vmem:[%s13 + $0x2c] sm:$0xf]
        %v2304 = vld [vmem:[%s13 + $0x30] sm:$0xf]
        %v2305 = vld [vmem:[%s13 + $0x34] sm:$0xf]
        %v2306 = vld [vmem:[%s13 + $0x38] sm:$0xf]
        %v2307 = vld [vmem:[%s13 + $0x3c] sm:$0xf]
        %v2308 = vld [vmem:[#allocation2 + $0x1] sm:$0xff]
        %v2309 = vld [vmem:[#allocation2 + $0x9] sm:$0xff]
        %v2310 = vpack.c.bf16 %v2309, %v2308
        %s2311 = scalar_lea.vmem %s13, 64
        %v2312 = vld [vmem:[%s2311] sm:$0xf]
        %v2313 = vld [vmem:[%s2311 + $0x4] sm:$0xf]
        %v2314 = vld [vmem:[%s2311 + $0x8] sm:$0xf]
        %v2315 = vld [vmem:[%s2311 + $0xc] sm:$0xf]
        %v2316 = vld [vmem:[%s2311 + $0x10] sm:$0xf]
        %v2317 = vld [vmem:[%s2311 + $0x14] sm:$0xf]
        %v2318 = vld [vmem:[%s2311 + $0x18] sm:$0xf]
        %v2319 = vld [vmem:[%s2311 + $0x1c] sm:$0xf]
        %v2320 = vld [vmem:[%s2311 + $0x20] sm:$0xf]
        %v2321 = vld [vmem:[%s2311 + $0x24] sm:$0xf]
        %v2322 = vld [vmem:[%s2311 + $0x28] sm:$0xf]
        %v2323 = vld [vmem:[%s2311 + $0x2c] sm:$0xf]
        %v2324 = vld [vmem:[%s2311 + $0x30] sm:$0xf]
        %v2325 = vld [vmem:[%s2311 + $0x34] sm:$0xf]
        %v2326 = vld [vmem:[%s2311 + $0x38] sm:$0xf]
        %v2327 = vld [vmem:[%s2311 + $0x3c] sm:$0xf]
        %v2344 = vunpack.c.l.b16 %v2312
        %v2345 = vunpack.c.l.b16 %v2313
        %v2346 = vunpack.c.l.b16 %v2314
        %v2347 = vunpack.c.l.b16 %v2315
        %v2348 = vunpack.c.l.b16 %v2316
        %v2349 = vunpack.c.l.b16 %v2317
        %v2350 = vunpack.c.l.b16 %v2318
        %v2351 = vunpack.c.l.b16 %v2319
        %v2352 = vunpack.c.l.b16 %v2320
        %v2353 = vunpack.c.l.b16 %v2321
        %v2354 = vunpack.c.l.b16 %v2322
        %v2355 = vunpack.c.l.b16 %v2323
        %v2356 = vunpack.c.l.b16 %v2324
        %v2357 = vunpack.c.l.b16 %v2325
        %v2358 = vunpack.c.l.b16 %v2326
        %v2359 = vunpack.c.l.b16 %v2327
        %v2360 = vpack.c.b16 %v2345, %v2344
        %v2361 = vpack.c.b16 %v2347, %v2346
        %v2362 = vpack.c.b16 %v2349, %v2348
        %v2363 = vpack.c.b16 %v2351, %v2350
        %v2364 = vpack.c.b16 %v2353, %v2352
        %v2365 = vpack.c.b16 %v2355, %v2354
        %v2366 = vpack.c.b16 %v2357, %v2356
        %v2367 = vpack.c.b16 %v2359, %v2358
        %2376 = vmatpush.bf16.msra.mxu0 %v2367
        %2377 = vmatpush.bf16.msra.mxu0 %v2366
        %2378 = vmatpush.bf16.msra.mxu0 %v2365
        %2379 = vmatpush.bf16.msra.mxu0 %v2364
        %2380 = vmatpush.bf16.msra.mxu0 %v2363
        %2381 = vmatpush.bf16.msra.mxu0 %v2362
        %2382 = vmatpush.bf16.msra.mxu0 %v2361
        %2383 = vmatpush.bf16.msra.mxu0 %v2360
        %2384 = vmatmul.bf16.gmra.mxu0 %v2310
        %v2385 = vpop.f32.mrf.mxu0
        %v2386 = vadd.f32 0.0, %v2385
        %v2387 = vpop.f32.mrf.mxu0
        %v2388 = vadd.f32 0.0, %v2387
        %2389 = vdwg.mxu0
        %v2406 = vunpack.c.l.b16 %v2292
        %v2407 = vunpack.c.l.b16 %v2293
        %v2408 = vunpack.c.l.b16 %v2294
        %v2409 = vunpack.c.l.b16 %v2295
        %v2410 = vunpack.c.l.b16 %v2296
        %v2411 = vunpack.c.l.b16 %v2297
        %v2412 = vunpack.c.l.b16 %v2298
        %v2413 = vunpack.c.l.b16 %v2299
        %v2414 = vunpack.c.l.b16 %v2300
        %v2415 = vunpack.c.l.b16 %v2301
        %v2416 = vunpack.c.l.b16 %v2302
        %v2417 = vunpack.c.l.b16 %v2303
        %v2418 = vunpack.c.l.b16 %v2304
        %v2419 = vunpack.c.l.b16 %v2305
        %v2420 = vunpack.c.l.b16 %v2306
        %v2421 = vunpack.c.l.b16 %v2307
        %v2422 = vpack.c.b16 %v2407, %v2406
        %v2423 = vpack.c.b16 %v2409, %v2408
        %v2424 = vpack.c.b16 %v2411, %v2410
        %v2425 = vpack.c.b16 %v2413, %v2412
        %v2426 = vpack.c.b16 %v2415, %v2414
        %v2427 = vpack.c.b16 %v2417, %v2416
        %v2428 = vpack.c.b16 %v2419, %v2418
        %v2429 = vpack.c.b16 %v2421, %v2420
        %2438 = vmatpush.bf16.msra.mxu0 %v2429
        %2439 = vmatpush.bf16.msra.mxu0 %v2428
        %2440 = vmatpush.bf16.msra.mxu0 %v2427
        %2441 = vmatpush.bf16.msra.mxu0 %v2426
        %2442 = vmatpush.bf16.msra.mxu0 %v2425
        %2443 = vmatpush.bf16.msra.mxu0 %v2424
        %2444 = vmatpush.bf16.msra.mxu0 %v2423
        %2445 = vmatpush.bf16.msra.mxu0 %v2422
        %2446 = vmatmul.bf16.gmra.mxu0 %v2291
        %v2447 = vpop.f32.mrf.mxu0
        %v2448 = vadd.f32 %v2386, %v2447
        %v2449 = vpop.f32.mrf.mxu0
        %v2450 = vadd.f32 %v2388, %v2449
        %2451 = vdwg.mxu0
        %v2452 = vld [vmem:[#allocation2 + $0x2] sm:$0xff]
        %v2453 = vld [vmem:[#allocation2 + $0xa] sm:$0xff]
        %v2454 = vpack.c.bf16 %v2453, %v2452
        %s2455 = scalar_lea.vmem %s13, 128
        %v2456 = vld [vmem:[%s2455] sm:$0xf]
        %v2457 = vld [vmem:[%s2455 + $0x4] sm:$0xf]
        %v2458 = vld [vmem:[%s2455 + $0x8] sm:$0xf]
        %v2459 = vld [vmem:[%s2455 + $0xc] sm:$0xf]
        %v2460 = vld [vmem:[%s2455 + $0x10] sm:$0xf]
        %v2461 = vld [vmem:[%s2455 + $0x14] sm:$0xf]
        %v2462 = vld [vmem:[%s2455 + $0x18] sm:$0xf]
        %v2463 = vld [vmem:[%s2455 + $0x1c] sm:$0xf]
        %v2464 = vld [vmem:[%s2455 + $0x20] sm:$0xf]
        %v2465 = vld [vmem:[%s2455 + $0x24] sm:$0xf]
        %v2466 = vld [vmem:[%s2455 + $0x28] sm:$0xf]
        %v2467 = vld [vmem:[%s2455 + $0x2c] sm:$0xf]
        %v2468 = vld [vmem:[%s2455 + $0x30] sm:$0xf]
        %v2469 = vld [vmem:[%s2455 + $0x34] sm:$0xf]
        %v2470 = vld [vmem:[%s2455 + $0x38] sm:$0xf]
        %v2471 = vld [vmem:[%s2455 + $0x3c] sm:$0xf]
        %v2488 = vunpack.c.l.b16 %v2456
        %v2489 = vunpack.c.l.b16 %v2457
        %v2490 = vunpack.c.l.b16 %v2458
        %v2491 = vunpack.c.l.b16 %v2459
        %v2492 = vunpack.c.l.b16 %v2460
        %v2493 = vunpack.c.l.b16 %v2461
        %v2494 = vunpack.c.l.b16 %v2462
        %v2495 = vunpack.c.l.b16 %v2463
        %v2496 = vunpack.c.l.b16 %v2464
        %v2497 = vunpack.c.l.b16 %v2465
        %v2498 = vunpack.c.l.b16 %v2466
        %v2499 = vunpack.c.l.b16 %v2467
        %v2500 = vunpack.c.l.b16 %v2468
        %v2501 = vunpack.c.l.b16 %v2469
        %v2502 = vunpack.c.l.b16 %v2470
        %v2503 = vunpack.c.l.b16 %v2471
        %v2504 = vpack.c.b16 %v2489, %v2488
        %v2505 = vpack.c.b16 %v2491, %v2490
        %v2506 = vpack.c.b16 %v2493, %v2492
        %v2507 = vpack.c.b16 %v2495, %v2494
        %v2508 = vpack.c.b16 %v2497, %v2496
        %v2509 = vpack.c.b16 %v2499, %v2498
        %v2510 = vpack.c.b16 %v2501, %v2500
        %v2511 = vpack.c.b16 %v2503, %v2502
        %2520 = vmatpush.bf16.msra.mxu0 %v2511
        %2521 = vmatpush.bf16.msra.mxu0 %v2510
        %2522 = vmatpush.bf16.msra.mxu0 %v2509
        %2523 = vmatpush.bf16.msra.mxu0 %v2508
        %2524 = vmatpush.bf16.msra.mxu0 %v2507
        %2525 = vmatpush.bf16.msra.mxu0 %v2506
        %2526 = vmatpush.bf16.msra.mxu0 %v2505
        %2527 = vmatpush.bf16.msra.mxu0 %v2504
        %2528 = vmatmul.bf16.gmra.mxu0 %v2454
        %v2529 = vpop.f32.mrf.mxu0
        %v2530 = vadd.f32 0.0, %v2529
        %v2531 = vpop.f32.mrf.mxu0
        %v2532 = vadd.f32 0.0, %v2531
        %2533 = vdwg.mxu0
        %v2534 = vadd.f32 %v2448, %v2530
        %v2535 = vadd.f32 %v2450, %v2532
        %v2536 = vadd.f32 %v2534, %v2535
        %v2537 = vrot.slane %v2536, 4
        %v2538 = vadd.f32 %v2536, %v2537
        %v2539 = vrot.slane %v2538, 2
        %v2540 = vadd.f32 %v2538, %v2539
        %v2541 = vrot.slane %v2540, 1
        %v2542 = vadd.f32 %v2540, %v2541
        %v2543 = vmul.f32 %v2534, %v2534
        %v2544 = vmul.f32 %v2535, %v2535
        %v2545 = vadd.f32 %v2543, %v2544
        %v2546 = vrot.slane %v2545, 4
        %v2547 = vadd.f32 %v2545, %v2546
        %v2548 = vrot.slane %v2547, 2
        %v2549 = vadd.f32 %v2547, %v2548
        %v2550 = vrot.slane %v2549, 1
        %v2551 = vadd.f32 %v2549, %v2550
        %v2552 = vsel %vm1867, %v2542, %v2551
        %v2553 = vld [vmem:[%s5] sm:$0xff]
        %v2554 = vld [vmem:[%s5 + $0x8] sm:$0xff]
        %v2555 = vld [vmem:[%s5 + $0x10] sm:$0xff]
        %v2556 = vld [vmem:[%s5 + $0x18] sm:$0xff]
        %v2557 = vld [vmem:[%s5 + $0x20] sm:$0xff]
        %v2558 = vld [vmem:[%s5 + $0x28] sm:$0xff]
        %v2559 = vld [vmem:[%s5 + $0x30] sm:$0xff]
        %v2560 = vld [vmem:[%s5 + $0x38] sm:$0xff]
        %v2561 = vld [vmem:[%s5 + $0x40] sm:$0xff]
        %v2562 = vld [vmem:[%s5 + $0x48] sm:$0xff]
        %v2563 = vld [vmem:[%s5 + $0x50] sm:$0xff]
        %v2564 = vld [vmem:[%s5 + $0x58] sm:$0xff]
        %v2565 = vld [vmem:[%s5 + $0x60] sm:$0xff]
        %v2566 = vld [vmem:[%s5 + $0x68] sm:$0xff]
        %v2567 = vld [vmem:[%s5 + $0x70] sm:$0xff]
        %v2568 = vld [vmem:[%s5 + $0x78] sm:$0xff]
        %2569 = vmatpush.msra.mxu0 %v2568
        %2570 = vmatpush.msra.mxu0 %v2567
        %2571 = vmatpush.msra.mxu0 %v2566
        %2572 = vmatpush.msra.mxu0 %v2565
        %2573 = vmatpush.msra.mxu0 %v2564
        %2574 = vmatpush.msra.mxu0 %v2563
        %2575 = vmatpush.msra.mxu0 %v2562
        %2576 = vmatpush.msra.mxu0 %v2561
        %2577 = vmatpush.msra.mxu0 %v2560
        %2578 = vmatpush.msra.mxu0 %v2559
        %2579 = vmatpush.msra.mxu0 %v2558
        %2580 = vmatpush.msra.mxu0 %v2557
        %2581 = vmatpush.msra.mxu0 %v2556
        %2582 = vmatpush.msra.mxu0 %v2555
        %2583 = vmatpush.msra.mxu0 %v2554
        %2584 = vmatpush.msra.mxu0 %v2553
        %2585 = vmatmul.f32.gmra.mxu0 %v2552
        %v2586 = vpop.f32.mrf.mxu0
        %v2587 = vadd.f32 0.0, %v2586
        %2588 = vdwg.mxu0
        %v2589 = vmul.f32 %v2587, %v2587
        %v2591 = vrot.slane %v2589, 7
        %v2593 = vsub.f32 %v2587, %v2591
        %v2594 = vmax.f32 %v2593, 0.0
        %v2595 = vperm.slane %v2587, 0
        %v2596 = vsub.f32 %v2534, %v2595
        %v2597 = vsub.f32 %v2535, %v2595
        %v2598 = vadd.f32 %v2594, 1e-05
        %v2599 = vrsqrt.pop %v2598
        %v2600 = vmul.f32 %v2599, %v2598
        %v2601 = vmul.f32 %v2600, %v2599
        %v2602 = vmul.f32 0.5, %v2601
        %v2603 = vsub.f32 1.5, %v2602
        %v2604 = vmul.f32 %v2599, %v2603
        %vm2605 = vweird.f32 %v2598
        %vm2606 = vweird.f32 %v2599
        %vm2607 = vmor %vm2605, %vm2606
        %v2608 = vsel %vm2607, %v2599, %v2604
        %v2609 = vld [vmem:[%s15] sm:$0x1]
        %v2611 = vrot.slane %v2609, 7
        %v2613 = vmul.f32 %v2608, %v2611
        %v2614 = vperm.slane %v2613, 1
        %v2615 = vmul.f32 %v2596, %v2614
        %v2616 = vmul.f32 %v2597, %v2614
        %v2617 = vld [vmem:[%s15 + $0x1] sm:$0x1]
        %v2618 = vperm.slane %v2617, 0
        %v2619 = vadd.f32 %v2615, %v2618
        %v2620 = vadd.f32 %v2616, %v2618
        %v2621 = vadd.f32 %v2619, %v1941
        %v2622 = vadd.f32 %v2620, %v1942
        %vm2623 = vcmp.ge.f32.partialorder %v2621, 0.0
        %vm2624 = vcmp.ge.f32.partialorder %v2622, 0.0
        %v2625 = vmul.f32 %v2621, 0.01
        %v2626 = vmul.f32 %v2622, 0.01
        %v2627 = vsel %vm2623, %v2621, %v2625
        %v2628 = vsel %vm2624, %v2622, %v2626
        %2629 = vst [vmem:[#allocation2] sm:$0x1] 0.0
        %2630 = vst [vmem:[#allocation2 + $0x11] sm:$0x1] 0.0
        %2631 = vst [vmem:[#allocation2 + $0x1] sm:$0xff] %v2627
        %2632 = vst [vmem:[#allocation2 + $0x9] sm:$0xff] %v2628
        %v2633 = vld [vmem:[#allocation2] ss:$2 sm:$0xff]
        %v2634 = vpack.c.bf16 %v2633, %v2633
        %v2635 = vld [vmem:[%s17] sm:$0xf]
        %v2636 = vld [vmem:[%s17 + $0x4] sm:$0xf]
        %v2637 = vld [vmem:[%s17 + $0x8] sm:$0xf]
        %v2638 = vld [vmem:[%s17 + $0xc] sm:$0xf]
        %v2639 = vld [vmem:[%s17 + $0x10] sm:$0xf]
        %v2640 = vld [vmem:[%s17 + $0x14] sm:$0xf]
        %v2641 = vld [vmem:[%s17 + $0x18] sm:$0xf]
        %v2642 = vld [vmem:[%s17 + $0x1c] sm:$0xf]
        %v2643 = vld [vmem:[%s17 + $0x20] sm:$0xf]
        %v2644 = vld [vmem:[%s17 + $0x24] sm:$0xf]
        %v2645 = vld [vmem:[%s17 + $0x28] sm:$0xf]
        %v2646 = vld [vmem:[%s17 + $0x2c] sm:$0xf]
        %v2647 = vld [vmem:[%s17 + $0x30] sm:$0xf]
        %v2648 = vld [vmem:[%s17 + $0x34] sm:$0xf]
        %v2649 = vld [vmem:[%s17 + $0x38] sm:$0xf]
        %v2650 = vld [vmem:[%s17 + $0x3c] sm:$0xf]
        %s2651 = scalar_lea.vmem [#allocation2], 1
        %v2652 = vld [vmem:[%s2651] ss:$2 sm:$0xff]
        %v2653 = vpack.c.bf16 %v2652, %v2652
        %s2654 = scalar_lea.vmem %s17, 64
        %v2655 = vld [vmem:[%s2654] sm:$0xf]
        %v2656 = vld [vmem:[%s2654 + $0x4] sm:$0xf]
        %v2657 = vld [vmem:[%s2654 + $0x8] sm:$0xf]
        %v2658 = vld [vmem:[%s2654 + $0xc] sm:$0xf]
        %v2659 = vld [vmem:[%s2654 + $0x10] sm:$0xf]
        %v2660 = vld [vmem:[%s2654 + $0x14] sm:$0xf]
        %v2661 = vld [vmem:[%s2654 + $0x18] sm:$0xf]
        %v2662 = vld [vmem:[%s2654 + $0x1c] sm:$0xf]
        %v2663 = vld [vmem:[%s2654 + $0x20] sm:$0xf]
        %v2664 = vld [vmem:[%s2654 + $0x24] sm:$0xf]
        %v2665 = vld [vmem:[%s2654 + $0x28] sm:$0xf]
        %v2666 = vld [vmem:[%s2654 + $0x2c] sm:$0xf]
        %v2667 = vld [vmem:[%s2654 + $0x30] sm:$0xf]
        %v2668 = vld [vmem:[%s2654 + $0x34] sm:$0xf]
        %v2669 = vld [vmem:[%s2654 + $0x38] sm:$0xf]
        %v2670 = vld [vmem:[%s2654 + $0x3c] sm:$0xf]
        %v2687 = vunpack.c.l.b16 %v2655
        %v2688 = vunpack.c.l.b16 %v2656
        %v2689 = vunpack.c.l.b16 %v2657
        %v2690 = vunpack.c.l.b16 %v2658
        %v2691 = vunpack.c.l.b16 %v2659
        %v2692 = vunpack.c.l.b16 %v2660
        %v2693 = vunpack.c.l.b16 %v2661
        %v2694 = vunpack.c.l.b16 %v2662
        %v2695 = vunpack.c.l.b16 %v2663
        %v2696 = vunpack.c.l.b16 %v2664
        %v2697 = vunpack.c.l.b16 %v2665
        %v2698 = vunpack.c.l.b16 %v2666
        %v2699 = vunpack.c.l.b16 %v2667
        %v2700 = vunpack.c.l.b16 %v2668
        %v2701 = vunpack.c.l.b16 %v2669
        %v2702 = vunpack.c.l.b16 %v2670
        %v2703 = vpack.c.b16 %v2688, %v2687
        %v2704 = vpack.c.b16 %v2690, %v2689
        %v2705 = vpack.c.b16 %v2692, %v2691
        %v2706 = vpack.c.b16 %v2694, %v2693
        %v2707 = vpack.c.b16 %v2696, %v2695
        %v2708 = vpack.c.b16 %v2698, %v2697
        %v2709 = vpack.c.b16 %v2700, %v2699
        %v2710 = vpack.c.b16 %v2702, %v2701
        %2719 = vmatpush.bf16.msra.mxu0 %v2710
        %2720 = vmatpush.bf16.msra.mxu0 %v2709
        %2721 = vmatpush.bf16.msra.mxu0 %v2708
        %2722 = vmatpush.bf16.msra.mxu0 %v2707
        %2723 = vmatpush.bf16.msra.mxu0 %v2706
        %2724 = vmatpush.bf16.msra.mxu0 %v2705
        %2725 = vmatpush.bf16.msra.mxu0 %v2704
        %2726 = vmatpush.bf16.msra.mxu0 %v2703
        %2727 = vmatmul.bf16.gmra.mxu0 %v2653
        %v2728 = vpop.f32.mrf.mxu0
        %v2729 = vadd.f32 0.0, %v2728
        %v2730 = vpop.f32.mrf.mxu0
        %2731 = vdwg.mxu0
        %v2748 = vunpack.c.l.b16 %v2635
        %v2749 = vunpack.c.l.b16 %v2636
        %v2750 = vunpack.c.l.b16 %v2637
        %v2751 = vunpack.c.l.b16 %v2638
        %v2752 = vunpack.c.l.b16 %v2639
        %v2753 = vunpack.c.l.b16 %v2640
        %v2754 = vunpack.c.l.b16 %v2641
        %v2755 = vunpack.c.l.b16 %v2642
        %v2756 = vunpack.c.l.b16 %v2643
        %v2757 = vunpack.c.l.b16 %v2644
        %v2758 = vunpack.c.l.b16 %v2645
        %v2759 = vunpack.c.l.b16 %v2646
        %v2760 = vunpack.c.l.b16 %v2647
        %v2761 = vunpack.c.l.b16 %v2648
        %v2762 = vunpack.c.l.b16 %v2649
        %v2763 = vunpack.c.l.b16 %v2650
        %v2764 = vpack.c.b16 %v2749, %v2748
        %v2765 = vpack.c.b16 %v2751, %v2750
        %v2766 = vpack.c.b16 %v2753, %v2752
        %v2767 = vpack.c.b16 %v2755, %v2754
        %v2768 = vpack.c.b16 %v2757, %v2756
        %v2769 = vpack.c.b16 %v2759, %v2758
        %v2770 = vpack.c.b16 %v2761, %v2760
        %v2771 = vpack.c.b16 %v2763, %v2762
        %2780 = vmatpush.bf16.msra.mxu0 %v2771
        %2781 = vmatpush.bf16.msra.mxu0 %v2770
        %2782 = vmatpush.bf16.msra.mxu0 %v2769
        %2783 = vmatpush.bf16.msra.mxu0 %v2768
        %2784 = vmatpush.bf16.msra.mxu0 %v2767
        %2785 = vmatpush.bf16.msra.mxu0 %v2766
        %2786 = vmatpush.bf16.msra.mxu0 %v2765
        %2787 = vmatpush.bf16.msra.mxu0 %v2764
        %2788 = vmatmul.bf16.gmra.mxu0 %v2634
        %v2789 = vpop.f32.mrf.mxu0
        %v2790 = vadd.f32 %v2729, %v2789
        %v2791 = vpop.f32.mrf.mxu0
        %2792 = vdwg.mxu0
        %s2793 = scalar_lea.vmem [#allocation2], 2
        %v2794 = vld [vmem:[%s2793] ss:$2 sm:$0xff]
        %v2795 = vpack.c.bf16 %v2794, %v2794
        %s2796 = scalar_lea.vmem %s17, 128
        %v2797 = vld [vmem:[%s2796] sm:$0xf]
        %v2798 = vld [vmem:[%s2796 + $0x4] sm:$0xf]
        %v2799 = vld [vmem:[%s2796 + $0x8] sm:$0xf]
        %v2800 = vld [vmem:[%s2796 + $0xc] sm:$0xf]
        %v2801 = vld [vmem:[%s2796 + $0x10] sm:$0xf]
        %v2802 = vld [vmem:[%s2796 + $0x14] sm:$0xf]
        %v2803 = vld [vmem:[%s2796 + $0x18] sm:$0xf]
        %v2804 = vld [vmem:[%s2796 + $0x1c] sm:$0xf]
        %v2805 = vld [vmem:[%s2796 + $0x20] sm:$0xf]
        %v2806 = vld [vmem:[%s2796 + $0x24] sm:$0xf]
        %v2807 = vld [vmem:[%s2796 + $0x28] sm:$0xf]
        %v2808 = vld [vmem:[%s2796 + $0x2c] sm:$0xf]
        %v2809 = vld [vmem:[%s2796 + $0x30] sm:$0xf]
        %v2810 = vld [vmem:[%s2796 + $0x34] sm:$0xf]
        %v2811 = vld [vmem:[%s2796 + $0x38] sm:$0xf]
        %v2812 = vld [vmem:[%s2796 + $0x3c] sm:$0xf]
        %v2829 = vunpack.c.l.b16 %v2797
        %v2830 = vunpack.c.l.b16 %v2798
        %v2831 = vunpack.c.l.b16 %v2799
        %v2832 = vunpack.c.l.b16 %v2800
        %v2833 = vunpack.c.l.b16 %v2801
        %v2834 = vunpack.c.l.b16 %v2802
        %v2835 = vunpack.c.l.b16 %v2803
        %v2836 = vunpack.c.l.b16 %v2804
        %v2837 = vunpack.c.l.b16 %v2805
        %v2838 = vunpack.c.l.b16 %v2806
        %v2839 = vunpack.c.l.b16 %v2807
        %v2840 = vunpack.c.l.b16 %v2808
        %v2841 = vunpack.c.l.b16 %v2809
        %v2842 = vunpack.c.l.b16 %v2810
        %v2843 = vunpack.c.l.b16 %v2811
        %v2844 = vunpack.c.l.b16 %v2812
        %v2845 = vpack.c.b16 %v2830, %v2829
        %v2846 = vpack.c.b16 %v2832, %v2831
        %v2847 = vpack.c.b16 %v2834, %v2833
        %v2848 = vpack.c.b16 %v2836, %v2835
        %v2849 = vpack.c.b16 %v2838, %v2837
        %v2850 = vpack.c.b16 %v2840, %v2839
        %v2851 = vpack.c.b16 %v2842, %v2841
        %v2852 = vpack.c.b16 %v2844, %v2843
        %2861 = vmatpush.bf16.msra.mxu0 %v2852
        %2862 = vmatpush.bf16.msra.mxu0 %v2851
        %2863 = vmatpush.bf16.msra.mxu0 %v2850
        %2864 = vmatpush.bf16.msra.mxu0 %v2849
        %2865 = vmatpush.bf16.msra.mxu0 %v2848
        %2866 = vmatpush.bf16.msra.mxu0 %v2847
        %2867 = vmatpush.bf16.msra.mxu0 %v2846
        %2868 = vmatpush.bf16.msra.mxu0 %v2845
        %2869 = vmatmul.bf16.gmra.mxu0 %v2795
        %v2870 = vpop.f32.mrf.mxu0
        %v2871 = vadd.f32 0.0, %v2870
        %v2872 = vpop.f32.mrf.mxu0
        %2873 = vdwg.mxu0
        %v2874 = vadd.f32 %v2790, %v2871
        %v2875 = vrot.slane %v2874, 4
        %v2876 = vadd.f32 %v2874, %v2875
        %v2877 = vrot.slane %v2876, 2
        %v2878 = vadd.f32 %v2876, %v2877
        %v2879 = vrot.slane %v2878, 1
        %v2880 = vadd.f32 %v2878, %v2879
        %v2881 = vmul.f32 %v2874, %v2874
        %v2882 = vrot.slane %v2881, 4
        %v2883 = vadd.f32 %v2881, %v2882
        %v2884 = vrot.slane %v2883, 2
        %v2885 = vadd.f32 %v2883, %v2884
        %v2886 = vrot.slane %v2885, 1
        %v2887 = vadd.f32 %v2885, %v2886
        %v2888 = vsel %vm1867, %v2880, %v2887
        %v2889 = vld [vmem:[#allocation3] sm:$0xff]
        %v2890 = vld [vmem:[#allocation3 + $0x8] sm:$0xff]
        %v2891 = vld [vmem:[#allocation3 + $0x10] sm:$0xff]
        %v2892 = vld [vmem:[#allocation3 + $0x18] sm:$0xff]
        %v2893 = vld [vmem:[#allocation3 + $0x20] sm:$0xff]
        %v2894 = vld [vmem:[#allocation3 + $0x28] sm:$0xff]
        %v2895 = vld [vmem:[#allocation3 + $0x30] sm:$0xff]
        %v2896 = vld [vmem:[#allocation3 + $0x38] sm:$0xff]
        %v2897 = vld [vmem:[#allocation3 + $0x40] sm:$0xff]
        %v2898 = vld [vmem:[#allocation3 + $0x48] sm:$0xff]
        %v2899 = vld [vmem:[#allocation3 + $0x50] sm:$0xff]
        %v2900 = vld [vmem:[#allocation3 + $0x58] sm:$0xff]
        %v2901 = vld [vmem:[#allocation3 + $0x60] sm:$0xff]
        %v2902 = vld [vmem:[#allocation3 + $0x68] sm:$0xff]
        %v2903 = vld [vmem:[#allocation3 + $0x70] sm:$0xff]
        %v2904 = vld [vmem:[#allocation3 + $0x78] sm:$0xff]
        %2905 = vmatpush.msra.mxu0 %v2904
        %2906 = vmatpush.msra.mxu0 %v2903
        %2907 = vmatpush.msra.mxu0 %v2902
        %2908 = vmatpush.msra.mxu0 %v2901
        %2909 = vmatpush.msra.mxu0 %v2900
        %2910 = vmatpush.msra.mxu0 %v2899
        %2911 = vmatpush.msra.mxu0 %v2898
        %2912 = vmatpush.msra.mxu0 %v2897
        %2913 = vmatpush.msra.mxu0 %v2896
        %2914 = vmatpush.msra.mxu0 %v2895
        %2915 = vmatpush.msra.mxu0 %v2894
        %2916 = vmatpush.msra.mxu0 %v2893
        %2917 = vmatpush.msra.mxu0 %v2892
        %2918 = vmatpush.msra.mxu0 %v2891
        %2919 = vmatpush.msra.mxu0 %v2890
        %2920 = vmatpush.msra.mxu0 %v2889
        %2921 = vmatmul.f32.gmra.mxu0 %v2888
        %v2922 = vpop.f32.mrf.mxu0
        %v2923 = vadd.f32 0.0, %v2922
        %2924 = vdwg.mxu0
        %v2925 = vmul.f32 %v2923, %v2923
        %v2927 = vrot.slane %v2925, 7
        %v2929 = vsub.f32 %v2923, %v2927
        %v2930 = vmax.f32 %v2929, 0.0
        %v2931 = vperm.slane %v2923, 0
        %v2932 = vsub.f32 %v2874, %v2931
        %v2933 = vadd.f32 %v2930, 1e-05
        %v2934 = vrsqrt.pop %v2933
        %v2935 = vmul.f32 %v2934, %v2933
        %v2936 = vmul.f32 %v2935, %v2934
        %v2937 = vmul.f32 0.5, %v2936
        %v2938 = vsub.f32 1.5, %v2937
        %v2939 = vmul.f32 %v2934, %v2938
        %vm2940 = vweird.f32 %v2933
        %vm2941 = vweird.f32 %v2934
        %vm2942 = vmor %vm2940, %vm2941
        %v2943 = vsel %vm2942, %v2934, %v2939
        %v2944 = vld [vmem:[%s21] sm:$0x1]
        %v2946 = vrot.slane %v2944, 7
        %v2948 = vmul.f32 %v2943, %v2946
        %v2949 = vperm.slane %v2948, 1
        %v2950 = vmul.f32 %v2932, %v2949
        %v2951 = vld [vmem:[%s21 + $0x1] sm:$0x1]
        %v2952 = vperm.slane %v2951, 0
        %v2953 = vadd.f32 %v2950, %v2952
        %vm2954 = vcmp.ge.f32.partialorder %v2953, 0.0
        %v2955 = vmul.f32 %v2953, 0.01
        %v2956 = vsel %vm2954, %v2953, %v2955
        %2957 = vst [vmem:[#allocation2] sm:$0x1] 0.0
        %2958 = vst [vmem:[#allocation2 + $0x9] sm:$0x1] 0.0
        %2959 = vst [vmem:[#allocation2 + $0x1] sm:$0xff] %v2956
        %v2960 = vld [vmem:[#allocation2] sm:$0xff]
        %v2961 = vpack.c.bf16 %v2960, %v2960
        %v2962 = vld [vmem:[#allocation5] sm:$0xf]
        %v2963 = vld [vmem:[#allocation5 + $0x4] sm:$0xf]
        %v2964 = vld [vmem:[#allocation5 + $0x8] sm:$0xf]
        %v2965 = vld [vmem:[#allocation5 + $0xc] sm:$0xf]
        %v2966 = vld [vmem:[#allocation5 + $0x10] sm:$0xf]
        %v2967 = vld [vmem:[#allocation5 + $0x14] sm:$0xf]
        %v2968 = vld [vmem:[#allocation5 + $0x18] sm:$0xf]
        %v2969 = vld [vmem:[#allocation5 + $0x1c] sm:$0xf]
        %v2970 = vld [vmem:[#allocation5 + $0x20] sm:$0xf]
        %v2971 = vld [vmem:[#allocation5 + $0x24] sm:$0xf]
        %v2972 = vld [vmem:[#allocation5 + $0x28] sm:$0xf]
        %v2973 = vld [vmem:[#allocation5 + $0x2c] sm:$0xf]
        %v2974 = vld [vmem:[#allocation5 + $0x30] sm:$0xf]
        %v2975 = vld [vmem:[#allocation5 + $0x34] sm:$0xf]
        %v2976 = vld [vmem:[#allocation5 + $0x38] sm:$0xf]
        %v2977 = vld [vmem:[#allocation5 + $0x3c] sm:$0xf]
        %v2978 = vld [vmem:[#allocation2 + $0x1] sm:$0xff]
        %v2979 = vpack.c.bf16 %v2978, %v2978
        %s2980 = scalar_lea.vmem [#allocation5], 64
        %v2981 = vld [vmem:[%s2980] sm:$0xf]
        %v2982 = vld [vmem:[%s2980 + $0x4] sm:$0xf]
        %v2983 = vld [vmem:[%s2980 + $0x8] sm:$0xf]
        %v2984 = vld [vmem:[%s2980 + $0xc] sm:$0xf]
        %v2985 = vld [vmem:[%s2980 + $0x10] sm:$0xf]
        %v2986 = vld [vmem:[%s2980 + $0x14] sm:$0xf]
        %v2987 = vld [vmem:[%s2980 + $0x18] sm:$0xf]
        %v2988 = vld [vmem:[%s2980 + $0x1c] sm:$0xf]
        %v2989 = vld [vmem:[%s2980 + $0x20] sm:$0xf]
        %v2990 = vld [vmem:[%s2980 + $0x24] sm:$0xf]
        %v2991 = vld [vmem:[%s2980 + $0x28] sm:$0xf]
        %v2992 = vld [vmem:[%s2980 + $0x2c] sm:$0xf]
        %v2993 = vld [vmem:[%s2980 + $0x30] sm:$0xf]
        %v2994 = vld [vmem:[%s2980 + $0x34] sm:$0xf]
        %v2995 = vld [vmem:[%s2980 + $0x38] sm:$0xf]
        %v2996 = vld [vmem:[%s2980 + $0x3c] sm:$0xf]
        %v3013 = vunpack.c.l.b16 %v2981
        %v3014 = vunpack.c.l.b16 %v2982
        %v3015 = vunpack.c.l.b16 %v2983
        %v3016 = vunpack.c.l.b16 %v2984
        %v3017 = vunpack.c.l.b16 %v2985
        %v3018 = vunpack.c.l.b16 %v2986
        %v3019 = vunpack.c.l.b16 %v2987
        %v3020 = vunpack.c.l.b16 %v2988
        %v3021 = vunpack.c.l.b16 %v2989
        %v3022 = vunpack.c.l.b16 %v2990
        %v3023 = vunpack.c.l.b16 %v2991
        %v3024 = vunpack.c.l.b16 %v2992
        %v3025 = vunpack.c.l.b16 %v2993
        %v3026 = vunpack.c.l.b16 %v2994
        %v3027 = vunpack.c.l.b16 %v2995
        %v3028 = vunpack.c.l.b16 %v2996
        %v3029 = vpack.c.b16 %v3014, %v3013
        %v3030 = vpack.c.b16 %v3016, %v3015
        %v3031 = vpack.c.b16 %v3018, %v3017
        %v3032 = vpack.c.b16 %v3020, %v3019
        %v3033 = vpack.c.b16 %v3022, %v3021
        %v3034 = vpack.c.b16 %v3024, %v3023
        %v3035 = vpack.c.b16 %v3026, %v3025
        %v3036 = vpack.c.b16 %v3028, %v3027
        %3045 = vmatpush.bf16.msra.mxu0 %v3036
        %3046 = vmatpush.bf16.msra.mxu0 %v3035
        %3047 = vmatpush.bf16.msra.mxu0 %v3034
        %3048 = vmatpush.bf16.msra.mxu0 %v3033
        %3049 = vmatpush.bf16.msra.mxu0 %v3032
        %3050 = vmatpush.bf16.msra.mxu0 %v3031
        %3051 = vmatpush.bf16.msra.mxu0 %v3030
        %3052 = vmatpush.bf16.msra.mxu0 %v3029
        %3053 = vmatmul.bf16.gmra.mxu0 %v2979
        %v3054 = vpop.f32.mrf.mxu0
        %v3055 = vadd.f32 0.0, %v3054
        %v3056 = vpop.f32.mrf.mxu0
        %3057 = vdwg.mxu0
        %v3074 = vunpack.c.l.b16 %v2962
        %v3075 = vunpack.c.l.b16 %v2963
        %v3076 = vunpack.c.l.b16 %v2964
        %v3077 = vunpack.c.l.b16 %v2965
        %v3078 = vunpack.c.l.b16 %v2966
        %v3079 = vunpack.c.l.b16 %v2967
        %v3080 = vunpack.c.l.b16 %v2968
        %v3081 = vunpack.c.l.b16 %v2969
        %v3082 = vunpack.c.l.b16 %v2970
        %v3083 = vunpack.c.l.b16 %v2971
        %v3084 = vunpack.c.l.b16 %v2972
        %v3085 = vunpack.c.l.b16 %v2973
        %v3086 = vunpack.c.l.b16 %v2974
        %v3087 = vunpack.c.l.b16 %v2975
        %v3088 = vunpack.c.l.b16 %v2976
        %v3089 = vunpack.c.l.b16 %v2977
        %v3090 = vpack.c.b16 %v3075, %v3074
        %v3091 = vpack.c.b16 %v3077, %v3076
        %v3092 = vpack.c.b16 %v3079, %v3078
        %v3093 = vpack.c.b16 %v3081, %v3080
        %v3094 = vpack.c.b16 %v3083, %v3082
        %v3095 = vpack.c.b16 %v3085, %v3084
        %v3096 = vpack.c.b16 %v3087, %v3086
        %v3097 = vpack.c.b16 %v3089, %v3088
        %3106 = vmatpush.bf16.msra.mxu0 %v3097
        %3107 = vmatpush.bf16.msra.mxu0 %v3096
        %3108 = vmatpush.bf16.msra.mxu0 %v3095
        %3109 = vmatpush.bf16.msra.mxu0 %v3094
        %3110 = vmatpush.bf16.msra.mxu0 %v3093
        %3111 = vmatpush.bf16.msra.mxu0 %v3092
        %3112 = vmatpush.bf16.msra.mxu0 %v3091
        %3113 = vmatpush.bf16.msra.mxu0 %v3090
        %3114 = vmatmul.bf16.gmra.mxu0 %v2961
        %v3115 = vpop.f32.mrf.mxu0
        %v3116 = vadd.f32 %v3055, %v3115
        %v3117 = vpop.f32.mrf.mxu0
        %3118 = vdwg.mxu0
        %v3119 = vld [vmem:[#allocation2 + $0x2] sm:$0xff]
        %v3120 = vpack.c.bf16 %v3119, %v3119
        %s3121 = scalar_lea.vmem [#allocation5], 128
        %v3122 = vld [vmem:[%s3121] sm:$0xf]
        %v3123 = vld [vmem:[%s3121 + $0x4] sm:$0xf]
        %v3124 = vld [vmem:[%s3121 + $0x8] sm:$0xf]
        %v3125 = vld [vmem:[%s3121 + $0xc] sm:$0xf]
        %v3126 = vld [vmem:[%s3121 + $0x10] sm:$0xf]
        %v3127 = vld [vmem:[%s3121 + $0x14] sm:$0xf]
        %v3128 = vld [vmem:[%s3121 + $0x18] sm:$0xf]
        %v3129 = vld [vmem:[%s3121 + $0x1c] sm:$0xf]
        %v3130 = vld [vmem:[%s3121 + $0x20] sm:$0xf]
        %v3131 = vld [vmem:[%s3121 + $0x24] sm:$0xf]
        %v3132 = vld [vmem:[%s3121 + $0x28] sm:$0xf]
        %v3133 = vld [vmem:[%s3121 + $0x2c] sm:$0xf]
        %v3134 = vld [vmem:[%s3121 + $0x30] sm:$0xf]
        %v3135 = vld [vmem:[%s3121 + $0x34] sm:$0xf]
        %v3136 = vld [vmem:[%s3121 + $0x38] sm:$0xf]
        %v3137 = vld [vmem:[%s3121 + $0x3c] sm:$0xf]
        %v3154 = vunpack.c.l.b16 %v3122
        %v3155 = vunpack.c.l.b16 %v3123
        %v3156 = vunpack.c.l.b16 %v3124
        %v3157 = vunpack.c.l.b16 %v3125
        %v3158 = vunpack.c.l.b16 %v3126
        %v3159 = vunpack.c.l.b16 %v3127
        %v3160 = vunpack.c.l.b16 %v3128
        %v3161 = vunpack.c.l.b16 %v3129
        %v3162 = vunpack.c.l.b16 %v3130
        %v3163 = vunpack.c.l.b16 %v3131
        %v3164 = vunpack.c.l.b16 %v3132
        %v3165 = vunpack.c.l.b16 %v3133
        %v3166 = vunpack.c.l.b16 %v3134
        %v3167 = vunpack.c.l.b16 %v3135
        %v3168 = vunpack.c.l.b16 %v3136
        %v3169 = vunpack.c.l.b16 %v3137
        %v3170 = vpack.c.b16 %v3155, %v3154
        %v3171 = vpack.c.b16 %v3157, %v3156
        %v3172 = vpack.c.b16 %v3159, %v3158
        %v3173 = vpack.c.b16 %v3161, %v3160
        %v3174 = vpack.c.b16 %v3163, %v3162
        %v3175 = vpack.c.b16 %v3165, %v3164
        %v3176 = vpack.c.b16 %v3167, %v3166
        %v3177 = vpack.c.b16 %v3169, %v3168
        %3186 = vmatpush.bf16.msra.mxu0 %v3177
        %3187 = vmatpush.bf16.msra.mxu0 %v3176
        %3188 = vmatpush.bf16.msra.mxu0 %v3175
        %3189 = vmatpush.bf16.msra.mxu0 %v3174
        %3190 = vmatpush.bf16.msra.mxu0 %v3173
        %3191 = vmatpush.bf16.msra.mxu0 %v3172
        %3192 = vmatpush.bf16.msra.mxu0 %v3171
        %3193 = vmatpush.bf16.msra.mxu0 %v3170
        %3194 = vmatmul.bf16.gmra.mxu0 %v3120
        %v3195 = vpop.f32.mrf.mxu0
        %v3196 = vadd.f32 0.0, %v3195
        %v3197 = vpop.f32.mrf.mxu0
        %3198 = vdwg.mxu0
        %v3199 = vadd.f32 %v3116, %v3196
        %v3200 = vrot.slane %v3199, 4
        %v3201 = vadd.f32 %v3199, %v3200
        %v3202 = vrot.slane %v3201, 2
        %v3203 = vadd.f32 %v3201, %v3202
        %v3204 = vrot.slane %v3203, 1
        %v3205 = vadd.f32 %v3203, %v3204
        %v3206 = vmul.f32 %v3199, %v3199
        %v3207 = vrot.slane %v3206, 4
        %v3208 = vadd.f32 %v3206, %v3207
        %v3209 = vrot.slane %v3208, 2
        %v3210 = vadd.f32 %v3208, %v3209
        %v3211 = vrot.slane %v3210, 1
        %v3212 = vadd.f32 %v3210, %v3211
        %v3213 = vsel %vm1867, %v3205, %v3212
        %v3214 = vld [vmem:[#allocation3] sm:$0xff]
        %v3215 = vld [vmem:[#allocation3 + $0x8] sm:$0xff]
        %v3216 = vld [vmem:[#allocation3 + $0x10] sm:$0xff]
        %v3217 = vld [vmem:[#allocation3 + $0x18] sm:$0xff]
        %v3218 = vld [vmem:[#allocation3 + $0x20] sm:$0xff]
        %v3219 = vld [vmem:[#allocation3 + $0x28] sm:$0xff]
        %v3220 = vld [vmem:[#allocation3 + $0x30] sm:$0xff]
        %v3221 = vld [vmem:[#allocation3 + $0x38] sm:$0xff]
        %v3222 = vld [vmem:[#allocation3 + $0x40] sm:$0xff]
        %v3223 = vld [vmem:[#allocation3 + $0x48] sm:$0xff]
        %v3224 = vld [vmem:[#allocation3 + $0x50] sm:$0xff]
        %v3225 = vld [vmem:[#allocation3 + $0x58] sm:$0xff]
        %v3226 = vld [vmem:[#allocation3 + $0x60] sm:$0xff]
        %v3227 = vld [vmem:[#allocation3 + $0x68] sm:$0xff]
        %v3228 = vld [vmem:[#allocation3 + $0x70] sm:$0xff]
        %v3229 = vld [vmem:[#allocation3 + $0x78] sm:$0xff]
        %3230 = vmatpush.msra.mxu0 %v3229
        %3231 = vmatpush.msra.mxu0 %v3228
        %3232 = vmatpush.msra.mxu0 %v3227
        %3233 = vmatpush.msra.mxu0 %v3226
        %3234 = vmatpush.msra.mxu0 %v3225
        %3235 = vmatpush.msra.mxu0 %v3224
        %3236 = vmatpush.msra.mxu0 %v3223
        %3237 = vmatpush.msra.mxu0 %v3222
        %3238 = vmatpush.msra.mxu0 %v3221
        %3239 = vmatpush.msra.mxu0 %v3220
        %3240 = vmatpush.msra.mxu0 %v3219
        %3241 = vmatpush.msra.mxu0 %v3218
        %3242 = vmatpush.msra.mxu0 %v3217
        %3243 = vmatpush.msra.mxu0 %v3216
        %3244 = vmatpush.msra.mxu0 %v3215
        %3245 = vmatpush.msra.mxu0 %v3214
        %3246 = vmatmul.f32.gmra.mxu0 %v3213
        %v3247 = vpop.f32.mrf.mxu0
        %v3248 = vadd.f32 0.0, %v3247
        %3249 = vdwg.mxu0
        %v3250 = vmul.f32 %v3248, %v3248
        %v3252 = vrot.slane %v3250, 7
        %v3254 = vsub.f32 %v3248, %v3252
        %v3255 = vmax.f32 %v3254, 0.0
        %v3256 = vperm.slane %v3248, 0
        %v3257 = vsub.f32 %v3199, %v3256
        %v3258 = vadd.f32 %v3255, 1e-05
        %v3259 = vrsqrt.pop %v3258
        %v3260 = vmul.f32 %v3259, %v3258
        %v3261 = vmul.f32 %v3260, %v3259
        %v3262 = vmul.f32 0.5, %v3261
        %v3263 = vsub.f32 1.5, %v3262
        %v3264 = vmul.f32 %v3259, %v3263
        %vm3265 = vweird.f32 %v3258
        %vm3266 = vweird.f32 %v3259
        %vm3267 = vmor %vm3265, %vm3266
        %v3268 = vsel %vm3267, %v3259, %v3264
        %v3269 = vld [vmem:[%s25] sm:$0x1]
        %v3271 = vrot.slane %v3269, 7
        %v3273 = vmul.f32 %v3268, %v3271
        %v3274 = vperm.slane %v3273, 1
        %v3275 = vmul.f32 %v3257, %v3274
        %v3276 = vld [vmem:[%s25 + $0x1] sm:$0x1]
        %v3277 = vperm.slane %v3276, 0
        %v3278 = vadd.f32 %v3275, %v3277
        %3279 = vst [vmem:[#allocation2] sm:$0xff] %v2627
        %3280 = vst [vmem:[#allocation2 + $0x8] sm:$0xff] %v2628
        %v3281 = vld [vmem:[#allocation2] ss:$2 sm:$0xff]
        %v3282 = vpack.c.bf16 %v3281, %v3281
        %v3283 = vld [vmem:[#allocation7] sm:$0xf]
        %v3284 = vld [vmem:[#allocation7 + $0x4] sm:$0xf]
        %v3285 = vld [vmem:[#allocation7 + $0x8] sm:$0xf]
        %v3286 = vld [vmem:[#allocation7 + $0xc] sm:$0xf]
        %v3287 = vld [vmem:[#allocation7 + $0x10] sm:$0xf]
        %v3288 = vld [vmem:[#allocation7 + $0x14] sm:$0xf]
        %v3289 = vld [vmem:[#allocation7 + $0x18] sm:$0xf]
        %v3290 = vld [vmem:[#allocation7 + $0x1c] sm:$0xf]
        %v3291 = vld [vmem:[#allocation7 + $0x20] sm:$0xf]
        %v3292 = vld [vmem:[#allocation7 + $0x24] sm:$0xf]
        %v3293 = vld [vmem:[#allocation7 + $0x28] sm:$0xf]
        %v3294 = vld [vmem:[#allocation7 + $0x2c] sm:$0xf]
        %v3295 = vld [vmem:[#allocation7 + $0x30] sm:$0xf]
        %v3296 = vld [vmem:[#allocation7 + $0x34] sm:$0xf]
        %v3297 = vld [vmem:[#allocation7 + $0x38] sm:$0xf]
        %v3298 = vld [vmem:[#allocation7 + $0x3c] sm:$0xf]
        %v3299 = vld [vmem:[%s2651] ss:$2 sm:$0xff]
        %v3300 = vpack.c.bf16 %v3299, %v3299
        %s3301 = scalar_lea.vmem [#allocation7], 64
        %v3302 = vld [vmem:[%s3301] sm:$0xf]
        %v3303 = vld [vmem:[%s3301 + $0x4] sm:$0xf]
        %v3304 = vld [vmem:[%s3301 + $0x8] sm:$0xf]
        %v3305 = vld [vmem:[%s3301 + $0xc] sm:$0xf]
        %v3306 = vld [vmem:[%s3301 + $0x10] sm:$0xf]
        %v3307 = vld [vmem:[%s3301 + $0x14] sm:$0xf]
        %v3308 = vld [vmem:[%s3301 + $0x18] sm:$0xf]
        %v3309 = vld [vmem:[%s3301 + $0x1c] sm:$0xf]
        %v3310 = vld [vmem:[%s3301 + $0x20] sm:$0xf]
        %v3311 = vld [vmem:[%s3301 + $0x24] sm:$0xf]
        %v3312 = vld [vmem:[%s3301 + $0x28] sm:$0xf]
        %v3313 = vld [vmem:[%s3301 + $0x2c] sm:$0xf]
        %v3314 = vld [vmem:[%s3301 + $0x30] sm:$0xf]
        %v3315 = vld [vmem:[%s3301 + $0x34] sm:$0xf]
        %v3316 = vld [vmem:[%s3301 + $0x38] sm:$0xf]
        %v3317 = vld [vmem:[%s3301 + $0x3c] sm:$0xf]
        %v3334 = vunpack.c.l.b16 %v3302
        %v3335 = vunpack.c.l.b16 %v3303
        %v3336 = vunpack.c.l.b16 %v3304
        %v3337 = vunpack.c.l.b16 %v3305
        %v3338 = vunpack.c.l.b16 %v3306
        %v3339 = vunpack.c.l.b16 %v3307
        %v3340 = vunpack.c.l.b16 %v3308
        %v3341 = vunpack.c.l.b16 %v3309
        %v3342 = vunpack.c.l.b16 %v3310
        %v3343 = vunpack.c.l.b16 %v3311
        %v3344 = vunpack.c.l.b16 %v3312
        %v3345 = vunpack.c.l.b16 %v3313
        %v3346 = vunpack.c.l.b16 %v3314
        %v3347 = vunpack.c.l.b16 %v3315
        %v3348 = vunpack.c.l.b16 %v3316
        %v3349 = vunpack.c.l.b16 %v3317
        %v3350 = vpack.c.b16 %v3335, %v3334
        %v3351 = vpack.c.b16 %v3337, %v3336
        %v3352 = vpack.c.b16 %v3339, %v3338
        %v3353 = vpack.c.b16 %v3341, %v3340
        %v3354 = vpack.c.b16 %v3343, %v3342
        %v3355 = vpack.c.b16 %v3345, %v3344
        %v3356 = vpack.c.b16 %v3347, %v3346
        %v3357 = vpack.c.b16 %v3349, %v3348
        %3366 = vmatpush.bf16.msra.mxu0 %v3357
        %3367 = vmatpush.bf16.msra.mxu0 %v3356
        %3368 = vmatpush.bf16.msra.mxu0 %v3355
        %3369 = vmatpush.bf16.msra.mxu0 %v3354
        %3370 = vmatpush.bf16.msra.mxu0 %v3353
        %3371 = vmatpush.bf16.msra.mxu0 %v3352
        %3372 = vmatpush.bf16.msra.mxu0 %v3351
        %3373 = vmatpush.bf16.msra.mxu0 %v3350
        %3374 = vmatmul.bf16.gmra.mxu0 %v3300
        %v3375 = vpop.f32.mrf.mxu0
        %v3376 = vadd.f32 0.0, %v3375
        %v3377 = vpop.f32.mrf.mxu0
        %3378 = vdwg.mxu0
        %v3395 = vunpack.c.l.b16 %v3283
        %v3396 = vunpack.c.l.b16 %v3284
        %v3397 = vunpack.c.l.b16 %v3285
        %v3398 = vunpack.c.l.b16 %v3286
        %v3399 = vunpack.c.l.b16 %v3287
        %v3400 = vunpack.c.l.b16 %v3288
        %v3401 = vunpack.c.l.b16 %v3289
        %v3402 = vunpack.c.l.b16 %v3290
        %v3403 = vunpack.c.l.b16 %v3291
        %v3404 = vunpack.c.l.b16 %v3292
        %v3405 = vunpack.c.l.b16 %v3293
        %v3406 = vunpack.c.l.b16 %v3294
        %v3407 = vunpack.c.l.b16 %v3295
        %v3408 = vunpack.c.l.b16 %v3296
        %v3409 = vunpack.c.l.b16 %v3297
        %v3410 = vunpack.c.l.b16 %v3298
        %v3411 = vpack.c.b16 %v3396, %v3395
        %v3412 = vpack.c.b16 %v3398, %v3397
        %v3413 = vpack.c.b16 %v3400, %v3399
        %v3414 = vpack.c.b16 %v3402, %v3401
        %v3415 = vpack.c.b16 %v3404, %v3403
        %v3416 = vpack.c.b16 %v3406, %v3405
        %v3417 = vpack.c.b16 %v3408, %v3407
        %v3418 = vpack.c.b16 %v3410, %v3409
        %3427 = vmatpush.bf16.msra.mxu0 %v3418
        %3428 = vmatpush.bf16.msra.mxu0 %v3417
        %3429 = vmatpush.bf16.msra.mxu0 %v3416
        %3430 = vmatpush.bf16.msra.mxu0 %v3415
        %3431 = vmatpush.bf16.msra.mxu0 %v3414
        %3432 = vmatpush.bf16.msra.mxu0 %v3413
        %3433 = vmatpush.bf16.msra.mxu0 %v3412
        %3434 = vmatpush.bf16.msra.mxu0 %v3411
        %3435 = vmatmul.bf16.gmra.mxu0 %v3282
        %v3436 = vpop.f32.mrf.mxu0
        %v3437 = vadd.f32 %v3376, %v3436
        %v3438 = vpop.f32.mrf.mxu0
        %3439 = vdwg.mxu0
        %v3440 = vrot.slane %v3437, 4
        %v3441 = vadd.f32 %v3437, %v3440
        %v3442 = vrot.slane %v3441, 2
        %v3443 = vadd.f32 %v3441, %v3442
        %v3444 = vrot.slane %v3443, 1
        %v3445 = vadd.f32 %v3443, %v3444
        %v3446 = vmul.f32 %v3437, %v3437
        %v3447 = vrot.slane %v3446, 4
        %v3448 = vadd.f32 %v3446, %v3447
        %v3449 = vrot.slane %v3448, 2
        %v3450 = vadd.f32 %v3448, %v3449
        %v3451 = vrot.slane %v3450, 1
        %v3452 = vadd.f32 %v3450, %v3451
        %v3453 = vsel %vm1867, %v3445, %v3452
        %v3454 = vld [vmem:[#allocation3] sm:$0xff]
        %v3455 = vld [vmem:[#allocation3 + $0x8] sm:$0xff]
        %v3456 = vld [vmem:[#allocation3 + $0x10] sm:$0xff]
        %v3457 = vld [vmem:[#allocation3 + $0x18] sm:$0xff]
        %v3458 = vld [vmem:[#allocation3 + $0x20] sm:$0xff]
        %v3459 = vld [vmem:[#allocation3 + $0x28] sm:$0xff]
        %v3460 = vld [vmem:[#allocation3 + $0x30] sm:$0xff]
        %v3461 = vld [vmem:[#allocation3 + $0x38] sm:$0xff]
        %v3462 = vld [vmem:[#allocation3 + $0x40] sm:$0xff]
        %v3463 = vld [vmem:[#allocation3 + $0x48] sm:$0xff]
        %v3464 = vld [vmem:[#allocation3 + $0x50] sm:$0xff]
        %v3465 = vld [vmem:[#allocation3 + $0x58] sm:$0xff]
        %v3466 = vld [vmem:[#allocation3 + $0x60] sm:$0xff]
        %v3467 = vld [vmem:[#allocation3 + $0x68] sm:$0xff]
        %v3468 = vld [vmem:[#allocation3 + $0x70] sm:$0xff]
        %v3469 = vld [vmem:[#allocation3 + $0x78] sm:$0xff]
        %3470 = vmatpush.msra.mxu0 %v3469
        %3471 = vmatpush.msra.mxu0 %v3468
        %3472 = vmatpush.msra.mxu0 %v3467
        %3473 = vmatpush.msra.mxu0 %v3466
        %3474 = vmatpush.msra.mxu0 %v3465
        %3475 = vmatpush.msra.mxu0 %v3464
        %3476 = vmatpush.msra.mxu0 %v3463
        %3477 = vmatpush.msra.mxu0 %v3462
        %3478 = vmatpush.msra.mxu0 %v3461
        %3479 = vmatpush.msra.mxu0 %v3460
        %3480 = vmatpush.msra.mxu0 %v3459
        %3481 = vmatpush.msra.mxu0 %v3458
        %3482 = vmatpush.msra.mxu0 %v3457
        %3483 = vmatpush.msra.mxu0 %v3456
        %3484 = vmatpush.msra.mxu0 %v3455
        %3485 = vmatpush.msra.mxu0 %v3454
        %3486 = vmatmul.f32.gmra.mxu0 %v3453
        %v3487 = vpop.f32.mrf.mxu0
        %v3488 = vadd.f32 0.0, %v3487
        %3489 = vdwg.mxu0
        %v3490 = vmul.f32 %v3488, %v3488
        %v3492 = vrot.slane %v3490, 7
        %v3494 = vsub.f32 %v3488, %v3492
        %v3495 = vmax.f32 %v3494, 0.0
        %v3496 = vperm.slane %v3488, 0
        %v3497 = vsub.f32 %v3437, %v3496
        %v3498 = vadd.f32 %v3495, 1e-05
        %v3499 = vrsqrt.pop %v3498
        %v3500 = vmul.f32 %v3499, %v3498
        %v3501 = vmul.f32 %v3500, %v3499
        %v3502 = vmul.f32 0.5, %v3501
        %v3503 = vsub.f32 1.5, %v3502
        %v3504 = vmul.f32 %v3499, %v3503
        %vm3505 = vweird.f32 %v3498
        %vm3506 = vweird.f32 %v3499
        %vm3507 = vmor %vm3505, %vm3506
        %v3508 = vsel %vm3507, %v3499, %v3504
        %v3509 = vld [vmem:[%s29] sm:$0x1]
        %v3511 = vrot.slane %v3509, 7
        %v3513 = vmul.f32 %v3508, %v3511
        %v3514 = vperm.slane %v3513, 1
        %v3515 = vmul.f32 %v3497, %v3514
        %v3516 = vld [vmem:[%s29 + $0x1] sm:$0x1]
        %v3517 = vperm.slane %v3516, 0
        %v3518 = vadd.f32 %v3515, %v3517
        %v3519 = vadd.f32 %v3518, %v3278
        %vm3520 = vcmp.ge.f32.partialorder %v3519, 0.0
        %v3521 = vmul.f32 %v3519, 0.01
        %v3522 = vsel %vm3520, %v3519, %v3521
        %3523 = vst [vmem:[#allocation2] sm:$0x1] 0.0
        %3524 = vst [vmem:[#allocation2 + $0x9] sm:$0x1] 0.0
        %3525 = vst [vmem:[#allocation2 + $0x1] sm:$0xff] %v3522
        %v3526 = vld [vmem:[#allocation2] ss:$2 sm:$0xf]
        %v3527 = vpack.c.bf16 %v3526, %v3526
        %v3528 = vld [vmem:[#allocation8] sm:$0xf]
        %v3529 = vld [vmem:[#allocation8 + $0x4] sm:$0xf]
        %v3530 = vld [vmem:[#allocation8 + $0x8] sm:$0xf]
        %v3531 = vld [vmem:[#allocation8 + $0xc] sm:$0xf]
        %v3532 = vld [vmem:[#allocation8 + $0x10] sm:$0xf]
        %v3533 = vld [vmem:[#allocation8 + $0x14] sm:$0xf]
        %v3534 = vld [vmem:[#allocation8 + $0x18] sm:$0xf]
        %v3535 = vld [vmem:[#allocation8 + $0x1c] sm:$0xf]
        %v3536 = vld [vmem:[#allocation8 + $0x20] sm:$0xf]
        %v3537 = vld [vmem:[#allocation8 + $0x24] sm:$0xf]
        %v3538 = vld [vmem:[#allocation8 + $0x28] sm:$0xf]
        %v3539 = vld [vmem:[#allocation8 + $0x2c] sm:$0xf]
        %v3540 = vld [vmem:[#allocation8 + $0x30] sm:$0xf]
        %v3541 = vld [vmem:[#allocation8 + $0x34] sm:$0xf]
        %v3542 = vld [vmem:[#allocation8 + $0x38] sm:$0xf]
        %v3543 = vld [vmem:[#allocation8 + $0x3c] sm:$0xf]
        %v3544 = vld [vmem:[%s2651] ss:$2 sm:$0xf]
        %v3545 = vpack.c.bf16 %v3544, %v3544
        %s3546 = scalar_lea.vmem [#allocation8], 64
        %v3547 = vld [vmem:[%s3546] sm:$0xf]
        %v3548 = vld [vmem:[%s3546 + $0x4] sm:$0xf]
        %v3549 = vld [vmem:[%s3546 + $0x8] sm:$0xf]
        %v3550 = vld [vmem:[%s3546 + $0xc] sm:$0xf]
        %v3551 = vld [vmem:[%s3546 + $0x10] sm:$0xf]
        %v3552 = vld [vmem:[%s3546 + $0x14] sm:$0xf]
        %v3553 = vld [vmem:[%s3546 + $0x18] sm:$0xf]
        %v3554 = vld [vmem:[%s3546 + $0x1c] sm:$0xf]
        %v3555 = vld [vmem:[%s3546 + $0x20] sm:$0xf]
        %v3556 = vld [vmem:[%s3546 + $0x24] sm:$0xf]
        %v3557 = vld [vmem:[%s3546 + $0x28] sm:$0xf]
        %v3558 = vld [vmem:[%s3546 + $0x2c] sm:$0xf]
        %v3559 = vld [vmem:[%s3546 + $0x30] sm:$0xf]
        %v3560 = vld [vmem:[%s3546 + $0x34] sm:$0xf]
        %v3561 = vld [vmem:[%s3546 + $0x38] sm:$0xf]
        %v3562 = vld [vmem:[%s3546 + $0x3c] sm:$0xf]
        %v3579 = vunpack.c.l.b16 %v3547
        %v3580 = vunpack.c.l.b16 %v3548
        %v3581 = vunpack.c.l.b16 %v3549
        %v3582 = vunpack.c.l.b16 %v3550
        %v3583 = vunpack.c.l.b16 %v3551
        %v3584 = vunpack.c.l.b16 %v3552
        %v3585 = vunpack.c.l.b16 %v3553
        %v3586 = vunpack.c.l.b16 %v3554
        %v3587 = vunpack.c.l.b16 %v3555
        %v3588 = vunpack.c.l.b16 %v3556
        %v3589 = vunpack.c.l.b16 %v3557
        %v3590 = vunpack.c.l.b16 %v3558
        %v3591 = vunpack.c.l.b16 %v3559
        %v3592 = vunpack.c.l.b16 %v3560
        %v3593 = vunpack.c.l.b16 %v3561
        %v3594 = vunpack.c.l.b16 %v3562
        %v3595 = vpack.c.b16 %v3580, %v3579
        %v3596 = vpack.c.b16 %v3582, %v3581
        %v3597 = vpack.c.b16 %v3584, %v3583
        %v3598 = vpack.c.b16 %v3586, %v3585
        %v3599 = vpack.c.b16 %v3588, %v3587
        %v3600 = vpack.c.b16 %v3590, %v3589
        %v3601 = vpack.c.b16 %v3592, %v3591
        %v3602 = vpack.c.b16 %v3594, %v3593
        %3611 = vmatpush.bf16.msra.mxu0 %v3602
        %3612 = vmatpush.bf16.msra.mxu0 %v3601
        %3613 = vmatpush.bf16.msra.mxu0 %v3600
        %3614 = vmatpush.bf16.msra.mxu0 %v3599
        %3615 = vmatpush.bf16.msra.mxu0 %v3598
        %3616 = vmatpush.bf16.msra.mxu0 %v3597
        %3617 = vmatpush.bf16.msra.mxu0 %v3596
        %3618 = vmatpush.bf16.msra.mxu0 %v3595
        %3619 = vmatmul.bf16.gmra.mxu0 %v3545
        %v3620 = vpop.f32.mrf.mxu0
        %v3621 = vadd.f32 0.0, %v3620
        %v3622 = vpop.f32.mrf.mxu0
        %3623 = vdwg.mxu0
        %v3640 = vunpack.c.l.b16 %v3528
        %v3641 = vunpack.c.l.b16 %v3529
        %v3642 = vunpack.c.l.b16 %v3530
        %v3643 = vunpack.c.l.b16 %v3531
        %v3644 = vunpack.c.l.b16 %v3532
        %v3645 = vunpack.c.l.b16 %v3533
        %v3646 = vunpack.c.l.b16 %v3534
        %v3647 = vunpack.c.l.b16 %v3535
        %v3648 = vunpack.c.l.b16 %v3536
        %v3649 = vunpack.c.l.b16 %v3537
        %v3650 = vunpack.c.l.b16 %v3538
        %v3651 = vunpack.c.l.b16 %v3539
        %v3652 = vunpack.c.l.b16 %v3540
        %v3653 = vunpack.c.l.b16 %v3541
        %v3654 = vunpack.c.l.b16 %v3542
        %v3655 = vunpack.c.l.b16 %v3543
        %v3656 = vpack.c.b16 %v3641, %v3640
        %v3657 = vpack.c.b16 %v3643, %v3642
        %v3658 = vpack.c.b16 %v3645, %v3644
        %v3659 = vpack.c.b16 %v3647, %v3646
        %v3660 = vpack.c.b16 %v3649, %v3648
        %v3661 = vpack.c.b16 %v3651, %v3650
        %v3662 = vpack.c.b16 %v3653, %v3652
        %v3663 = vpack.c.b16 %v3655, %v3654
        %3672 = vmatpush.bf16.msra.mxu0 %v3663
        %3673 = vmatpush.bf16.msra.mxu0 %v3662
        %3674 = vmatpush.bf16.msra.mxu0 %v3661
        %3675 = vmatpush.bf16.msra.mxu0 %v3660
        %3676 = vmatpush.bf16.msra.mxu0 %v3659
        %3677 = vmatpush.bf16.msra.mxu0 %v3658
        %3678 = vmatpush.bf16.msra.mxu0 %v3657
        %3679 = vmatpush.bf16.msra.mxu0 %v3656
        %3680 = vmatmul.bf16.gmra.mxu0 %v3527
        %v3681 = vpop.f32.mrf.mxu0
        %v3682 = vadd.f32 %v3621, %v3681
        %v3683 = vpop.f32.mrf.mxu0
        %3684 = vdwg.mxu0
        %s3685 = scalar_lea.vmem [#allocation2], 2
        %v3686 = vld [vmem:[%s3685] ss:$2 sm:$0xf]
        %v3687 = vpack.c.bf16 %v3686, %v3686
        %s3688 = scalar_lea.vmem [#allocation8], 128
        %v3689 = vld [vmem:[%s3688] sm:$0xf]
        %v3690 = vld [vmem:[%s3688 + $0x4] sm:$0xf]
        %v3691 = vld [vmem:[%s3688 + $0x8] sm:$0xf]
        %v3692 = vld [vmem:[%s3688 + $0xc] sm:$0xf]
        %v3693 = vld [vmem:[%s3688 + $0x10] sm:$0xf]
        %v3694 = vld [vmem:[%s3688 + $0x14] sm:$0xf]
        %v3695 = vld [vmem:[%s3688 + $0x18] sm:$0xf]
        %v3696 = vld [vmem:[%s3688 + $0x1c] sm:$0xf]
        %v3697 = vld [vmem:[%s3688 + $0x20] sm:$0xf]
        %v3698 = vld [vmem:[%s3688 + $0x24] sm:$0xf]
        %v3699 = vld [vmem:[%s3688 + $0x28] sm:$0xf]
        %v3700 = vld [vmem:[%s3688 + $0x2c] sm:$0xf]
        %v3701 = vld [vmem:[%s3688 + $0x30] sm:$0xf]
        %v3702 = vld [vmem:[%s3688 + $0x34] sm:$0xf]
        %v3703 = vld [vmem:[%s3688 + $0x38] sm:$0xf]
        %v3704 = vld [vmem:[%s3688 + $0x3c] sm:$0xf]
        %v3721 = vunpack.c.l.b16 %v3689
        %v3722 = vunpack.c.l.b16 %v3690
        %v3723 = vunpack.c.l.b16 %v3691
        %v3724 = vunpack.c.l.b16 %v3692
        %v3725 = vunpack.c.l.b16 %v3693
        %v3726 = vunpack.c.l.b16 %v3694
        %v3727 = vunpack.c.l.b16 %v3695
        %v3728 = vunpack.c.l.b16 %v3696
        %v3729 = vunpack.c.l.b16 %v3697
        %v3730 = vunpack.c.l.b16 %v3698
        %v3731 = vunpack.c.l.b16 %v3699
        %v3732 = vunpack.c.l.b16 %v3700
        %v3733 = vunpack.c.l.b16 %v3701
        %v3734 = vunpack.c.l.b16 %v3702
        %v3735 = vunpack.c.l.b16 %v3703
        %v3736 = vunpack.c.l.b16 %v3704
        %v3737 = vpack.c.b16 %v3722, %v3721
        %v3738 = vpack.c.b16 %v3724, %v3723
        %v3739 = vpack.c.b16 %v3726, %v3725
        %v3740 = vpack.c.b16 %v3728, %v3727
        %v3741 = vpack.c.b16 %v3730, %v3729
        %v3742 = vpack.c.b16 %v3732, %v3731
        %v3743 = vpack.c.b16 %v3734, %v3733
        %v3744 = vpack.c.b16 %v3736, %v3735
        %3753 = vmatpush.bf16.msra.mxu0 %v3744
        %3754 = vmatpush.bf16.msra.mxu0 %v3743
        %3755 = vmatpush.bf16.msra.mxu0 %v3742
        %3756 = vmatpush.bf16.msra.mxu0 %v3741
        %3757 = vmatpush.bf16.msra.mxu0 %v3740
        %3758 = vmatpush.bf16.msra.mxu0 %v3739
        %3759 = vmatpush.bf16.msra.mxu0 %v3738
        %3760 = vmatpush.bf16.msra.mxu0 %v3737
        %3761 = vmatmul.bf16.gmra.mxu0 %v3687
        %v3762 = vpop.f32.mrf.mxu0
        %v3763 = vadd.f32 0.0, %v3762
        %v3764 = vpop.f32.mrf.mxu0
        %3765 = vdwg.mxu0
        %v3766 = vadd.f32 %v3682, %v3763
        %vm3767 = vcmask 1043456
        %v3768 = vsel %vm3767, %v3766, 0.0
        %v3769 = vrot.slane %v3768, 4
        %v3770 = vadd.f32 %v3768, %v3769
        %v3771 = vrot.slane %v3770, 2
        %v3772 = vadd.f32 %v3770, %v3771
        %v3773 = vrot.slane %v3772, 1
        %v3774 = vadd.f32 %v3772, %v3773
        %v3775 = vmul.f32 %v3766, %v3766
        %v3776 = vsel %vm3767, %v3775, 0.0
        %v3777 = vrot.slane %v3776, 4
        %v3778 = vadd.f32 %v3776, %v3777
        %v3779 = vrot.slane %v3778, 2
        %v3780 = vadd.f32 %v3778, %v3779
        %v3781 = vrot.slane %v3780, 1
        %v3782 = vadd.f32 %v3780, %v3781
        %v3783 = vsel %vm1867, %v3774, %v3782
        %v3784 = vld [vmem:[#allocation10] sm:$0xff]
        %v3785 = vld [vmem:[#allocation10 + $0x8] sm:$0xff]
        %v3786 = vld [vmem:[#allocation10 + $0x10] sm:$0xff]
        %v3787 = vld [vmem:[#allocation10 + $0x18] sm:$0xff]
        %v3788 = vld [vmem:[#allocation10 + $0x20] sm:$0xff]
        %v3789 = vld [vmem:[#allocation10 + $0x28] sm:$0xff]
        %v3790 = vld [vmem:[#allocation10 + $0x30] sm:$0xff]
        %v3791 = vld [vmem:[#allocation10 + $0x38] sm:$0xff]
        %v3792 = vld [vmem:[#allocation10 + $0x40] sm:$0xff]
        %v3793 = vld [vmem:[#allocation10 + $0x48] sm:$0xff]
        %v3794 = vld [vmem:[#allocation10 + $0x50] sm:$0xff]
        %v3795 = vld [vmem:[#allocation10 + $0x58] sm:$0xff]
        %v3796 = vld [vmem:[#allocation10 + $0x60] sm:$0xff]
        %v3797 = vld [vmem:[#allocation10 + $0x68] sm:$0xff]
        %v3798 = vld [vmem:[#allocation10 + $0x70] sm:$0xff]
        %v3799 = vld [vmem:[#allocation10 + $0x78] sm:$0xff]
        %3800 = vmatpush.msra.mxu0 %v3799
        %3801 = vmatpush.msra.mxu0 %v3798
        %3802 = vmatpush.msra.mxu0 %v3797
        %3803 = vmatpush.msra.mxu0 %v3796
        %3804 = vmatpush.msra.mxu0 %v3795
        %3805 = vmatpush.msra.mxu0 %v3794
        %3806 = vmatpush.msra.mxu0 %v3793
        %3807 = vmatpush.msra.mxu0 %v3792
        %3808 = vmatpush.msra.mxu0 %v3791
        %3809 = vmatpush.msra.mxu0 %v3790
        %3810 = vmatpush.msra.mxu0 %v3789
        %3811 = vmatpush.msra.mxu0 %v3788
        %3812 = vmatpush.msra.mxu0 %v3787
        %3813 = vmatpush.msra.mxu0 %v3786
        %3814 = vmatpush.msra.mxu0 %v3785
        %3815 = vmatpush.msra.mxu0 %v3784
        %3816 = vmatmul.f32.gmra.mxu0 %v3783
        %v3817 = vpop.f32.mrf.mxu0
        %v3818 = vadd.f32 0.0, %v3817
        %3819 = vdwg.mxu0
        %v3820 = vmul.f32 %v3818, %v3818
        %v3822 = vrot.slane %v3820, 7
        %v3824 = vsub.f32 %v3818, %v3822
        %v3825 = vmax.f32 %v3824, 0.0
        %v3826 = vperm.slane %v3818, 0
        %v3827 = vsub.f32 %v3766, %v3826
        %v3828 = vadd.f32 %v3825, 1e-05
        %v3829 = vrsqrt.pop %v3828
        %v3830 = vmul.f32 %v3829, %v3828
        %v3831 = vmul.f32 %v3830, %v3829
        %v3832 = vmul.f32 0.5, %v3831
        %v3833 = vsub.f32 1.5, %v3832
        %v3834 = vmul.f32 %v3829, %v3833
        %vm3835 = vweird.f32 %v3828
        %vm3836 = vweird.f32 %v3829
        %vm3837 = vmor %vm3835, %vm3836
        %v3838 = vsel %vm3837, %v3829, %v3834
        %v3839 = vld [vmem:[%s35] sm:$0x1]
        %v3841 = vrot.slane %v3839, 7
        %v3843 = vmul.f32 %v3838, %v3841
        %v3844 = vperm.slane %v3843, 1
        %v3845 = vmul.f32 %v3827, %v3844
        %v3846 = vld [vmem:[%s35 + $0x1] sm:$0x1]
        %v3847 = vperm.slane %v3846, 0
        %v3848 = vadd.f32 %v3845, %v3847
        %vm3849 = vcmp.ge.f32.partialorder %v3848, 0.0
        %v3850 = vmul.f32 %v3848, 0.01
        %v3851 = vsel %vm3849, %v3848, %v3850
        %3852 = vst [vmem:[#allocation2] sm:$0x1] 0.0
        %3853 = vst [vmem:[#allocation2 + $0x5] sm:$0x1] 0.0
        %3854 = vst [vmem:[#allocation2 + $0x1] sm:$0xf] %v3851
        %v3855 = vld [vmem:[#allocation2] sm:$0xf]
        %v3856 = vpack.c.bf16 %v3855, %v3855
        %v3857 = vld [vmem:[#allocation11] sm:$0xf]
        %v3858 = vld [vmem:[#allocation11 + $0x4] sm:$0xf]
        %v3859 = vld [vmem:[#allocation11 + $0x8] sm:$0xf]
        %v3860 = vld [vmem:[#allocation11 + $0xc] sm:$0xf]
        %v3861 = vld [vmem:[#allocation11 + $0x10] sm:$0xf]
        %v3862 = vld [vmem:[#allocation11 + $0x14] sm:$0xf]
        %v3863 = vld [vmem:[#allocation11 + $0x18] sm:$0xf]
        %v3864 = vld [vmem:[#allocation11 + $0x1c] sm:$0xf]
        %v3865 = vld [vmem:[#allocation11 + $0x20] sm:$0xf]
        %v3866 = vld [vmem:[#allocation11 + $0x24] sm:$0xf]
        %v3867 = vld [vmem:[#allocation11 + $0x28] sm:$0xf]
        %v3868 = vld [vmem:[#allocation11 + $0x2c] sm:$0xf]
        %v3869 = vld [vmem:[#allocation11 + $0x30] sm:$0xf]
        %v3870 = vld [vmem:[#allocation11 + $0x34] sm:$0xf]
        %v3871 = vld [vmem:[#allocation11 + $0x38] sm:$0xf]
        %v3872 = vld [vmem:[#allocation11 + $0x3c] sm:$0xf]
        %v3873 = vld [vmem:[#allocation2 + $0x1] sm:$0xf]
        %v3874 = vpack.c.bf16 %v3873, %v3873
        %s3875 = scalar_lea.vmem [#allocation11], 64
        %v3876 = vld [vmem:[%s3875] sm:$0xf]
        %v3877 = vld [vmem:[%s3875 + $0x4] sm:$0xf]
        %v3878 = vld [vmem:[%s3875 + $0x8] sm:$0xf]
        %v3879 = vld [vmem:[%s3875 + $0xc] sm:$0xf]
        %v3880 = vld [vmem:[%s3875 + $0x10] sm:$0xf]
        %v3881 = vld [vmem:[%s3875 + $0x14] sm:$0xf]
        %v3882 = vld [vmem:[%s3875 + $0x18] sm:$0xf]
        %v3883 = vld [vmem:[%s3875 + $0x1c] sm:$0xf]
        %v3884 = vld [vmem:[%s3875 + $0x20] sm:$0xf]
        %v3885 = vld [vmem:[%s3875 + $0x24] sm:$0xf]
        %v3886 = vld [vmem:[%s3875 + $0x28] sm:$0xf]
        %v3887 = vld [vmem:[%s3875 + $0x2c] sm:$0xf]
        %v3888 = vld [vmem:[%s3875 + $0x30] sm:$0xf]
        %v3889 = vld [vmem:[%s3875 + $0x34] sm:$0xf]
        %v3890 = vld [vmem:[%s3875 + $0x38] sm:$0xf]
        %v3891 = vld [vmem:[%s3875 + $0x3c] sm:$0xf]
        %v3908 = vunpack.c.l.b16 %v3876
        %v3909 = vunpack.c.l.b16 %v3877
        %v3910 = vunpack.c.l.b16 %v3878
        %v3911 = vunpack.c.l.b16 %v3879
        %v3912 = vunpack.c.l.b16 %v3880
        %v3913 = vunpack.c.l.b16 %v3881
        %v3914 = vunpack.c.l.b16 %v3882
        %v3915 = vunpack.c.l.b16 %v3883
        %v3916 = vunpack.c.l.b16 %v3884
        %v3917 = vunpack.c.l.b16 %v3885
        %v3918 = vunpack.c.l.b16 %v3886
        %v3919 = vunpack.c.l.b16 %v3887
        %v3920 = vunpack.c.l.b16 %v3888
        %v3921 = vunpack.c.l.b16 %v3889
        %v3922 = vunpack.c.l.b16 %v3890
        %v3923 = vunpack.c.l.b16 %v3891
        %v3924 = vpack.c.b16 %v3909, %v3908
        %v3925 = vpack.c.b16 %v3911, %v3910
        %v3926 = vpack.c.b16 %v3913, %v3912
        %v3927 = vpack.c.b16 %v3915, %v3914
        %v3928 = vpack.c.b16 %v3917, %v3916
        %v3929 = vpack.c.b16 %v3919, %v3918
        %v3930 = vpack.c.b16 %v3921, %v3920
        %v3931 = vpack.c.b16 %v3923, %v3922
        %3940 = vmatpush.bf16.msra.mxu0 %v3931
        %3941 = vmatpush.bf16.msra.mxu0 %v3930
        %3942 = vmatpush.bf16.msra.mxu0 %v3929
        %3943 = vmatpush.bf16.msra.mxu0 %v3928
        %3944 = vmatpush.bf16.msra.mxu0 %v3927
        %3945 = vmatpush.bf16.msra.mxu0 %v3926
        %3946 = vmatpush.bf16.msra.mxu0 %v3925
        %3947 = vmatpush.bf16.msra.mxu0 %v3924
        %3948 = vmatmul.bf16.gmra.mxu0 %v3874
        %v3949 = vpop.f32.mrf.mxu0
        %v3950 = vadd.f32 0.0, %v3949
        %v3951 = vpop.f32.mrf.mxu0
        %3952 = vdwg.mxu0
        %v3969 = vunpack.c.l.b16 %v3857
        %v3970 = vunpack.c.l.b16 %v3858
        %v3971 = vunpack.c.l.b16 %v3859
        %v3972 = vunpack.c.l.b16 %v3860
        %v3973 = vunpack.c.l.b16 %v3861
        %v3974 = vunpack.c.l.b16 %v3862
        %v3975 = vunpack.c.l.b16 %v3863
        %v3976 = vunpack.c.l.b16 %v3864
        %v3977 = vunpack.c.l.b16 %v3865
        %v3978 = vunpack.c.l.b16 %v3866
        %v3979 = vunpack.c.l.b16 %v3867
        %v3980 = vunpack.c.l.b16 %v3868
        %v3981 = vunpack.c.l.b16 %v3869
        %v3982 = vunpack.c.l.b16 %v3870
        %v3983 = vunpack.c.l.b16 %v3871
        %v3984 = vunpack.c.l.b16 %v3872
        %v3985 = vpack.c.b16 %v3970, %v3969
        %v3986 = vpack.c.b16 %v3972, %v3971
        %v3987 = vpack.c.b16 %v3974, %v3973
        %v3988 = vpack.c.b16 %v3976, %v3975
        %v3989 = vpack.c.b16 %v3978, %v3977
        %v3990 = vpack.c.b16 %v3980, %v3979
        %v3991 = vpack.c.b16 %v3982, %v3981
        %v3992 = vpack.c.b16 %v3984, %v3983
        %4001 = vmatpush.bf16.msra.mxu0 %v3992
        %4002 = vmatpush.bf16.msra.mxu0 %v3991
        %4003 = vmatpush.bf16.msra.mxu0 %v3990
        %4004 = vmatpush.bf16.msra.mxu0 %v3989
        %4005 = vmatpush.bf16.msra.mxu0 %v3988
        %4006 = vmatpush.bf16.msra.mxu0 %v3987
        %4007 = vmatpush.bf16.msra.mxu0 %v3986
        %4008 = vmatpush.bf16.msra.mxu0 %v3985
        %4009 = vmatmul.bf16.gmra.mxu0 %v3856
        %v4010 = vpop.f32.mrf.mxu0
        %v4011 = vadd.f32 %v3950, %v4010
        %v4012 = vpop.f32.mrf.mxu0
        %4013 = vdwg.mxu0
        %v4014 = vld [vmem:[#allocation2 + $0x2] sm:$0xf]
        %v4015 = vpack.c.bf16 %v4014, %v4014
        %s4016 = scalar_lea.vmem [#allocation11], 128
        %v4017 = vld [vmem:[%s4016] sm:$0xf]
        %v4018 = vld [vmem:[%s4016 + $0x4] sm:$0xf]
        %v4019 = vld [vmem:[%s4016 + $0x8] sm:$0xf]
        %v4020 = vld [vmem:[%s4016 + $0xc] sm:$0xf]
        %v4021 = vld [vmem:[%s4016 + $0x10] sm:$0xf]
        %v4022 = vld [vmem:[%s4016 + $0x14] sm:$0xf]
        %v4023 = vld [vmem:[%s4016 + $0x18] sm:$0xf]
        %v4024 = vld [vmem:[%s4016 + $0x1c] sm:$0xf]
        %v4025 = vld [vmem:[%s4016 + $0x20] sm:$0xf]
        %v4026 = vld [vmem:[%s4016 + $0x24] sm:$0xf]
        %v4027 = vld [vmem:[%s4016 + $0x28] sm:$0xf]
        %v4028 = vld [vmem:[%s4016 + $0x2c] sm:$0xf]
        %v4029 = vld [vmem:[%s4016 + $0x30] sm:$0xf]
        %v4030 = vld [vmem:[%s4016 + $0x34] sm:$0xf]
        %v4031 = vld [vmem:[%s4016 + $0x38] sm:$0xf]
        %v4032 = vld [vmem:[%s4016 + $0x3c] sm:$0xf]
        %v4049 = vunpack.c.l.b16 %v4017
        %v4050 = vunpack.c.l.b16 %v4018
        %v4051 = vunpack.c.l.b16 %v4019
        %v4052 = vunpack.c.l.b16 %v4020
        %v4053 = vunpack.c.l.b16 %v4021
        %v4054 = vunpack.c.l.b16 %v4022
        %v4055 = vunpack.c.l.b16 %v4023
        %v4056 = vunpack.c.l.b16 %v4024
        %v4057 = vunpack.c.l.b16 %v4025
        %v4058 = vunpack.c.l.b16 %v4026
        %v4059 = vunpack.c.l.b16 %v4027
        %v4060 = vunpack.c.l.b16 %v4028
        %v4061 = vunpack.c.l.b16 %v4029
        %v4062 = vunpack.c.l.b16 %v4030
        %v4063 = vunpack.c.l.b16 %v4031
        %v4064 = vunpack.c.l.b16 %v4032
        %v4065 = vpack.c.b16 %v4050, %v4049
        %v4066 = vpack.c.b16 %v4052, %v4051
        %v4067 = vpack.c.b16 %v4054, %v4053
        %v4068 = vpack.c.b16 %v4056, %v4055
        %v4069 = vpack.c.b16 %v4058, %v4057
        %v4070 = vpack.c.b16 %v4060, %v4059
        %v4071 = vpack.c.b16 %v4062, %v4061
        %v4072 = vpack.c.b16 %v4064, %v4063
        %4081 = vmatpush.bf16.msra.mxu0 %v4072
        %4082 = vmatpush.bf16.msra.mxu0 %v4071
        %4083 = vmatpush.bf16.msra.mxu0 %v4070
        %4084 = vmatpush.bf16.msra.mxu0 %v4069
        %4085 = vmatpush.bf16.msra.mxu0 %v4068
        %4086 = vmatpush.bf16.msra.mxu0 %v4067
        %4087 = vmatpush.bf16.msra.mxu0 %v4066
        %4088 = vmatpush.bf16.msra.mxu0 %v4065
        %4089 = vmatmul.bf16.gmra.mxu0 %v4015
        %v4090 = vpop.f32.mrf.mxu0
        %v4091 = vadd.f32 0.0, %v4090
        %v4092 = vpop.f32.mrf.mxu0
        %4093 = vdwg.mxu0
        %v4094 = vadd.f32 %v4011, %v4091
        %v4095 = vsel %vm3767, %v4094, 0.0
        %v4096 = vrot.slane %v4095, 4
        %v4097 = vadd.f32 %v4095, %v4096
        %v4098 = vrot.slane %v4097, 2
        %v4099 = vadd.f32 %v4097, %v4098
        %v4100 = vrot.slane %v4099, 1
        %v4101 = vadd.f32 %v4099, %v4100
        %v4102 = vmul.f32 %v4094, %v4094
        %v4103 = vsel %vm3767, %v4102, 0.0
        %v4104 = vrot.slane %v4103, 4
        %v4105 = vadd.f32 %v4103, %v4104
        %v4106 = vrot.slane %v4105, 2
        %v4107 = vadd.f32 %v4105, %v4106
        %v4108 = vrot.slane %v4107, 1
        %v4109 = vadd.f32 %v4107, %v4108
        %v4110 = vsel %vm1867, %v4101, %v4109
        %v4111 = vld [vmem:[#allocation10] sm:$0xff]
        %v4112 = vld [vmem:[#allocation10 + $0x8] sm:$0xff]
        %v4113 = vld [vmem:[#allocation10 + $0x10] sm:$0xff]
        %v4114 = vld [vmem:[#allocation10 + $0x18] sm:$0xff]
        %v4115 = vld [vmem:[#allocation10 + $0x20] sm:$0xff]
        %v4116 = vld [vmem:[#allocation10 + $0x28] sm:$0xff]
        %v4117 = vld [vmem:[#allocation10 + $0x30] sm:$0xff]
        %v4118 = vld [vmem:[#allocation10 + $0x38] sm:$0xff]
        %v4119 = vld [vmem:[#allocation10 + $0x40] sm:$0xff]
        %v4120 = vld [vmem:[#allocation10 + $0x48] sm:$0xff]
        %v4121 = vld [vmem:[#allocation10 + $0x50] sm:$0xff]
        %v4122 = vld [vmem:[#allocation10 + $0x58] sm:$0xff]
        %v4123 = vld [vmem:[#allocation10 + $0x60] sm:$0xff]
        %v4124 = vld [vmem:[#allocation10 + $0x68] sm:$0xff]
        %v4125 = vld [vmem:[#allocation10 + $0x70] sm:$0xff]
        %v4126 = vld [vmem:[#allocation10 + $0x78] sm:$0xff]
        %4127 = vmatpush.msra.mxu0 %v4126
        %4128 = vmatpush.msra.mxu0 %v4125
        %4129 = vmatpush.msra.mxu0 %v4124
        %4130 = vmatpush.msra.mxu0 %v4123
        %4131 = vmatpush.msra.mxu0 %v4122
        %4132 = vmatpush.msra.mxu0 %v4121
        %4133 = vmatpush.msra.mxu0 %v4120
        %4134 = vmatpush.msra.mxu0 %v4119
        %4135 = vmatpush.msra.mxu0 %v4118
        %4136 = vmatpush.msra.mxu0 %v4117
        %4137 = vmatpush.msra.mxu0 %v4116
        %4138 = vmatpush.msra.mxu0 %v4115
        %4139 = vmatpush.msra.mxu0 %v4114
        %4140 = vmatpush.msra.mxu0 %v4113
        %4141 = vmatpush.msra.mxu0 %v4112
        %4142 = vmatpush.msra.mxu0 %v4111
        %4143 = vmatmul.f32.gmra.mxu0 %v4110
        %v4144 = vpop.f32.mrf.mxu0
        %v4145 = vadd.f32 0.0, %v4144
        %4146 = vdwg.mxu0
        %v4147 = vmul.f32 %v4145, %v4145
        %v4149 = vrot.slane %v4147, 7
        %v4151 = vsub.f32 %v4145, %v4149
        %v4152 = vmax.f32 %v4151, 0.0
        %v4153 = vperm.slane %v4145, 0
        %v4154 = vsub.f32 %v4094, %v4153
        %v4155 = vadd.f32 %v4152, 1e-05
        %v4156 = vrsqrt.pop %v4155
        %v4157 = vmul.f32 %v4156, %v4155
        %v4158 = vmul.f32 %v4157, %v4156
        %v4159 = vmul.f32 0.5, %v4158
        %v4160 = vsub.f32 1.5, %v4159
        %v4161 = vmul.f32 %v4156, %v4160
        %vm4162 = vweird.f32 %v4155
        %vm4163 = vweird.f32 %v4156
        %vm4164 = vmor %vm4162, %vm4163
        %v4165 = vsel %vm4164, %v4156, %v4161
        %v4166 = vld [vmem:[%s39] sm:$0x1]
        %v4168 = vrot.slane %v4166, 7
        %v4170 = vmul.f32 %v4165, %v4168
        %v4171 = vperm.slane %v4170, 1
        %v4172 = vmul.f32 %v4154, %v4171
        %v4173 = vld [vmem:[%s39 + $0x1] sm:$0x1]
        %v4174 = vperm.slane %v4173, 0
        %v4175 = vadd.f32 %v4172, %v4174
        %4176 = vst [vmem:[#allocation2] sm:$0xff] %v3522
        %v4177 = vld [vmem:[#allocation2] ss:$2 sm:$0xf]
        %v4178 = vpack.c.bf16 %v4177, %v4177
        %v4179 = vld [vmem:[#allocation13] sm:$0xf]
        %v4180 = vld [vmem:[#allocation13 + $0x4] sm:$0xf]
        %v4181 = vld [vmem:[#allocation13 + $0x8] sm:$0xf]
        %v4182 = vld [vmem:[#allocation13 + $0xc] sm:$0xf]
        %v4183 = vld [vmem:[#allocation13 + $0x10] sm:$0xf]
        %v4184 = vld [vmem:[#allocation13 + $0x14] sm:$0xf]
        %v4185 = vld [vmem:[#allocation13 + $0x18] sm:$0xf]
        %v4186 = vld [vmem:[#allocation13 + $0x1c] sm:$0xf]
        %v4187 = vld [vmem:[#allocation13 + $0x20] sm:$0xf]
        %v4188 = vld [vmem:[#allocation13 + $0x24] sm:$0xf]
        %v4189 = vld [vmem:[#allocation13 + $0x28] sm:$0xf]
        %v4190 = vld [vmem:[#allocation13 + $0x2c] sm:$0xf]
        %v4191 = vld [vmem:[#allocation13 + $0x30] sm:$0xf]
        %v4192 = vld [vmem:[#allocation13 + $0x34] sm:$0xf]
        %v4193 = vld [vmem:[#allocation13 + $0x38] sm:$0xf]
        %v4194 = vld [vmem:[#allocation13 + $0x3c] sm:$0xf]
        %v4195 = vld [vmem:[%s2651] ss:$2 sm:$0xf]
        %v4196 = vpack.c.bf16 %v4195, %v4195
        %s4197 = scalar_lea.vmem [#allocation13], 64
        %v4198 = vld [vmem:[%s4197] sm:$0xf]
        %v4199 = vld [vmem:[%s4197 + $0x4] sm:$0xf]
        %v4200 = vld [vmem:[%s4197 + $0x8] sm:$0xf]
        %v4201 = vld [vmem:[%s4197 + $0xc] sm:$0xf]
        %v4202 = vld [vmem:[%s4197 + $0x10] sm:$0xf]
        %v4203 = vld [vmem:[%s4197 + $0x14] sm:$0xf]
        %v4204 = vld [vmem:[%s4197 + $0x18] sm:$0xf]
        %v4205 = vld [vmem:[%s4197 + $0x1c] sm:$0xf]
        %v4206 = vld [vmem:[%s4197 + $0x20] sm:$0xf]
        %v4207 = vld [vmem:[%s4197 + $0x24] sm:$0xf]
        %v4208 = vld [vmem:[%s4197 + $0x28] sm:$0xf]
        %v4209 = vld [vmem:[%s4197 + $0x2c] sm:$0xf]
        %v4210 = vld [vmem:[%s4197 + $0x30] sm:$0xf]
        %v4211 = vld [vmem:[%s4197 + $0x34] sm:$0xf]
        %v4212 = vld [vmem:[%s4197 + $0x38] sm:$0xf]
        %v4213 = vld [vmem:[%s4197 + $0x3c] sm:$0xf]
        %v4230 = vunpack.c.l.b16 %v4198
        %v4231 = vunpack.c.l.b16 %v4199
        %v4232 = vunpack.c.l.b16 %v4200
        %v4233 = vunpack.c.l.b16 %v4201
        %v4234 = vunpack.c.l.b16 %v4202
        %v4235 = vunpack.c.l.b16 %v4203
        %v4236 = vunpack.c.l.b16 %v4204
        %v4237 = vunpack.c.l.b16 %v4205
        %v4238 = vunpack.c.l.b16 %v4206
        %v4239 = vunpack.c.l.b16 %v4207
        %v4240 = vunpack.c.l.b16 %v4208
        %v4241 = vunpack.c.l.b16 %v4209
        %v4242 = vunpack.c.l.b16 %v4210
        %v4243 = vunpack.c.l.b16 %v4211
        %v4244 = vunpack.c.l.b16 %v4212
        %v4245 = vunpack.c.l.b16 %v4213
        %v4246 = vpack.c.b16 %v4231, %v4230
        %v4247 = vpack.c.b16 %v4233, %v4232
        %v4248 = vpack.c.b16 %v4235, %v4234
        %v4249 = vpack.c.b16 %v4237, %v4236
        %v4250 = vpack.c.b16 %v4239, %v4238
        %v4251 = vpack.c.b16 %v4241, %v4240
        %v4252 = vpack.c.b16 %v4243, %v4242
        %v4253 = vpack.c.b16 %v4245, %v4244
        %4262 = vmatpush.bf16.msra.mxu0 %v4253
        %4263 = vmatpush.bf16.msra.mxu0 %v4252
        %4264 = vmatpush.bf16.msra.mxu0 %v4251
        %4265 = vmatpush.bf16.msra.mxu0 %v4250
        %4266 = vmatpush.bf16.msra.mxu0 %v4249
        %4267 = vmatpush.bf16.msra.mxu0 %v4248
        %4268 = vmatpush.bf16.msra.mxu0 %v4247
        %4269 = vmatpush.bf16.msra.mxu0 %v4246
        %4270 = vmatmul.bf16.gmra.mxu0 %v4196
        %v4271 = vpop.f32.mrf.mxu0
        %v4272 = vadd.f32 0.0, %v4271
        %v4273 = vpop.f32.mrf.mxu0
        %4274 = vdwg.mxu0
        %v4291 = vunpack.c.l.b16 %v4179
        %v4292 = vunpack.c.l.b16 %v4180
        %v4293 = vunpack.c.l.b16 %v4181
        %v4294 = vunpack.c.l.b16 %v4182
        %v4295 = vunpack.c.l.b16 %v4183
        %v4296 = vunpack.c.l.b16 %v4184
        %v4297 = vunpack.c.l.b16 %v4185
        %v4298 = vunpack.c.l.b16 %v4186
        %v4299 = vunpack.c.l.b16 %v4187
        %v4300 = vunpack.c.l.b16 %v4188
        %v4301 = vunpack.c.l.b16 %v4189
        %v4302 = vunpack.c.l.b16 %v4190
        %v4303 = vunpack.c.l.b16 %v4191
        %v4304 = vunpack.c.l.b16 %v4192
        %v4305 = vunpack.c.l.b16 %v4193
        %v4306 = vunpack.c.l.b16 %v4194
        %v4307 = vpack.c.b16 %v4292, %v4291
        %v4308 = vpack.c.b16 %v4294, %v4293
        %v4309 = vpack.c.b16 %v4296, %v4295
        %v4310 = vpack.c.b16 %v4298, %v4297
        %v4311 = vpack.c.b16 %v4300, %v4299
        %v4312 = vpack.c.b16 %v4302, %v4301
        %v4313 = vpack.c.b16 %v4304, %v4303
        %v4314 = vpack.c.b16 %v4306, %v4305
        %4323 = vmatpush.bf16.msra.mxu0 %v4314
        %4324 = vmatpush.bf16.msra.mxu0 %v4313
        %4325 = vmatpush.bf16.msra.mxu0 %v4312
        %4326 = vmatpush.bf16.msra.mxu0 %v4311
        %4327 = vmatpush.bf16.msra.mxu0 %v4310
        %4328 = vmatpush.bf16.msra.mxu0 %v4309
        %4329 = vmatpush.bf16.msra.mxu0 %v4308
        %4330 = vmatpush.bf16.msra.mxu0 %v4307
        %4331 = vmatmul.bf16.gmra.mxu0 %v4178
        %v4332 = vpop.f32.mrf.mxu0
        %v4333 = vadd.f32 %v4272, %v4332
        %v4334 = vpop.f32.mrf.mxu0
        %4335 = vdwg.mxu0
        %v4336 = vsel %vm3767, %v4333, 0.0
        %v4337 = vrot.slane %v4336, 4
        %v4338 = vadd.f32 %v4336, %v4337
        %v4339 = vrot.slane %v4338, 2
        %v4340 = vadd.f32 %v4338, %v4339
        %v4341 = vrot.slane %v4340, 1
        %v4342 = vadd.f32 %v4340, %v4341
        %v4343 = vmul.f32 %v4333, %v4333
        %v4344 = vsel %vm3767, %v4343, 0.0
        %v4345 = vrot.slane %v4344, 4
        %v4346 = vadd.f32 %v4344, %v4345
        %v4347 = vrot.slane %v4346, 2
        %v4348 = vadd.f32 %v4346, %v4347
        %v4349 = vrot.slane %v4348, 1
        %v4350 = vadd.f32 %v4348, %v4349
        %v4351 = vsel %vm1867, %v4342, %v4350
        %v4352 = vld [vmem:[#allocation10] sm:$0xff]
        %v4353 = vld [vmem:[#allocation10 + $0x8] sm:$0xff]
        %v4354 = vld [vmem:[#allocation10 + $0x10] sm:$0xff]
        %v4355 = vld [vmem:[#allocation10 + $0x18] sm:$0xff]
        %v4356 = vld [vmem:[#allocation10 + $0x20] sm:$0xff]
        %v4357 = vld [vmem:[#allocation10 + $0x28] sm:$0xff]
        %v4358 = vld [vmem:[#allocation10 + $0x30] sm:$0xff]
        %v4359 = vld [vmem:[#allocation10 + $0x38] sm:$0xff]
        %v4360 = vld [vmem:[#allocation10 + $0x40] sm:$0xff]
        %v4361 = vld [vmem:[#allocation10 + $0x48] sm:$0xff]
        %v4362 = vld [vmem:[#allocation10 + $0x50] sm:$0xff]
        %v4363 = vld [vmem:[#allocation10 + $0x58] sm:$0xff]
        %v4364 = vld [vmem:[#allocation10 + $0x60] sm:$0xff]
        %v4365 = vld [vmem:[#allocation10 + $0x68] sm:$0xff]
        %v4366 = vld [vmem:[#allocation10 + $0x70] sm:$0xff]
        %v4367 = vld [vmem:[#allocation10 + $0x78] sm:$0xff]
        %4368 = vmatpush.msra.mxu0 %v4367
        %4369 = vmatpush.msra.mxu0 %v4366
        %4370 = vmatpush.msra.mxu0 %v4365
        %4371 = vmatpush.msra.mxu0 %v4364
        %4372 = vmatpush.msra.mxu0 %v4363
        %4373 = vmatpush.msra.mxu0 %v4362
        %4374 = vmatpush.msra.mxu0 %v4361
        %4375 = vmatpush.msra.mxu0 %v4360
        %4376 = vmatpush.msra.mxu0 %v4359
        %4377 = vmatpush.msra.mxu0 %v4358
        %4378 = vmatpush.msra.mxu0 %v4357
        %4379 = vmatpush.msra.mxu0 %v4356
        %4380 = vmatpush.msra.mxu0 %v4355
        %4381 = vmatpush.msra.mxu0 %v4354
        %4382 = vmatpush.msra.mxu0 %v4353
        %4383 = vmatpush.msra.mxu0 %v4352
        %4384 = vmatmul.f32.gmra.mxu0 %v4351
        %v4385 = vpop.f32.mrf.mxu0
        %v4386 = vadd.f32 0.0, %v4385
        %4387 = vdwg.mxu0
        %v4388 = vmul.f32 %v4386, %v4386
        %v4390 = vrot.slane %v4388, 7
        %v4392 = vsub.f32 %v4386, %v4390
        %v4393 = vmax.f32 %v4392, 0.0
        %v4394 = vperm.slane %v4386, 0
        %v4395 = vsub.f32 %v4333, %v4394
        %v4396 = vadd.f32 %v4393, 1e-05
        %v4397 = vrsqrt.pop %v4396
        %v4398 = vmul.f32 %v4397, %v4396
        %v4399 = vmul.f32 %v4398, %v4397
        %v4400 = vmul.f32 0.5, %v4399
        %v4401 = vsub.f32 1.5, %v4400
        %v4402 = vmul.f32 %v4397, %v4401
        %vm4403 = vweird.f32 %v4396
        %vm4404 = vweird.f32 %v4397
        %vm4405 = vmor %vm4403, %vm4404
        %v4406 = vsel %vm4405, %v4397, %v4402
        %v4407 = vld [vmem:[%s43] sm:$0x1]
        %v4409 = vrot.slane %v4407, 7
        %v4411 = vmul.f32 %v4406, %v4409
        %v4412 = vperm.slane %v4411, 1
        %v4413 = vmul.f32 %v4395, %v4412
        %v4414 = vld [vmem:[%s43 + $0x1] sm:$0x1]
        %v4415 = vperm.slane %v4414, 0
        %v4416 = vadd.f32 %v4413, %v4415
        %v4417 = vadd.f32 %v4416, %v4175
        %vm4418 = vcmp.ge.f32.partialorder %v4417, 0.0
        %v4419 = vmul.f32 %v4417, 0.01
        %v4420 = vsel %vm4418, %v4417, %v4419
        %v4421 = vpack.c.bf16 %v4420, %v4420
        %v4422 = vld [vmem:[#allocation14] sm:$0xf]
        %v4423 = vld [vmem:[#allocation14 + $0x4] sm:$0xf]
        %v4424 = vld [vmem:[#allocation14 + $0x8] sm:$0xf]
        %v4425 = vld [vmem:[#allocation14 + $0xc] sm:$0xf]
        %v4426 = vld [vmem:[#allocation14 + $0x10] sm:$0xf]
        %v4427 = vld [vmem:[#allocation14 + $0x14] sm:$0xf]
        %v4428 = vld [vmem:[#allocation14 + $0x18] sm:$0xf]
        %v4429 = vld [vmem:[#allocation14 + $0x1c] sm:$0xf]
        %v4430 = vld [vmem:[#allocation14 + $0x20] sm:$0xf]
        %v4431 = vld [vmem:[#allocation14 + $0x24] sm:$0xf]
        %v4432 = vld [vmem:[#allocation14 + $0x28] sm:$0xf]
        %v4433 = vld [vmem:[#allocation14 + $0x2c] sm:$0xf]
        %v4434 = vld [vmem:[#allocation14 + $0x30] sm:$0xf]
        %v4435 = vld [vmem:[#allocation14 + $0x34] sm:$0xf]
        %v4436 = vld [vmem:[#allocation14 + $0x38] sm:$0xf]
        %v4437 = vld [vmem:[#allocation14 + $0x3c] sm:$0xf]
        %v4454 = vunpack.c.l.b16 %v4422
        %v4455 = vunpack.c.l.b16 %v4423
        %v4456 = vunpack.c.l.b16 %v4424
        %v4457 = vunpack.c.l.b16 %v4425
        %v4458 = vunpack.c.l.b16 %v4426
        %v4459 = vunpack.c.l.b16 %v4427
        %v4460 = vunpack.c.l.b16 %v4428
        %v4461 = vunpack.c.l.b16 %v4429
        %v4462 = vunpack.c.l.b16 %v4430
        %v4463 = vunpack.c.l.b16 %v4431
        %v4464 = vunpack.c.l.b16 %v4432
        %v4465 = vunpack.c.l.b16 %v4433
        %v4466 = vunpack.c.l.b16 %v4434
        %v4467 = vunpack.c.l.b16 %v4435
        %v4468 = vunpack.c.l.b16 %v4436
        %v4469 = vunpack.c.l.b16 %v4437
        %v4470 = vpack.c.b16 %v4455, %v4454
        %v4471 = vpack.c.b16 %v4457, %v4456
        %v4472 = vpack.c.b16 %v4459, %v4458
        %v4473 = vpack.c.b16 %v4461, %v4460
        %v4474 = vpack.c.b16 %v4463, %v4462
        %v4475 = vpack.c.b16 %v4465, %v4464
        %v4476 = vpack.c.b16 %v4467, %v4466
        %v4477 = vpack.c.b16 %v4469, %v4468
        %4486 = vmatpush.bf16.msra.mxu0 %v4477
        %4487 = vmatpush.bf16.msra.mxu0 %v4476
        %4488 = vmatpush.bf16.msra.mxu0 %v4475
        %4489 = vmatpush.bf16.msra.mxu0 %v4474
        %4490 = vmatpush.bf16.msra.mxu0 %v4473
        %4491 = vmatpush.bf16.msra.mxu0 %v4472
        %4492 = vmatpush.bf16.msra.mxu0 %v4471
        %4493 = vmatpush.bf16.msra.mxu0 %v4470
        %4494 = vmatmul.bf16.gmra.mxu0 %v4421
        %v4495 = vpop.f32.mrf.mxu0
        %v4496 = vadd.f32 0.0, %v4495
        %v4497 = vpop.f32.mrf.mxu0
        %4498 = vdwg.mxu0
        %4499 = vst [vmem:[#allocation2] ss:$2 sm:$0xf] %v4496
        %s4500 = scalar_lea.vmem [#allocation14], 64
        %v4501 = vld [vmem:[%s4500] sm:$0xf]
        %v4502 = vld [vmem:[%s4500 + $0x4] sm:$0xf]
        %v4503 = vld [vmem:[%s4500 + $0x8] sm:$0xf]
        %v4504 = vld [vmem:[%s4500 + $0xc] sm:$0xf]
        %v4505 = vld [vmem:[%s4500 + $0x10] sm:$0xf]
        %v4506 = vld [vmem:[%s4500 + $0x14] sm:$0xf]
        %v4507 = vld [vmem:[%s4500 + $0x18] sm:$0xf]
        %v4508 = vld [vmem:[%s4500 + $0x1c] sm:$0xf]
        %v4509 = vld [vmem:[%s4500 + $0x20] sm:$0xf]
        %v4510 = vld [vmem:[%s4500 + $0x24] sm:$0xf]
        %v4511 = vld [vmem:[%s4500 + $0x28] sm:$0xf]
        %v4512 = vld [vmem:[%s4500 + $0x2c] sm:$0xf]
        %v4513 = vld [vmem:[%s4500 + $0x30] sm:$0xf]
        %v4514 = vld [vmem:[%s4500 + $0x34] sm:$0xf]
        %v4515 = vld [vmem:[%s4500 + $0x38] sm:$0xf]
        %v4516 = vld [vmem:[%s4500 + $0x3c] sm:$0xf]
        %v4533 = vunpack.c.l.b16 %v4501
        %v4534 = vunpack.c.l.b16 %v4502
        %v4535 = vunpack.c.l.b16 %v4503
        %v4536 = vunpack.c.l.b16 %v4504
        %v4537 = vunpack.c.l.b16 %v4505
        %v4538 = vunpack.c.l.b16 %v4506
        %v4539 = vunpack.c.l.b16 %v4507
        %v4540 = vunpack.c.l.b16 %v4508
        %v4541 = vunpack.c.l.b16 %v4509
        %v4542 = vunpack.c.l.b16 %v4510
        %v4543 = vunpack.c.l.b16 %v4511
        %v4544 = vunpack.c.l.b16 %v4512
        %v4545 = vunpack.c.l.b16 %v4513
        %v4546 = vunpack.c.l.b16 %v4514
        %v4547 = vunpack.c.l.b16 %v4515
        %v4548 = vunpack.c.l.b16 %v4516
        %v4549 = vpack.c.b16 %v4534, %v4533
        %v4550 = vpack.c.b16 %v4536, %v4535
        %v4551 = vpack.c.b16 %v4538, %v4537
        %v4552 = vpack.c.b16 %v4540, %v4539
        %v4553 = vpack.c.b16 %v4542, %v4541
        %v4554 = vpack.c.b16 %v4544, %v4543
        %v4555 = vpack.c.b16 %v4546, %v4545
        %v4556 = vpack.c.b16 %v4548, %v4547
        %4565 = vmatpush.bf16.msra.mxu0 %v4556
        %4566 = vmatpush.bf16.msra.mxu0 %v4555
        %4567 = vmatpush.bf16.msra.mxu0 %v4554
        %4568 = vmatpush.bf16.msra.mxu0 %v4553
        %4569 = vmatpush.bf16.msra.mxu0 %v4552
        %4570 = vmatpush.bf16.msra.mxu0 %v4551
        %4571 = vmatpush.bf16.msra.mxu0 %v4550
        %4572 = vmatpush.bf16.msra.mxu0 %v4549
        %4573 = vmatmul.bf16.gmra.mxu0 %v4421
        %v4574 = vpop.f32.mrf.mxu0
        %v4575 = vadd.f32 0.0, %v4574
        %v4576 = vpop.f32.mrf.mxu0
        %4577 = vdwg.mxu0
        %4578 = vst [vmem:[%s2651] ss:$2 sm:$0xf] %v4575
        %v4579 = vld [vmem:[#allocation2] sm:$0xff]
        %4580 = vst [vmem:[#allocation2] sm:$0x1] 0.0
        %4581 = vst [vmem:[#allocation2 + $0x9] sm:$0x1] 0.0
        %4582 = vst [vmem:[#allocation2 + $0x1] sm:$0xff] %v4579
        %v4583 = vld [vmem:[#allocation2] sm:$0xff]
        %v4584 = vpack.c.bf16 %v4583, %v4583
        %v4585 = vld [vmem:[#allocation16] sm:$0xf]
        %v4586 = vld [vmem:[#allocation16 + $0x4] sm:$0xf]
        %v4587 = vld [vmem:[#allocation16 + $0x8] sm:$0xf]
        %v4588 = vld [vmem:[#allocation16 + $0xc] sm:$0xf]
        %v4589 = vld [vmem:[#allocation16 + $0x10] sm:$0xf]
        %v4590 = vld [vmem:[#allocation16 + $0x14] sm:$0xf]
        %v4591 = vld [vmem:[#allocation16 + $0x18] sm:$0xf]
        %v4592 = vld [vmem:[#allocation16 + $0x1c] sm:$0xf]
        %v4593 = vld [vmem:[#allocation16 + $0x20] sm:$0xf]
        %v4594 = vld [vmem:[#allocation16 + $0x24] sm:$0xf]
        %v4595 = vld [vmem:[#allocation16 + $0x28] sm:$0xf]
        %v4596 = vld [vmem:[#allocation16 + $0x2c] sm:$0xf]
        %v4597 = vld [vmem:[#allocation16 + $0x30] sm:$0xf]
        %v4598 = vld [vmem:[#allocation16 + $0x34] sm:$0xf]
        %v4599 = vld [vmem:[#allocation16 + $0x38] sm:$0xf]
        %v4600 = vld [vmem:[#allocation16 + $0x3c] sm:$0xf]
        %v4601 = vld [vmem:[#allocation2 + $0x1] sm:$0xff]
        %v4602 = vpack.c.bf16 %v4601, %v4601
        %s4603 = scalar_lea.vmem [#allocation16], 64
        %v4604 = vld [vmem:[%s4603] sm:$0xf]
        %v4605 = vld [vmem:[%s4603 + $0x4] sm:$0xf]
        %v4606 = vld [vmem:[%s4603 + $0x8] sm:$0xf]
        %v4607 = vld [vmem:[%s4603 + $0xc] sm:$0xf]
        %v4608 = vld [vmem:[%s4603 + $0x10] sm:$0xf]
        %v4609 = vld [vmem:[%s4603 + $0x14] sm:$0xf]
        %v4610 = vld [vmem:[%s4603 + $0x18] sm:$0xf]
        %v4611 = vld [vmem:[%s4603 + $0x1c] sm:$0xf]
        %v4612 = vld [vmem:[%s4603 + $0x20] sm:$0xf]
        %v4613 = vld [vmem:[%s4603 + $0x24] sm:$0xf]
        %v4614 = vld [vmem:[%s4603 + $0x28] sm:$0xf]
        %v4615 = vld [vmem:[%s4603 + $0x2c] sm:$0xf]
        %v4616 = vld [vmem:[%s4603 + $0x30] sm:$0xf]
        %v4617 = vld [vmem:[%s4603 + $0x34] sm:$0xf]
        %v4618 = vld [vmem:[%s4603 + $0x38] sm:$0xf]
        %v4619 = vld [vmem:[%s4603 + $0x3c] sm:$0xf]
        %v4636 = vunpack.c.l.b16 %v4604
        %v4637 = vunpack.c.l.b16 %v4605
        %v4638 = vunpack.c.l.b16 %v4606
        %v4639 = vunpack.c.l.b16 %v4607
        %v4640 = vunpack.c.l.b16 %v4608
        %v4641 = vunpack.c.l.b16 %v4609
        %v4642 = vunpack.c.l.b16 %v4610
        %v4643 = vunpack.c.l.b16 %v4611
        %v4644 = vunpack.c.l.b16 %v4612
        %v4645 = vunpack.c.l.b16 %v4613
        %v4646 = vunpack.c.l.b16 %v4614
        %v4647 = vunpack.c.l.b16 %v4615
        %v4648 = vunpack.c.l.b16 %v4616
        %v4649 = vunpack.c.l.b16 %v4617
        %v4650 = vunpack.c.l.b16 %v4618
        %v4651 = vunpack.c.l.b16 %v4619
        %v4652 = vpack.c.b16 %v4637, %v4636
        %v4653 = vpack.c.b16 %v4639, %v4638
        %v4654 = vpack.c.b16 %v4641, %v4640
        %v4655 = vpack.c.b16 %v4643, %v4642
        %v4656 = vpack.c.b16 %v4645, %v4644
        %v4657 = vpack.c.b16 %v4647, %v4646
        %v4658 = vpack.c.b16 %v4649, %v4648
        %v4659 = vpack.c.b16 %v4651, %v4650
        %4668 = vmatpush.bf16.msra.mxu0 %v4659
        %4669 = vmatpush.bf16.msra.mxu0 %v4658
        %4670 = vmatpush.bf16.msra.mxu0 %v4657
        %4671 = vmatpush.bf16.msra.mxu0 %v4656
        %4672 = vmatpush.bf16.msra.mxu0 %v4655
        %4673 = vmatpush.bf16.msra.mxu0 %v4654
        %4674 = vmatpush.bf16.msra.mxu0 %v4653
        %4675 = vmatpush.bf16.msra.mxu0 %v4652
        %4676 = vmatmul.bf16.gmra.mxu0 %v4602
        %v4677 = vpop.f32.mrf.mxu0
        %v4678 = vadd.f32 0.0, %v4677
        %v4679 = vpop.f32.mrf.mxu0
        %4680 = vdwg.mxu0
        %v4697 = vunpack.c.l.b16 %v4585
        %v4698 = vunpack.c.l.b16 %v4586
        %v4699 = vunpack.c.l.b16 %v4587
        %v4700 = vunpack.c.l.b16 %v4588
        %v4701 = vunpack.c.l.b16 %v4589
        %v4702 = vunpack.c.l.b16 %v4590
        %v4703 = vunpack.c.l.b16 %v4591
        %v4704 = vunpack.c.l.b16 %v4592
        %v4705 = vunpack.c.l.b16 %v4593
        %v4706 = vunpack.c.l.b16 %v4594
        %v4707 = vunpack.c.l.b16 %v4595
        %v4708 = vunpack.c.l.b16 %v4596
        %v4709 = vunpack.c.l.b16 %v4597
        %v4710 = vunpack.c.l.b16 %v4598
        %v4711 = vunpack.c.l.b16 %v4599
        %v4712 = vunpack.c.l.b16 %v4600
        %v4713 = vpack.c.b16 %v4698, %v4697
        %v4714 = vpack.c.b16 %v4700, %v4699
        %v4715 = vpack.c.b16 %v4702, %v4701
        %v4716 = vpack.c.b16 %v4704, %v4703
        %v4717 = vpack.c.b16 %v4706, %v4705
        %v4718 = vpack.c.b16 %v4708, %v4707
        %v4719 = vpack.c.b16 %v4710, %v4709
        %v4720 = vpack.c.b16 %v4712, %v4711
        %4729 = vmatpush.bf16.msra.mxu0 %v4720
        %4730 = vmatpush.bf16.msra.mxu0 %v4719
        %4731 = vmatpush.bf16.msra.mxu0 %v4718
        %4732 = vmatpush.bf16.msra.mxu0 %v4717
        %4733 = vmatpush.bf16.msra.mxu0 %v4716
        %4734 = vmatpush.bf16.msra.mxu0 %v4715
        %4735 = vmatpush.bf16.msra.mxu0 %v4714
        %4736 = vmatpush.bf16.msra.mxu0 %v4713
        %4737 = vmatmul.bf16.gmra.mxu0 %v4584
        %v4738 = vpop.f32.mrf.mxu0
        %v4739 = vadd.f32 %v4678, %v4738
        %v4740 = vpop.f32.mrf.mxu0
        %4741 = vdwg.mxu0
        %v4742 = vld [vmem:[#allocation2 + $0x2] sm:$0xff]
        %v4743 = vpack.c.bf16 %v4742, %v4742
        %s4744 = scalar_lea.vmem [#allocation16], 128
        %v4745 = vld [vmem:[%s4744] sm:$0xf]
        %v4746 = vld [vmem:[%s4744 + $0x4] sm:$0xf]
        %v4747 = vld [vmem:[%s4744 + $0x8] sm:$0xf]
        %v4748 = vld [vmem:[%s4744 + $0xc] sm:$0xf]
        %v4749 = vld [vmem:[%s4744 + $0x10] sm:$0xf]
        %v4750 = vld [vmem:[%s4744 + $0x14] sm:$0xf]
        %v4751 = vld [vmem:[%s4744 + $0x18] sm:$0xf]
        %v4752 = vld [vmem:[%s4744 + $0x1c] sm:$0xf]
        %v4753 = vld [vmem:[%s4744 + $0x20] sm:$0xf]
        %v4754 = vld [vmem:[%s4744 + $0x24] sm:$0xf]
        %v4755 = vld [vmem:[%s4744 + $0x28] sm:$0xf]
        %v4756 = vld [vmem:[%s4744 + $0x2c] sm:$0xf]
        %v4757 = vld [vmem:[%s4744 + $0x30] sm:$0xf]
        %v4758 = vld [vmem:[%s4744 + $0x34] sm:$0xf]
        %v4759 = vld [vmem:[%s4744 + $0x38] sm:$0xf]
        %v4760 = vld [vmem:[%s4744 + $0x3c] sm:$0xf]
        %v4777 = vunpack.c.l.b16 %v4745
        %v4778 = vunpack.c.l.b16 %v4746
        %v4779 = vunpack.c.l.b16 %v4747
        %v4780 = vunpack.c.l.b16 %v4748
        %v4781 = vunpack.c.l.b16 %v4749
        %v4782 = vunpack.c.l.b16 %v4750
        %v4783 = vunpack.c.l.b16 %v4751
        %v4784 = vunpack.c.l.b16 %v4752
        %v4785 = vunpack.c.l.b16 %v4753
        %v4786 = vunpack.c.l.b16 %v4754
        %v4787 = vunpack.c.l.b16 %v4755
        %v4788 = vunpack.c.l.b16 %v4756
        %v4789 = vunpack.c.l.b16 %v4757
        %v4790 = vunpack.c.l.b16 %v4758
        %v4791 = vunpack.c.l.b16 %v4759
        %v4792 = vunpack.c.l.b16 %v4760
        %v4793 = vpack.c.b16 %v4778, %v4777
        %v4794 = vpack.c.b16 %v4780, %v4779
        %v4795 = vpack.c.b16 %v4782, %v4781
        %v4796 = vpack.c.b16 %v4784, %v4783
        %v4797 = vpack.c.b16 %v4786, %v4785
        %v4798 = vpack.c.b16 %v4788, %v4787
        %v4799 = vpack.c.b16 %v4790, %v4789
        %v4800 = vpack.c.b16 %v4792, %v4791
        %4809 = vmatpush.bf16.msra.mxu0 %v4800
        %4810 = vmatpush.bf16.msra.mxu0 %v4799
        %4811 = vmatpush.bf16.msra.mxu0 %v4798
        %4812 = vmatpush.bf16.msra.mxu0 %v4797
        %4813 = vmatpush.bf16.msra.mxu0 %v4796
        %4814 = vmatpush.bf16.msra.mxu0 %v4795
        %4815 = vmatpush.bf16.msra.mxu0 %v4794
        %4816 = vmatpush.bf16.msra.mxu0 %v4793
        %4817 = vmatmul.bf16.gmra.mxu0 %v4743
        %v4818 = vpop.f32.mrf.mxu0
        %v4819 = vadd.f32 0.0, %v4818
        %v4820 = vpop.f32.mrf.mxu0
        %4821 = vdwg.mxu0
        %v4822 = vadd.f32 %v4739, %v4819
        %4823 = vst [vmem:[#allocation2] sm:$0x1] 0.0
        %4824 = vst [vmem:[#allocation2 + $0x9] sm:$0x1] 0.0
        %4825 = vst [vmem:[#allocation2 + $0x1] sm:$0xff] %v3522
        %v4826 = vld [vmem:[#allocation2] sm:$0xff]
        %v4827 = vpack.c.bf16 %v4826, %v4826
        %v4828 = vld [vmem:[#allocation17] sm:$0xf]
        %v4829 = vld [vmem:[#allocation17 + $0x4] sm:$0xf]
        %v4830 = vld [vmem:[#allocation17 + $0x8] sm:$0xf]
        %v4831 = vld [vmem:[#allocation17 + $0xc] sm:$0xf]
        %v4832 = vld [vmem:[#allocation17 + $0x10] sm:$0xf]
        %v4833 = vld [vmem:[#allocation17 + $0x14] sm:$0xf]
        %v4834 = vld [vmem:[#allocation17 + $0x18] sm:$0xf]
        %v4835 = vld [vmem:[#allocation17 + $0x1c] sm:$0xf]
        %v4836 = vld [vmem:[#allocation17 + $0x20] sm:$0xf]
        %v4837 = vld [vmem:[#allocation17 + $0x24] sm:$0xf]
        %v4838 = vld [vmem:[#allocation17 + $0x28] sm:$0xf]
        %v4839 = vld [vmem:[#allocation17 + $0x2c] sm:$0xf]
        %v4840 = vld [vmem:[#allocation17 + $0x30] sm:$0xf]
        %v4841 = vld [vmem:[#allocation17 + $0x34] sm:$0xf]
        %v4842 = vld [vmem:[#allocation17 + $0x38] sm:$0xf]
        %v4843 = vld [vmem:[#allocation17 + $0x3c] sm:$0xf]
        %v4844 = vld [vmem:[#allocation2 + $0x1] sm:$0xff]
        %v4845 = vpack.c.bf16 %v4844, %v4844
        %s4846 = scalar_lea.vmem [#allocation17], 64
        %v4847 = vld [vmem:[%s4846] sm:$0xf]
        %v4848 = vld [vmem:[%s4846 + $0x4] sm:$0xf]
        %v4849 = vld [vmem:[%s4846 + $0x8] sm:$0xf]
        %v4850 = vld [vmem:[%s4846 + $0xc] sm:$0xf]
        %v4851 = vld [vmem:[%s4846 + $0x10] sm:$0xf]
        %v4852 = vld [vmem:[%s4846 + $0x14] sm:$0xf]
        %v4853 = vld [vmem:[%s4846 + $0x18] sm:$0xf]
        %v4854 = vld [vmem:[%s4846 + $0x1c] sm:$0xf]
        %v4855 = vld [vmem:[%s4846 + $0x20] sm:$0xf]
        %v4856 = vld [vmem:[%s4846 + $0x24] sm:$0xf]
        %v4857 = vld [vmem:[%s4846 + $0x28] sm:$0xf]
        %v4858 = vld [vmem:[%s4846 + $0x2c] sm:$0xf]
        %v4859 = vld [vmem:[%s4846 + $0x30] sm:$0xf]
        %v4860 = vld [vmem:[%s4846 + $0x34] sm:$0xf]
        %v4861 = vld [vmem:[%s4846 + $0x38] sm:$0xf]
        %v4862 = vld [vmem:[%s4846 + $0x3c] sm:$0xf]
        %v4879 = vunpack.c.l.b16 %v4847
        %v4880 = vunpack.c.l.b16 %v4848
        %v4881 = vunpack.c.l.b16 %v4849
        %v4882 = vunpack.c.l.b16 %v4850
        %v4883 = vunpack.c.l.b16 %v4851
        %v4884 = vunpack.c.l.b16 %v4852
        %v4885 = vunpack.c.l.b16 %v4853
        %v4886 = vunpack.c.l.b16 %v4854
        %v4887 = vunpack.c.l.b16 %v4855
        %v4888 = vunpack.c.l.b16 %v4856
        %v4889 = vunpack.c.l.b16 %v4857
        %v4890 = vunpack.c.l.b16 %v4858
        %v4891 = vunpack.c.l.b16 %v4859
        %v4892 = vunpack.c.l.b16 %v4860
        %v4893 = vunpack.c.l.b16 %v4861
        %v4894 = vunpack.c.l.b16 %v4862
        %v4895 = vpack.c.b16 %v4880, %v4879
        %v4896 = vpack.c.b16 %v4882, %v4881
        %v4897 = vpack.c.b16 %v4884, %v4883
        %v4898 = vpack.c.b16 %v4886, %v4885
        %v4899 = vpack.c.b16 %v4888, %v4887
        %v4900 = vpack.c.b16 %v4890, %v4889
        %v4901 = vpack.c.b16 %v4892, %v4891
        %v4902 = vpack.c.b16 %v4894, %v4893
        %4911 = vmatpush.bf16.msra.mxu0 %v4902
        %4912 = vmatpush.bf16.msra.mxu0 %v4901
        %4913 = vmatpush.bf16.msra.mxu0 %v4900
        %4914 = vmatpush.bf16.msra.mxu0 %v4899
        %4915 = vmatpush.bf16.msra.mxu0 %v4898
        %4916 = vmatpush.bf16.msra.mxu0 %v4897
        %4917 = vmatpush.bf16.msra.mxu0 %v4896
        %4918 = vmatpush.bf16.msra.mxu0 %v4895
        %4919 = vmatmul.bf16.gmra.mxu0 %v4845
        %v4920 = vpop.f32.mrf.mxu0
        %v4921 = vadd.f32 0.0, %v4920
        %v4922 = vpop.f32.mrf.mxu0
        %4923 = vdwg.mxu0
        %v4940 = vunpack.c.l.b16 %v4828
        %v4941 = vunpack.c.l.b16 %v4829
        %v4942 = vunpack.c.l.b16 %v4830
        %v4943 = vunpack.c.l.b16 %v4831
        %v4944 = vunpack.c.l.b16 %v4832
        %v4945 = vunpack.c.l.b16 %v4833
        %v4946 = vunpack.c.l.b16 %v4834
        %v4947 = vunpack.c.l.b16 %v4835
        %v4948 = vunpack.c.l.b16 %v4836
        %v4949 = vunpack.c.l.b16 %v4837
        %v4950 = vunpack.c.l.b16 %v4838
        %v4951 = vunpack.c.l.b16 %v4839
        %v4952 = vunpack.c.l.b16 %v4840
        %v4953 = vunpack.c.l.b16 %v4841
        %v4954 = vunpack.c.l.b16 %v4842
        %v4955 = vunpack.c.l.b16 %v4843
        %v4956 = vpack.c.b16 %v4941, %v4940
        %v4957 = vpack.c.b16 %v4943, %v4942
        %v4958 = vpack.c.b16 %v4945, %v4944
        %v4959 = vpack.c.b16 %v4947, %v4946
        %v4960 = vpack.c.b16 %v4949, %v4948
        %v4961 = vpack.c.b16 %v4951, %v4950
        %v4962 = vpack.c.b16 %v4953, %v4952
        %v4963 = vpack.c.b16 %v4955, %v4954
        %4972 = vmatpush.bf16.msra.mxu0 %v4963
        %4973 = vmatpush.bf16.msra.mxu0 %v4962
        %4974 = vmatpush.bf16.msra.mxu0 %v4961
        %4975 = vmatpush.bf16.msra.mxu0 %v4960
        %4976 = vmatpush.bf16.msra.mxu0 %v4959
        %4977 = vmatpush.bf16.msra.mxu0 %v4958
        %4978 = vmatpush.bf16.msra.mxu0 %v4957
        %4979 = vmatpush.bf16.msra.mxu0 %v4956
        %4980 = vmatmul.bf16.gmra.mxu0 %v4827
        %v4981 = vpop.f32.mrf.mxu0
        %v4982 = vadd.f32 %v4921, %v4981
        %v4983 = vpop.f32.mrf.mxu0
        %4984 = vdwg.mxu0
        %v4985 = vld [vmem:[#allocation2 + $0x2] sm:$0xff]
        %v4986 = vpack.c.bf16 %v4985, %v4985
        %s4987 = scalar_lea.vmem [#allocation17], 128
        %v4988 = vld [vmem:[%s4987] sm:$0xf]
        %v4989 = vld [vmem:[%s4987 + $0x4] sm:$0xf]
        %v4990 = vld [vmem:[%s4987 + $0x8] sm:$0xf]
        %v4991 = vld [vmem:[%s4987 + $0xc] sm:$0xf]
        %v4992 = vld [vmem:[%s4987 + $0x10] sm:$0xf]
        %v4993 = vld [vmem:[%s4987 + $0x14] sm:$0xf]
        %v4994 = vld [vmem:[%s4987 + $0x18] sm:$0xf]
        %v4995 = vld [vmem:[%s4987 + $0x1c] sm:$0xf]
        %v4996 = vld [vmem:[%s4987 + $0x20] sm:$0xf]
        %v4997 = vld [vmem:[%s4987 + $0x24] sm:$0xf]
        %v4998 = vld [vmem:[%s4987 + $0x28] sm:$0xf]
        %v4999 = vld [vmem:[%s4987 + $0x2c] sm:$0xf]
        %v5000 = vld [vmem:[%s4987 + $0x30] sm:$0xf]
        %v5001 = vld [vmem:[%s4987 + $0x34] sm:$0xf]
        %v5002 = vld [vmem:[%s4987 + $0x38] sm:$0xf]
        %v5003 = vld [vmem:[%s4987 + $0x3c] sm:$0xf]
        %v5020 = vunpack.c.l.b16 %v4988
        %v5021 = vunpack.c.l.b16 %v4989
        %v5022 = vunpack.c.l.b16 %v4990
        %v5023 = vunpack.c.l.b16 %v4991
        %v5024 = vunpack.c.l.b16 %v4992
        %v5025 = vunpack.c.l.b16 %v4993
        %v5026 = vunpack.c.l.b16 %v4994
        %v5027 = vunpack.c.l.b16 %v4995
        %v5028 = vunpack.c.l.b16 %v4996
        %v5029 = vunpack.c.l.b16 %v4997
        %v5030 = vunpack.c.l.b16 %v4998
        %v5031 = vunpack.c.l.b16 %v4999
        %v5032 = vunpack.c.l.b16 %v5000
        %v5033 = vunpack.c.l.b16 %v5001
        %v5034 = vunpack.c.l.b16 %v5002
        %v5035 = vunpack.c.l.b16 %v5003
        %v5036 = vpack.c.b16 %v5021, %v5020
        %v5037 = vpack.c.b16 %v5023, %v5022
        %v5038 = vpack.c.b16 %v5025, %v5024
        %v5039 = vpack.c.b16 %v5027, %v5026
        %v5040 = vpack.c.b16 %v5029, %v5028
        %v5041 = vpack.c.b16 %v5031, %v5030
        %v5042 = vpack.c.b16 %v5033, %v5032
        %v5043 = vpack.c.b16 %v5035, %v5034
        %5052 = vmatpush.bf16.msra.mxu0 %v5043
        %5053 = vmatpush.bf16.msra.mxu0 %v5042
        %5054 = vmatpush.bf16.msra.mxu0 %v5041
        %5055 = vmatpush.bf16.msra.mxu0 %v5040
        %5056 = vmatpush.bf16.msra.mxu0 %v5039
        %5057 = vmatpush.bf16.msra.mxu0 %v5038
        %5058 = vmatpush.bf16.msra.mxu0 %v5037
        %5059 = vmatpush.bf16.msra.mxu0 %v5036
        %5060 = vmatmul.bf16.gmra.mxu0 %v4986
        %v5061 = vpop.f32.mrf.mxu0
        %v5062 = vadd.f32 0.0, %v5061
        %v5063 = vpop.f32.mrf.mxu0
        %5064 = vdwg.mxu0
        %v5065 = vadd.f32 %v4982, %v5062
        %v5066 = vadd.f32 %v4822, %v5065
        %v5067 = vrot.slane %v5066, 4
        %v5068 = vadd.f32 %v5066, %v5067
        %v5069 = vrot.slane %v5068, 2
        %v5070 = vadd.f32 %v5068, %v5069
        %v5071 = vrot.slane %v5070, 1
        %v5072 = vadd.f32 %v5070, %v5071
        %v5073 = vmul.f32 %v5066, %v5066
        %v5074 = vrot.slane %v5073, 4
        %v5075 = vadd.f32 %v5073, %v5074
        %v5076 = vrot.slane %v5075, 2
        %v5077 = vadd.f32 %v5075, %v5076
        %v5078 = vrot.slane %v5077, 1
        %v5079 = vadd.f32 %v5077, %v5078
        %v5080 = vsel %vm1867, %v5072, %v5079
        %v5081 = vld [vmem:[#allocation3] sm:$0xff]
        %v5082 = vld [vmem:[#allocation3 + $0x8] sm:$0xff]
        %v5083 = vld [vmem:[#allocation3 + $0x10] sm:$0xff]
        %v5084 = vld [vmem:[#allocation3 + $0x18] sm:$0xff]
        %v5085 = vld [vmem:[#allocation3 + $0x20] sm:$0xff]
        %v5086 = vld [vmem:[#allocation3 + $0x28] sm:$0xff]
        %v5087 = vld [vmem:[#allocation3 + $0x30] sm:$0xff]
        %v5088 = vld [vmem:[#allocation3 + $0x38] sm:$0xff]
        %v5089 = vld [vmem:[#allocation3 + $0x40] sm:$0xff]
        %v5090 = vld [vmem:[#allocation3 + $0x48] sm:$0xff]
        %v5091 = vld [vmem:[#allocation3 + $0x50] sm:$0xff]
        %v5092 = vld [vmem:[#allocation3 + $0x58] sm:$0xff]
        %v5093 = vld [vmem:[#allocation3 + $0x60] sm:$0xff]
        %v5094 = vld [vmem:[#allocation3 + $0x68] sm:$0xff]
        %v5095 = vld [vmem:[#allocation3 + $0x70] sm:$0xff]
        %v5096 = vld [vmem:[#allocation3 + $0x78] sm:$0xff]
        %5097 = vmatpush.msra.mxu0 %v5096
        %5098 = vmatpush.msra.mxu0 %v5095
        %5099 = vmatpush.msra.mxu0 %v5094
        %5100 = vmatpush.msra.mxu0 %v5093
        %5101 = vmatpush.msra.mxu0 %v5092
        %5102 = vmatpush.msra.mxu0 %v5091
        %5103 = vmatpush.msra.mxu0 %v5090
        %5104 = vmatpush.msra.mxu0 %v5089
        %5105 = vmatpush.msra.mxu0 %v5088
        %5106 = vmatpush.msra.mxu0 %v5087
        %5107 = vmatpush.msra.mxu0 %v5086
        %5108 = vmatpush.msra.mxu0 %v5085
        %5109 = vmatpush.msra.mxu0 %v5084
        %5110 = vmatpush.msra.mxu0 %v5083
        %5111 = vmatpush.msra.mxu0 %v5082
        %5112 = vmatpush.msra.mxu0 %v5081
        %5113 = vmatmul.f32.gmra.mxu0 %v5080
        %v5114 = vpop.f32.mrf.mxu0
        %v5115 = vadd.f32 0.0, %v5114
        %5116 = vdwg.mxu0
        %v5117 = vmul.f32 %v5115, %v5115
        %v5119 = vrot.slane %v5117, 7
        %v5121 = vsub.f32 %v5115, %v5119
        %v5122 = vmax.f32 %v5121, 0.0
        %v5123 = vperm.slane %v5115, 0
        %v5124 = vsub.f32 %v5066, %v5123
        %v5125 = vadd.f32 %v5122, 1e-05
        %v5126 = vrsqrt.pop %v5125
        %v5127 = vmul.f32 %v5126, %v5125
        %v5128 = vmul.f32 %v5127, %v5126
        %v5129 = vmul.f32 0.5, %v5128
        %v5130 = vsub.f32 1.5, %v5129
        %v5131 = vmul.f32 %v5126, %v5130
        %vm5132 = vweird.f32 %v5125
        %vm5133 = vweird.f32 %v5126
        %vm5134 = vmor %vm5132, %vm5133
        %v5135 = vsel %vm5134, %v5126, %v5131
        %v5136 = vld [vmem:[%s51] sm:$0x1]
        %v5138 = vrot.slane %v5136, 7
        %v5140 = vmul.f32 %v5135, %v5138
        %v5141 = vperm.slane %v5140, 1
        %v5142 = vmul.f32 %v5124, %v5141
        %v5143 = vld [vmem:[%s51 + $0x1] sm:$0x1]
        %v5144 = vperm.slane %v5143, 0
        %v5145 = vadd.f32 %v5142, %v5144
        %vm5146 = vcmp.ge.f32.partialorder %v5145, 0.0
        %v5147 = vmul.f32 %v5145, 0.01
        %v5148 = vsel %vm5146, %v5145, %v5147
        %5149 = vst [vmem:[#allocation2] sm:$0x1] 0.0
        %5150 = vst [vmem:[#allocation2 + $0x9] sm:$0x1] 0.0
        %5151 = vst [vmem:[#allocation2 + $0x1] sm:$0xff] %v5148
        %v5152 = vld [vmem:[#allocation2] sm:$0xff]
        %v5153 = vpack.c.bf16 %v5152, %v5152
        %v5154 = vld [vmem:[#allocation19] sm:$0xf]
        %v5155 = vld [vmem:[#allocation19 + $0x4] sm:$0xf]
        %v5156 = vld [vmem:[#allocation19 + $0x8] sm:$0xf]
        %v5157 = vld [vmem:[#allocation19 + $0xc] sm:$0xf]
        %v5158 = vld [vmem:[#allocation19 + $0x10] sm:$0xf]
        %v5159 = vld [vmem:[#allocation19 + $0x14] sm:$0xf]
        %v5160 = vld [vmem:[#allocation19 + $0x18] sm:$0xf]
        %v5161 = vld [vmem:[#allocation19 + $0x1c] sm:$0xf]
        %v5162 = vld [vmem:[#allocation19 + $0x20] sm:$0xf]
        %v5163 = vld [vmem:[#allocation19 + $0x24] sm:$0xf]
        %v5164 = vld [vmem:[#allocation19 + $0x28] sm:$0xf]
        %v5165 = vld [vmem:[#allocation19 + $0x2c] sm:$0xf]
        %v5166 = vld [vmem:[#allocation19 + $0x30] sm:$0xf]
        %v5167 = vld [vmem:[#allocation19 + $0x34] sm:$0xf]
        %v5168 = vld [vmem:[#allocation19 + $0x38] sm:$0xf]
        %v5169 = vld [vmem:[#allocation19 + $0x3c] sm:$0xf]
        %v5170 = vld [vmem:[#allocation2 + $0x1] sm:$0xff]
        %v5171 = vpack.c.bf16 %v5170, %v5170
        %s5172 = scalar_lea.vmem [#allocation19], 64
        %v5173 = vld [vmem:[%s5172] sm:$0xf]
        %v5174 = vld [vmem:[%s5172 + $0x4] sm:$0xf]
        %v5175 = vld [vmem:[%s5172 + $0x8] sm:$0xf]
        %v5176 = vld [vmem:[%s5172 + $0xc] sm:$0xf]
        %v5177 = vld [vmem:[%s5172 + $0x10] sm:$0xf]
        %v5178 = vld [vmem:[%s5172 + $0x14] sm:$0xf]
        %v5179 = vld [vmem:[%s5172 + $0x18] sm:$0xf]
        %v5180 = vld [vmem:[%s5172 + $0x1c] sm:$0xf]
        %v5181 = vld [vmem:[%s5172 + $0x20] sm:$0xf]
        %v5182 = vld [vmem:[%s5172 + $0x24] sm:$0xf]
        %v5183 = vld [vmem:[%s5172 + $0x28] sm:$0xf]
        %v5184 = vld [vmem:[%s5172 + $0x2c] sm:$0xf]
        %v5185 = vld [vmem:[%s5172 + $0x30] sm:$0xf]
        %v5186 = vld [vmem:[%s5172 + $0x34] sm:$0xf]
        %v5187 = vld [vmem:[%s5172 + $0x38] sm:$0xf]
        %v5188 = vld [vmem:[%s5172 + $0x3c] sm:$0xf]
        %v5205 = vunpack.c.l.b16 %v5173
        %v5206 = vunpack.c.l.b16 %v5174
        %v5207 = vunpack.c.l.b16 %v5175
        %v5208 = vunpack.c.l.b16 %v5176
        %v5209 = vunpack.c.l.b16 %v5177
        %v5210 = vunpack.c.l.b16 %v5178
        %v5211 = vunpack.c.l.b16 %v5179
        %v5212 = vunpack.c.l.b16 %v5180
        %v5213 = vunpack.c.l.b16 %v5181
        %v5214 = vunpack.c.l.b16 %v5182
        %v5215 = vunpack.c.l.b16 %v5183
        %v5216 = vunpack.c.l.b16 %v5184
        %v5217 = vunpack.c.l.b16 %v5185
        %v5218 = vunpack.c.l.b16 %v5186
        %v5219 = vunpack.c.l.b16 %v5187
        %v5220 = vunpack.c.l.b16 %v5188
        %v5221 = vpack.c.b16 %v5206, %v5205
        %v5222 = vpack.c.b16 %v5208, %v5207
        %v5223 = vpack.c.b16 %v5210, %v5209
        %v5224 = vpack.c.b16 %v5212, %v5211
        %v5225 = vpack.c.b16 %v5214, %v5213
        %v5226 = vpack.c.b16 %v5216, %v5215
        %v5227 = vpack.c.b16 %v5218, %v5217
        %v5228 = vpack.c.b16 %v5220, %v5219
        %5237 = vmatpush.bf16.msra.mxu0 %v5228
        %5238 = vmatpush.bf16.msra.mxu0 %v5227
        %5239 = vmatpush.bf16.msra.mxu0 %v5226
        %5240 = vmatpush.bf16.msra.mxu0 %v5225
        %5241 = vmatpush.bf16.msra.mxu0 %v5224
        %5242 = vmatpush.bf16.msra.mxu0 %v5223
        %5243 = vmatpush.bf16.msra.mxu0 %v5222
        %5244 = vmatpush.bf16.msra.mxu0 %v5221
        %5245 = vmatmul.bf16.gmra.mxu0 %v5171
        %v5246 = vpop.f32.mrf.mxu0
        %v5247 = vadd.f32 0.0, %v5246
        %v5248 = vpop.f32.mrf.mxu0
        %5249 = vdwg.mxu0
        %v5266 = vunpack.c.l.b16 %v5154
        %v5267 = vunpack.c.l.b16 %v5155
        %v5268 = vunpack.c.l.b16 %v5156
        %v5269 = vunpack.c.l.b16 %v5157
        %v5270 = vunpack.c.l.b16 %v5158
        %v5271 = vunpack.c.l.b16 %v5159
        %v5272 = vunpack.c.l.b16 %v5160
        %v5273 = vunpack.c.l.b16 %v5161
        %v5274 = vunpack.c.l.b16 %v5162
        %v5275 = vunpack.c.l.b16 %v5163
        %v5276 = vunpack.c.l.b16 %v5164
        %v5277 = vunpack.c.l.b16 %v5165
        %v5278 = vunpack.c.l.b16 %v5166
        %v5279 = vunpack.c.l.b16 %v5167
        %v5280 = vunpack.c.l.b16 %v5168
        %v5281 = vunpack.c.l.b16 %v5169
        %v5282 = vpack.c.b16 %v5267, %v5266
        %v5283 = vpack.c.b16 %v5269, %v5268
        %v5284 = vpack.c.b16 %v5271, %v5270
        %v5285 = vpack.c.b16 %v5273, %v5272
        %v5286 = vpack.c.b16 %v5275, %v5274
        %v5287 = vpack.c.b16 %v5277, %v5276
        %v5288 = vpack.c.b16 %v5279, %v5278
        %v5289 = vpack.c.b16 %v5281, %v5280
        %5298 = vmatpush.bf16.msra.mxu0 %v5289
        %5299 = vmatpush.bf16.msra.mxu0 %v5288
        %5300 = vmatpush.bf16.msra.mxu0 %v5287
        %5301 = vmatpush.bf16.msra.mxu0 %v5286
        %5302 = vmatpush.bf16.msra.mxu0 %v5285
        %5303 = vmatpush.bf16.msra.mxu0 %v5284
        %5304 = vmatpush.bf16.msra.mxu0 %v5283
        %5305 = vmatpush.bf16.msra.mxu0 %v5282
        %5306 = vmatmul.bf16.gmra.mxu0 %v5153
        %v5307 = vpop.f32.mrf.mxu0
        %v5308 = vadd.f32 %v5247, %v5307
        %v5309 = vpop.f32.mrf.mxu0
        %5310 = vdwg.mxu0
        %v5311 = vld [vmem:[#allocation2 + $0x2] sm:$0xff]
        %v5312 = vpack.c.bf16 %v5311, %v5311
        %s5313 = scalar_lea.vmem [#allocation19], 128
        %v5314 = vld [vmem:[%s5313] sm:$0xf]
        %v5315 = vld [vmem:[%s5313 + $0x4] sm:$0xf]
        %v5316 = vld [vmem:[%s5313 + $0x8] sm:$0xf]
        %v5317 = vld [vmem:[%s5313 + $0xc] sm:$0xf]
        %v5318 = vld [vmem:[%s5313 + $0x10] sm:$0xf]
        %v5319 = vld [vmem:[%s5313 + $0x14] sm:$0xf]
        %v5320 = vld [vmem:[%s5313 + $0x18] sm:$0xf]
        %v5321 = vld [vmem:[%s5313 + $0x1c] sm:$0xf]
        %v5322 = vld [vmem:[%s5313 + $0x20] sm:$0xf]
        %v5323 = vld [vmem:[%s5313 + $0x24] sm:$0xf]
        %v5324 = vld [vmem:[%s5313 + $0x28] sm:$0xf]
        %v5325 = vld [vmem:[%s5313 + $0x2c] sm:$0xf]
        %v5326 = vld [vmem:[%s5313 + $0x30] sm:$0xf]
        %v5327 = vld [vmem:[%s5313 + $0x34] sm:$0xf]
        %v5328 = vld [vmem:[%s5313 + $0x38] sm:$0xf]
        %v5329 = vld [vmem:[%s5313 + $0x3c] sm:$0xf]
        %v5346 = vunpack.c.l.b16 %v5314
        %v5347 = vunpack.c.l.b16 %v5315
        %v5348 = vunpack.c.l.b16 %v5316
        %v5349 = vunpack.c.l.b16 %v5317
        %v5350 = vunpack.c.l.b16 %v5318
        %v5351 = vunpack.c.l.b16 %v5319
        %v5352 = vunpack.c.l.b16 %v5320
        %v5353 = vunpack.c.l.b16 %v5321
        %v5354 = vunpack.c.l.b16 %v5322
        %v5355 = vunpack.c.l.b16 %v5323
        %v5356 = vunpack.c.l.b16 %v5324
        %v5357 = vunpack.c.l.b16 %v5325
        %v5358 = vunpack.c.l.b16 %v5326
        %v5359 = vunpack.c.l.b16 %v5327
        %v5360 = vunpack.c.l.b16 %v5328
        %v5361 = vunpack.c.l.b16 %v5329
        %v5362 = vpack.c.b16 %v5347, %v5346
        %v5363 = vpack.c.b16 %v5349, %v5348
        %v5364 = vpack.c.b16 %v5351, %v5350
        %v5365 = vpack.c.b16 %v5353, %v5352
        %v5366 = vpack.c.b16 %v5355, %v5354
        %v5367 = vpack.c.b16 %v5357, %v5356
        %v5368 = vpack.c.b16 %v5359, %v5358
        %v5369 = vpack.c.b16 %v5361, %v5360
        %5378 = vmatpush.bf16.msra.mxu0 %v5369
        %5379 = vmatpush.bf16.msra.mxu0 %v5368
        %5380 = vmatpush.bf16.msra.mxu0 %v5367
        %5381 = vmatpush.bf16.msra.mxu0 %v5366
        %5382 = vmatpush.bf16.msra.mxu0 %v5365
        %5383 = vmatpush.bf16.msra.mxu0 %v5364
        %5384 = vmatpush.bf16.msra.mxu0 %v5363
        %5385 = vmatpush.bf16.msra.mxu0 %v5362
        %5386 = vmatmul.bf16.gmra.mxu0 %v5312
        %v5387 = vpop.f32.mrf.mxu0
        %v5388 = vadd.f32 0.0, %v5387
        %v5389 = vpop.f32.mrf.mxu0
        %5390 = vdwg.mxu0
        %v5391 = vadd.f32 %v5308, %v5388
        %v5392 = vrot.slane %v5391, 4
        %v5393 = vadd.f32 %v5391, %v5392
        %v5394 = vrot.slane %v5393, 2
        %v5395 = vadd.f32 %v5393, %v5394
        %v5396 = vrot.slane %v5395, 1
        %v5397 = vadd.f32 %v5395, %v5396
        %v5398 = vmul.f32 %v5391, %v5391
        %v5399 = vrot.slane %v5398, 4
        %v5400 = vadd.f32 %v5398, %v5399
        %v5401 = vrot.slane %v5400, 2
        %v5402 = vadd.f32 %v5400, %v5401
        %v5403 = vrot.slane %v5402, 1
        %v5404 = vadd.f32 %v5402, %v5403
        %v5405 = vsel %vm1867, %v5397, %v5404
        %v5406 = vld [vmem:[#allocation3] sm:$0xff]
        %v5407 = vld [vmem:[#allocation3 + $0x8] sm:$0xff]
        %v5408 = vld [vmem:[#allocation3 + $0x10] sm:$0xff]
        %v5409 = vld [vmem:[#allocation3 + $0x18] sm:$0xff]
        %v5410 = vld [vmem:[#allocation3 + $0x20] sm:$0xff]
        %v5411 = vld [vmem:[#allocation3 + $0x28] sm:$0xff]
        %v5412 = vld [vmem:[#allocation3 + $0x30] sm:$0xff]
        %v5413 = vld [vmem:[#allocation3 + $0x38] sm:$0xff]
        %v5414 = vld [vmem:[#allocation3 + $0x40] sm:$0xff]
        %v5415 = vld [vmem:[#allocation3 + $0x48] sm:$0xff]
        %v5416 = vld [vmem:[#allocation3 + $0x50] sm:$0xff]
        %v5417 = vld [vmem:[#allocation3 + $0x58] sm:$0xff]
        %v5418 = vld [vmem:[#allocation3 + $0x60] sm:$0xff]
        %v5419 = vld [vmem:[#allocation3 + $0x68] sm:$0xff]
        %v5420 = vld [vmem:[#allocation3 + $0x70] sm:$0xff]
        %v5421 = vld [vmem:[#allocation3 + $0x78] sm:$0xff]
        %5422 = vmatpush.msra.mxu0 %v5421
        %5423 = vmatpush.msra.mxu0 %v5420
        %5424 = vmatpush.msra.mxu0 %v5419
        %5425 = vmatpush.msra.mxu0 %v5418
        %5426 = vmatpush.msra.mxu0 %v5417
        %5427 = vmatpush.msra.mxu0 %v5416
        %5428 = vmatpush.msra.mxu0 %v5415
        %5429 = vmatpush.msra.mxu0 %v5414
        %5430 = vmatpush.msra.mxu0 %v5413
        %5431 = vmatpush.msra.mxu0 %v5412
        %5432 = vmatpush.msra.mxu0 %v5411
        %5433 = vmatpush.msra.mxu0 %v5410
        %5434 = vmatpush.msra.mxu0 %v5409
        %5435 = vmatpush.msra.mxu0 %v5408
        %5436 = vmatpush.msra.mxu0 %v5407
        %5437 = vmatpush.msra.mxu0 %v5406
        %5438 = vmatmul.f32.gmra.mxu0 %v5405
        %v5439 = vpop.f32.mrf.mxu0
        %v5440 = vadd.f32 0.0, %v5439
        %5441 = vdwg.mxu0
        %v5442 = vmul.f32 %v5440, %v5440
        %v5444 = vrot.slane %v5442, 7
        %v5446 = vsub.f32 %v5440, %v5444
        %v5447 = vmax.f32 %v5446, 0.0
        %v5448 = vperm.slane %v5440, 0
        %v5449 = vsub.f32 %v5391, %v5448
        %v5450 = vadd.f32 %v5447, 1e-05
        %v5451 = vrsqrt.pop %v5450
        %v5452 = vmul.f32 %v5451, %v5450
        %v5453 = vmul.f32 %v5452, %v5451
        %v5454 = vmul.f32 0.5, %v5453
        %v5455 = vsub.f32 1.5, %v5454
        %v5456 = vmul.f32 %v5451, %v5455
        %vm5457 = vweird.f32 %v5450
        %vm5458 = vweird.f32 %v5451
        %vm5459 = vmor %vm5457, %vm5458
        %v5460 = vsel %vm5459, %v5451, %v5456
        %v5461 = vld [vmem:[%s55] sm:$0x1]
        %v5463 = vrot.slane %v5461, 7
        %v5465 = vmul.f32 %v5460, %v5463
        %v5466 = vperm.slane %v5465, 1
        %v5467 = vmul.f32 %v5449, %v5466
        %v5468 = vld [vmem:[%s55 + $0x1] sm:$0x1]
        %v5469 = vperm.slane %v5468, 0
        %v5470 = vadd.f32 %v5467, %v5469
        %5471 = vst [vmem:[#allocation2] sm:$0xff] %v4579
        %v5472 = vld [vmem:[#allocation2] sm:$0xff]
        %v5473 = vpack.c.bf16 %v5472, %v5472
        %v5474 = vld [vmem:[#allocation20] sm:$0xf]
        %v5475 = vld [vmem:[#allocation20 + $0x4] sm:$0xf]
        %v5476 = vld [vmem:[#allocation20 + $0x8] sm:$0xf]
        %v5477 = vld [vmem:[#allocation20 + $0xc] sm:$0xf]
        %v5478 = vld [vmem:[#allocation20 + $0x10] sm:$0xf]
        %v5479 = vld [vmem:[#allocation20 + $0x14] sm:$0xf]
        %v5480 = vld [vmem:[#allocation20 + $0x18] sm:$0xf]
        %v5481 = vld [vmem:[#allocation20 + $0x1c] sm:$0xf]
        %v5482 = vld [vmem:[#allocation20 + $0x20] sm:$0xf]
        %v5483 = vld [vmem:[#allocation20 + $0x24] sm:$0xf]
        %v5484 = vld [vmem:[#allocation20 + $0x28] sm:$0xf]
        %v5485 = vld [vmem:[#allocation20 + $0x2c] sm:$0xf]
        %v5486 = vld [vmem:[#allocation20 + $0x30] sm:$0xf]
        %v5487 = vld [vmem:[#allocation20 + $0x34] sm:$0xf]
        %v5488 = vld [vmem:[#allocation20 + $0x38] sm:$0xf]
        %v5489 = vld [vmem:[#allocation20 + $0x3c] sm:$0xf]
        %5490 = vst [vmem:[#allocation2] sm:$0xff] %v3522
        %v5491 = vld [vmem:[#allocation2] sm:$0xff]
        %v5492 = vpack.c.bf16 %v5491, %v5491
        %v5493 = vld [vmem:[#allocation22] sm:$0xf]
        %v5494 = vld [vmem:[#allocation22 + $0x4] sm:$0xf]
        %v5495 = vld [vmem:[#allocation22 + $0x8] sm:$0xf]
        %v5496 = vld [vmem:[#allocation22 + $0xc] sm:$0xf]
        %v5497 = vld [vmem:[#allocation22 + $0x10] sm:$0xf]
        %v5498 = vld [vmem:[#allocation22 + $0x14] sm:$0xf]
        %v5499 = vld [vmem:[#allocation22 + $0x18] sm:$0xf]
        %v5500 = vld [vmem:[#allocation22 + $0x1c] sm:$0xf]
        %v5501 = vld [vmem:[#allocation22 + $0x20] sm:$0xf]
        %v5502 = vld [vmem:[#allocation22 + $0x24] sm:$0xf]
        %v5503 = vld [vmem:[#allocation22 + $0x28] sm:$0xf]
        %v5504 = vld [vmem:[#allocation22 + $0x2c] sm:$0xf]
        %v5505 = vld [vmem:[#allocation22 + $0x30] sm:$0xf]
        %v5506 = vld [vmem:[#allocation22 + $0x34] sm:$0xf]
        %v5507 = vld [vmem:[#allocation22 + $0x38] sm:$0xf]
        %v5508 = vld [vmem:[#allocation22 + $0x3c] sm:$0xf]
        %v5525 = vunpack.c.l.b16 %v5493
        %v5526 = vunpack.c.l.b16 %v5494
        %v5527 = vunpack.c.l.b16 %v5495
        %v5528 = vunpack.c.l.b16 %v5496
        %v5529 = vunpack.c.l.b16 %v5497
        %v5530 = vunpack.c.l.b16 %v5498
        %v5531 = vunpack.c.l.b16 %v5499
        %v5532 = vunpack.c.l.b16 %v5500
        %v5533 = vunpack.c.l.b16 %v5501
        %v5534 = vunpack.c.l.b16 %v5502
        %v5535 = vunpack.c.l.b16 %v5503
        %v5536 = vunpack.c.l.b16 %v5504
        %v5537 = vunpack.c.l.b16 %v5505
        %v5538 = vunpack.c.l.b16 %v5506
        %v5539 = vunpack.c.l.b16 %v5507
        %v5540 = vunpack.c.l.b16 %v5508
        %v5541 = vpack.c.b16 %v5526, %v5525
        %v5542 = vpack.c.b16 %v5528, %v5527
        %v5543 = vpack.c.b16 %v5530, %v5529
        %v5544 = vpack.c.b16 %v5532, %v5531
        %v5545 = vpack.c.b16 %v5534, %v5533
        %v5546 = vpack.c.b16 %v5536, %v5535
        %v5547 = vpack.c.b16 %v5538, %v5537
        %v5548 = vpack.c.b16 %v5540, %v5539
        %5557 = vmatpush.bf16.msra.mxu0 %v5548
        %5558 = vmatpush.bf16.msra.mxu0 %v5547
        %5559 = vmatpush.bf16.msra.mxu0 %v5546
        %5560 = vmatpush.bf16.msra.mxu0 %v5545
        %5561 = vmatpush.bf16.msra.mxu0 %v5544
        %5562 = vmatpush.bf16.msra.mxu0 %v5543
        %5563 = vmatpush.bf16.msra.mxu0 %v5542
        %5564 = vmatpush.bf16.msra.mxu0 %v5541
        %5565 = vmatmul.bf16.gmra.mxu0 %v5492
        %v5566 = vpop.f32.mrf.mxu0
        %v5567 = vadd.f32 0.0, %v5566
        %v5568 = vpop.f32.mrf.mxu0
        %5569 = vdwg.mxu0
        %v5586 = vunpack.c.l.b16 %v5474
        %v5587 = vunpack.c.l.b16 %v5475
        %v5588 = vunpack.c.l.b16 %v5476
        %v5589 = vunpack.c.l.b16 %v5477
        %v5590 = vunpack.c.l.b16 %v5478
        %v5591 = vunpack.c.l.b16 %v5479
        %v5592 = vunpack.c.l.b16 %v5480
        %v5593 = vunpack.c.l.b16 %v5481
        %v5594 = vunpack.c.l.b16 %v5482
        %v5595 = vunpack.c.l.b16 %v5483
        %v5596 = vunpack.c.l.b16 %v5484
        %v5597 = vunpack.c.l.b16 %v5485
        %v5598 = vunpack.c.l.b16 %v5486
        %v5599 = vunpack.c.l.b16 %v5487
        %v5600 = vunpack.c.l.b16 %v5488
        %v5601 = vunpack.c.l.b16 %v5489
        %v5602 = vpack.c.b16 %v5587, %v5586
        %v5603 = vpack.c.b16 %v5589, %v5588
        %v5604 = vpack.c.b16 %v5591, %v5590
        %v5605 = vpack.c.b16 %v5593, %v5592
        %v5606 = vpack.c.b16 %v5595, %v5594
        %v5607 = vpack.c.b16 %v5597, %v5596
        %v5608 = vpack.c.b16 %v5599, %v5598
        %v5609 = vpack.c.b16 %v5601, %v5600
        %5618 = vmatpush.bf16.msra.mxu0 %v5609
        %5619 = vmatpush.bf16.msra.mxu0 %v5608
        %5620 = vmatpush.bf16.msra.mxu0 %v5607
        %5621 = vmatpush.bf16.msra.mxu0 %v5606
        %5622 = vmatpush.bf16.msra.mxu0 %v5605
        %5623 = vmatpush.bf16.msra.mxu0 %v5604
        %5624 = vmatpush.bf16.msra.mxu0 %v5603
        %5625 = vmatpush.bf16.msra.mxu0 %v5602
        %5626 = vmatmul.bf16.gmra.mxu0 %v5473
        %v5627 = vpop.f32.mrf.mxu0
        %v5628 = vadd.f32 %v5567, %v5627
        %v5629 = vpop.f32.mrf.mxu0
        %5630 = vdwg.mxu0
        %v5631 = vrot.slane %v5628, 4
        %v5632 = vadd.f32 %v5628, %v5631
        %v5633 = vrot.slane %v5632, 2
        %v5634 = vadd.f32 %v5632, %v5633
        %v5635 = vrot.slane %v5634, 1
        %v5636 = vadd.f32 %v5634, %v5635
        %v5637 = vmul.f32 %v5628, %v5628
        %v5638 = vrot.slane %v5637, 4
        %v5639 = vadd.f32 %v5637, %v5638
        %v5640 = vrot.slane %v5639, 2
        %v5641 = vadd.f32 %v5639, %v5640
        %v5642 = vrot.slane %v5641, 1
        %v5643 = vadd.f32 %v5641, %v5642
        %v5644 = vsel %vm1867, %v5636, %v5643
        %v5645 = vld [vmem:[#allocation3] sm:$0xff]
        %v5646 = vld [vmem:[#allocation3 + $0x8] sm:$0xff]
        %v5647 = vld [vmem:[#allocation3 + $0x10] sm:$0xff]
        %v5648 = vld [vmem:[#allocation3 + $0x18] sm:$0xff]
        %v5649 = vld [vmem:[#allocation3 + $0x20] sm:$0xff]
        %v5650 = vld [vmem:[#allocation3 + $0x28] sm:$0xff]
        %v5651 = vld [vmem:[#allocation3 + $0x30] sm:$0xff]
        %v5652 = vld [vmem:[#allocation3 + $0x38] sm:$0xff]
        %v5653 = vld [vmem:[#allocation3 + $0x40] sm:$0xff]
        %v5654 = vld [vmem:[#allocation3 + $0x48] sm:$0xff]
        %v5655 = vld [vmem:[#allocation3 + $0x50] sm:$0xff]
        %v5656 = vld [vmem:[#allocation3 + $0x58] sm:$0xff]
        %v5657 = vld [vmem:[#allocation3 + $0x60] sm:$0xff]
        %v5658 = vld [vmem:[#allocation3 + $0x68] sm:$0xff]
        %v5659 = vld [vmem:[#allocation3 + $0x70] sm:$0xff]
        %v5660 = vld [vmem:[#allocation3 + $0x78] sm:$0xff]
        %5661 = vmatpush.msra.mxu0 %v5660
        %5662 = vmatpush.msra.mxu0 %v5659
        %5663 = vmatpush.msra.mxu0 %v5658
        %5664 = vmatpush.msra.mxu0 %v5657
        %5665 = vmatpush.msra.mxu0 %v5656
        %5666 = vmatpush.msra.mxu0 %v5655
        %5667 = vmatpush.msra.mxu0 %v5654
        %5668 = vmatpush.msra.mxu0 %v5653
        %5669 = vmatpush.msra.mxu0 %v5652
        %5670 = vmatpush.msra.mxu0 %v5651
        %5671 = vmatpush.msra.mxu0 %v5650
        %5672 = vmatpush.msra.mxu0 %v5649
        %5673 = vmatpush.msra.mxu0 %v5648
        %5674 = vmatpush.msra.mxu0 %v5647
        %5675 = vmatpush.msra.mxu0 %v5646
        %5676 = vmatpush.msra.mxu0 %v5645
        %5677 = vmatmul.f32.gmra.mxu0 %v5644
        %v5678 = vpop.f32.mrf.mxu0
        %v5679 = vadd.f32 0.0, %v5678
        %5680 = vdwg.mxu0
        %v5681 = vmul.f32 %v5679, %v5679
        %v5683 = vrot.slane %v5681, 7
        %v5685 = vsub.f32 %v5679, %v5683
        %v5686 = vmax.f32 %v5685, 0.0
        %v5687 = vperm.slane %v5679, 0
        %v5688 = vsub.f32 %v5628, %v5687
        %v5689 = vadd.f32 %v5686, 1e-05
        %v5690 = vrsqrt.pop %v5689
        %v5691 = vmul.f32 %v5690, %v5689
        %v5692 = vmul.f32 %v5691, %v5690
        %v5693 = vmul.f32 0.5, %v5692
        %v5694 = vsub.f32 1.5, %v5693
        %v5695 = vmul.f32 %v5690, %v5694
        %vm5696 = vweird.f32 %v5689
        %vm5697 = vweird.f32 %v5690
        %vm5698 = vmor %vm5696, %vm5697
        %v5699 = vsel %vm5698, %v5690, %v5695
        %v5700 = vld [vmem:[%s61] sm:$0x1]
        %v5702 = vrot.slane %v5700, 7
        %v5704 = vmul.f32 %v5699, %v5702
        %v5705 = vperm.slane %v5704, 1
        %v5706 = vmul.f32 %v5688, %v5705
        %v5707 = vld [vmem:[%s61 + $0x1] sm:$0x1]
        %v5708 = vperm.slane %v5707, 0
        %v5709 = vadd.f32 %v5706, %v5708
        %v5710 = vadd.f32 %v5709, %v5470
        %vm5711 = vcmp.ge.f32.partialorder %v5710, 0.0
        %v5712 = vmul.f32 %v5710, 0.01
        %v5713 = vsel %vm5711, %v5710, %v5712
        %v5714 = vpack.c.bf16 %v5713, %v5713
        %v5715 = vld [vmem:[#allocation23] sm:$0xf]
        %v5716 = vld [vmem:[#allocation23 + $0x4] sm:$0xf]
        %v5717 = vld [vmem:[#allocation23 + $0x8] sm:$0xf]
        %v5718 = vld [vmem:[#allocation23 + $0xc] sm:$0xf]
        %v5719 = vld [vmem:[#allocation23 + $0x10] sm:$0xf]
        %v5720 = vld [vmem:[#allocation23 + $0x14] sm:$0xf]
        %v5721 = vld [vmem:[#allocation23 + $0x18] sm:$0xf]
        %v5722 = vld [vmem:[#allocation23 + $0x1c] sm:$0xf]
        %v5723 = vld [vmem:[#allocation23 + $0x20] sm:$0xf]
        %v5724 = vld [vmem:[#allocation23 + $0x24] sm:$0xf]
        %v5725 = vld [vmem:[#allocation23 + $0x28] sm:$0xf]
        %v5726 = vld [vmem:[#allocation23 + $0x2c] sm:$0xf]
        %v5727 = vld [vmem:[#allocation23 + $0x30] sm:$0xf]
        %v5728 = vld [vmem:[#allocation23 + $0x34] sm:$0xf]
        %v5729 = vld [vmem:[#allocation23 + $0x38] sm:$0xf]
        %v5730 = vld [vmem:[#allocation23 + $0x3c] sm:$0xf]
        %v5747 = vunpack.c.l.b16 %v5715
        %v5748 = vunpack.c.l.b16 %v5716
        %v5749 = vunpack.c.l.b16 %v5717
        %v5750 = vunpack.c.l.b16 %v5718
        %v5751 = vunpack.c.l.b16 %v5719
        %v5752 = vunpack.c.l.b16 %v5720
        %v5753 = vunpack.c.l.b16 %v5721
        %v5754 = vunpack.c.l.b16 %v5722
        %v5755 = vunpack.c.l.b16 %v5723
        %v5756 = vunpack.c.l.b16 %v5724
        %v5757 = vunpack.c.l.b16 %v5725
        %v5758 = vunpack.c.l.b16 %v5726
        %v5759 = vunpack.c.l.b16 %v5727
        %v5760 = vunpack.c.l.b16 %v5728
        %v5761 = vunpack.c.l.b16 %v5729
        %v5762 = vunpack.c.l.b16 %v5730
        %v5763 = vpack.c.b16 %v5748, %v5747
        %v5764 = vpack.c.b16 %v5750, %v5749
        %v5765 = vpack.c.b16 %v5752, %v5751
        %v5766 = vpack.c.b16 %v5754, %v5753
        %v5767 = vpack.c.b16 %v5756, %v5755
        %v5768 = vpack.c.b16 %v5758, %v5757
        %v5769 = vpack.c.b16 %v5760, %v5759
        %v5770 = vpack.c.b16 %v5762, %v5761
        %5779 = vmatpush.bf16.msra.mxu0 %v5770
        %5780 = vmatpush.bf16.msra.mxu0 %v5769
        %5781 = vmatpush.bf16.msra.mxu0 %v5768
        %5782 = vmatpush.bf16.msra.mxu0 %v5767
        %5783 = vmatpush.bf16.msra.mxu0 %v5766
        %5784 = vmatpush.bf16.msra.mxu0 %v5765
        %5785 = vmatpush.bf16.msra.mxu0 %v5764
        %5786 = vmatpush.bf16.msra.mxu0 %v5763
        %5787 = vmatmul.bf16.gmra.mxu0 %v5714
        %v5788 = vpop.f32.mrf.mxu0
        %v5789 = vadd.f32 0.0, %v5788
        %v5790 = vpop.f32.mrf.mxu0
        %5791 = vdwg.mxu0
        %5792 = vst [vmem:[#allocation2] ss:$2 sm:$0xff] %v5789
        %s5793 = scalar_lea.vmem [#allocation23], 64
        %v5794 = vld [vmem:[%s5793] sm:$0xf]
        %v5795 = vld [vmem:[%s5793 + $0x4] sm:$0xf]
        %v5796 = vld [vmem:[%s5793 + $0x8] sm:$0xf]
        %v5797 = vld [vmem:[%s5793 + $0xc] sm:$0xf]
        %v5798 = vld [vmem:[%s5793 + $0x10] sm:$0xf]
        %v5799 = vld [vmem:[%s5793 + $0x14] sm:$0xf]
        %v5800 = vld [vmem:[%s5793 + $0x18] sm:$0xf]
        %v5801 = vld [vmem:[%s5793 + $0x1c] sm:$0xf]
        %v5802 = vld [vmem:[%s5793 + $0x20] sm:$0xf]
        %v5803 = vld [vmem:[%s5793 + $0x24] sm:$0xf]
        %v5804 = vld [vmem:[%s5793 + $0x28] sm:$0xf]
        %v5805 = vld [vmem:[%s5793 + $0x2c] sm:$0xf]
        %v5806 = vld [vmem:[%s5793 + $0x30] sm:$0xf]
        %v5807 = vld [vmem:[%s5793 + $0x34] sm:$0xf]
        %v5808 = vld [vmem:[%s5793 + $0x38] sm:$0xf]
        %v5809 = vld [vmem:[%s5793 + $0x3c] sm:$0xf]
        %v5826 = vunpack.c.l.b16 %v5794
        %v5827 = vunpack.c.l.b16 %v5795
        %v5828 = vunpack.c.l.b16 %v5796
        %v5829 = vunpack.c.l.b16 %v5797
        %v5830 = vunpack.c.l.b16 %v5798
        %v5831 = vunpack.c.l.b16 %v5799
        %v5832 = vunpack.c.l.b16 %v5800
        %v5833 = vunpack.c.l.b16 %v5801
        %v5834 = vunpack.c.l.b16 %v5802
        %v5835 = vunpack.c.l.b16 %v5803
        %v5836 = vunpack.c.l.b16 %v5804
        %v5837 = vunpack.c.l.b16 %v5805
        %v5838 = vunpack.c.l.b16 %v5806
        %v5839 = vunpack.c.l.b16 %v5807
        %v5840 = vunpack.c.l.b16 %v5808
        %v5841 = vunpack.c.l.b16 %v5809
        %v5842 = vpack.c.b16 %v5827, %v5826
        %v5843 = vpack.c.b16 %v5829, %v5828
        %v5844 = vpack.c.b16 %v5831, %v5830
        %v5845 = vpack.c.b16 %v5833, %v5832
        %v5846 = vpack.c.b16 %v5835, %v5834
        %v5847 = vpack.c.b16 %v5837, %v5836
        %v5848 = vpack.c.b16 %v5839, %v5838
        %v5849 = vpack.c.b16 %v5841, %v5840
        %5858 = vmatpush.bf16.msra.mxu0 %v5849
        %5859 = vmatpush.bf16.msra.mxu0 %v5848
        %5860 = vmatpush.bf16.msra.mxu0 %v5847
        %5861 = vmatpush.bf16.msra.mxu0 %v5846
        %5862 = vmatpush.bf16.msra.mxu0 %v5845
        %5863 = vmatpush.bf16.msra.mxu0 %v5844
        %5864 = vmatpush.bf16.msra.mxu0 %v5843
        %5865 = vmatpush.bf16.msra.mxu0 %v5842
        %5866 = vmatmul.bf16.gmra.mxu0 %v5714
        %v5867 = vpop.f32.mrf.mxu0
        %v5868 = vadd.f32 0.0, %v5867
        %v5869 = vpop.f32.mrf.mxu0
        %5870 = vdwg.mxu0
        %5871 = vst [vmem:[%s2651] ss:$2 sm:$0xff] %v5868
        %v5872 = vld [vmem:[#allocation2] sm:$0xff]
        %v5873 = vld [vmem:[#allocation2 + $0x8] sm:$0xff]
        %5874 = vst [vmem:[#allocation2] sm:$0x1] 0.0
        %5875 = vst [vmem:[#allocation2 + $0x11] sm:$0x1] 0.0
        %5876 = vst [vmem:[#allocation2 + $0x1] sm:$0xff] %v5872
        %5877 = vst [vmem:[#allocation2 + $0x9] sm:$0xff] %v5873
        %v5878 = vld [vmem:[#allocation2] sm:$0xff]
        %v5879 = vld [vmem:[#allocation2 + $0x8] sm:$0xff]
        %v5880 = vpack.c.bf16 %v5879, %v5878
        %v5881 = vld [vmem:[#allocation25] sm:$0xf]
        %v5882 = vld [vmem:[#allocation25 + $0x4] sm:$0xf]
        %v5883 = vld [vmem:[#allocation25 + $0x8] sm:$0xf]
        %v5884 = vld [vmem:[#allocation25 + $0xc] sm:$0xf]
        %v5885 = vld [vmem:[#allocation25 + $0x10] sm:$0xf]
        %v5886 = vld [vmem:[#allocation25 + $0x14] sm:$0xf]
        %v5887 = vld [vmem:[#allocation25 + $0x18] sm:$0xf]
        %v5888 = vld [vmem:[#allocation25 + $0x1c] sm:$0xf]
        %v5889 = vld [vmem:[#allocation25 + $0x20] sm:$0xf]
        %v5890 = vld [vmem:[#allocation25 + $0x24] sm:$0xf]
        %v5891 = vld [vmem:[#allocation25 + $0x28] sm:$0xf]
        %v5892 = vld [vmem:[#allocation25 + $0x2c] sm:$0xf]
        %v5893 = vld [vmem:[#allocation25 + $0x30] sm:$0xf]
        %v5894 = vld [vmem:[#allocation25 + $0x34] sm:$0xf]
        %v5895 = vld [vmem:[#allocation25 + $0x38] sm:$0xf]
        %v5896 = vld [vmem:[#allocation25 + $0x3c] sm:$0xf]
        %v5897 = vld [vmem:[#allocation2 + $0x1] sm:$0xff]
        %v5898 = vld [vmem:[#allocation2 + $0x9] sm:$0xff]
        %v5899 = vpack.c.bf16 %v5898, %v5897
        %s5900 = scalar_lea.vmem [#allocation25], 64
        %v5901 = vld [vmem:[%s5900] sm:$0xf]
        %v5902 = vld [vmem:[%s5900 + $0x4] sm:$0xf]
        %v5903 = vld [vmem:[%s5900 + $0x8] sm:$0xf]
        %v5904 = vld [vmem:[%s5900 + $0xc] sm:$0xf]
        %v5905 = vld [vmem:[%s5900 + $0x10] sm:$0xf]
        %v5906 = vld [vmem:[%s5900 + $0x14] sm:$0xf]
        %v5907 = vld [vmem:[%s5900 + $0x18] sm:$0xf]
        %v5908 = vld [vmem:[%s5900 + $0x1c] sm:$0xf]
        %v5909 = vld [vmem:[%s5900 + $0x20] sm:$0xf]
        %v5910 = vld [vmem:[%s5900 + $0x24] sm:$0xf]
        %v5911 = vld [vmem:[%s5900 + $0x28] sm:$0xf]
        %v5912 = vld [vmem:[%s5900 + $0x2c] sm:$0xf]
        %v5913 = vld [vmem:[%s5900 + $0x30] sm:$0xf]
        %v5914 = vld [vmem:[%s5900 + $0x34] sm:$0xf]
        %v5915 = vld [vmem:[%s5900 + $0x38] sm:$0xf]
        %v5916 = vld [vmem:[%s5900 + $0x3c] sm:$0xf]
        %v5933 = vunpack.c.l.b16 %v5901
        %v5934 = vunpack.c.l.b16 %v5902
        %v5935 = vunpack.c.l.b16 %v5903
        %v5936 = vunpack.c.l.b16 %v5904
        %v5937 = vunpack.c.l.b16 %v5905
        %v5938 = vunpack.c.l.b16 %v5906
        %v5939 = vunpack.c.l.b16 %v5907
        %v5940 = vunpack.c.l.b16 %v5908
        %v5941 = vunpack.c.l.b16 %v5909
        %v5942 = vunpack.c.l.b16 %v5910
        %v5943 = vunpack.c.l.b16 %v5911
        %v5944 = vunpack.c.l.b16 %v5912
        %v5945 = vunpack.c.l.b16 %v5913
        %v5946 = vunpack.c.l.b16 %v5914
        %v5947 = vunpack.c.l.b16 %v5915
        %v5948 = vunpack.c.l.b16 %v5916
        %v5949 = vpack.c.b16 %v5934, %v5933
        %v5950 = vpack.c.b16 %v5936, %v5935
        %v5951 = vpack.c.b16 %v5938, %v5937
        %v5952 = vpack.c.b16 %v5940, %v5939
        %v5953 = vpack.c.b16 %v5942, %v5941
        %v5954 = vpack.c.b16 %v5944, %v5943
        %v5955 = vpack.c.b16 %v5946, %v5945
        %v5956 = vpack.c.b16 %v5948, %v5947
        %5965 = vmatpush.bf16.msra.mxu0 %v5956
        %5966 = vmatpush.bf16.msra.mxu0 %v5955
        %5967 = vmatpush.bf16.msra.mxu0 %v5954
        %5968 = vmatpush.bf16.msra.mxu0 %v5953
        %5969 = vmatpush.bf16.msra.mxu0 %v5952
        %5970 = vmatpush.bf16.msra.mxu0 %v5951
        %5971 = vmatpush.bf16.msra.mxu0 %v5950
        %5972 = vmatpush.bf16.msra.mxu0 %v5949
        %5973 = vmatmul.bf16.gmra.mxu0 %v5899
        %v5974 = vpop.f32.mrf.mxu0
        %v5975 = vadd.f32 0.0, %v5974
        %v5976 = vpop.f32.mrf.mxu0
        %v5977 = vadd.f32 0.0, %v5976
        %5978 = vdwg.mxu0
        %v5995 = vunpack.c.l.b16 %v5881
        %v5996 = vunpack.c.l.b16 %v5882
        %v5997 = vunpack.c.l.b16 %v5883
        %v5998 = vunpack.c.l.b16 %v5884
        %v5999 = vunpack.c.l.b16 %v5885
        %v6000 = vunpack.c.l.b16 %v5886
        %v6001 = vunpack.c.l.b16 %v5887
        %v6002 = vunpack.c.l.b16 %v5888
        %v6003 = vunpack.c.l.b16 %v5889
        %v6004 = vunpack.c.l.b16 %v5890
        %v6005 = vunpack.c.l.b16 %v5891
        %v6006 = vunpack.c.l.b16 %v5892
        %v6007 = vunpack.c.l.b16 %v5893
        %v6008 = vunpack.c.l.b16 %v5894
        %v6009 = vunpack.c.l.b16 %v5895
        %v6010 = vunpack.c.l.b16 %v5896
        %v6011 = vpack.c.b16 %v5996, %v5995
        %v6012 = vpack.c.b16 %v5998, %v5997
        %v6013 = vpack.c.b16 %v6000, %v5999
        %v6014 = vpack.c.b16 %v6002, %v6001
        %v6015 = vpack.c.b16 %v6004, %v6003
        %v6016 = vpack.c.b16 %v6006, %v6005
        %v6017 = vpack.c.b16 %v6008, %v6007
        %v6018 = vpack.c.b16 %v6010, %v6009
        %6027 = vmatpush.bf16.msra.mxu0 %v6018
        %6028 = vmatpush.bf16.msra.mxu0 %v6017
        %6029 = vmatpush.bf16.msra.mxu0 %v6016
        %6030 = vmatpush.bf16.msra.mxu0 %v6015
        %6031 = vmatpush.bf16.msra.mxu0 %v6014
        %6032 = vmatpush.bf16.msra.mxu0 %v6013
        %6033 = vmatpush.bf16.msra.mxu0 %v6012
        %6034 = vmatpush.bf16.msra.mxu0 %v6011
        %6035 = vmatmul.bf16.gmra.mxu0 %v5880
        %v6036 = vpop.f32.mrf.mxu0
        %v6037 = vadd.f32 %v5975, %v6036
        %v6038 = vpop.f32.mrf.mxu0
        %v6039 = vadd.f32 %v5977, %v6038
        %6040 = vdwg.mxu0
        %v6041 = vld [vmem:[#allocation2 + $0x2] sm:$0xff]
        %v6042 = vld [vmem:[#allocation2 + $0xa] sm:$0xff]
        %v6043 = vpack.c.bf16 %v6042, %v6041
        %s6044 = scalar_lea.vmem [#allocation25], 128
        %v6045 = vld [vmem:[%s6044] sm:$0xf]
        %v6046 = vld [vmem:[%s6044 + $0x4] sm:$0xf]
        %v6047 = vld [vmem:[%s6044 + $0x8] sm:$0xf]
        %v6048 = vld [vmem:[%s6044 + $0xc] sm:$0xf]
        %v6049 = vld [vmem:[%s6044 + $0x10] sm:$0xf]
        %v6050 = vld [vmem:[%s6044 + $0x14] sm:$0xf]
        %v6051 = vld [vmem:[%s6044 + $0x18] sm:$0xf]
        %v6052 = vld [vmem:[%s6044 + $0x1c] sm:$0xf]
        %v6053 = vld [vmem:[%s6044 + $0x20] sm:$0xf]
        %v6054 = vld [vmem:[%s6044 + $0x24] sm:$0xf]
        %v6055 = vld [vmem:[%s6044 + $0x28] sm:$0xf]
        %v6056 = vld [vmem:[%s6044 + $0x2c] sm:$0xf]
        %v6057 = vld [vmem:[%s6044 + $0x30] sm:$0xf]
        %v6058 = vld [vmem:[%s6044 + $0x34] sm:$0xf]
        %v6059 = vld [vmem:[%s6044 + $0x38] sm:$0xf]
        %v6060 = vld [vmem:[%s6044 + $0x3c] sm:$0xf]
        %v6077 = vunpack.c.l.b16 %v6045
        %v6078 = vunpack.c.l.b16 %v6046
        %v6079 = vunpack.c.l.b16 %v6047
        %v6080 = vunpack.c.l.b16 %v6048
        %v6081 = vunpack.c.l.b16 %v6049
        %v6082 = vunpack.c.l.b16 %v6050
        %v6083 = vunpack.c.l.b16 %v6051
        %v6084 = vunpack.c.l.b16 %v6052
        %v6085 = vunpack.c.l.b16 %v6053
        %v6086 = vunpack.c.l.b16 %v6054
        %v6087 = vunpack.c.l.b16 %v6055
        %v6088 = vunpack.c.l.b16 %v6056
        %v6089 = vunpack.c.l.b16 %v6057
        %v6090 = vunpack.c.l.b16 %v6058
        %v6091 = vunpack.c.l.b16 %v6059
        %v6092 = vunpack.c.l.b16 %v6060
        %v6093 = vpack.c.b16 %v6078, %v6077
        %v6094 = vpack.c.b16 %v6080, %v6079
        %v6095 = vpack.c.b16 %v6082, %v6081
        %v6096 = vpack.c.b16 %v6084, %v6083
        %v6097 = vpack.c.b16 %v6086, %v6085
        %v6098 = vpack.c.b16 %v6088, %v6087
        %v6099 = vpack.c.b16 %v6090, %v6089
        %v6100 = vpack.c.b16 %v6092, %v6091
        %6109 = vmatpush.bf16.msra.mxu0 %v6100
        %6110 = vmatpush.bf16.msra.mxu0 %v6099
        %6111 = vmatpush.bf16.msra.mxu0 %v6098
        %6112 = vmatpush.bf16.msra.mxu0 %v6097
        %6113 = vmatpush.bf16.msra.mxu0 %v6096
        %6114 = vmatpush.bf16.msra.mxu0 %v6095
        %6115 = vmatpush.bf16.msra.mxu0 %v6094
        %6116 = vmatpush.bf16.msra.mxu0 %v6093
        %6117 = vmatmul.bf16.gmra.mxu0 %v6043
        %v6118 = vpop.f32.mrf.mxu0
        %v6119 = vadd.f32 0.0, %v6118
        %v6120 = vpop.f32.mrf.mxu0
        %v6121 = vadd.f32 0.0, %v6120
        %6122 = vdwg.mxu0
        %v6123 = vadd.f32 %v6037, %v6119
        %v6124 = vadd.f32 %v6039, %v6121
        %6125 = vst [vmem:[#allocation2] sm:$0x1] 0.0
        %6126 = vst [vmem:[#allocation2 + $0x11] sm:$0x1] 0.0
        %6127 = vst [vmem:[#allocation2 + $0x1] sm:$0xff] %v2627
        %6128 = vst [vmem:[#allocation2 + $0x9] sm:$0xff] %v2628
        %v6129 = vld [vmem:[#allocation2] sm:$0xff]
        %v6130 = vld [vmem:[#allocation2 + $0x8] sm:$0xff]
        %v6131 = vpack.c.bf16 %v6130, %v6129
        %v6132 = vld [vmem:[#allocation26] sm:$0xf]
        %v6133 = vld [vmem:[#allocation26 + $0x4] sm:$0xf]
        %v6134 = vld [vmem:[#allocation26 + $0x8] sm:$0xf]
        %v6135 = vld [vmem:[#allocation26 + $0xc] sm:$0xf]
        %v6136 = vld [vmem:[#allocation26 + $0x10] sm:$0xf]
        %v6137 = vld [vmem:[#allocation26 + $0x14] sm:$0xf]
        %v6138 = vld [vmem:[#allocation26 + $0x18] sm:$0xf]
        %v6139 = vld [vmem:[#allocation26 + $0x1c] sm:$0xf]
        %v6140 = vld [vmem:[#allocation26 + $0x20] sm:$0xf]
        %v6141 = vld [vmem:[#allocation26 + $0x24] sm:$0xf]
        %v6142 = vld [vmem:[#allocation26 + $0x28] sm:$0xf]
        %v6143 = vld [vmem:[#allocation26 + $0x2c] sm:$0xf]
        %v6144 = vld [vmem:[#allocation26 + $0x30] sm:$0xf]
        %v6145 = vld [vmem:[#allocation26 + $0x34] sm:$0xf]
        %v6146 = vld [vmem:[#allocation26 + $0x38] sm:$0xf]
        %v6147 = vld [vmem:[#allocation26 + $0x3c] sm:$0xf]
        %v6148 = vld [vmem:[#allocation2 + $0x1] sm:$0xff]
        %v6149 = vld [vmem:[#allocation2 + $0x9] sm:$0xff]
        %v6150 = vpack.c.bf16 %v6149, %v6148
        %s6151 = scalar_lea.vmem [#allocation26], 64
        %v6152 = vld [vmem:[%s6151] sm:$0xf]
        %v6153 = vld [vmem:[%s6151 + $0x4] sm:$0xf]
        %v6154 = vld [vmem:[%s6151 + $0x8] sm:$0xf]
        %v6155 = vld [vmem:[%s6151 + $0xc] sm:$0xf]
        %v6156 = vld [vmem:[%s6151 + $0x10] sm:$0xf]
        %v6157 = vld [vmem:[%s6151 + $0x14] sm:$0xf]
        %v6158 = vld [vmem:[%s6151 + $0x18] sm:$0xf]
        %v6159 = vld [vmem:[%s6151 + $0x1c] sm:$0xf]
        %v6160 = vld [vmem:[%s6151 + $0x20] sm:$0xf]
        %v6161 = vld [vmem:[%s6151 + $0x24] sm:$0xf]
        %v6162 = vld [vmem:[%s6151 + $0x28] sm:$0xf]
        %v6163 = vld [vmem:[%s6151 + $0x2c] sm:$0xf]
        %v6164 = vld [vmem:[%s6151 + $0x30] sm:$0xf]
        %v6165 = vld [vmem:[%s6151 + $0x34] sm:$0xf]
        %v6166 = vld [vmem:[%s6151 + $0x38] sm:$0xf]
        %v6167 = vld [vmem:[%s6151 + $0x3c] sm:$0xf]
        %v6184 = vunpack.c.l.b16 %v6152
        %v6185 = vunpack.c.l.b16 %v6153
        %v6186 = vunpack.c.l.b16 %v6154
        %v6187 = vunpack.c.l.b16 %v6155
        %v6188 = vunpack.c.l.b16 %v6156
        %v6189 = vunpack.c.l.b16 %v6157
        %v6190 = vunpack.c.l.b16 %v6158
        %v6191 = vunpack.c.l.b16 %v6159
        %v6192 = vunpack.c.l.b16 %v6160
        %v6193 = vunpack.c.l.b16 %v6161
        %v6194 = vunpack.c.l.b16 %v6162
        %v6195 = vunpack.c.l.b16 %v6163
        %v6196 = vunpack.c.l.b16 %v6164
        %v6197 = vunpack.c.l.b16 %v6165
        %v6198 = vunpack.c.l.b16 %v6166
        %v6199 = vunpack.c.l.b16 %v6167
        %v6200 = vpack.c.b16 %v6185, %v6184
        %v6201 = vpack.c.b16 %v6187, %v6186
        %v6202 = vpack.c.b16 %v6189, %v6188
        %v6203 = vpack.c.b16 %v6191, %v6190
        %v6204 = vpack.c.b16 %v6193, %v6192
        %v6205 = vpack.c.b16 %v6195, %v6194
        %v6206 = vpack.c.b16 %v6197, %v6196
        %v6207 = vpack.c.b16 %v6199, %v6198
        %6216 = vmatpush.bf16.msra.mxu0 %v6207
        %6217 = vmatpush.bf16.msra.mxu0 %v6206
        %6218 = vmatpush.bf16.msra.mxu0 %v6205
        %6219 = vmatpush.bf16.msra.mxu0 %v6204
        %6220 = vmatpush.bf16.msra.mxu0 %v6203
        %6221 = vmatpush.bf16.msra.mxu0 %v6202
        %6222 = vmatpush.bf16.msra.mxu0 %v6201
        %6223 = vmatpush.bf16.msra.mxu0 %v6200
        %6224 = vmatmul.bf16.gmra.mxu0 %v6150
        %v6225 = vpop.f32.mrf.mxu0
        %v6226 = vadd.f32 0.0, %v6225
        %v6227 = vpop.f32.mrf.mxu0
        %v6228 = vadd.f32 0.0, %v6227
        %6229 = vdwg.mxu0
        %v6246 = vunpack.c.l.b16 %v6132
        %v6247 = vunpack.c.l.b16 %v6133
        %v6248 = vunpack.c.l.b16 %v6134
        %v6249 = vunpack.c.l.b16 %v6135
        %v6250 = vunpack.c.l.b16 %v6136
        %v6251 = vunpack.c.l.b16 %v6137
        %v6252 = vunpack.c.l.b16 %v6138
        %v6253 = vunpack.c.l.b16 %v6139
        %v6254 = vunpack.c.l.b16 %v6140
        %v6255 = vunpack.c.l.b16 %v6141
        %v6256 = vunpack.c.l.b16 %v6142
        %v6257 = vunpack.c.l.b16 %v6143
        %v6258 = vunpack.c.l.b16 %v6144
        %v6259 = vunpack.c.l.b16 %v6145
        %v6260 = vunpack.c.l.b16 %v6146
        %v6261 = vunpack.c.l.b16 %v6147
        %v6262 = vpack.c.b16 %v6247, %v6246
        %v6263 = vpack.c.b16 %v6249, %v6248
        %v6264 = vpack.c.b16 %v6251, %v6250
        %v6265 = vpack.c.b16 %v6253, %v6252
        %v6266 = vpack.c.b16 %v6255, %v6254
        %v6267 = vpack.c.b16 %v6257, %v6256
        %v6268 = vpack.c.b16 %v6259, %v6258
        %v6269 = vpack.c.b16 %v6261, %v6260
        %6278 = vmatpush.bf16.msra.mxu0 %v6269
        %6279 = vmatpush.bf16.msra.mxu0 %v6268
        %6280 = vmatpush.bf16.msra.mxu0 %v6267
        %6281 = vmatpush.bf16.msra.mxu0 %v6266
        %6282 = vmatpush.bf16.msra.mxu0 %v6265
        %6283 = vmatpush.bf16.msra.mxu0 %v6264
        %6284 = vmatpush.bf16.msra.mxu0 %v6263
        %6285 = vmatpush.bf16.msra.mxu0 %v6262
        %6286 = vmatmul.bf16.gmra.mxu0 %v6131
        %v6287 = vpop.f32.mrf.mxu0
        %v6288 = vadd.f32 %v6226, %v6287
        %v6289 = vpop.f32.mrf.mxu0
        %v6290 = vadd.f32 %v6228, %v6289
        %6291 = vdwg.mxu0
        %v6292 = vld [vmem:[#allocation2 + $0x2] sm:$0xff]
        %v6293 = vld [vmem:[#allocation2 + $0xa] sm:$0xff]
        %v6294 = vpack.c.bf16 %v6293, %v6292
        %s6295 = scalar_lea.vmem [#allocation26], 128
        %v6296 = vld [vmem:[%s6295] sm:$0xf]
        %v6297 = vld [vmem:[%s6295 + $0x4] sm:$0xf]
        %v6298 = vld [vmem:[%s6295 + $0x8] sm:$0xf]
        %v6299 = vld [vmem:[%s6295 + $0xc] sm:$0xf]
        %v6300 = vld [vmem:[%s6295 + $0x10] sm:$0xf]
        %v6301 = vld [vmem:[%s6295 + $0x14] sm:$0xf]
        %v6302 = vld [vmem:[%s6295 + $0x18] sm:$0xf]
        %v6303 = vld [vmem:[%s6295 + $0x1c] sm:$0xf]
        %v6304 = vld [vmem:[%s6295 + $0x20] sm:$0xf]
        %v6305 = vld [vmem:[%s6295 + $0x24] sm:$0xf]
        %v6306 = vld [vmem:[%s6295 + $0x28] sm:$0xf]
        %v6307 = vld [vmem:[%s6295 + $0x2c] sm:$0xf]
        %v6308 = vld [vmem:[%s6295 + $0x30] sm:$0xf]
        %v6309 = vld [vmem:[%s6295 + $0x34] sm:$0xf]
        %v6310 = vld [vmem:[%s6295 + $0x38] sm:$0xf]
        %v6311 = vld [vmem:[%s6295 + $0x3c] sm:$0xf]
        %v6328 = vunpack.c.l.b16 %v6296
        %v6329 = vunpack.c.l.b16 %v6297
        %v6330 = vunpack.c.l.b16 %v6298
        %v6331 = vunpack.c.l.b16 %v6299
        %v6332 = vunpack.c.l.b16 %v6300
        %v6333 = vunpack.c.l.b16 %v6301
        %v6334 = vunpack.c.l.b16 %v6302
        %v6335 = vunpack.c.l.b16 %v6303
        %v6336 = vunpack.c.l.b16 %v6304
        %v6337 = vunpack.c.l.b16 %v6305
        %v6338 = vunpack.c.l.b16 %v6306
        %v6339 = vunpack.c.l.b16 %v6307
        %v6340 = vunpack.c.l.b16 %v6308
        %v6341 = vunpack.c.l.b16 %v6309
        %v6342 = vunpack.c.l.b16 %v6310
        %v6343 = vunpack.c.l.b16 %v6311
        %v6344 = vpack.c.b16 %v6329, %v6328
        %v6345 = vpack.c.b16 %v6331, %v6330
        %v6346 = vpack.c.b16 %v6333, %v6332
        %v6347 = vpack.c.b16 %v6335, %v6334
        %v6348 = vpack.c.b16 %v6337, %v6336
        %v6349 = vpack.c.b16 %v6339, %v6338
        %v6350 = vpack.c.b16 %v6341, %v6340
        %v6351 = vpack.c.b16 %v6343, %v6342
        %6360 = vmatpush.bf16.msra.mxu0 %v6351
        %6361 = vmatpush.bf16.msra.mxu0 %v6350
        %6362 = vmatpush.bf16.msra.mxu0 %v6349
        %6363 = vmatpush.bf16.msra.mxu0 %v6348
        %6364 = vmatpush.bf16.msra.mxu0 %v6347
        %6365 = vmatpush.bf16.msra.mxu0 %v6346
        %6366 = vmatpush.bf16.msra.mxu0 %v6345
        %6367 = vmatpush.bf16.msra.mxu0 %v6344
        %6368 = vmatmul.bf16.gmra.mxu0 %v6294
        %v6369 = vpop.f32.mrf.mxu0
        %v6370 = vadd.f32 0.0, %v6369
        %v6371 = vpop.f32.mrf.mxu0
        %v6372 = vadd.f32 0.0, %v6371
        %6373 = vdwg.mxu0
        %v6374 = vadd.f32 %v6288, %v6370
        %v6375 = vadd.f32 %v6290, %v6372
        %v6376 = vadd.f32 %v6123, %v6374
        %v6377 = vadd.f32 %v6124, %v6375
        %v6378 = vadd.f32 %v6376, %v6377
        %v6379 = vrot.slane %v6378, 4
        %v6380 = vadd.f32 %v6378, %v6379
        %v6381 = vrot.slane %v6380, 2
        %v6382 = vadd.f32 %v6380, %v6381
        %v6383 = vrot.slane %v6382, 1
        %v6384 = vadd.f32 %v6382, %v6383
        %v6385 = vmul.f32 %v6376, %v6376
        %v6386 = vmul.f32 %v6377, %v6377
        %v6387 = vadd.f32 %v6385, %v6386
        %v6388 = vrot.slane %v6387, 4
        %v6389 = vadd.f32 %v6387, %v6388
        %v6390 = vrot.slane %v6389, 2
        %v6391 = vadd.f32 %v6389, %v6390
        %v6392 = vrot.slane %v6391, 1
        %v6393 = vadd.f32 %v6391, %v6392
        %v6394 = vsel %vm1867, %v6384, %v6393
        %v6395 = vld [vmem:[%s5] sm:$0xff]
        %v6396 = vld [vmem:[%s5 + $0x8] sm:$0xff]
        %v6397 = vld [vmem:[%s5 + $0x10] sm:$0xff]
        %v6398 = vld [vmem:[%s5 + $0x18] sm:$0xff]
        %v6399 = vld [vmem:[%s5 + $0x20] sm:$0xff]
        %v6400 = vld [vmem:[%s5 + $0x28] sm:$0xff]
        %v6401 = vld [vmem:[%s5 + $0x30] sm:$0xff]
        %v6402 = vld [vmem:[%s5 + $0x38] sm:$0xff]
        %v6403 = vld [vmem:[%s5 + $0x40] sm:$0xff]
        %v6404 = vld [vmem:[%s5 + $0x48] sm:$0xff]
        %v6405 = vld [vmem:[%s5 + $0x50] sm:$0xff]
        %v6406 = vld [vmem:[%s5 + $0x58] sm:$0xff]
        %v6407 = vld [vmem:[%s5 + $0x60] sm:$0xff]
        %v6408 = vld [vmem:[%s5 + $0x68] sm:$0xff]
        %v6409 = vld [vmem:[%s5 + $0x70] sm:$0xff]
        %v6410 = vld [vmem:[%s5 + $0x78] sm:$0xff]
        %6411 = vmatpush.msra.mxu0 %v6410
        %6412 = vmatpush.msra.mxu0 %v6409
        %6413 = vmatpush.msra.mxu0 %v6408
        %6414 = vmatpush.msra.mxu0 %v6407
        %6415 = vmatpush.msra.mxu0 %v6406
        %6416 = vmatpush.msra.mxu0 %v6405
        %6417 = vmatpush.msra.mxu0 %v6404
        %6418 = vmatpush.msra.mxu0 %v6403
        %6419 = vmatpush.msra.mxu0 %v6402
        %6420 = vmatpush.msra.mxu0 %v6401
        %6421 = vmatpush.msra.mxu0 %v6400
        %6422 = vmatpush.msra.mxu0 %v6399
        %6423 = vmatpush.msra.mxu0 %v6398
        %6424 = vmatpush.msra.mxu0 %v6397
        %6425 = vmatpush.msra.mxu0 %v6396
        %6426 = vmatpush.msra.mxu0 %v6395
        %6427 = vmatmul.f32.gmra.mxu0 %v6394
        %v6428 = vpop.f32.mrf.mxu0
        %v6429 = vadd.f32 0.0, %v6428
        %6430 = vdwg.mxu0
        %v6431 = vmul.f32 %v6429, %v6429
        %v6433 = vrot.slane %v6431, 7
        %v6435 = vsub.f32 %v6429, %v6433
        %v6436 = vmax.f32 %v6435, 0.0
        %v6437 = vperm.slane %v6429, 0
        %v6438 = vsub.f32 %v6376, %v6437
        %v6439 = vsub.f32 %v6377, %v6437
        %v6440 = vadd.f32 %v6436, 1e-05
        %v6441 = vrsqrt.pop %v6440
        %v6442 = vmul.f32 %v6441, %v6440
        %v6443 = vmul.f32 %v6442, %v6441
        %v6444 = vmul.f32 0.5, %v6443
        %v6445 = vsub.f32 1.5, %v6444
        %v6446 = vmul.f32 %v6441, %v6445
        %vm6447 = vweird.f32 %v6440
        %vm6448 = vweird.f32 %v6441
        %vm6449 = vmor %vm6447, %vm6448
        %v6450 = vsel %vm6449, %v6441, %v6446
        %v6451 = vld [vmem:[%s69] sm:$0x1]
        %v6453 = vrot.slane %v6451, 7
        %v6455 = vmul.f32 %v6450, %v6453
        %v6456 = vperm.slane %v6455, 1
        %v6457 = vmul.f32 %v6438, %v6456
        %v6458 = vmul.f32 %v6439, %v6456
        %v6459 = vld [vmem:[%s69 + $0x1] sm:$0x1]
        %v6460 = vperm.slane %v6459, 0
        %v6461 = vadd.f32 %v6457, %v6460
        %v6462 = vadd.f32 %v6458, %v6460
        %vm6463 = vcmp.ge.f32.partialorder %v6461, 0.0
        %vm6464 = vcmp.ge.f32.partialorder %v6462, 0.0
        %v6465 = vmul.f32 %v6461, 0.01
        %v6466 = vmul.f32 %v6462, 0.01
        %v6467 = vsel %vm6463, %v6461, %v6465
        %v6468 = vsel %vm6464, %v6462, %v6466
        %6469 = vst [vmem:[#allocation2] sm:$0x1] 0.0
        %6470 = vst [vmem:[#allocation2 + $0x11] sm:$0x1] 0.0
        %6471 = vst [vmem:[#allocation2 + $0x1] sm:$0xff] %v6467
        %6472 = vst [vmem:[#allocation2 + $0x9] sm:$0xff] %v6468
        %v6473 = vld [vmem:[#allocation2] sm:$0xff]
        %v6474 = vld [vmem:[#allocation2 + $0x8] sm:$0xff]
        %v6475 = vpack.c.bf16 %v6474, %v6473
        %v6476 = vld [vmem:[#allocation28] sm:$0xf]
        %v6477 = vld [vmem:[#allocation28 + $0x4] sm:$0xf]
        %v6478 = vld [vmem:[#allocation28 + $0x8] sm:$0xf]
        %v6479 = vld [vmem:[#allocation28 + $0xc] sm:$0xf]
        %v6480 = vld [vmem:[#allocation28 + $0x10] sm:$0xf]
        %v6481 = vld [vmem:[#allocation28 + $0x14] sm:$0xf]
        %v6482 = vld [vmem:[#allocation28 + $0x18] sm:$0xf]
        %v6483 = vld [vmem:[#allocation28 + $0x1c] sm:$0xf]
        %v6484 = vld [vmem:[#allocation28 + $0x20] sm:$0xf]
        %v6485 = vld [vmem:[#allocation28 + $0x24] sm:$0xf]
        %v6486 = vld [vmem:[#allocation28 + $0x28] sm:$0xf]
        %v6487 = vld [vmem:[#allocation28 + $0x2c] sm:$0xf]
        %v6488 = vld [vmem:[#allocation28 + $0x30] sm:$0xf]
        %v6489 = vld [vmem:[#allocation28 + $0x34] sm:$0xf]
        %v6490 = vld [vmem:[#allocation28 + $0x38] sm:$0xf]
        %v6491 = vld [vmem:[#allocation28 + $0x3c] sm:$0xf]
        %v6492 = vld [vmem:[#allocation2 + $0x1] sm:$0xff]
        %v6493 = vld [vmem:[#allocation2 + $0x9] sm:$0xff]
        %v6494 = vpack.c.bf16 %v6493, %v6492
        %s6495 = scalar_lea.vmem [#allocation28], 64
        %v6496 = vld [vmem:[%s6495] sm:$0xf]
        %v6497 = vld [vmem:[%s6495 + $0x4] sm:$0xf]
        %v6498 = vld [vmem:[%s6495 + $0x8] sm:$0xf]
        %v6499 = vld [vmem:[%s6495 + $0xc] sm:$0xf]
        %v6500 = vld [vmem:[%s6495 + $0x10] sm:$0xf]
        %v6501 = vld [vmem:[%s6495 + $0x14] sm:$0xf]
        %v6502 = vld [vmem:[%s6495 + $0x18] sm:$0xf]
        %v6503 = vld [vmem:[%s6495 + $0x1c] sm:$0xf]
        %v6504 = vld [vmem:[%s6495 + $0x20] sm:$0xf]
        %v6505 = vld [vmem:[%s6495 + $0x24] sm:$0xf]
        %v6506 = vld [vmem:[%s6495 + $0x28] sm:$0xf]
        %v6507 = vld [vmem:[%s6495 + $0x2c] sm:$0xf]
        %v6508 = vld [vmem:[%s6495 + $0x30] sm:$0xf]
        %v6509 = vld [vmem:[%s6495 + $0x34] sm:$0xf]
        %v6510 = vld [vmem:[%s6495 + $0x38] sm:$0xf]
        %v6511 = vld [vmem:[%s6495 + $0x3c] sm:$0xf]
        %v6528 = vunpack.c.l.b16 %v6496
        %v6529 = vunpack.c.l.b16 %v6497
        %v6530 = vunpack.c.l.b16 %v6498
        %v6531 = vunpack.c.l.b16 %v6499
        %v6532 = vunpack.c.l.b16 %v6500
        %v6533 = vunpack.c.l.b16 %v6501
        %v6534 = vunpack.c.l.b16 %v6502
        %v6535 = vunpack.c.l.b16 %v6503
        %v6536 = vunpack.c.l.b16 %v6504
        %v6537 = vunpack.c.l.b16 %v6505
        %v6538 = vunpack.c.l.b16 %v6506
        %v6539 = vunpack.c.l.b16 %v6507
        %v6540 = vunpack.c.l.b16 %v6508
        %v6541 = vunpack.c.l.b16 %v6509
        %v6542 = vunpack.c.l.b16 %v6510
        %v6543 = vunpack.c.l.b16 %v6511
        %v6544 = vpack.c.b16 %v6529, %v6528
        %v6545 = vpack.c.b16 %v6531, %v6530
        %v6546 = vpack.c.b16 %v6533, %v6532
        %v6547 = vpack.c.b16 %v6535, %v6534
        %v6548 = vpack.c.b16 %v6537, %v6536
        %v6549 = vpack.c.b16 %v6539, %v6538
        %v6550 = vpack.c.b16 %v6541, %v6540
        %v6551 = vpack.c.b16 %v6543, %v6542
        %6560 = vmatpush.bf16.msra.mxu0 %v6551
        %6561 = vmatpush.bf16.msra.mxu0 %v6550
        %6562 = vmatpush.bf16.msra.mxu0 %v6549
        %6563 = vmatpush.bf16.msra.mxu0 %v6548
        %6564 = vmatpush.bf16.msra.mxu0 %v6547
        %6565 = vmatpush.bf16.msra.mxu0 %v6546
        %6566 = vmatpush.bf16.msra.mxu0 %v6545
        %6567 = vmatpush.bf16.msra.mxu0 %v6544
        %6568 = vmatmul.bf16.gmra.mxu0 %v6494
        %v6569 = vpop.f32.mrf.mxu0
        %v6570 = vadd.f32 0.0, %v6569
        %v6571 = vpop.f32.mrf.mxu0
        %v6572 = vadd.f32 0.0, %v6571
        %6573 = vdwg.mxu0
        %v6590 = vunpack.c.l.b16 %v6476
        %v6591 = vunpack.c.l.b16 %v6477
        %v6592 = vunpack.c.l.b16 %v6478
        %v6593 = vunpack.c.l.b16 %v6479
        %v6594 = vunpack.c.l.b16 %v6480
        %v6595 = vunpack.c.l.b16 %v6481
        %v6596 = vunpack.c.l.b16 %v6482
        %v6597 = vunpack.c.l.b16 %v6483
        %v6598 = vunpack.c.l.b16 %v6484
        %v6599 = vunpack.c.l.b16 %v6485
        %v6600 = vunpack.c.l.b16 %v6486
        %v6601 = vunpack.c.l.b16 %v6487
        %v6602 = vunpack.c.l.b16 %v6488
        %v6603 = vunpack.c.l.b16 %v6489
        %v6604 = vunpack.c.l.b16 %v6490
        %v6605 = vunpack.c.l.b16 %v6491
        %v6606 = vpack.c.b16 %v6591, %v6590
        %v6607 = vpack.c.b16 %v6593, %v6592
        %v6608 = vpack.c.b16 %v6595, %v6594
        %v6609 = vpack.c.b16 %v6597, %v6596
        %v6610 = vpack.c.b16 %v6599, %v6598
        %v6611 = vpack.c.b16 %v6601, %v6600
        %v6612 = vpack.c.b16 %v6603, %v6602
        %v6613 = vpack.c.b16 %v6605, %v6604
        %6622 = vmatpush.bf16.msra.mxu0 %v6613
        %6623 = vmatpush.bf16.msra.mxu0 %v6612
        %6624 = vmatpush.bf16.msra.mxu0 %v6611
        %6625 = vmatpush.bf16.msra.mxu0 %v6610
        %6626 = vmatpush.bf16.msra.mxu0 %v6609
        %6627 = vmatpush.bf16.msra.mxu0 %v6608
        %6628 = vmatpush.bf16.msra.mxu0 %v6607
        %6629 = vmatpush.bf16.msra.mxu0 %v6606
        %6630 = vmatmul.bf16.gmra.mxu0 %v6475
        %v6631 = vpop.f32.mrf.mxu0
        %v6632 = vadd.f32 %v6570, %v6631
        %v6633 = vpop.f32.mrf.mxu0
        %v6634 = vadd.f32 %v6572, %v6633
        %6635 = vdwg.mxu0
        %v6636 = vld [vmem:[#allocation2 + $0x2] sm:$0xff]
        %v6637 = vld [vmem:[#allocation2 + $0xa] sm:$0xff]
        %v6638 = vpack.c.bf16 %v6637, %v6636
        %s6639 = scalar_lea.vmem [#allocation28], 128
        %v6640 = vld [vmem:[%s6639] sm:$0xf]
        %v6641 = vld [vmem:[%s6639 + $0x4] sm:$0xf]
        %v6642 = vld [vmem:[%s6639 + $0x8] sm:$0xf]
        %v6643 = vld [vmem:[%s6639 + $0xc] sm:$0xf]
        %v6644 = vld [vmem:[%s6639 + $0x10] sm:$0xf]
        %v6645 = vld [vmem:[%s6639 + $0x14] sm:$0xf]
        %v6646 = vld [vmem:[%s6639 + $0x18] sm:$0xf]
        %v6647 = vld [vmem:[%s6639 + $0x1c] sm:$0xf]
        %v6648 = vld [vmem:[%s6639 + $0x20] sm:$0xf]
        %v6649 = vld [vmem:[%s6639 + $0x24] sm:$0xf]
        %v6650 = vld [vmem:[%s6639 + $0x28] sm:$0xf]
        %v6651 = vld [vmem:[%s6639 + $0x2c] sm:$0xf]
        %v6652 = vld [vmem:[%s6639 + $0x30] sm:$0xf]
        %v6653 = vld [vmem:[%s6639 + $0x34] sm:$0xf]
        %v6654 = vld [vmem:[%s6639 + $0x38] sm:$0xf]
        %v6655 = vld [vmem:[%s6639 + $0x3c] sm:$0xf]
        %v6672 = vunpack.c.l.b16 %v6640
        %v6673 = vunpack.c.l.b16 %v6641
        %v6674 = vunpack.c.l.b16 %v6642
        %v6675 = vunpack.c.l.b16 %v6643
        %v6676 = vunpack.c.l.b16 %v6644
        %v6677 = vunpack.c.l.b16 %v6645
        %v6678 = vunpack.c.l.b16 %v6646
        %v6679 = vunpack.c.l.b16 %v6647
        %v6680 = vunpack.c.l.b16 %v6648
        %v6681 = vunpack.c.l.b16 %v6649
        %v6682 = vunpack.c.l.b16 %v6650
        %v6683 = vunpack.c.l.b16 %v6651
        %v6684 = vunpack.c.l.b16 %v6652
        %v6685 = vunpack.c.l.b16 %v6653
        %v6686 = vunpack.c.l.b16 %v6654
        %v6687 = vunpack.c.l.b16 %v6655
        %v6688 = vpack.c.b16 %v6673, %v6672
        %v6689 = vpack.c.b16 %v6675, %v6674
        %v6690 = vpack.c.b16 %v6677, %v6676
        %v6691 = vpack.c.b16 %v6679, %v6678
        %v6692 = vpack.c.b16 %v6681, %v6680
        %v6693 = vpack.c.b16 %v6683, %v6682
        %v6694 = vpack.c.b16 %v6685, %v6684
        %v6695 = vpack.c.b16 %v6687, %v6686
        %6704 = vmatpush.bf16.msra.mxu0 %v6695
        %6705 = vmatpush.bf16.msra.mxu0 %v6694
        %6706 = vmatpush.bf16.msra.mxu0 %v6693
        %6707 = vmatpush.bf16.msra.mxu0 %v6692
        %6708 = vmatpush.bf16.msra.mxu0 %v6691
        %6709 = vmatpush.bf16.msra.mxu0 %v6690
        %6710 = vmatpush.bf16.msra.mxu0 %v6689
        %6711 = vmatpush.bf16.msra.mxu0 %v6688
        %6712 = vmatmul.bf16.gmra.mxu0 %v6638
        %v6713 = vpop.f32.mrf.mxu0
        %v6714 = vadd.f32 0.0, %v6713
        %v6715 = vpop.f32.mrf.mxu0
        %v6716 = vadd.f32 0.0, %v6715
        %6717 = vdwg.mxu0
        %v6718 = vadd.f32 %v6632, %v6714
        %v6719 = vadd.f32 %v6634, %v6716
        %v6720 = vadd.f32 %v6718, %v6719
        %v6721 = vrot.slane %v6720, 4
        %v6722 = vadd.f32 %v6720, %v6721
        %v6723 = vrot.slane %v6722, 2
        %v6724 = vadd.f32 %v6722, %v6723
        %v6725 = vrot.slane %v6724, 1
        %v6726 = vadd.f32 %v6724, %v6725
        %v6727 = vmul.f32 %v6718, %v6718
        %v6728 = vmul.f32 %v6719, %v6719
        %v6729 = vadd.f32 %v6727, %v6728
        %v6730 = vrot.slane %v6729, 4
        %v6731 = vadd.f32 %v6729, %v6730
        %v6732 = vrot.slane %v6731, 2
        %v6733 = vadd.f32 %v6731, %v6732
        %v6734 = vrot.slane %v6733, 1
        %v6735 = vadd.f32 %v6733, %v6734
        %v6736 = vsel %vm1867, %v6726, %v6735
        %v6737 = vld [vmem:[%s5] sm:$0xff]
        %v6738 = vld [vmem:[%s5 + $0x8] sm:$0xff]
        %v6739 = vld [vmem:[%s5 + $0x10] sm:$0xff]
        %v6740 = vld [vmem:[%s5 + $0x18] sm:$0xff]
        %v6741 = vld [vmem:[%s5 + $0x20] sm:$0xff]
        %v6742 = vld [vmem:[%s5 + $0x28] sm:$0xff]
        %v6743 = vld [vmem:[%s5 + $0x30] sm:$0xff]
        %v6744 = vld [vmem:[%s5 + $0x38] sm:$0xff]
        %v6745 = vld [vmem:[%s5 + $0x40] sm:$0xff]
        %v6746 = vld [vmem:[%s5 + $0x48] sm:$0xff]
        %v6747 = vld [vmem:[%s5 + $0x50] sm:$0xff]
        %v6748 = vld [vmem:[%s5 + $0x58] sm:$0xff]
        %v6749 = vld [vmem:[%s5 + $0x60] sm:$0xff]
        %v6750 = vld [vmem:[%s5 + $0x68] sm:$0xff]
        %v6751 = vld [vmem:[%s5 + $0x70] sm:$0xff]
        %v6752 = vld [vmem:[%s5 + $0x78] sm:$0xff]
        %6753 = vmatpush.msra.mxu0 %v6752
        %6754 = vmatpush.msra.mxu0 %v6751
        %6755 = vmatpush.msra.mxu0 %v6750
        %6756 = vmatpush.msra.mxu0 %v6749
        %6757 = vmatpush.msra.mxu0 %v6748
        %6758 = vmatpush.msra.mxu0 %v6747
        %6759 = vmatpush.msra.mxu0 %v6746
        %6760 = vmatpush.msra.mxu0 %v6745
        %6761 = vmatpush.msra.mxu0 %v6744
        %6762 = vmatpush.msra.mxu0 %v6743
        %6763 = vmatpush.msra.mxu0 %v6742
        %6764 = vmatpush.msra.mxu0 %v6741
        %6765 = vmatpush.msra.mxu0 %v6740
        %6766 = vmatpush.msra.mxu0 %v6739
        %6767 = vmatpush.msra.mxu0 %v6738
        %6768 = vmatpush.msra.mxu0 %v6737
        %6769 = vmatmul.f32.gmra.mxu0 %v6736
        %v6770 = vpop.f32.mrf.mxu0
        %v6771 = vadd.f32 0.0, %v6770
        %6772 = vdwg.mxu0
        %v6773 = vmul.f32 %v6771, %v6771
        %v6775 = vrot.slane %v6773, 7
        %v6777 = vsub.f32 %v6771, %v6775
        %v6778 = vmax.f32 %v6777, 0.0
        %v6779 = vperm.slane %v6771, 0
        %v6780 = vsub.f32 %v6718, %v6779
        %v6781 = vsub.f32 %v6719, %v6779
        %v6782 = vadd.f32 %v6778, 1e-05
        %v6783 = vrsqrt.pop %v6782
        %v6784 = vmul.f32 %v6783, %v6782
        %v6785 = vmul.f32 %v6784, %v6783
        %v6786 = vmul.f32 0.5, %v6785
        %v6787 = vsub.f32 1.5, %v6786
        %v6788 = vmul.f32 %v6783, %v6787
        %vm6789 = vweird.f32 %v6782
        %vm6790 = vweird.f32 %v6783
        %vm6791 = vmor %vm6789, %vm6790
        %v6792 = vsel %vm6791, %v6783, %v6788
        %v6793 = vld [vmem:[%s73] sm:$0x1]
        %v6795 = vrot.slane %v6793, 7
        %v6797 = vmul.f32 %v6792, %v6795
        %v6798 = vperm.slane %v6797, 1
        %v6799 = vmul.f32 %v6780, %v6798
        %v6800 = vmul.f32 %v6781, %v6798
        %v6801 = vld [vmem:[%s73 + $0x1] sm:$0x1]
        %v6802 = vperm.slane %v6801, 0
        %v6803 = vadd.f32 %v6799, %v6802
        %v6804 = vadd.f32 %v6800, %v6802
        %6805 = vst [vmem:[#allocation2] sm:$0xff] %v5872
        %6806 = vst [vmem:[#allocation2 + $0x8] sm:$0xff] %v5873
        %v6807 = vld [vmem:[#allocation2] sm:$0xff]
        %v6808 = vld [vmem:[#allocation2 + $0x8] sm:$0xff]
        %v6809 = vpack.c.bf16 %v6808, %v6807
        %v6810 = vld [vmem:[#allocation29] sm:$0xf]
        %v6811 = vld [vmem:[#allocation29 + $0x4] sm:$0xf]
        %v6812 = vld [vmem:[#allocation29 + $0x8] sm:$0xf]
        %v6813 = vld [vmem:[#allocation29 + $0xc] sm:$0xf]
        %v6814 = vld [vmem:[#allocation29 + $0x10] sm:$0xf]
        %v6815 = vld [vmem:[#allocation29 + $0x14] sm:$0xf]
        %v6816 = vld [vmem:[#allocation29 + $0x18] sm:$0xf]
        %v6817 = vld [vmem:[#allocation29 + $0x1c] sm:$0xf]
        %v6818 = vld [vmem:[#allocation29 + $0x20] sm:$0xf]
        %v6819 = vld [vmem:[#allocation29 + $0x24] sm:$0xf]
        %v6820 = vld [vmem:[#allocation29 + $0x28] sm:$0xf]
        %v6821 = vld [vmem:[#allocation29 + $0x2c] sm:$0xf]
        %v6822 = vld [vmem:[#allocation29 + $0x30] sm:$0xf]
        %v6823 = vld [vmem:[#allocation29 + $0x34] sm:$0xf]
        %v6824 = vld [vmem:[#allocation29 + $0x38] sm:$0xf]
        %v6825 = vld [vmem:[#allocation29 + $0x3c] sm:$0xf]
        %6826 = vst [vmem:[#allocation2] sm:$0xff] %v2627
        %6827 = vst [vmem:[#allocation2 + $0x8] sm:$0xff] %v2628
        %v6828 = vld [vmem:[#allocation2] sm:$0xff]
        %v6829 = vld [vmem:[#allocation2 + $0x8] sm:$0xff]
        %v6830 = vpack.c.bf16 %v6829, %v6828
        %v6831 = vld [vmem:[#allocation31] sm:$0xf]
        %v6832 = vld [vmem:[#allocation31 + $0x4] sm:$0xf]
        %v6833 = vld [vmem:[#allocation31 + $0x8] sm:$0xf]
        %v6834 = vld [vmem:[#allocation31 + $0xc] sm:$0xf]
        %v6835 = vld [vmem:[#allocation31 + $0x10] sm:$0xf]
        %v6836 = vld [vmem:[#allocation31 + $0x14] sm:$0xf]
        %v6837 = vld [vmem:[#allocation31 + $0x18] sm:$0xf]
        %v6838 = vld [vmem:[#allocation31 + $0x1c] sm:$0xf]
        %v6839 = vld [vmem:[#allocation31 + $0x20] sm:$0xf]
        %v6840 = vld [vmem:[#allocation31 + $0x24] sm:$0xf]
        %v6841 = vld [vmem:[#allocation31 + $0x28] sm:$0xf]
        %v6842 = vld [vmem:[#allocation31 + $0x2c] sm:$0xf]
        %v6843 = vld [vmem:[#allocation31 + $0x30] sm:$0xf]
        %v6844 = vld [vmem:[#allocation31 + $0x34] sm:$0xf]
        %v6845 = vld [vmem:[#allocation31 + $0x38] sm:$0xf]
        %v6846 = vld [vmem:[#allocation31 + $0x3c] sm:$0xf]
        %v6863 = vunpack.c.l.b16 %v6831
        %v6864 = vunpack.c.l.b16 %v6832
        %v6865 = vunpack.c.l.b16 %v6833
        %v6866 = vunpack.c.l.b16 %v6834
        %v6867 = vunpack.c.l.b16 %v6835
        %v6868 = vunpack.c.l.b16 %v6836
        %v6869 = vunpack.c.l.b16 %v6837
        %v6870 = vunpack.c.l.b16 %v6838
        %v6871 = vunpack.c.l.b16 %v6839
        %v6872 = vunpack.c.l.b16 %v6840
        %v6873 = vunpack.c.l.b16 %v6841
        %v6874 = vunpack.c.l.b16 %v6842
        %v6875 = vunpack.c.l.b16 %v6843
        %v6876 = vunpack.c.l.b16 %v6844
        %v6877 = vunpack.c.l.b16 %v6845
        %v6878 = vunpack.c.l.b16 %v6846
        %v6879 = vpack.c.b16 %v6864, %v6863
        %v6880 = vpack.c.b16 %v6866, %v6865
        %v6881 = vpack.c.b16 %v6868, %v6867
        %v6882 = vpack.c.b16 %v6870, %v6869
        %v6883 = vpack.c.b16 %v6872, %v6871
        %v6884 = vpack.c.b16 %v6874, %v6873
        %v6885 = vpack.c.b16 %v6876, %v6875
        %v6886 = vpack.c.b16 %v6878, %v6877
        %6895 = vmatpush.bf16.msra.mxu0 %v6886
        %6896 = vmatpush.bf16.msra.mxu0 %v6885
        %6897 = vmatpush.bf16.msra.mxu0 %v6884
        %6898 = vmatpush.bf16.msra.mxu0 %v6883
        %6899 = vmatpush.bf16.msra.mxu0 %v6882
        %6900 = vmatpush.bf16.msra.mxu0 %v6881
        %6901 = vmatpush.bf16.msra.mxu0 %v6880
        %6902 = vmatpush.bf16.msra.mxu0 %v6879
        %6903 = vmatmul.bf16.gmra.mxu0 %v6830
        %v6904 = vpop.f32.mrf.mxu0
        %v6905 = vadd.f32 0.0, %v6904
        %v6906 = vpop.f32.mrf.mxu0
        %v6907 = vadd.f32 0.0, %v6906
        %6908 = vdwg.mxu0
        %v6925 = vunpack.c.l.b16 %v6810
        %v6926 = vunpack.c.l.b16 %v6811
        %v6927 = vunpack.c.l.b16 %v6812
        %v6928 = vunpack.c.l.b16 %v6813
        %v6929 = vunpack.c.l.b16 %v6814
        %v6930 = vunpack.c.l.b16 %v6815
        %v6931 = vunpack.c.l.b16 %v6816
        %v6932 = vunpack.c.l.b16 %v6817
        %v6933 = vunpack.c.l.b16 %v6818
        %v6934 = vunpack.c.l.b16 %v6819
        %v6935 = vunpack.c.l.b16 %v6820
        %v6936 = vunpack.c.l.b16 %v6821
        %v6937 = vunpack.c.l.b16 %v6822
        %v6938 = vunpack.c.l.b16 %v6823
        %v6939 = vunpack.c.l.b16 %v6824
        %v6940 = vunpack.c.l.b16 %v6825
        %v6941 = vpack.c.b16 %v6926, %v6925
        %v6942 = vpack.c.b16 %v6928, %v6927
        %v6943 = vpack.c.b16 %v6930, %v6929
        %v6944 = vpack.c.b16 %v6932, %v6931
        %v6945 = vpack.c.b16 %v6934, %v6933
        %v6946 = vpack.c.b16 %v6936, %v6935
        %v6947 = vpack.c.b16 %v6938, %v6937
        %v6948 = vpack.c.b16 %v6940, %v6939
        %6957 = vmatpush.bf16.msra.mxu0 %v6948
        %6958 = vmatpush.bf16.msra.mxu0 %v6947
        %6959 = vmatpush.bf16.msra.mxu0 %v6946
        %6960 = vmatpush.bf16.msra.mxu0 %v6945
        %6961 = vmatpush.bf16.msra.mxu0 %v6944
        %6962 = vmatpush.bf16.msra.mxu0 %v6943
        %6963 = vmatpush.bf16.msra.mxu0 %v6942
        %6964 = vmatpush.bf16.msra.mxu0 %v6941
        %6965 = vmatmul.bf16.gmra.mxu0 %v6809
        %v6966 = vpop.f32.mrf.mxu0
        %v6967 = vadd.f32 %v6905, %v6966
        %v6968 = vpop.f32.mrf.mxu0
        %v6969 = vadd.f32 %v6907, %v6968
        %6970 = vdwg.mxu0
        %v6971 = vadd.f32 %v6967, %v6969
        %v6972 = vrot.slane %v6971, 4
        %v6973 = vadd.f32 %v6971, %v6972
        %v6974 = vrot.slane %v6973, 2
        %v6975 = vadd.f32 %v6973, %v6974
        %v6976 = vrot.slane %v6975, 1
        %v6977 = vadd.f32 %v6975, %v6976
        %v6978 = vmul.f32 %v6967, %v6967
        %v6979 = vmul.f32 %v6969, %v6969
        %v6980 = vadd.f32 %v6978, %v6979
        %v6981 = vrot.slane %v6980, 4
        %v6982 = vadd.f32 %v6980, %v6981
        %v6983 = vrot.slane %v6982, 2
        %v6984 = vadd.f32 %v6982, %v6983
        %v6985 = vrot.slane %v6984, 1
        %v6986 = vadd.f32 %v6984, %v6985
        %v6987 = vsel %vm1867, %v6977, %v6986
        %v6988 = vld [vmem:[%s5] sm:$0xff]
        %v6989 = vld [vmem:[%s5 + $0x8] sm:$0xff]
        %v6990 = vld [vmem:[%s5 + $0x10] sm:$0xff]
        %v6991 = vld [vmem:[%s5 + $0x18] sm:$0xff]
        %v6992 = vld [vmem:[%s5 + $0x20] sm:$0xff]
        %v6993 = vld [vmem:[%s5 + $0x28] sm:$0xff]
        %v6994 = vld [vmem:[%s5 + $0x30] sm:$0xff]
        %v6995 = vld [vmem:[%s5 + $0x38] sm:$0xff]
        %v6996 = vld [vmem:[%s5 + $0x40] sm:$0xff]
        %v6997 = vld [vmem:[%s5 + $0x48] sm:$0xff]
        %v6998 = vld [vmem:[%s5 + $0x50] sm:$0xff]
        %v6999 = vld [vmem:[%s5 + $0x58] sm:$0xff]
        %v7000 = vld [vmem:[%s5 + $0x60] sm:$0xff]
        %v7001 = vld [vmem:[%s5 + $0x68] sm:$0xff]
        %v7002 = vld [vmem:[%s5 + $0x70] sm:$0xff]
        %v7003 = vld [vmem:[%s5 + $0x78] sm:$0xff]
        %7004 = vmatpush.msra.mxu0 %v7003
        %7005 = vmatpush.msra.mxu0 %v7002
        %7006 = vmatpush.msra.mxu0 %v7001
        %7007 = vmatpush.msra.mxu0 %v7000
        %7008 = vmatpush.msra.mxu0 %v6999
        %7009 = vmatpush.msra.mxu0 %v6998
        %7010 = vmatpush.msra.mxu0 %v6997
        %7011 = vmatpush.msra.mxu0 %v6996
        %7012 = vmatpush.msra.mxu0 %v6995
        %7013 = vmatpush.msra.mxu0 %v6994
        %7014 = vmatpush.msra.mxu0 %v6993
        %7015 = vmatpush.msra.mxu0 %v6992
        %7016 = vmatpush.msra.mxu0 %v6991
        %7017 = vmatpush.msra.mxu0 %v6990
        %7018 = vmatpush.msra.mxu0 %v6989
        %7019 = vmatpush.msra.mxu0 %v6988
        %7020 = vmatmul.f32.gmra.mxu0 %v6987
        %v7021 = vpop.f32.mrf.mxu0
        %v7022 = vadd.f32 0.0, %v7021
        %7023 = vdwg.mxu0
        %v7024 = vmul.f32 %v7022, %v7022
        %v7026 = vrot.slane %v7024, 7
        %v7028 = vsub.f32 %v7022, %v7026
        %v7029 = vmax.f32 %v7028, 0.0
        %v7030 = vperm.slane %v7022, 0
        %v7031 = vsub.f32 %v6967, %v7030
        %v7032 = vsub.f32 %v6969, %v7030
        %v7033 = vadd.f32 %v7029, 1e-05
        %v7034 = vrsqrt.pop %v7033
        %v7035 = vmul.f32 %v7034, %v7033
        %v7036 = vmul.f32 %v7035, %v7034
        %v7037 = vmul.f32 0.5, %v7036
        %v7038 = vsub.f32 1.5, %v7037
        %v7039 = vmul.f32 %v7034, %v7038
        %vm7040 = vweird.f32 %v7033
        %vm7041 = vweird.f32 %v7034
        %vm7042 = vmor %vm7040, %vm7041
        %v7043 = vsel %vm7042, %v7034, %v7039
        %v7044 = vld [vmem:[%s79] sm:$0x1]
        %v7046 = vrot.slane %v7044, 7
        %v7048 = vmul.f32 %v7043, %v7046
        %v7049 = vperm.slane %v7048, 1
        %v7050 = vmul.f32 %v7031, %v7049
        %v7051 = vmul.f32 %v7032, %v7049
        %v7052 = vld [vmem:[%s79 + $0x1] sm:$0x1]
        %v7053 = vperm.slane %v7052, 0
        %v7054 = vadd.f32 %v7050, %v7053
        %v7055 = vadd.f32 %v7051, %v7053
        %v7056 = vadd.f32 %v7054, %v6803
        %v7057 = vadd.f32 %v7055, %v6804
        %vm7058 = vcmp.ge.f32.partialorder %v7056, 0.0
        %vm7059 = vcmp.ge.f32.partialorder %v7057, 0.0
        %v7060 = vmul.f32 %v7056, 0.01
        %v7061 = vmul.f32 %v7057, 0.01
        %v7062 = vsel %vm7058, %v7056, %v7060
        %v7063 = vsel %vm7059, %v7057, %v7061
        %7064 = vst [vmem:[#allocation2] sm:$0xff] %v7062
        %7065 = vst [vmem:[#allocation2 + $0x8] sm:$0xff] %v7063
        %v7066 = vld [vmem:[#allocation2] sm:$0xff]
        %v7067 = vld [vmem:[#allocation2 + $0x8] sm:$0xff]
        %v7068 = vpack.c.bf16 %v7067, %v7066
        %v7069 = vld [vmem:[#allocation32] sm:$0xf]
        %v7070 = vld [vmem:[#allocation32 + $0x4] sm:$0xf]
        %v7071 = vld [vmem:[#allocation32 + $0x8] sm:$0xf]
        %v7072 = vld [vmem:[#allocation32 + $0xc] sm:$0xf]
        %v7073 = vld [vmem:[#allocation32 + $0x10] sm:$0xf]
        %v7074 = vld [vmem:[#allocation32 + $0x14] sm:$0xf]
        %v7075 = vld [vmem:[#allocation32 + $0x18] sm:$0xf]
        %v7076 = vld [vmem:[#allocation32 + $0x1c] sm:$0xf]
        %v7077 = vld [vmem:[#allocation32 + $0x20] sm:$0xf]
        %v7078 = vld [vmem:[#allocation32 + $0x24] sm:$0xf]
        %v7079 = vld [vmem:[#allocation32 + $0x28] sm:$0xf]
        %v7080 = vld [vmem:[#allocation32 + $0x2c] sm:$0xf]
        %v7081 = vld [vmem:[#allocation32 + $0x30] sm:$0xf]
        %v7082 = vld [vmem:[#allocation32 + $0x34] sm:$0xf]
        %v7083 = vld [vmem:[#allocation32 + $0x38] sm:$0xf]
        %v7084 = vld [vmem:[#allocation32 + $0x3c] sm:$0xf]
        %v7085 = vld [vmem:[%s83] sm:$0x1]
        %v7087 = vperm.slane %v7085, 0
        %v7105 = vunpack.c.l.b16 %v7069
        %v7106 = vunpack.c.l.b16 %v7070
        %v7107 = vunpack.c.l.b16 %v7071
        %v7108 = vunpack.c.l.b16 %v7072
        %v7109 = vunpack.c.l.b16 %v7073
        %v7110 = vunpack.c.l.b16 %v7074
        %v7111 = vunpack.c.l.b16 %v7075
        %v7112 = vunpack.c.l.b16 %v7076
        %v7113 = vunpack.c.l.b16 %v7077
        %v7114 = vunpack.c.l.b16 %v7078
        %v7115 = vunpack.c.l.b16 %v7079
        %v7116 = vunpack.c.l.b16 %v7080
        %v7117 = vunpack.c.l.b16 %v7081
        %v7118 = vunpack.c.l.b16 %v7082
        %v7119 = vunpack.c.l.b16 %v7083
        %v7120 = vunpack.c.l.b16 %v7084
        %v7121 = vpack.c.b16 %v7106, %v7105
        %v7122 = vpack.c.b16 %v7108, %v7107
        %v7123 = vpack.c.b16 %v7110, %v7109
        %v7124 = vpack.c.b16 %v7112, %v7111
        %v7125 = vpack.c.b16 %v7114, %v7113
        %v7126 = vpack.c.b16 %v7116, %v7115
        %v7127 = vpack.c.b16 %v7118, %v7117
        %v7128 = vpack.c.b16 %v7120, %v7119
        %7137 = vmatpush.bf16.msra.mxu0 %v7128
        %7138 = vmatpush.bf16.msra.mxu0 %v7127
        %7139 = vmatpush.bf16.msra.mxu0 %v7126
        %7140 = vmatpush.bf16.msra.mxu0 %v7125
        %7141 = vmatpush.bf16.msra.mxu0 %v7124
        %7142 = vmatpush.bf16.msra.mxu0 %v7123
        %7143 = vmatpush.bf16.msra.mxu0 %v7122
        %7144 = vmatpush.bf16.msra.mxu0 %v7121
        %7145 = vmatmul.bf16.gmra.mxu0 %v7068
        %v7146 = vpop.f32.mrf.mxu0
        %v7147 = vadd.f32 %v7087, %v7146
        %v7148 = vpop.f32.mrf.mxu0
        %v7149 = vadd.f32 %v7087, %v7148
        %7150 = vdwg.mxu0
        %7151 = vst [vmem:[%s1597] sm:$0xff] %v7147
        %7152 = vst [vmem:[%s1597 + $0x8] sm:$0xff] %v7149
        %p7153 = scmp.lt.s32.totalorder %s107, 1
        %s7154 = scalar_select %p7153, %s107, 1
        %s7155 = smul.addr %s7154, 2
        %s7156 = smul.addr %s7155, 8
        %s7157 = scalar_lea.vmem %s85, %s7156
        // Predicated region
        $region269: #{forward.1} parent=187 // pred_check
          %p7158 = pneg %p1012
        $region270: #{forward.1} parent=187 // pred_check_branch
          %7160 = sbr.rel (%p7158) target = $region272
        $region271: #{forward.1} parent=187 // pred_region
          _
        $region272: #{forward.1} parent=187 // pred_fallthru
          _
      $region188: #{forward.1} parent=5 // pred_fallthru
        _
      %p7161 = scmp.le.s32.totalorder 2, %s102
      // Predicated region
      $region273: #{forward.1} parent=5 // pred_check
        %p7162 = pneg %p7161
      $region274: #{forward.1} parent=5 // pred_check_branch
        %7164 = sbr.rel (%p7162) target = $region276
      $region275: #{forward.1} parent=5 // pred_region
        %s7165 = ssub.s32 %s102, 2
        // Predicated region
        $region277: #{forward.1} parent=275 // pred_check
          %p7166 = pneg %p1018
        $region278: #{forward.1} parent=275 // pred_check_branch
          %7168 = sbr.rel (%p7166) target = $region280
        $region279: #{forward.1} parent=275 // pred_region
          %p7169 = scmp.lt.s32.totalorder %s108, 1
          %s7170 = scalar_select %p7169, %s108, 1
          %s7171 = smul.addr %s7170, 2
          %s7172 = smul.addr %s7171, 8
          %s7173 = scalar_lea.vmem %s85, %s7172
        $region280: #{forward.1} parent=275 // pred_fallthru
          _
      $region276: #{forward.1} parent=5 // pred_fallthru
        _
    $region6: #{forward.1} parent=1 // loop_footer
      %s106 = sadd.s32 1, %s102
    $region7: #{forward.1} parent=1 // loop_footer_branch
      %101 = sbr.rel target = $region3
    $region8: #{forward.1} parent=1 // loop_exit
      _
    %7174 = vsyncpa [#allocation4], 1
    %s7175 = scalar_lea.sflag [#allocation4], 1
    %7176 = vsyncpa %s7175, 1
    %7177 = vsyncpa [#allocation6], 1
    %7178 = vsyncpa [#allocation9], 1
    %7179 = vsyncpa [#allocation12], 1
    %7180 = vsyncpa [#allocation15], 1
    %7181 = vsyncpa [#allocation18], 1
    %7182 = vsyncpa [#allocation21], 1
    %7183 = vsyncpa [#allocation24], 1
    %7184 = vsyncpa [#allocation27], 1
    %7185 = vsyncpa [#allocation30], 1
    %7186 = vsyncpa [#allocation33], 1

</llo_original>
